<compile_context>
chip_gen: v6e
topology: v6e:2x2x1
jax: 0.10.0
libtpu: 0.0.40
codegen_flags: <defaults>
</compile_context>

<pallas_src>
import functools

import jax
import jax.numpy as jnp
from jax.experimental import pallas as pl
from jax.experimental.pallas import tpu as pltpu

_LN_EPS = 1e-5
_NEG = -1e30


# ----------------------------------------------------------------------------
# In-kernel helpers (operate on values, not refs)
# ----------------------------------------------------------------------------
def _dot(a, b):
    """bf16 MXU matmul with f32 accumulation (cast is a no-op if already bf16)."""
    return jnp.dot(a.astype(jnp.bfloat16), b.astype(jnp.bfloat16),
                   preferred_element_type=jnp.float32)


def _layernorm(x, g, b):
    mu = jnp.mean(x, axis=-1, keepdims=True)
    var = jnp.mean(jnp.square(x - mu), axis=-1, keepdims=True)
    return (x - mu) * jax.lax.rsqrt(var + _LN_EPS) * g + b


def _mlp_block(x, p):
    """Residual MLP: relu(LN2(W2 relu(LN1(W1 x))) + shortcut(x)).

    `x` is a single bf16 (rows, cin) array; the caller materializes the
    lane-dense concat so every matmul runs at full contraction depth."""
    h = _dot(x, p["w1"]) + p["b1"]
    h = jnp.maximum(_layernorm(h, p["g1"], p["be1"]), 0.0)
    out = _layernorm(_dot(h.astype(jnp.bfloat16), p["w2"]) + p["b2"],
                     p["g2"], p["be2"])
    if "ws" in p:
        sc = _layernorm(_dot(x, p["ws"]) + p["bs"], p["gs"], p["bes"])
    else:
        sc = x.astype(jnp.float32)            # identity shortcut (cin == cout)
    return jnp.maximum(out + sc, 0.0)


def _l2norm_rows(x):
    ss = jnp.sum(x * x, axis=-1, keepdims=True)
    return x * jax.lax.rsqrt(jnp.maximum(ss, jnp.float32(1e-24)))


# ----------------------------------------------------------------------------
# Kernel 1: fused SubGraph1 + SubGraph2
# ----------------------------------------------------------------------------
def _subgraph_kernel(treedef, x_ref, oh_ref, id_ref, *rest):
    (*param_refs, o_ref) = rest
    params = jax.tree_util.tree_unflatten(treedef, [r[...] for r in param_refs])

    n_vec = x_ref.shape[0]
    n_poly = oh_ref.shape[0]
    v_per_poly = n_vec // n_poly
    n_cat = oh_ref.shape[1]

    def poly_max(h):                      # (N, C) -> (P, C): reshape + VPU max
        return jnp.max(h.reshape(n_poly, v_per_poly, h.shape[-1]), axis=1)

    def poly_repeat(pf):                  # (P, C) -> (N, C): broadcast, no matmul
        c = pf.shape[-1]
        return jnp.broadcast_to(pf[:, None, :],
                                (n_poly, v_per_poly, c)).reshape(n_vec, c)

    # ------------------------------ SubGraph1 -------------------------------
    x_in = x_ref[...].astype(jnp.bfloat16)                       # (N, Cin)
    for lp in params["sg1_layers"]:
        h1 = _mlp_block(x_in, lp)                                # (N, 64) f32
        pooled = poly_max(h1)                                    # (P, 64)
        x_in = jnp.concatenate([h1, poly_repeat(pooled)],
                               axis=-1).astype(jnp.bfloat16)     # (N, 128) bf16
    w, b = params["sg1_lin"]
    h = _dot(x_in, w) + b                                        # (N, 64) f32
    sg1 = _l2norm_rows(poly_max(h))                              # (P, 64) f32

    # ------------------------------ SubGraph2 -------------------------------
    oh = oh_ref[...]                                             # (P, n_cat)

    def cat_pool_gather(h1):                                     # (P, C) -> (P, C)
        rows = []
        for c in range(n_cat):                                   # small & static
            m = oh[:, c:c + 1]                                   # (P, 1)
            rows.append(jnp.max(jnp.where(m > 0.5, h1, jnp.float32(_NEG)),
                                axis=0, keepdims=True))          # (1, C)
        cat_max = jnp.concatenate(rows, axis=0)                  # (n_cat, C)
        # one-hot gather matmul; empty categories contribute exactly zero.
        return _dot(oh, cat_max)                                 # (P, C)

    x2 = sg1.astype(jnp.bfloat16)                                # (P, 64)
    for lp in params["sg2_layers"]:
        h1 = _mlp_block(x2, lp)                                  # (P, 64)
        x2 = jnp.concatenate([h1, cat_pool_gather(h1)],
                             axis=-1).astype(jnp.bfloat16)       # (P, 128)
    w, b = params["sg2_lin"]
    sg2 = _l2norm_rows(_dot(x2, w) + b)                          # (P, 64) f32

    # single unmasked full-lane store: [sg2 | identifier(lane-padded)] (P, 128)
    o_ref[...] = jnp.concatenate([sg2, id_ref[...]], axis=-1)


# ----------------------------------------------------------------------------
# Kernel 2: masked global attention (row-0 query only) + trajectory head
# ----------------------------------------------------------------------------
def _attn_head_kernel(treedef, gx_ref, vl_ref, *rest):
    (*param_refs, o_ref) = rest
    p = jax.tree_util.tree_unflatten(treedef, [r[...] for r in param_refs])

    gb, t_len, d_pad = gx_ref.shape                              # graphs/block, T, 128
    x3 = gx_ref[...]                                             # (GB, T, 128) f32
    x2 = x3.reshape(gb * t_len, d_pad).astype(jnp.bfloat16)

    # K/V for every polyline (fused K=128 matmul); Q only for the target
    # (row-0) polyline of each graph -> scores are (GB, GB*T), not (T, T).
    kv = _dot(x2, p["gg"]["wkv"]) + p["gg"]["bkv"]               # (GB*T, 2d) f32
    d = kv.shape[-1] // 2
    k, v = kv[:, :d], kv[:, d:]
    q = _dot(x3[:, 0, :].astype(jnp.bfloat16), p["gg"]["wq"]) + p["gg"]["bq"]

    scores = jax.lax.dot_general(
        q.astype(jnp.bfloat16), k.astype(jnp.bfloat16),
        dimension_numbers=(((1,), (1,)), ((), ())),
        preferred_element_type=jnp.float32)                      # (GB, GB*T)

    # block-diagonal + valid_len mask: graph g attends only to its own first
    # valid_len[g] polylines.
    col = jax.lax.broadcasted_iota(jnp.int32, scores.shape, 1)
    row = jax.lax.broadcasted_iota(jnp.int32, scores.shape, 0)
    local = col - row * t_len
    vl = vl_ref[...]                                             # (GB, 1) int32
    mask = (local >= 0) & (local < t_len) & (local < vl)
    scores = jnp.where(mask, scores, jnp.float32(_NEG))

    scores = scores - jnp.max(scores, axis=-1, keepdims=True)
    e = jnp.exp(scores)
    attn = e * pl.reciprocal(jnp.sum(e, axis=-1, keepdims=True), approx=True)
    feat = _dot(attn, v)                                         # (GB, d) f32

    ht = _mlp_block(feat.astype(jnp.bfloat16), p["traj_mlp"])    # (GB, d)
    wl, bl = p["traj_lin"]
    o_ref[...] = _dot(ht.astype(jnp.bfloat16), wl) + bl          # (GB, 128)


# ----------------------------------------------------------------------------
# Parameter initialization (PyTorch-default-style uniform; weights in bf16)
# ----------------------------------------------------------------------------
def init_linear(key, cin, cout):
    k1, k2 = jax.random.split(key)
    bound = 1.0 / (cin ** 0.5)
    w = jax.random.uniform(k1, (cin, cout), jnp.float32, -bound, bound)
    b = jax.random.uniform(k2, (1, cout), jnp.float32, -bound, bound)
    return w.astype(jnp.bfloat16), b


def init_mlp(key, cin, cout, hidden):
    ks = jax.random.split(key, 3)
    p = {}
    p["w1"], p["b1"] = init_linear(ks[0], cin, hidden)
    p["g1"], p["be1"] = jnp.ones((1, hidden)), jnp.zeros((1, hidden))
    p["w2"], p["b2"] = init_linear(ks[1], hidden, cout)
    p["g2"], p["be2"] = jnp.ones((1, cout)), jnp.zeros((1, cout))
    if cin != cout:      # nn.Linear + LayerNorm shortcut, else identity
        p["ws"], p["bs"] = init_linear(ks[2], cin, cout)
        p["gs"], p["bes"] = jnp.ones((1, cout)), jnp.zeros((1, cout))
    return p


def init_vectornet(key, in_channels=8, horizon=50, num_subgraph_layers=3,
                   subgraph_width=64, global_graph_width=64,
                   traj_pred_mlp_width=64):
    keys = jax.random.split(key, 16)
    params = {}
    # SubGraph1: MLP stack with per-cluster max-pool concat
    sg1, cin = [], in_channels
    for i in range(num_subgraph_layers):
        sg1.append(init_mlp(keys[i], cin, subgraph_width, subgraph_width))
        cin = subgraph_width * 2
    params["sg1_layers"] = sg1
    params["sg1_lin"] = init_linear(keys[3], subgraph_width * 2, subgraph_width)
    # SubGraph2: MLP stack with per-category max-pool concat
    sg2, cin = [], subgraph_width
    for i in range(num_subgraph_layers):
        sg2.append(init_mlp(keys[4 + i], cin, subgraph_width, subgraph_width))
        cin = subgraph_width * 2
    params["sg2_layers"] = sg2
    params["sg2_lin"] = init_linear(keys[7], subgraph_width * 2, subgraph_width)
    # GlobalGraph: one self-attention layer; weights padded to a lane-dense
    # 128-row input so the subgraph output can be stored 128-wide.
    gin = subgraph_width + 2
    gin_pad = 128
    wq, bq = init_linear(keys[8], gin, global_graph_width)
    wk, bk = init_linear(keys[9], gin, global_graph_width)
    wv, bv = init_linear(keys[10], gin, global_graph_width)
    wq_pad = jnp.zeros((gin_pad, global_graph_width), jnp.bfloat16).at[:gin].set(wq)
    wkv = jnp.concatenate([wk, wv], axis=1)                              # (gin, 2d)
    wkv_pad = jnp.zeros((gin_pad, 2 * global_graph_width),
                        jnp.bfloat16).at[:gin].set(wkv)                  # (128, 2d)
    bkv = jnp.concatenate([bk, bv], axis=1)                              # (1, 2d)
    params["gg"] = {"wq": wq_pad, "bq": bq, "wkv": wkv_pad, "bkv": bkv}
    # trajectory prediction head (output lane-padded to 128)
    params["traj_mlp"] = init_mlp(keys[11], global_graph_width,
                                  traj_pred_mlp_width, traj_pred_mlp_width)
    wl, bl = init_linear(keys[12], traj_pred_mlp_width, horizon * 2)
    h2 = horizon * 2
    h2_pad = ((h2 + 127) // 128) * 128
    wl_pad = jnp.zeros((traj_pred_mlp_width, h2_pad), jnp.bfloat16).at[:, :h2].set(wl)
    bl_pad = jnp.zeros((1, h2_pad), jnp.float32).at[:, :h2].set(bl)
    params["traj_lin"] = (wl_pad, bl_pad)
    params["traj_out_dim"] = h2
    return params


# ----------------------------------------------------------------------------
# VectorNet forward (eval mode, with_aux=False) — two pallas_calls total
# ----------------------------------------------------------------------------
def vectornet_forward(params, x, cluster, category, identifier, valid_len,
                      batch_size, time_step_len, num_categories):
    del cluster  # contiguous batch-major layout assumed (see TODO above)
    n_poly = batch_size * time_step_len
    d_pad = params["gg"]["wq"].shape[0]                  # lane-dense width (128)
    sub_w = params["sg2_lin"][0].shape[1]                # 64
    h2 = params["traj_out_dim"]
    h2_pad = params["traj_lin"][0].shape[1]

    onehot = jax.nn.one_hot(category, num_categories, dtype=jnp.float32)
    ident_pad = jnp.zeros((n_poly, d_pad - sub_w), jnp.float32)
    ident_pad = ident_pad.at[:, :identifier.shape[1]].set(identifier)

    # ---- kernel 1: SubGraph1 + SubGraph2 (single VMEM-resident kernel) -----
    sub_tree = {"sg1_layers": params["sg1_layers"],
                "sg1_lin": params["sg1_lin"],
                "sg2_layers": params["sg2_layers"],
                "sg2_lin": params["sg2_lin"]}
    flat, treedef = jax.tree_util.tree_flatten(sub_tree)
    gx = pl.pallas_call(
        functools.partial(_subgraph_kernel, treedef),
        out_shape=jax.ShapeDtypeStruct((n_poly, d_pad), jnp.float32),
        compiler_params=pltpu.CompilerParams(vmem_limit_bytes=64 * 1024 * 1024),
    )(x, onehot, ident_pad, *flat)                       # (P, 128) = [sg2|id|pad]

    # ---- kernel 2: masked attention + trajectory head (grid over graphs) ---
    gx3 = gx.reshape(batch_size, time_step_len, d_pad)
    vl2 = valid_len.astype(jnp.int32).reshape(batch_size, 1)

    graphs_per_step = batch_size if batch_size <= 8 else 8
    assert batch_size % graphs_per_step == 0, \
        "TODO(synk): pad the batch to a multiple of 8 graphs"
    n_steps = batch_size // graphs_per_step

    head_tree = {"gg": params["gg"], "traj_mlp": params["traj_mlp"],
                 "traj_lin": params["traj_lin"]}
    flat2, treedef2 = jax.tree_util.tree_flatten(head_tree)

    pred_pad = pl.pallas_call(
        functools.partial(_attn_head_kernel, treedef2),
        out_shape=jax.ShapeDtypeStruct((batch_size, h2_pad), jnp.float32),
        grid=(n_steps,),
        in_specs=[pl.BlockSpec((graphs_per_step, time_step_len, d_pad),
                               lambda b: (b, 0, 0)),
                  pl.BlockSpec((graphs_per_step, 1), lambda b: (b, 0))]
                 + [pl.BlockSpec(a.shape, lambda b, nd=a.ndim: (0,) * nd)
                    for a in flat2],
        out_specs=pl.BlockSpec((graphs_per_step, h2_pad), lambda b: (b, 0)),
        compiler_params=pltpu.CompilerParams(
            dimension_semantics=("parallel",)),          # both v7x TensorCores
    )(gx3, vl2, *flat2)

    pred = pred_pad[:, :h2]
    return {"pred": pred, "aux_out": None, "aux_gt": None}


# ----------------------------------------------------------------------------
if __name__ == "__main__":
    key = jax.random.PRNGKey(0)
    B, T, V, Cin = 2, 8, 4, 8          # graphs, polylines/graph, vectors/polyline
    P = B * T                          # total polylines
    N = P * V                          # total vectors
    horizon = 50
    n_cat = 4

    kx, kid, kcat, kp = jax.random.split(key, 4)
    x = jax.random.normal(kx, (N, Cin), jnp.float32)
    cluster = jnp.repeat(jnp.arange(P, dtype=jnp.int32), V)          # (N,)
    category = jax.random.randint(kcat, (P,), 0, n_cat, jnp.int32)   # (P,)
    identifier = jax.random.normal(kid, (P, 2), jnp.float32)         # (P, 2)
    valid_len = jnp.array([T, T - 2], jnp.int32)                     # (B,)

    params = init_vectornet(kp, in_channels=Cin, horizon=horizon)
    out = vectornet_forward(params, x, cluster, category, identifier,
                            valid_len, B, T, n_cat)
    pred = jax.block_until_ready(out["pred"])
    assert pred.shape == (B, horizon * 2)
    assert bool(jnp.all(jnp.isfinite(pred)))
    print("KERNEL_OK")
</pallas_src>

<mosaic_0001>
module attributes {stable_mosaic.version = 11 : i64} {
  func.func @_subgraph_kernel(%arg0: memref<64x8xf32, #tpu.memory_space<vmem>>, %arg1: memref<16x4xf32, #tpu.memory_space<vmem>>, %arg2: memref<16x64xf32, #tpu.memory_space<vmem>>, %arg3: memref<1x64xf32, #tpu.memory_space<vmem>>, %arg4: memref<1x64xf32, #tpu.memory_space<vmem>>, %arg5: memref<1x64xf32, #tpu.memory_space<vmem>>, %arg6: memref<1x64xf32, #tpu.memory_space<vmem>>, %arg7: memref<1x64xf32, #tpu.memory_space<vmem>>, %arg8: memref<1x64xf32, #tpu.memory_space<vmem>>, %arg9: memref<1x64xf32, #tpu.memory_space<vmem>>, %arg10: memref<1x64xf32, #tpu.memory_space<vmem>>, %arg11: memref<1x64xf32, #tpu.memory_space<vmem>>, %arg12: memref<8x64xbf16, #tpu.memory_space<vmem>>, %arg13: memref<64x64xbf16, #tpu.memory_space<vmem>>, %arg14: memref<8x64xbf16, #tpu.memory_space<vmem>>, %arg15: memref<1x64xf32, #tpu.memory_space<vmem>>, %arg16: memref<1x64xf32, #tpu.memory_space<vmem>>, %arg17: memref<1x64xf32, #tpu.memory_space<vmem>>, %arg18: memref<1x64xf32, #tpu.memory_space<vmem>>, %arg19: memref<1x64xf32, #tpu.memory_space<vmem>>, %arg20: memref<1x64xf32, #tpu.memory_space<vmem>>, %arg21: memref<1x64xf32, #tpu.memory_space<vmem>>, %arg22: memref<1x64xf32, #tpu.memory_space<vmem>>, %arg23: memref<1x64xf32, #tpu.memory_space<vmem>>, %arg24: memref<128x64xbf16, #tpu.memory_space<vmem>>, %arg25: memref<64x64xbf16, #tpu.memory_space<vmem>>, %arg26: memref<128x64xbf16, #tpu.memory_space<vmem>>, %arg27: memref<1x64xf32, #tpu.memory_space<vmem>>, %arg28: memref<1x64xf32, #tpu.memory_space<vmem>>, %arg29: memref<1x64xf32, #tpu.memory_space<vmem>>, %arg30: memref<1x64xf32, #tpu.memory_space<vmem>>, %arg31: memref<1x64xf32, #tpu.memory_space<vmem>>, %arg32: memref<1x64xf32, #tpu.memory_space<vmem>>, %arg33: memref<1x64xf32, #tpu.memory_space<vmem>>, %arg34: memref<1x64xf32, #tpu.memory_space<vmem>>, %arg35: memref<1x64xf32, #tpu.memory_space<vmem>>, %arg36: memref<128x64xbf16, #tpu.memory_space<vmem>>, %arg37: memref<64x64xbf16, #tpu.memory_space<vmem>>, %arg38: memref<128x64xbf16, #tpu.memory_space<vmem>>, %arg39: memref<128x64xbf16, #tpu.memory_space<vmem>>, %arg40: memref<1x64xf32, #tpu.memory_space<vmem>>, %arg41: memref<1x64xf32, #tpu.memory_space<vmem>>, %arg42: memref<1x64xf32, #tpu.memory_space<vmem>>, %arg43: memref<1x64xf32, #tpu.memory_space<vmem>>, %arg44: memref<1x64xf32, #tpu.memory_space<vmem>>, %arg45: memref<1x64xf32, #tpu.memory_space<vmem>>, %arg46: memref<1x64xf32, #tpu.memory_space<vmem>>, %arg47: memref<64x64xbf16, #tpu.memory_space<vmem>>, %arg48: memref<64x64xbf16, #tpu.memory_space<vmem>>, %arg49: memref<1x64xf32, #tpu.memory_space<vmem>>, %arg50: memref<1x64xf32, #tpu.memory_space<vmem>>, %arg51: memref<1x64xf32, #tpu.memory_space<vmem>>, %arg52: memref<1x64xf32, #tpu.memory_space<vmem>>, %arg53: memref<1x64xf32, #tpu.memory_space<vmem>>, %arg54: memref<1x64xf32, #tpu.memory_space<vmem>>, %arg55: memref<1x64xf32, #tpu.memory_space<vmem>>, %arg56: memref<1x64xf32, #tpu.memory_space<vmem>>, %arg57: memref<1x64xf32, #tpu.memory_space<vmem>>, %arg58: memref<128x64xbf16, #tpu.memory_space<vmem>>, %arg59: memref<64x64xbf16, #tpu.memory_space<vmem>>, %arg60: memref<128x64xbf16, #tpu.memory_space<vmem>>, %arg61: memref<1x64xf32, #tpu.memory_space<vmem>>, %arg62: memref<1x64xf32, #tpu.memory_space<vmem>>, %arg63: memref<1x64xf32, #tpu.memory_space<vmem>>, %arg64: memref<1x64xf32, #tpu.memory_space<vmem>>, %arg65: memref<1x64xf32, #tpu.memory_space<vmem>>, %arg66: memref<1x64xf32, #tpu.memory_space<vmem>>, %arg67: memref<1x64xf32, #tpu.memory_space<vmem>>, %arg68: memref<1x64xf32, #tpu.memory_space<vmem>>, %arg69: memref<1x64xf32, #tpu.memory_space<vmem>>, %arg70: memref<128x64xbf16, #tpu.memory_space<vmem>>, %arg71: memref<64x64xbf16, #tpu.memory_space<vmem>>, %arg72: memref<128x64xbf16, #tpu.memory_space<vmem>>, %arg73: memref<128x64xbf16, #tpu.memory_space<vmem>>, %arg74: memref<1x64xf32, #tpu.memory_space<vmem>>, %arg75: memref<16x128xf32, #tpu.memory_space<vmem>>) attributes {dimension_semantics = [], scalar_prefetch = 0 : i64, scratch_operands = 0 : i64, tpu.core_type = #tpu.core_type<tc>} {
    %c0 = arith.constant 0 : index
    %c0_0 = arith.constant 0 : index
    %0 = vector.load %arg3[%c0, %c0_0] : memref<1x64xf32, #tpu.memory_space<vmem>>, vector<1x64xf32>
    %c0_1 = arith.constant 0 : index
    %c0_2 = arith.constant 0 : index
    %1 = vector.load %arg4[%c0_1, %c0_2] : memref<1x64xf32, #tpu.memory_space<vmem>>, vector<1x64xf32>
    %c0_3 = arith.constant 0 : index
    %c0_4 = arith.constant 0 : index
    %2 = vector.load %arg5[%c0_3, %c0_4] : memref<1x64xf32, #tpu.memory_space<vmem>>, vector<1x64xf32>
    %c0_5 = arith.constant 0 : index
    %c0_6 = arith.constant 0 : index
    %3 = vector.load %arg6[%c0_5, %c0_6] : memref<1x64xf32, #tpu.memory_space<vmem>>, vector<1x64xf32>
    %c0_7 = arith.constant 0 : index
    %c0_8 = arith.constant 0 : index
    %4 = vector.load %arg7[%c0_7, %c0_8] : memref<1x64xf32, #tpu.memory_space<vmem>>, vector<1x64xf32>
    %c0_9 = arith.constant 0 : index
    %c0_10 = arith.constant 0 : index
    %5 = vector.load %arg8[%c0_9, %c0_10] : memref<1x64xf32, #tpu.memory_space<vmem>>, vector<1x64xf32>
    %c0_11 = arith.constant 0 : index
    %c0_12 = arith.constant 0 : index
    %6 = vector.load %arg9[%c0_11, %c0_12] : memref<1x64xf32, #tpu.memory_space<vmem>>, vector<1x64xf32>
    %c0_13 = arith.constant 0 : index
    %c0_14 = arith.constant 0 : index
    %7 = vector.load %arg10[%c0_13, %c0_14] : memref<1x64xf32, #tpu.memory_space<vmem>>, vector<1x64xf32>
    %c0_15 = arith.constant 0 : index
    %c0_16 = arith.constant 0 : index
    %8 = vector.load %arg11[%c0_15, %c0_16] : memref<1x64xf32, #tpu.memory_space<vmem>>, vector<1x64xf32>
    %c0_17 = arith.constant 0 : index
    %c0_18 = arith.constant 0 : index
    %9 = vector.load %arg12[%c0_17, %c0_18] : memref<8x64xbf16, #tpu.memory_space<vmem>>, vector<8x64xbf16>
    %c0_19 = arith.constant 0 : index
    %c0_20 = arith.constant 0 : index
    %10 = vector.load %arg13[%c0_19, %c0_20] : memref<64x64xbf16, #tpu.memory_space<vmem>>, vector<64x64xbf16>
    %c0_21 = arith.constant 0 : index
    %c0_22 = arith.constant 0 : index
    %11 = vector.load %arg14[%c0_21, %c0_22] : memref<8x64xbf16, #tpu.memory_space<vmem>>, vector<8x64xbf16>
    %c0_23 = arith.constant 0 : index
    %c0_24 = arith.constant 0 : index
    %12 = vector.load %arg15[%c0_23, %c0_24] : memref<1x64xf32, #tpu.memory_space<vmem>>, vector<1x64xf32>
    %c0_25 = arith.constant 0 : index
    %c0_26 = arith.constant 0 : index
    %13 = vector.load %arg16[%c0_25, %c0_26] : memref<1x64xf32, #tpu.memory_space<vmem>>, vector<1x64xf32>
    %c0_27 = arith.constant 0 : index
    %c0_28 = arith.constant 0 : index
    %14 = vector.load %arg17[%c0_27, %c0_28] : memref<1x64xf32, #tpu.memory_space<vmem>>, vector<1x64xf32>
    %c0_29 = arith.constant 0 : index
    %c0_30 = arith.constant 0 : index
    %15 = vector.load %arg18[%c0_29, %c0_30] : memref<1x64xf32, #tpu.memory_space<vmem>>, vector<1x64xf32>
    %c0_31 = arith.constant 0 : index
    %c0_32 = arith.constant 0 : index
    %16 = vector.load %arg19[%c0_31, %c0_32] : memref<1x64xf32, #tpu.memory_space<vmem>>, vector<1x64xf32>
    %c0_33 = arith.constant 0 : index
    %c0_34 = arith.constant 0 : index
    %17 = vector.load %arg20[%c0_33, %c0_34] : memref<1x64xf32, #tpu.memory_space<vmem>>, vector<1x64xf32>
    %c0_35 = arith.constant 0 : index
    %c0_36 = arith.constant 0 : index
    %18 = vector.load %arg21[%c0_35, %c0_36] : memref<1x64xf32, #tpu.memory_space<vmem>>, vector<1x64xf32>
    %c0_37 = arith.constant 0 : index
    %c0_38 = arith.constant 0 : index
    %19 = vector.load %arg22[%c0_37, %c0_38] : memref<1x64xf32, #tpu.memory_space<vmem>>, vector<1x64xf32>
    %c0_39 = arith.constant 0 : index
    %c0_40 = arith.constant 0 : index
    %20 = vector.load %arg23[%c0_39, %c0_40] : memref<1x64xf32, #tpu.memory_space<vmem>>, vector<1x64xf32>
    %c0_41 = arith.constant 0 : index
    %c0_42 = arith.constant 0 : index
    %21 = vector.load %arg24[%c0_41, %c0_42] : memref<128x64xbf16, #tpu.memory_space<vmem>>, vector<128x64xbf16>
    %c0_43 = arith.constant 0 : index
    %c0_44 = arith.constant 0 : index
    %22 = vector.load %arg25[%c0_43, %c0_44] : memref<64x64xbf16, #tpu.memory_space<vmem>>, vector<64x64xbf16>
    %c0_45 = arith.constant 0 : index
    %c0_46 = arith.constant 0 : index
    %23 = vector.load %arg26[%c0_45, %c0_46] : memref<128x64xbf16, #tpu.memory_space<vmem>>, vector<128x64xbf16>
    %c0_47 = arith.constant 0 : index
    %c0_48 = arith.constant 0 : index
    %24 = vector.load %arg27[%c0_47, %c0_48] : memref<1x64xf32, #tpu.memory_space<vmem>>, vector<1x64xf32>
    %c0_49 = arith.constant 0 : index
    %c0_50 = arith.constant 0 : index
    %25 = vector.load %arg28[%c0_49, %c0_50] : memref<1x64xf32, #tpu.memory_space<vmem>>, vector<1x64xf32>
    %c0_51 = arith.constant 0 : index
    %c0_52 = arith.constant 0 : index
    %26 = vector.load %arg29[%c0_51, %c0_52] : memref<1x64xf32, #tpu.memory_space<vmem>>, vector<1x64xf32>
    %c0_53 = arith.constant 0 : index
    %c0_54 = arith.constant 0 : index
    %27 = vector.load %arg30[%c0_53, %c0_54] : memref<1x64xf32, #tpu.memory_space<vmem>>, vector<1x64xf32>
    %c0_55 = arith.constant 0 : index
    %c0_56 = arith.constant 0 : index
    %28 = vector.load %arg31[%c0_55, %c0_56] : memref<1x64xf32, #tpu.memory_space<vmem>>, vector<1x64xf32>
    %c0_57 = arith.constant 0 : index
    %c0_58 = arith.constant 0 : index
    %29 = vector.load %arg32[%c0_57, %c0_58] : memref<1x64xf32, #tpu.memory_space<vmem>>, vector<1x64xf32>
    %c0_59 = arith.constant 0 : index
    %c0_60 = arith.constant 0 : index
    %30 = vector.load %arg33[%c0_59, %c0_60] : memref<1x64xf32, #tpu.memory_space<vmem>>, vector<1x64xf32>
    %c0_61 = arith.constant 0 : index
    %c0_62 = arith.constant 0 : index
    %31 = vector.load %arg34[%c0_61, %c0_62] : memref<1x64xf32, #tpu.memory_space<vmem>>, vector<1x64xf32>
    %c0_63 = arith.constant 0 : index
    %c0_64 = arith.constant 0 : index
    %32 = vector.load %arg35[%c0_63, %c0_64] : memref<1x64xf32, #tpu.memory_space<vmem>>, vector<1x64xf32>
    %c0_65 = arith.constant 0 : index
    %c0_66 = arith.constant 0 : index
    %33 = vector.load %arg36[%c0_65, %c0_66] : memref<128x64xbf16, #tpu.memory_space<vmem>>, vector<128x64xbf16>
    %c0_67 = arith.constant 0 : index
    %c0_68 = arith.constant 0 : index
    %34 = vector.load %arg37[%c0_67, %c0_68] : memref<64x64xbf16, #tpu.memory_space<vmem>>, vector<64x64xbf16>
    %c0_69 = arith.constant 0 : index
    %c0_70 = arith.constant 0 : index
    %35 = vector.load %arg38[%c0_69, %c0_70] : memref<128x64xbf16, #tpu.memory_space<vmem>>, vector<128x64xbf16>
    %c0_71 = arith.constant 0 : index
    %c0_72 = arith.constant 0 : index
    %36 = vector.load %arg39[%c0_71, %c0_72] : memref<128x64xbf16, #tpu.memory_space<vmem>>, vector<128x64xbf16>
    %c0_73 = arith.constant 0 : index
    %c0_74 = arith.constant 0 : index
    %37 = vector.load %arg40[%c0_73, %c0_74] : memref<1x64xf32, #tpu.memory_space<vmem>>, vector<1x64xf32>
    %c0_75 = arith.constant 0 : index
    %c0_76 = arith.constant 0 : index
    %38 = vector.load %arg41[%c0_75, %c0_76] : memref<1x64xf32, #tpu.memory_space<vmem>>, vector<1x64xf32>
    %c0_77 = arith.constant 0 : index
    %c0_78 = arith.constant 0 : index
    %39 = vector.load %arg42[%c0_77, %c0_78] : memref<1x64xf32, #tpu.memory_space<vmem>>, vector<1x64xf32>
    %c0_79 = arith.constant 0 : index
    %c0_80 = arith.constant 0 : index
    %40 = vector.load %arg43[%c0_79, %c0_80] : memref<1x64xf32, #tpu.memory_space<vmem>>, vector<1x64xf32>
    %c0_81 = arith.constant 0 : index
    %c0_82 = arith.constant 0 : index
    %41 = vector.load %arg44[%c0_81, %c0_82] : memref<1x64xf32, #tpu.memory_space<vmem>>, vector<1x64xf32>
    %c0_83 = arith.constant 0 : index
    %c0_84 = arith.constant 0 : index
    %42 = vector.load %arg45[%c0_83, %c0_84] : memref<1x64xf32, #tpu.memory_space<vmem>>, vector<1x64xf32>
    %c0_85 = arith.constant 0 : index
    %c0_86 = arith.constant 0 : index
    %43 = vector.load %arg46[%c0_85, %c0_86] : memref<1x64xf32, #tpu.memory_space<vmem>>, vector<1x64xf32>
    %c0_87 = arith.constant 0 : index
    %c0_88 = arith.constant 0 : index
    %44 = vector.load %arg47[%c0_87, %c0_88] : memref<64x64xbf16, #tpu.memory_space<vmem>>, vector<64x64xbf16>
    %c0_89 = arith.constant 0 : index
    %c0_90 = arith.constant 0 : index
    %45 = vector.load %arg48[%c0_89, %c0_90] : memref<64x64xbf16, #tpu.memory_space<vmem>>, vector<64x64xbf16>
    %c0_91 = arith.constant 0 : index
    %c0_92 = arith.constant 0 : index
    %46 = vector.load %arg49[%c0_91, %c0_92] : memref<1x64xf32, #tpu.memory_space<vmem>>, vector<1x64xf32>
    %c0_93 = arith.constant 0 : index
    %c0_94 = arith.constant 0 : index
    %47 = vector.load %arg50[%c0_93, %c0_94] : memref<1x64xf32, #tpu.memory_space<vmem>>, vector<1x64xf32>
    %c0_95 = arith.constant 0 : index
    %c0_96 = arith.constant 0 : index
    %48 = vector.load %arg51[%c0_95, %c0_96] : memref<1x64xf32, #tpu.memory_space<vmem>>, vector<1x64xf32>
    %c0_97 = arith.constant 0 : index
    %c0_98 = arith.constant 0 : index
    %49 = vector.load %arg52[%c0_97, %c0_98] : memref<1x64xf32, #tpu.memory_space<vmem>>, vector<1x64xf32>
    %c0_99 = arith.constant 0 : index
    %c0_100 = arith.constant 0 : index
    %50 = vector.load %arg53[%c0_99, %c0_100] : memref<1x64xf32, #tpu.memory_space<vmem>>, vector<1x64xf32>
    %c0_101 = arith.constant 0 : index
    %c0_102 = arith.constant 0 : index
    %51 = vector.load %arg54[%c0_101, %c0_102] : memref<1x64xf32, #tpu.memory_space<vmem>>, vector<1x64xf32>
    %c0_103 = arith.constant 0 : index
    %c0_104 = arith.constant 0 : index
    %52 = vector.load %arg55[%c0_103, %c0_104] : memref<1x64xf32, #tpu.memory_space<vmem>>, vector<1x64xf32>
    %c0_105 = arith.constant 0 : index
    %c0_106 = arith.constant 0 : index
    %53 = vector.load %arg56[%c0_105, %c0_106] : memref<1x64xf32, #tpu.memory_space<vmem>>, vector<1x64xf32>
    %c0_107 = arith.constant 0 : index
    %c0_108 = arith.constant 0 : index
    %54 = vector.load %arg57[%c0_107, %c0_108] : memref<1x64xf32, #tpu.memory_space<vmem>>, vector<1x64xf32>
    %c0_109 = arith.constant 0 : index
    %c0_110 = arith.constant 0 : index
    %55 = vector.load %arg58[%c0_109, %c0_110] : memref<128x64xbf16, #tpu.memory_space<vmem>>, vector<128x64xbf16>
    %c0_111 = arith.constant 0 : index
    %c0_112 = arith.constant 0 : index
    %56 = vector.load %arg59[%c0_111, %c0_112] : memref<64x64xbf16, #tpu.memory_space<vmem>>, vector<64x64xbf16>
    %c0_113 = arith.constant 0 : index
    %c0_114 = arith.constant 0 : index
    %57 = vector.load %arg60[%c0_113, %c0_114] : memref<128x64xbf16, #tpu.memory_space<vmem>>, vector<128x64xbf16>
    %c0_115 = arith.constant 0 : index
    %c0_116 = arith.constant 0 : index
    %58 = vector.load %arg61[%c0_115, %c0_116] : memref<1x64xf32, #tpu.memory_space<vmem>>, vector<1x64xf32>
    %c0_117 = arith.constant 0 : index
    %c0_118 = arith.constant 0 : index
    %59 = vector.load %arg62[%c0_117, %c0_118] : memref<1x64xf32, #tpu.memory_space<vmem>>, vector<1x64xf32>
    %c0_119 = arith.constant 0 : index
    %c0_120 = arith.constant 0 : index
    %60 = vector.load %arg63[%c0_119, %c0_120] : memref<1x64xf32, #tpu.memory_space<vmem>>, vector<1x64xf32>
    %c0_121 = arith.constant 0 : index
    %c0_122 = arith.constant 0 : index
    %61 = vector.load %arg64[%c0_121, %c0_122] : memref<1x64xf32, #tpu.memory_space<vmem>>, vector<1x64xf32>
    %c0_123 = arith.constant 0 : index
    %c0_124 = arith.constant 0 : index
    %62 = vector.load %arg65[%c0_123, %c0_124] : memref<1x64xf32, #tpu.memory_space<vmem>>, vector<1x64xf32>
    %c0_125 = arith.constant 0 : index
    %c0_126 = arith.constant 0 : index
    %63 = vector.load %arg66[%c0_125, %c0_126] : memref<1x64xf32, #tpu.memory_space<vmem>>, vector<1x64xf32>
    %c0_127 = arith.constant 0 : index
    %c0_128 = arith.constant 0 : index
    %64 = vector.load %arg67[%c0_127, %c0_128] : memref<1x64xf32, #tpu.memory_space<vmem>>, vector<1x64xf32>
    %c0_129 = arith.constant 0 : index
    %c0_130 = arith.constant 0 : index
    %65 = vector.load %arg68[%c0_129, %c0_130] : memref<1x64xf32, #tpu.memory_space<vmem>>, vector<1x64xf32>
    %c0_131 = arith.constant 0 : index
    %c0_132 = arith.constant 0 : index
    %66 = vector.load %arg69[%c0_131, %c0_132] : memref<1x64xf32, #tpu.memory_space<vmem>>, vector<1x64xf32>
    %c0_133 = arith.constant 0 : index
    %c0_134 = arith.constant 0 : index
    %67 = vector.load %arg70[%c0_133, %c0_134] : memref<128x64xbf16, #tpu.memory_space<vmem>>, vector<128x64xbf16>
    %c0_135 = arith.constant 0 : index
    %c0_136 = arith.constant 0 : index
    %68 = vector.load %arg71[%c0_135, %c0_136] : memref<64x64xbf16, #tpu.memory_space<vmem>>, vector<64x64xbf16>
    %c0_137 = arith.constant 0 : index
    %c0_138 = arith.constant 0 : index
    %69 = vector.load %arg72[%c0_137, %c0_138] : memref<128x64xbf16, #tpu.memory_space<vmem>>, vector<128x64xbf16>
    %c0_139 = arith.constant 0 : index
    %c0_140 = arith.constant 0 : index
    %70 = vector.load %arg73[%c0_139, %c0_140] : memref<128x64xbf16, #tpu.memory_space<vmem>>, vector<128x64xbf16>
    %c0_141 = arith.constant 0 : index
    %c0_142 = arith.constant 0 : index
    %71 = vector.load %arg74[%c0_141, %c0_142] : memref<1x64xf32, #tpu.memory_space<vmem>>, vector<1x64xf32>
    %c0_143 = arith.constant 0 : index
    %c0_144 = arith.constant 0 : index
    %72 = vector.load %arg0[%c0_143, %c0_144] : memref<64x8xf32, #tpu.memory_space<vmem>>, vector<64x8xf32>
    %73 = arith.truncf %72 : vector<64x8xf32> to vector<64x8xbf16>
    %cst = arith.constant dense<0.000000e+00> : vector<64x64xf32>
    %74 = tpu.matmul %73, %9, %cst {dimension_numbers = #tpu.dot_dimension_numbers<[1], [0], [0], [1], [0, 0, 1, 1], [], []>} : vector<64x8xbf16>, vector<8x64xbf16>, vector<64x64xf32> -> vector<64x64xf32>
    %75 = vector.broadcast %0 : vector<1x64xf32> to vector<64x64xf32>
    %76 = arith.addf %74, %75 : vector<64x64xf32>
    %cst_145 = arith.constant dense<0.000000e+00> : vector<64xf32>
    %77 = vector.multi_reduction <add>, %76, %cst_145 [1] : vector<64x64xf32> to vector<64xf32>
    %78 = vector.shape_cast %77 : vector<64xf32> to vector<64x1xf32>
    %cst_146 = arith.constant 6.400000e+01 : f32
    %79 = vector.broadcast %cst_146 : f32 to vector<64x1xf32>
    %80 = arith.divf %78, %79 : vector<64x1xf32>
    %81 = vector.broadcast %80 : vector<64x1xf32> to vector<64x64xf32>
    %82 = arith.subf %76, %81 : vector<64x64xf32>
    %83 = arith.mulf %82, %82 : vector<64x64xf32>
    %cst_147 = arith.constant dense<0.000000e+00> : vector<64xf32>
    %84 = vector.multi_reduction <add>, %83, %cst_147 [1] : vector<64x64xf32> to vector<64xf32>
    %85 = vector.shape_cast %84 : vector<64xf32> to vector<64x1xf32>
    %cst_148 = arith.constant 6.400000e+01 : f32
    %86 = vector.broadcast %cst_148 : f32 to vector<64x1xf32>
    %87 = arith.divf %85, %86 : vector<64x1xf32>
    %88 = vector.broadcast %80 : vector<64x1xf32> to vector<64x64xf32>
    %89 = arith.subf %76, %88 : vector<64x64xf32>
    %cst_149 = arith.constant 9.99999974E-6 : f32
    %90 = vector.broadcast %cst_149 : f32 to vector<64x1xf32>
    %91 = arith.addf %87, %90 : vector<64x1xf32>
    %92 = math.rsqrt %91 : vector<64x1xf32>
    %93 = vector.broadcast %92 : vector<64x1xf32> to vector<64x64xf32>
    %94 = arith.mulf %89, %93 : vector<64x64xf32>
    %95 = vector.broadcast %6 : vector<1x64xf32> to vector<64x64xf32>
    %96 = arith.mulf %94, %95 : vector<64x64xf32>
    %97 = vector.broadcast %2 : vector<1x64xf32> to vector<64x64xf32>
    %98 = arith.addf %96, %97 : vector<64x64xf32>
    %cst_150 = arith.constant 0.000000e+00 : f32
    %99 = vector.broadcast %cst_150 : f32 to vector<64x64xf32>
    %100 = arith.maximumf %98, %99 : vector<64x64xf32>
    %101 = arith.truncf %100 : vector<64x64xf32> to vector<64x64xbf16>
    %cst_151 = arith.constant dense<0.000000e+00> : vector<64x64xf32>
    %102 = tpu.matmul %101, %10, %cst_151 {dimension_numbers = #tpu.dot_dimension_numbers<[1], [0], [0], [1], [0, 0, 1, 1], [], []>} : vector<64x64xbf16>, vector<64x64xbf16>, vector<64x64xf32> -> vector<64x64xf32>
    %103 = vector.broadcast %1 : vector<1x64xf32> to vector<64x64xf32>
    %104 = arith.addf %102, %103 : vector<64x64xf32>
    %cst_152 = arith.constant dense<0.000000e+00> : vector<64xf32>
    %105 = vector.multi_reduction <add>, %104, %cst_152 [1] : vector<64x64xf32> to vector<64xf32>
    %106 = vector.shape_cast %105 : vector<64xf32> to vector<64x1xf32>
    %cst_153 = arith.constant 6.400000e+01 : f32
    %107 = vector.broadcast %cst_153 : f32 to vector<64x1xf32>
    %108 = arith.divf %106, %107 : vector<64x1xf32>
    %109 = vector.broadcast %108 : vector<64x1xf32> to vector<64x64xf32>
    %110 = arith.subf %104, %109 : vector<64x64xf32>
    %111 = arith.mulf %110, %110 : vector<64x64xf32>
    %cst_154 = arith.constant dense<0.000000e+00> : vector<64xf32>
    %112 = vector.multi_reduction <add>, %111, %cst_154 [1] : vector<64x64xf32> to vector<64xf32>
    %113 = vector.shape_cast %112 : vector<64xf32> to vector<64x1xf32>
    %cst_155 = arith.constant 6.400000e+01 : f32
    %114 = vector.broadcast %cst_155 : f32 to vector<64x1xf32>
    %115 = arith.divf %113, %114 : vector<64x1xf32>
    %116 = vector.broadcast %108 : vector<64x1xf32> to vector<64x64xf32>
    %117 = arith.subf %104, %116 : vector<64x64xf32>
    %cst_156 = arith.constant 9.99999974E-6 : f32
    %118 = vector.broadcast %cst_156 : f32 to vector<64x1xf32>
    %119 = arith.addf %115, %118 : vector<64x1xf32>
    %120 = math.rsqrt %119 : vector<64x1xf32>
    %121 = vector.broadcast %120 : vector<64x1xf32> to vector<64x64xf32>
    %122 = arith.mulf %117, %121 : vector<64x64xf32>
    %123 = vector.broadcast %7 : vector<1x64xf32> to vector<64x64xf32>
    %124 = arith.mulf %122, %123 : vector<64x64xf32>
    %125 = vector.broadcast %3 : vector<1x64xf32> to vector<64x64xf32>
    %126 = arith.addf %124, %125 : vector<64x64xf32>
    %cst_157 = arith.constant dense<0.000000e+00> : vector<64x64xf32>
    %127 = tpu.matmul %73, %11, %cst_157 {dimension_numbers = #tpu.dot_dimension_numbers<[1], [0], [0], [1], [0, 0, 1, 1], [], []>} : vector<64x8xbf16>, vector<8x64xbf16>, vector<64x64xf32> -> vector<64x64xf32>
    %128 = vector.broadcast %5 : vector<1x64xf32> to vector<64x64xf32>
    %129 = arith.addf %127, %128 : vector<64x64xf32>
    %cst_158 = arith.constant dense<0.000000e+00> : vector<64xf32>
    %130 = vector.multi_reduction <add>, %129, %cst_158 [1] : vector<64x64xf32> to vector<64xf32>
    %131 = vector.shape_cast %130 : vector<64xf32> to vector<64x1xf32>
    %cst_159 = arith.constant 6.400000e+01 : f32
    %132 = vector.broadcast %cst_159 : f32 to vector<64x1xf32>
    %133 = arith.divf %131, %132 : vector<64x1xf32>
    %134 = vector.broadcast %133 : vector<64x1xf32> to vector<64x64xf32>
    %135 = arith.subf %129, %134 : vector<64x64xf32>
    %136 = arith.mulf %135, %135 : vector<64x64xf32>
    %cst_160 = arith.constant dense<0.000000e+00> : vector<64xf32>
    %137 = vector.multi_reduction <add>, %136, %cst_160 [1] : vector<64x64xf32> to vector<64xf32>
    %138 = vector.shape_cast %137 : vector<64xf32> to vector<64x1xf32>
    %cst_161 = arith.constant 6.400000e+01 : f32
    %139 = vector.broadcast %cst_161 : f32 to vector<64x1xf32>
    %140 = arith.divf %138, %139 : vector<64x1xf32>
    %141 = vector.broadcast %133 : vector<64x1xf32> to vector<64x64xf32>
    %142 = arith.subf %129, %141 : vector<64x64xf32>
    %cst_162 = arith.constant 9.99999974E-6 : f32
    %143 = vector.broadcast %cst_162 : f32 to vector<64x1xf32>
    %144 = arith.addf %140, %143 : vector<64x1xf32>
    %145 = math.rsqrt %144 : vector<64x1xf32>
    %146 = vector.broadcast %145 : vector<64x1xf32> to vector<64x64xf32>
    %147 = arith.mulf %142, %146 : vector<64x64xf32>
    %148 = vector.broadcast %8 : vector<1x64xf32> to vector<64x64xf32>
    %149 = arith.mulf %147, %148 : vector<64x64xf32>
    %150 = vector.broadcast %4 : vector<1x64xf32> to vector<64x64xf32>
    %151 = arith.addf %149, %150 : vector<64x64xf32>
    %152 = arith.addf %126, %151 : vector<64x64xf32>
    %cst_163 = arith.constant 0.000000e+00 : f32
    %153 = vector.broadcast %cst_163 : f32 to vector<64x64xf32>
    %154 = arith.maximumf %152, %153 : vector<64x64xf32>
    %155 = vector.shape_cast %154 : vector<64x64xf32> to vector<16x4x64xf32>
    %cst_164 = arith.constant dense<0xFF800000> : vector<16x64xf32>
    %156 = vector.multi_reduction <maximumf>, %155, %cst_164 [1] : vector<16x4x64xf32> to vector<16x64xf32>
    %157 = vector.shape_cast %156 : vector<16x64xf32> to vector<16x1x64xf32>
    %158 = vector.shape_cast %157 : vector<16x1x64xf32> to vector<16x1x64xf32>
    %159 = vector.broadcast %158 : vector<16x1x64xf32> to vector<16x4x64xf32>
    %160 = vector.shape_cast %159 : vector<16x4x64xf32> to vector<64x64xf32>
    %161 = tpu.concatenate %154, %160 in 1 : vector<64x64xf32>, vector<64x64xf32> -> vector<64x128xf32>
    %162 = arith.truncf %161 : vector<64x128xf32> to vector<64x128xbf16>
    %cst_165 = arith.constant dense<0.000000e+00> : vector<64x64xf32>
    %163 = tpu.matmul %162, %21, %cst_165 {dimension_numbers = #tpu.dot_dimension_numbers<[1], [0], [0], [1], [0, 0, 1, 1], [], []>} : vector<64x128xbf16>, vector<128x64xbf16>, vector<64x64xf32> -> vector<64x64xf32>
    %164 = vector.broadcast %12 : vector<1x64xf32> to vector<64x64xf32>
    %165 = arith.addf %163, %164 : vector<64x64xf32>
    %cst_166 = arith.constant dense<0.000000e+00> : vector<64xf32>
    %166 = vector.multi_reduction <add>, %165, %cst_166 [1] : vector<64x64xf32> to vector<64xf32>
    %167 = vector.shape_cast %166 : vector<64xf32> to vector<64x1xf32>
    %cst_167 = arith.constant 6.400000e+01 : f32
    %168 = vector.broadcast %cst_167 : f32 to vector<64x1xf32>
    %169 = arith.divf %167, %168 : vector<64x1xf32>
    %170 = vector.broadcast %169 : vector<64x1xf32> to vector<64x64xf32>
    %171 = arith.subf %165, %170 : vector<64x64xf32>
    %172 = arith.mulf %171, %171 : vector<64x64xf32>
    %cst_168 = arith.constant dense<0.000000e+00> : vector<64xf32>
    %173 = vector.multi_reduction <add>, %172, %cst_168 [1] : vector<64x64xf32> to vector<64xf32>
    %174 = vector.shape_cast %173 : vector<64xf32> to vector<64x1xf32>
    %cst_169 = arith.constant 6.400000e+01 : f32
    %175 = vector.broadcast %cst_169 : f32 to vector<64x1xf32>
    %176 = arith.divf %174, %175 : vector<64x1xf32>
    %177 = vector.broadcast %169 : vector<64x1xf32> to vector<64x64xf32>
    %178 = arith.subf %165, %177 : vector<64x64xf32>
    %cst_170 = arith.constant 9.99999974E-6 : f32
    %179 = vector.broadcast %cst_170 : f32 to vector<64x1xf32>
    %180 = arith.addf %176, %179 : vector<64x1xf32>
    %181 = math.rsqrt %180 : vector<64x1xf32>
    %182 = vector.broadcast %181 : vector<64x1xf32> to vector<64x64xf32>
    %183 = arith.mulf %178, %182 : vector<64x64xf32>
    %184 = vector.broadcast %18 : vector<1x64xf32> to vector<64x64xf32>
    %185 = arith.mulf %183, %184 : vector<64x64xf32>
    %186 = vector.broadcast %14 : vector<1x64xf32> to vector<64x64xf32>
    %187 = arith.addf %185, %186 : vector<64x64xf32>
    %cst_171 = arith.constant 0.000000e+00 : f32
    %188 = vector.broadcast %cst_171 : f32 to vector<64x64xf32>
    %189 = arith.maximumf %187, %188 : vector<64x64xf32>
    %190 = arith.truncf %189 : vector<64x64xf32> to vector<64x64xbf16>
    %cst_172 = arith.constant dense<0.000000e+00> : vector<64x64xf32>
    %191 = tpu.matmul %190, %22, %cst_172 {dimension_numbers = #tpu.dot_dimension_numbers<[1], [0], [0], [1], [0, 0, 1, 1], [], []>} : vector<64x64xbf16>, vector<64x64xbf16>, vector<64x64xf32> -> vector<64x64xf32>
    %192 = vector.broadcast %13 : vector<1x64xf32> to vector<64x64xf32>
    %193 = arith.addf %191, %192 : vector<64x64xf32>
    %cst_173 = arith.constant dense<0.000000e+00> : vector<64xf32>
    %194 = vector.multi_reduction <add>, %193, %cst_173 [1] : vector<64x64xf32> to vector<64xf32>
    %195 = vector.shape_cast %194 : vector<64xf32> to vector<64x1xf32>
    %cst_174 = arith.constant 6.400000e+01 : f32
    %196 = vector.broadcast %cst_174 : f32 to vector<64x1xf32>
    %197 = arith.divf %195, %196 : vector<64x1xf32>
    %198 = vector.broadcast %197 : vector<64x1xf32> to vector<64x64xf32>
    %199 = arith.subf %193, %198 : vector<64x64xf32>
    %200 = arith.mulf %199, %199 : vector<64x64xf32>
    %cst_175 = arith.constant dense<0.000000e+00> : vector<64xf32>
    %201 = vector.multi_reduction <add>, %200, %cst_175 [1] : vector<64x64xf32> to vector<64xf32>
    %202 = vector.shape_cast %201 : vector<64xf32> to vector<64x1xf32>
    %cst_176 = arith.constant 6.400000e+01 : f32
    %203 = vector.broadcast %cst_176 : f32 to vector<64x1xf32>
    %204 = arith.divf %202, %203 : vector<64x1xf32>
    %205 = vector.broadcast %197 : vector<64x1xf32> to vector<64x64xf32>
    %206 = arith.subf %193, %205 : vector<64x64xf32>
    %cst_177 = arith.constant 9.99999974E-6 : f32
    %207 = vector.broadcast %cst_177 : f32 to vector<64x1xf32>
    %208 = arith.addf %204, %207 : vector<64x1xf32>
    %209 = math.rsqrt %208 : vector<64x1xf32>
    %210 = vector.broadcast %209 : vector<64x1xf32> to vector<64x64xf32>
    %211 = arith.mulf %206, %210 : vector<64x64xf32>
    %212 = vector.broadcast %19 : vector<1x64xf32> to vector<64x64xf32>
    %213 = arith.mulf %211, %212 : vector<64x64xf32>
    %214 = vector.broadcast %15 : vector<1x64xf32> to vector<64x64xf32>
    %215 = arith.addf %213, %214 : vector<64x64xf32>
    %cst_178 = arith.constant dense<0.000000e+00> : vector<64x64xf32>
    %216 = tpu.matmul %162, %23, %cst_178 {dimension_numbers = #tpu.dot_dimension_numbers<[1], [0], [0], [1], [0, 0, 1, 1], [], []>} : vector<64x128xbf16>, vector<128x64xbf16>, vector<64x64xf32> -> vector<64x64xf32>
    %217 = vector.broadcast %17 : vector<1x64xf32> to vector<64x64xf32>
    %218 = arith.addf %216, %217 : vector<64x64xf32>
    %cst_179 = arith.constant dense<0.000000e+00> : vector<64xf32>
    %219 = vector.multi_reduction <add>, %218, %cst_179 [1] : vector<64x64xf32> to vector<64xf32>
    %220 = vector.shape_cast %219 : vector<64xf32> to vector<64x1xf32>
    %cst_180 = arith.constant 6.400000e+01 : f32
    %221 = vector.broadcast %cst_180 : f32 to vector<64x1xf32>
    %222 = arith.divf %220, %221 : vector<64x1xf32>
    %223 = vector.broadcast %222 : vector<64x1xf32> to vector<64x64xf32>
    %224 = arith.subf %218, %223 : vector<64x64xf32>
    %225 = arith.mulf %224, %224 : vector<64x64xf32>
    %cst_181 = arith.constant dense<0.000000e+00> : vector<64xf32>
    %226 = vector.multi_reduction <add>, %225, %cst_181 [1] : vector<64x64xf32> to vector<64xf32>
    %227 = vector.shape_cast %226 : vector<64xf32> to vector<64x1xf32>
    %cst_182 = arith.constant 6.400000e+01 : f32
    %228 = vector.broadcast %cst_182 : f32 to vector<64x1xf32>
    %229 = arith.divf %227, %228 : vector<64x1xf32>
    %230 = vector.broadcast %222 : vector<64x1xf32> to vector<64x64xf32>
    %231 = arith.subf %218, %230 : vector<64x64xf32>
    %cst_183 = arith.constant 9.99999974E-6 : f32
    %232 = vector.broadcast %cst_183 : f32 to vector<64x1xf32>
    %233 = arith.addf %229, %232 : vector<64x1xf32>
    %234 = math.rsqrt %233 : vector<64x1xf32>
    %235 = vector.broadcast %234 : vector<64x1xf32> to vector<64x64xf32>
    %236 = arith.mulf %231, %235 : vector<64x64xf32>
    %237 = vector.broadcast %20 : vector<1x64xf32> to vector<64x64xf32>
    %238 = arith.mulf %236, %237 : vector<64x64xf32>
    %239 = vector.broadcast %16 : vector<1x64xf32> to vector<64x64xf32>
    %240 = arith.addf %238, %239 : vector<64x64xf32>
    %241 = arith.addf %215, %240 : vector<64x64xf32>
    %cst_184 = arith.constant 0.000000e+00 : f32
    %242 = vector.broadcast %cst_184 : f32 to vector<64x64xf32>
    %243 = arith.maximumf %241, %242 : vector<64x64xf32>
    %244 = vector.shape_cast %243 : vector<64x64xf32> to vector<16x4x64xf32>
    %cst_185 = arith.constant dense<0xFF800000> : vector<16x64xf32>
    %245 = vector.multi_reduction <maximumf>, %244, %cst_185 [1] : vector<16x4x64xf32> to vector<16x64xf32>
    %246 = vector.shape_cast %245 : vector<16x64xf32> to vector<16x1x64xf32>
    %247 = vector.shape_cast %246 : vector<16x1x64xf32> to vector<16x1x64xf32>
    %248 = vector.broadcast %247 : vector<16x1x64xf32> to vector<16x4x64xf32>
    %249 = vector.shape_cast %248 : vector<16x4x64xf32> to vector<64x64xf32>
    %250 = tpu.concatenate %243, %249 in 1 : vector<64x64xf32>, vector<64x64xf32> -> vector<64x128xf32>
    %251 = arith.truncf %250 : vector<64x128xf32> to vector<64x128xbf16>
    %cst_186 = arith.constant dense<0.000000e+00> : vector<64x64xf32>
    %252 = tpu.matmul %251, %33, %cst_186 {dimension_numbers = #tpu.dot_dimension_numbers<[1], [0], [0], [1], [0, 0, 1, 1], [], []>} : vector<64x128xbf16>, vector<128x64xbf16>, vector<64x64xf32> -> vector<64x64xf32>
    %253 = vector.broadcast %24 : vector<1x64xf32> to vector<64x64xf32>
    %254 = arith.addf %252, %253 : vector<64x64xf32>
    %cst_187 = arith.constant dense<0.000000e+00> : vector<64xf32>
    %255 = vector.multi_reduction <add>, %254, %cst_187 [1] : vector<64x64xf32> to vector<64xf32>
    %256 = vector.shape_cast %255 : vector<64xf32> to vector<64x1xf32>
    %cst_188 = arith.constant 6.400000e+01 : f32
    %257 = vector.broadcast %cst_188 : f32 to vector<64x1xf32>
    %258 = arith.divf %256, %257 : vector<64x1xf32>
    %259 = vector.broadcast %258 : vector<64x1xf32> to vector<64x64xf32>
    %260 = arith.subf %254, %259 : vector<64x64xf32>
    %261 = arith.mulf %260, %260 : vector<64x64xf32>
    %cst_189 = arith.constant dense<0.000000e+00> : vector<64xf32>
    %262 = vector.multi_reduction <add>, %261, %cst_189 [1] : vector<64x64xf32> to vector<64xf32>
    %263 = vector.shape_cast %262 : vector<64xf32> to vector<64x1xf32>
    %cst_190 = arith.constant 6.400000e+01 : f32
    %264 = vector.broadcast %cst_190 : f32 to vector<64x1xf32>
    %265 = arith.divf %263, %264 : vector<64x1xf32>
    %266 = vector.broadcast %258 : vector<64x1xf32> to vector<64x64xf32>
    %267 = arith.subf %254, %266 : vector<64x64xf32>
    %cst_191 = arith.constant 9.99999974E-6 : f32
    %268 = vector.broadcast %cst_191 : f32 to vector<64x1xf32>
    %269 = arith.addf %265, %268 : vector<64x1xf32>
    %270 = math.rsqrt %269 : vector<64x1xf32>
    %271 = vector.broadcast %270 : vector<64x1xf32> to vector<64x64xf32>
    %272 = arith.mulf %267, %271 : vector<64x64xf32>
    %273 = vector.broadcast %30 : vector<1x64xf32> to vector<64x64xf32>
    %274 = arith.mulf %272, %273 : vector<64x64xf32>
    %275 = vector.broadcast %26 : vector<1x64xf32> to vector<64x64xf32>
    %276 = arith.addf %274, %275 : vector<64x64xf32>
    %cst_192 = arith.constant 0.000000e+00 : f32
    %277 = vector.broadcast %cst_192 : f32 to vector<64x64xf32>
    %278 = arith.maximumf %276, %277 : vector<64x64xf32>
    %279 = arith.truncf %278 : vector<64x64xf32> to vector<64x64xbf16>
    %cst_193 = arith.constant dense<0.000000e+00> : vector<64x64xf32>
    %280 = tpu.matmul %279, %34, %cst_193 {dimension_numbers = #tpu.dot_dimension_numbers<[1], [0], [0], [1], [0, 0, 1, 1], [], []>} : vector<64x64xbf16>, vector<64x64xbf16>, vector<64x64xf32> -> vector<64x64xf32>
    %281 = vector.broadcast %25 : vector<1x64xf32> to vector<64x64xf32>
    %282 = arith.addf %280, %281 : vector<64x64xf32>
    %cst_194 = arith.constant dense<0.000000e+00> : vector<64xf32>
    %283 = vector.multi_reduction <add>, %282, %cst_194 [1] : vector<64x64xf32> to vector<64xf32>
    %284 = vector.shape_cast %283 : vector<64xf32> to vector<64x1xf32>
    %cst_195 = arith.constant 6.400000e+01 : f32
    %285 = vector.broadcast %cst_195 : f32 to vector<64x1xf32>
    %286 = arith.divf %284, %285 : vector<64x1xf32>
    %287 = vector.broadcast %286 : vector<64x1xf32> to vector<64x64xf32>
    %288 = arith.subf %282, %287 : vector<64x64xf32>
    %289 = arith.mulf %288, %288 : vector<64x64xf32>
    %cst_196 = arith.constant dense<0.000000e+00> : vector<64xf32>
    %290 = vector.multi_reduction <add>, %289, %cst_196 [1] : vector<64x64xf32> to vector<64xf32>
    %291 = vector.shape_cast %290 : vector<64xf32> to vector<64x1xf32>
    %cst_197 = arith.constant 6.400000e+01 : f32
    %292 = vector.broadcast %cst_197 : f32 to vector<64x1xf32>
    %293 = arith.divf %291, %292 : vector<64x1xf32>
    %294 = vector.broadcast %286 : vector<64x1xf32> to vector<64x64xf32>
    %295 = arith.subf %282, %294 : vector<64x64xf32>
    %cst_198 = arith.constant 9.99999974E-6 : f32
    %296 = vector.broadcast %cst_198 : f32 to vector<64x1xf32>
    %297 = arith.addf %293, %296 : vector<64x1xf32>
    %298 = math.rsqrt %297 : vector<64x1xf32>
    %299 = vector.broadcast %298 : vector<64x1xf32> to vector<64x64xf32>
    %300 = arith.mulf %295, %299 : vector<64x64xf32>
    %301 = vector.broadcast %31 : vector<1x64xf32> to vector<64x64xf32>
    %302 = arith.mulf %300, %301 : vector<64x64xf32>
    %303 = vector.broadcast %27 : vector<1x64xf32> to vector<64x64xf32>
    %304 = arith.addf %302, %303 : vector<64x64xf32>
    %cst_199 = arith.constant dense<0.000000e+00> : vector<64x64xf32>
    %305 = tpu.matmul %251, %35, %cst_199 {dimension_numbers = #tpu.dot_dimension_numbers<[1], [0], [0], [1], [0, 0, 1, 1], [], []>} : vector<64x128xbf16>, vector<128x64xbf16>, vector<64x64xf32> -> vector<64x64xf32>
    %306 = vector.broadcast %29 : vector<1x64xf32> to vector<64x64xf32>
    %307 = arith.addf %305, %306 : vector<64x64xf32>
    %cst_200 = arith.constant dense<0.000000e+00> : vector<64xf32>
    %308 = vector.multi_reduction <add>, %307, %cst_200 [1] : vector<64x64xf32> to vector<64xf32>
    %309 = vector.shape_cast %308 : vector<64xf32> to vector<64x1xf32>
    %cst_201 = arith.constant 6.400000e+01 : f32
    %310 = vector.broadcast %cst_201 : f32 to vector<64x1xf32>
    %311 = arith.divf %309, %310 : vector<64x1xf32>
    %312 = vector.broadcast %311 : vector<64x1xf32> to vector<64x64xf32>
    %313 = arith.subf %307, %312 : vector<64x64xf32>
    %314 = arith.mulf %313, %313 : vector<64x64xf32>
    %cst_202 = arith.constant dense<0.000000e+00> : vector<64xf32>
    %315 = vector.multi_reduction <add>, %314, %cst_202 [1] : vector<64x64xf32> to vector<64xf32>
    %316 = vector.shape_cast %315 : vector<64xf32> to vector<64x1xf32>
    %cst_203 = arith.constant 6.400000e+01 : f32
    %317 = vector.broadcast %cst_203 : f32 to vector<64x1xf32>
    %318 = arith.divf %316, %317 : vector<64x1xf32>
    %319 = vector.broadcast %311 : vector<64x1xf32> to vector<64x64xf32>
    %320 = arith.subf %307, %319 : vector<64x64xf32>
    %cst_204 = arith.constant 9.99999974E-6 : f32
    %321 = vector.broadcast %cst_204 : f32 to vector<64x1xf32>
    %322 = arith.addf %318, %321 : vector<64x1xf32>
    %323 = math.rsqrt %322 : vector<64x1xf32>
    %324 = vector.broadcast %323 : vector<64x1xf32> to vector<64x64xf32>
    %325 = arith.mulf %320, %324 : vector<64x64xf32>
    %326 = vector.broadcast %32 : vector<1x64xf32> to vector<64x64xf32>
    %327 = arith.mulf %325, %326 : vector<64x64xf32>
    %328 = vector.broadcast %28 : vector<1x64xf32> to vector<64x64xf32>
    %329 = arith.addf %327, %328 : vector<64x64xf32>
    %330 = arith.addf %304, %329 : vector<64x64xf32>
    %cst_205 = arith.constant 0.000000e+00 : f32
    %331 = vector.broadcast %cst_205 : f32 to vector<64x64xf32>
    %332 = arith.maximumf %330, %331 : vector<64x64xf32>
    %333 = vector.shape_cast %332 : vector<64x64xf32> to vector<16x4x64xf32>
    %cst_206 = arith.constant dense<0xFF800000> : vector<16x64xf32>
    %334 = vector.multi_reduction <maximumf>, %333, %cst_206 [1] : vector<16x4x64xf32> to vector<16x64xf32>
    %335 = vector.shape_cast %334 : vector<16x64xf32> to vector<16x1x64xf32>
    %336 = vector.shape_cast %335 : vector<16x1x64xf32> to vector<16x1x64xf32>
    %337 = vector.broadcast %336 : vector<16x1x64xf32> to vector<16x4x64xf32>
    %338 = vector.shape_cast %337 : vector<16x4x64xf32> to vector<64x64xf32>
    %339 = tpu.concatenate %332, %338 in 1 : vector<64x64xf32>, vector<64x64xf32> -> vector<64x128xf32>
    %340 = arith.truncf %339 : vector<64x128xf32> to vector<64x128xbf16>
    %cst_207 = arith.constant dense<0.000000e+00> : vector<64x64xf32>
    %341 = tpu.matmul %340, %36, %cst_207 {dimension_numbers = #tpu.dot_dimension_numbers<[1], [0], [0], [1], [0, 0, 1, 1], [], []>} : vector<64x128xbf16>, vector<128x64xbf16>, vector<64x64xf32> -> vector<64x64xf32>
    %342 = vector.broadcast %37 : vector<1x64xf32> to vector<64x64xf32>
    %343 = arith.addf %341, %342 : vector<64x64xf32>
    %344 = vector.shape_cast %343 : vector<64x64xf32> to vector<16x4x64xf32>
    %cst_208 = arith.constant dense<0xFF800000> : vector<16x64xf32>
    %345 = vector.multi_reduction <maximumf>, %344, %cst_208 [1] : vector<16x4x64xf32> to vector<16x64xf32>
    %346 = arith.mulf %345, %345 : vector<16x64xf32>
    %cst_209 = arith.constant dense<0.000000e+00> : vector<16xf32>
    %347 = vector.multi_reduction <add>, %346, %cst_209 [1] : vector<16x64xf32> to vector<16xf32>
    %348 = vector.shape_cast %347 : vector<16xf32> to vector<16x1xf32>
    %cst_210 = arith.constant 1.000000e-24 : f32
    %349 = vector.broadcast %cst_210 : f32 to vector<16x1xf32>
    %350 = arith.maximumf %348, %349 : vector<16x1xf32>
    %351 = math.rsqrt %350 : vector<16x1xf32>
    %352 = vector.broadcast %351 : vector<16x1xf32> to vector<16x64xf32>
    %353 = arith.mulf %345, %352 : vector<16x64xf32>
    %c0_211 = arith.constant 0 : index
    %c0_212 = arith.constant 0 : index
    %354 = vector.load %arg1[%c0_211, %c0_212] : memref<16x4xf32, #tpu.memory_space<vmem>>, vector<16x4xf32>
    %355 = arith.truncf %353 : vector<16x64xf32> to vector<16x64xbf16>
    %cst_213 = arith.constant dense<0.000000e+00> : vector<16x64xf32>
    %356 = tpu.matmul %355, %44, %cst_213 {dimension_numbers = #tpu.dot_dimension_numbers<[1], [0], [0], [1], [0, 0, 1, 1], [], []>} : vector<16x64xbf16>, vector<64x64xbf16>, vector<16x64xf32> -> vector<16x64xf32>
    %357 = vector.broadcast %38 : vector<1x64xf32> to vector<16x64xf32>
    %358 = arith.addf %356, %357 : vector<16x64xf32>
    %cst_214 = arith.constant dense<0.000000e+00> : vector<16xf32>
    %359 = vector.multi_reduction <add>, %358, %cst_214 [1] : vector<16x64xf32> to vector<16xf32>
    %360 = vector.shape_cast %359 : vector<16xf32> to vector<16x1xf32>
    %cst_215 = arith.constant 6.400000e+01 : f32
    %361 = vector.broadcast %cst_215 : f32 to vector<16x1xf32>
    %362 = arith.divf %360, %361 : vector<16x1xf32>
    %363 = vector.broadcast %362 : vector<16x1xf32> to vector<16x64xf32>
    %364 = arith.subf %358, %363 : vector<16x64xf32>
    %365 = arith.mulf %364, %364 : vector<16x64xf32>
    %cst_216 = arith.constant dense<0.000000e+00> : vector<16xf32>
    %366 = vector.multi_reduction <add>, %365, %cst_216 [1] : vector<16x64xf32> to vector<16xf32>
    %367 = vector.shape_cast %366 : vector<16xf32> to vector<16x1xf32>
    %cst_217 = arith.constant 6.400000e+01 : f32
    %368 = vector.broadcast %cst_217 : f32 to vector<16x1xf32>
    %369 = arith.divf %367, %368 : vector<16x1xf32>
    %370 = vector.broadcast %362 : vector<16x1xf32> to vector<16x64xf32>
    %371 = arith.subf %358, %370 : vector<16x64xf32>
    %cst_218 = arith.constant 9.99999974E-6 : f32
    %372 = vector.broadcast %cst_218 : f32 to vector<16x1xf32>
    %373 = arith.addf %369, %372 : vector<16x1xf32>
    %374 = math.rsqrt %373 : vector<16x1xf32>
    %375 = vector.broadcast %374 : vector<16x1xf32> to vector<16x64xf32>
    %376 = arith.mulf %371, %375 : vector<16x64xf32>
    %377 = vector.broadcast %42 : vector<1x64xf32> to vector<16x64xf32>
    %378 = arith.mulf %376, %377 : vector<16x64xf32>
    %379 = vector.broadcast %40 : vector<1x64xf32> to vector<16x64xf32>
    %380 = arith.addf %378, %379 : vector<16x64xf32>
    %cst_219 = arith.constant 0.000000e+00 : f32
    %381 = vector.broadcast %cst_219 : f32 to vector<16x64xf32>
    %382 = arith.maximumf %380, %381 : vector<16x64xf32>
    %383 = arith.truncf %382 : vector<16x64xf32> to vector<16x64xbf16>
    %cst_220 = arith.constant dense<0.000000e+00> : vector<16x64xf32>
    %384 = tpu.matmul %383, %45, %cst_220 {dimension_numbers = #tpu.dot_dimension_numbers<[1], [0], [0], [1], [0, 0, 1, 1], [], []>} : vector<16x64xbf16>, vector<64x64xbf16>, vector<16x64xf32> -> vector<16x64xf32>
    %385 = vector.broadcast %39 : vector<1x64xf32> to vector<16x64xf32>
    %386 = arith.addf %384, %385 : vector<16x64xf32>
    %cst_221 = arith.constant dense<0.000000e+00> : vector<16xf32>
    %387 = vector.multi_reduction <add>, %386, %cst_221 [1] : vector<16x64xf32> to vector<16xf32>
    %388 = vector.shape_cast %387 : vector<16xf32> to vector<16x1xf32>
    %cst_222 = arith.constant 6.400000e+01 : f32
    %389 = vector.broadcast %cst_222 : f32 to vector<16x1xf32>
    %390 = arith.divf %388, %389 : vector<16x1xf32>
    %391 = vector.broadcast %390 : vector<16x1xf32> to vector<16x64xf32>
    %392 = arith.subf %386, %391 : vector<16x64xf32>
    %393 = arith.mulf %392, %392 : vector<16x64xf32>
    %cst_223 = arith.constant dense<0.000000e+00> : vector<16xf32>
    %394 = vector.multi_reduction <add>, %393, %cst_223 [1] : vector<16x64xf32> to vector<16xf32>
    %395 = vector.shape_cast %394 : vector<16xf32> to vector<16x1xf32>
    %cst_224 = arith.constant 6.400000e+01 : f32
    %396 = vector.broadcast %cst_224 : f32 to vector<16x1xf32>
    %397 = arith.divf %395, %396 : vector<16x1xf32>
    %398 = vector.broadcast %390 : vector<16x1xf32> to vector<16x64xf32>
    %399 = arith.subf %386, %398 : vector<16x64xf32>
    %cst_225 = arith.constant 9.99999974E-6 : f32
    %400 = vector.broadcast %cst_225 : f32 to vector<16x1xf32>
    %401 = arith.addf %397, %400 : vector<16x1xf32>
    %402 = math.rsqrt %401 : vector<16x1xf32>
    %403 = vector.broadcast %402 : vector<16x1xf32> to vector<16x64xf32>
    %404 = arith.mulf %399, %403 : vector<16x64xf32>
    %405 = vector.broadcast %43 : vector<1x64xf32> to vector<16x64xf32>
    %406 = arith.mulf %404, %405 : vector<16x64xf32>
    %407 = vector.broadcast %41 : vector<1x64xf32> to vector<16x64xf32>
    %408 = arith.addf %406, %407 : vector<16x64xf32>
    %409 = arith.extf %355 : vector<16x64xbf16> to vector<16x64xf32>
    %410 = arith.addf %408, %409 : vector<16x64xf32>
    %cst_226 = arith.constant 0.000000e+00 : f32
    %411 = vector.broadcast %cst_226 : f32 to vector<16x64xf32>
    %412 = arith.maximumf %410, %411 : vector<16x64xf32>
    %413 = vector.extract_strided_slice %354 {offsets = [0, 0], sizes = [16, 1], strides = [1, 1]} : vector<16x4xf32> to vector<16x1xf32>
    %cst_227 = arith.constant 5.000000e-01 : f32
    %414 = vector.broadcast %cst_227 : f32 to vector<16x1xf32>
    %415 = arith.cmpf ogt, %413, %414 : vector<16x1xf32>
    %cst_228 = arith.constant -1.000000e+30 : f32
    %416 = vector.shape_cast %415 : vector<16x1xi1> to vector<16x1xi1>
    %417 = vector.broadcast %416 : vector<16x1xi1> to vector<16x64xi1>
    %418 = vector.broadcast %cst_228 : f32 to vector<16x64xf32>
    %419 = arith.select %417, %412, %418 : vector<16x64xi1>, vector<16x64xf32>
    %cst_229 = arith.constant dense<0xFF800000> : vector<64xf32>
    %420 = vector.multi_reduction <maximumf>, %419, %cst_229 [0] : vector<16x64xf32> to vector<64xf32>
    %421 = vector.shape_cast %420 : vector<64xf32> to vector<1x64xf32>
    %422 = vector.extract_strided_slice %354 {offsets = [0, 1], sizes = [16, 1], strides = [1, 1]} : vector<16x4xf32> to vector<16x1xf32>
    %cst_230 = arith.constant 5.000000e-01 : f32
    %423 = vector.broadcast %cst_230 : f32 to vector<16x1xf32>
    %424 = arith.cmpf ogt, %422, %423 : vector<16x1xf32>
    %cst_231 = arith.constant -1.000000e+30 : f32
    %425 = vector.shape_cast %424 : vector<16x1xi1> to vector<16x1xi1>
    %426 = vector.broadcast %425 : vector<16x1xi1> to vector<16x64xi1>
    %427 = vector.broadcast %cst_231 : f32 to vector<16x64xf32>
    %428 = arith.select %426, %412, %427 : vector<16x64xi1>, vector<16x64xf32>
    %cst_232 = arith.constant dense<0xFF800000> : vector<64xf32>
    %429 = vector.multi_reduction <maximumf>, %428, %cst_232 [0] : vector<16x64xf32> to vector<64xf32>
    %430 = vector.shape_cast %429 : vector<64xf32> to vector<1x64xf32>
    %431 = vector.extract_strided_slice %354 {offsets = [0, 2], sizes = [16, 1], strides = [1, 1]} : vector<16x4xf32> to vector<16x1xf32>
    %cst_233 = arith.constant 5.000000e-01 : f32
    %432 = vector.broadcast %cst_233 : f32 to vector<16x1xf32>
    %433 = arith.cmpf ogt, %431, %432 : vector<16x1xf32>
    %cst_234 = arith.constant -1.000000e+30 : f32
    %434 = vector.shape_cast %433 : vector<16x1xi1> to vector<16x1xi1>
    %435 = vector.broadcast %434 : vector<16x1xi1> to vector<16x64xi1>
    %436 = vector.broadcast %cst_234 : f32 to vector<16x64xf32>
    %437 = arith.select %435, %412, %436 : vector<16x64xi1>, vector<16x64xf32>
    %cst_235 = arith.constant dense<0xFF800000> : vector<64xf32>
    %438 = vector.multi_reduction <maximumf>, %437, %cst_235 [0] : vector<16x64xf32> to vector<64xf32>
    %439 = vector.shape_cast %438 : vector<64xf32> to vector<1x64xf32>
    %440 = vector.extract_strided_slice %354 {offsets = [0, 3], sizes = [16, 1], strides = [1, 1]} : vector<16x4xf32> to vector<16x1xf32>
    %cst_236 = arith.constant 5.000000e-01 : f32
    %441 = vector.broadcast %cst_236 : f32 to vector<16x1xf32>
    %442 = arith.cmpf ogt, %440, %441 : vector<16x1xf32>
    %cst_237 = arith.constant -1.000000e+30 : f32
    %443 = vector.shape_cast %442 : vector<16x1xi1> to vector<16x1xi1>
    %444 = vector.broadcast %443 : vector<16x1xi1> to vector<16x64xi1>
    %445 = vector.broadcast %cst_237 : f32 to vector<16x64xf32>
    %446 = arith.select %444, %412, %445 : vector<16x64xi1>, vector<16x64xf32>
    %cst_238 = arith.constant dense<0xFF800000> : vector<64xf32>
    %447 = vector.multi_reduction <maximumf>, %446, %cst_238 [0] : vector<16x64xf32> to vector<64xf32>
    %448 = vector.shape_cast %447 : vector<64xf32> to vector<1x64xf32>
    %449 = tpu.concatenate %421, %430, %439, %448 in 0 : vector<1x64xf32>, vector<1x64xf32>, vector<1x64xf32>, vector<1x64xf32> -> vector<4x64xf32>
    %450 = arith.truncf %354 : vector<16x4xf32> to vector<16x4xbf16>
    %451 = arith.truncf %449 : vector<4x64xf32> to vector<4x64xbf16>
    %cst_239 = arith.constant dense<0.000000e+00> : vector<16x64xf32>
    %452 = tpu.matmul %450, %451, %cst_239 {dimension_numbers = #tpu.dot_dimension_numbers<[1], [0], [0], [1], [0, 0, 1, 1], [], []>} : vector<16x4xbf16>, vector<4x64xbf16>, vector<16x64xf32> -> vector<16x64xf32>
    %453 = tpu.concatenate %412, %452 in 1 : vector<16x64xf32>, vector<16x64xf32> -> vector<16x128xf32>
    %454 = arith.truncf %453 : vector<16x128xf32> to vector<16x128xbf16>
    %cst_240 = arith.constant dense<0.000000e+00> : vector<16x64xf32>
    %455 = tpu.matmul %454, %55, %cst_240 {dimension_numbers = #tpu.dot_dimension_numbers<[1], [0], [0], [1], [0, 0, 1, 1], [], []>} : vector<16x128xbf16>, vector<128x64xbf16>, vector<16x64xf32> -> vector<16x64xf32>
    %456 = vector.broadcast %46 : vector<1x64xf32> to vector<16x64xf32>
    %457 = arith.addf %455, %456 : vector<16x64xf32>
    %cst_241 = arith.constant dense<0.000000e+00> : vector<16xf32>
    %458 = vector.multi_reduction <add>, %457, %cst_241 [1] : vector<16x64xf32> to vector<16xf32>
    %459 = vector.shape_cast %458 : vector<16xf32> to vector<16x1xf32>
    %cst_242 = arith.constant 6.400000e+01 : f32
    %460 = vector.broadcast %cst_242 : f32 to vector<16x1xf32>
    %461 = arith.divf %459, %460 : vector<16x1xf32>
    %462 = vector.broadcast %461 : vector<16x1xf32> to vector<16x64xf32>
    %463 = arith.subf %457, %462 : vector<16x64xf32>
    %464 = arith.mulf %463, %463 : vector<16x64xf32>
    %cst_243 = arith.constant dense<0.000000e+00> : vector<16xf32>
    %465 = vector.multi_reduction <add>, %464, %cst_243 [1] : vector<16x64xf32> to vector<16xf32>
    %466 = vector.shape_cast %465 : vector<16xf32> to vector<16x1xf32>
    %cst_244 = arith.constant 6.400000e+01 : f32
    %467 = vector.broadcast %cst_244 : f32 to vector<16x1xf32>
    %468 = arith.divf %466, %467 : vector<16x1xf32>
    %469 = vector.broadcast %461 : vector<16x1xf32> to vector<16x64xf32>
    %470 = arith.subf %457, %469 : vector<16x64xf32>
    %cst_245 = arith.constant 9.99999974E-6 : f32
    %471 = vector.broadcast %cst_245 : f32 to vector<16x1xf32>
    %472 = arith.addf %468, %471 : vector<16x1xf32>
    %473 = math.rsqrt %472 : vector<16x1xf32>
    %474 = vector.broadcast %473 : vector<16x1xf32> to vector<16x64xf32>
    %475 = arith.mulf %470, %474 : vector<16x64xf32>
    %476 = vector.broadcast %52 : vector<1x64xf32> to vector<16x64xf32>
    %477 = arith.mulf %475, %476 : vector<16x64xf32>
    %478 = vector.broadcast %48 : vector<1x64xf32> to vector<16x64xf32>
    %479 = arith.addf %477, %478 : vector<16x64xf32>
    %cst_246 = arith.constant 0.000000e+00 : f32
    %480 = vector.broadcast %cst_246 : f32 to vector<16x64xf32>
    %481 = arith.maximumf %479, %480 : vector<16x64xf32>
    %482 = arith.truncf %481 : vector<16x64xf32> to vector<16x64xbf16>
    %cst_247 = arith.constant dense<0.000000e+00> : vector<16x64xf32>
    %483 = tpu.matmul %482, %56, %cst_247 {dimension_numbers = #tpu.dot_dimension_numbers<[1], [0], [0], [1], [0, 0, 1, 1], [], []>} : vector<16x64xbf16>, vector<64x64xbf16>, vector<16x64xf32> -> vector<16x64xf32>
    %484 = vector.broadcast %47 : vector<1x64xf32> to vector<16x64xf32>
    %485 = arith.addf %483, %484 : vector<16x64xf32>
    %cst_248 = arith.constant dense<0.000000e+00> : vector<16xf32>
    %486 = vector.multi_reduction <add>, %485, %cst_248 [1] : vector<16x64xf32> to vector<16xf32>
    %487 = vector.shape_cast %486 : vector<16xf32> to vector<16x1xf32>
    %cst_249 = arith.constant 6.400000e+01 : f32
    %488 = vector.broadcast %cst_249 : f32 to vector<16x1xf32>
    %489 = arith.divf %487, %488 : vector<16x1xf32>
    %490 = vector.broadcast %489 : vector<16x1xf32> to vector<16x64xf32>
    %491 = arith.subf %485, %490 : vector<16x64xf32>
    %492 = arith.mulf %491, %491 : vector<16x64xf32>
    %cst_250 = arith.constant dense<0.000000e+00> : vector<16xf32>
    %493 = vector.multi_reduction <add>, %492, %cst_250 [1] : vector<16x64xf32> to vector<16xf32>
    %494 = vector.shape_cast %493 : vector<16xf32> to vector<16x1xf32>
    %cst_251 = arith.constant 6.400000e+01 : f32
    %495 = vector.broadcast %cst_251 : f32 to vector<16x1xf32>
    %496 = arith.divf %494, %495 : vector<16x1xf32>
    %497 = vector.broadcast %489 : vector<16x1xf32> to vector<16x64xf32>
    %498 = arith.subf %485, %497 : vector<16x64xf32>
    %cst_252 = arith.constant 9.99999974E-6 : f32
    %499 = vector.broadcast %cst_252 : f32 to vector<16x1xf32>
    %500 = arith.addf %496, %499 : vector<16x1xf32>
    %501 = math.rsqrt %500 : vector<16x1xf32>
    %502 = vector.broadcast %501 : vector<16x1xf32> to vector<16x64xf32>
    %503 = arith.mulf %498, %502 : vector<16x64xf32>
    %504 = vector.broadcast %53 : vector<1x64xf32> to vector<16x64xf32>
    %505 = arith.mulf %503, %504 : vector<16x64xf32>
    %506 = vector.broadcast %49 : vector<1x64xf32> to vector<16x64xf32>
    %507 = arith.addf %505, %506 : vector<16x64xf32>
    %cst_253 = arith.constant dense<0.000000e+00> : vector<16x64xf32>
    %508 = tpu.matmul %454, %57, %cst_253 {dimension_numbers = #tpu.dot_dimension_numbers<[1], [0], [0], [1], [0, 0, 1, 1], [], []>} : vector<16x128xbf16>, vector<128x64xbf16>, vector<16x64xf32> -> vector<16x64xf32>
    %509 = vector.broadcast %51 : vector<1x64xf32> to vector<16x64xf32>
    %510 = arith.addf %508, %509 : vector<16x64xf32>
    %cst_254 = arith.constant dense<0.000000e+00> : vector<16xf32>
    %511 = vector.multi_reduction <add>, %510, %cst_254 [1] : vector<16x64xf32> to vector<16xf32>
    %512 = vector.shape_cast %511 : vector<16xf32> to vector<16x1xf32>
    %cst_255 = arith.constant 6.400000e+01 : f32
    %513 = vector.broadcast %cst_255 : f32 to vector<16x1xf32>
    %514 = arith.divf %512, %513 : vector<16x1xf32>
    %515 = vector.broadcast %514 : vector<16x1xf32> to vector<16x64xf32>
    %516 = arith.subf %510, %515 : vector<16x64xf32>
    %517 = arith.mulf %516, %516 : vector<16x64xf32>
    %cst_256 = arith.constant dense<0.000000e+00> : vector<16xf32>
    %518 = vector.multi_reduction <add>, %517, %cst_256 [1] : vector<16x64xf32> to vector<16xf32>
    %519 = vector.shape_cast %518 : vector<16xf32> to vector<16x1xf32>
    %cst_257 = arith.constant 6.400000e+01 : f32
    %520 = vector.broadcast %cst_257 : f32 to vector<16x1xf32>
    %521 = arith.divf %519, %520 : vector<16x1xf32>
    %522 = vector.broadcast %514 : vector<16x1xf32> to vector<16x64xf32>
    %523 = arith.subf %510, %522 : vector<16x64xf32>
    %cst_258 = arith.constant 9.99999974E-6 : f32
    %524 = vector.broadcast %cst_258 : f32 to vector<16x1xf32>
    %525 = arith.addf %521, %524 : vector<16x1xf32>
    %526 = math.rsqrt %525 : vector<16x1xf32>
    %527 = vector.broadcast %526 : vector<16x1xf32> to vector<16x64xf32>
    %528 = arith.mulf %523, %527 : vector<16x64xf32>
    %529 = vector.broadcast %54 : vector<1x64xf32> to vector<16x64xf32>
    %530 = arith.mulf %528, %529 : vector<16x64xf32>
    %531 = vector.broadcast %50 : vector<1x64xf32> to vector<16x64xf32>
    %532 = arith.addf %530, %531 : vector<16x64xf32>
    %533 = arith.addf %507, %532 : vector<16x64xf32>
    %cst_259 = arith.constant 0.000000e+00 : f32
    %534 = vector.broadcast %cst_259 : f32 to vector<16x64xf32>
    %535 = arith.maximumf %533, %534 : vector<16x64xf32>
    %536 = vector.extract_strided_slice %354 {offsets = [0, 0], sizes = [16, 1], strides = [1, 1]} : vector<16x4xf32> to vector<16x1xf32>
    %cst_260 = arith.constant 5.000000e-01 : f32
    %537 = vector.broadcast %cst_260 : f32 to vector<16x1xf32>
    %538 = arith.cmpf ogt, %536, %537 : vector<16x1xf32>
    %cst_261 = arith.constant -1.000000e+30 : f32
    %539 = vector.shape_cast %538 : vector<16x1xi1> to vector<16x1xi1>
    %540 = vector.broadcast %539 : vector<16x1xi1> to vector<16x64xi1>
    %541 = vector.broadcast %cst_261 : f32 to vector<16x64xf32>
    %542 = arith.select %540, %535, %541 : vector<16x64xi1>, vector<16x64xf32>
    %cst_262 = arith.constant dense<0xFF800000> : vector<64xf32>
    %543 = vector.multi_reduction <maximumf>, %542, %cst_262 [0] : vector<16x64xf32> to vector<64xf32>
    %544 = vector.shape_cast %543 : vector<64xf32> to vector<1x64xf32>
    %545 = vector.extract_strided_slice %354 {offsets = [0, 1], sizes = [16, 1], strides = [1, 1]} : vector<16x4xf32> to vector<16x1xf32>
    %cst_263 = arith.constant 5.000000e-01 : f32
    %546 = vector.broadcast %cst_263 : f32 to vector<16x1xf32>
    %547 = arith.cmpf ogt, %545, %546 : vector<16x1xf32>
    %cst_264 = arith.constant -1.000000e+30 : f32
    %548 = vector.shape_cast %547 : vector<16x1xi1> to vector<16x1xi1>
    %549 = vector.broadcast %548 : vector<16x1xi1> to vector<16x64xi1>
    %550 = vector.broadcast %cst_264 : f32 to vector<16x64xf32>
    %551 = arith.select %549, %535, %550 : vector<16x64xi1>, vector<16x64xf32>
    %cst_265 = arith.constant dense<0xFF800000> : vector<64xf32>
    %552 = vector.multi_reduction <maximumf>, %551, %cst_265 [0] : vector<16x64xf32> to vector<64xf32>
    %553 = vector.shape_cast %552 : vector<64xf32> to vector<1x64xf32>
    %554 = vector.extract_strided_slice %354 {offsets = [0, 2], sizes = [16, 1], strides = [1, 1]} : vector<16x4xf32> to vector<16x1xf32>
    %cst_266 = arith.constant 5.000000e-01 : f32
    %555 = vector.broadcast %cst_266 : f32 to vector<16x1xf32>
    %556 = arith.cmpf ogt, %554, %555 : vector<16x1xf32>
    %cst_267 = arith.constant -1.000000e+30 : f32
    %557 = vector.shape_cast %556 : vector<16x1xi1> to vector<16x1xi1>
    %558 = vector.broadcast %557 : vector<16x1xi1> to vector<16x64xi1>
    %559 = vector.broadcast %cst_267 : f32 to vector<16x64xf32>
    %560 = arith.select %558, %535, %559 : vector<16x64xi1>, vector<16x64xf32>
    %cst_268 = arith.constant dense<0xFF800000> : vector<64xf32>
    %561 = vector.multi_reduction <maximumf>, %560, %cst_268 [0] : vector<16x64xf32> to vector<64xf32>
    %562 = vector.shape_cast %561 : vector<64xf32> to vector<1x64xf32>
    %563 = vector.extract_strided_slice %354 {offsets = [0, 3], sizes = [16, 1], strides = [1, 1]} : vector<16x4xf32> to vector<16x1xf32>
    %cst_269 = arith.constant 5.000000e-01 : f32
    %564 = vector.broadcast %cst_269 : f32 to vector<16x1xf32>
    %565 = arith.cmpf ogt, %563, %564 : vector<16x1xf32>
    %cst_270 = arith.constant -1.000000e+30 : f32
    %566 = vector.shape_cast %565 : vector<16x1xi1> to vector<16x1xi1>
    %567 = vector.broadcast %566 : vector<16x1xi1> to vector<16x64xi1>
    %568 = vector.broadcast %cst_270 : f32 to vector<16x64xf32>
    %569 = arith.select %567, %535, %568 : vector<16x64xi1>, vector<16x64xf32>
    %cst_271 = arith.constant dense<0xFF800000> : vector<64xf32>
    %570 = vector.multi_reduction <maximumf>, %569, %cst_271 [0] : vector<16x64xf32> to vector<64xf32>
    %571 = vector.shape_cast %570 : vector<64xf32> to vector<1x64xf32>
    %572 = tpu.concatenate %544, %553, %562, %571 in 0 : vector<1x64xf32>, vector<1x64xf32>, vector<1x64xf32>, vector<1x64xf32> -> vector<4x64xf32>
    %573 = arith.truncf %354 : vector<16x4xf32> to vector<16x4xbf16>
    %574 = arith.truncf %572 : vector<4x64xf32> to vector<4x64xbf16>
    %cst_272 = arith.constant dense<0.000000e+00> : vector<16x64xf32>
    %575 = tpu.matmul %573, %574, %cst_272 {dimension_numbers = #tpu.dot_dimension_numbers<[1], [0], [0], [1], [0, 0, 1, 1], [], []>} : vector<16x4xbf16>, vector<4x64xbf16>, vector<16x64xf32> -> vector<16x64xf32>
    %576 = tpu.concatenate %535, %575 in 1 : vector<16x64xf32>, vector<16x64xf32> -> vector<16x128xf32>
    %577 = arith.truncf %576 : vector<16x128xf32> to vector<16x128xbf16>
    %cst_273 = arith.constant dense<0.000000e+00> : vector<16x64xf32>
    %578 = tpu.matmul %577, %67, %cst_273 {dimension_numbers = #tpu.dot_dimension_numbers<[1], [0], [0], [1], [0, 0, 1, 1], [], []>} : vector<16x128xbf16>, vector<128x64xbf16>, vector<16x64xf32> -> vector<16x64xf32>
    %579 = vector.broadcast %58 : vector<1x64xf32> to vector<16x64xf32>
    %580 = arith.addf %578, %579 : vector<16x64xf32>
    %cst_274 = arith.constant dense<0.000000e+00> : vector<16xf32>
    %581 = vector.multi_reduction <add>, %580, %cst_274 [1] : vector<16x64xf32> to vector<16xf32>
    %582 = vector.shape_cast %581 : vector<16xf32> to vector<16x1xf32>
    %cst_275 = arith.constant 6.400000e+01 : f32
    %583 = vector.broadcast %cst_275 : f32 to vector<16x1xf32>
    %584 = arith.divf %582, %583 : vector<16x1xf32>
    %585 = vector.broadcast %584 : vector<16x1xf32> to vector<16x64xf32>
    %586 = arith.subf %580, %585 : vector<16x64xf32>
    %587 = arith.mulf %586, %586 : vector<16x64xf32>
    %cst_276 = arith.constant dense<0.000000e+00> : vector<16xf32>
    %588 = vector.multi_reduction <add>, %587, %cst_276 [1] : vector<16x64xf32> to vector<16xf32>
    %589 = vector.shape_cast %588 : vector<16xf32> to vector<16x1xf32>
    %cst_277 = arith.constant 6.400000e+01 : f32
    %590 = vector.broadcast %cst_277 : f32 to vector<16x1xf32>
    %591 = arith.divf %589, %590 : vector<16x1xf32>
    %592 = vector.broadcast %584 : vector<16x1xf32> to vector<16x64xf32>
    %593 = arith.subf %580, %592 : vector<16x64xf32>
    %cst_278 = arith.constant 9.99999974E-6 : f32
    %594 = vector.broadcast %cst_278 : f32 to vector<16x1xf32>
    %595 = arith.addf %591, %594 : vector<16x1xf32>
    %596 = math.rsqrt %595 : vector<16x1xf32>
    %597 = vector.broadcast %596 : vector<16x1xf32> to vector<16x64xf32>
    %598 = arith.mulf %593, %597 : vector<16x64xf32>
    %599 = vector.broadcast %64 : vector<1x64xf32> to vector<16x64xf32>
    %600 = arith.mulf %598, %599 : vector<16x64xf32>
    %601 = vector.broadcast %60 : vector<1x64xf32> to vector<16x64xf32>
    %602 = arith.addf %600, %601 : vector<16x64xf32>
    %cst_279 = arith.constant 0.000000e+00 : f32
    %603 = vector.broadcast %cst_279 : f32 to vector<16x64xf32>
    %604 = arith.maximumf %602, %603 : vector<16x64xf32>
    %605 = arith.truncf %604 : vector<16x64xf32> to vector<16x64xbf16>
    %cst_280 = arith.constant dense<0.000000e+00> : vector<16x64xf32>
    %606 = tpu.matmul %605, %68, %cst_280 {dimension_numbers = #tpu.dot_dimension_numbers<[1], [0], [0], [1], [0, 0, 1, 1], [], []>} : vector<16x64xbf16>, vector<64x64xbf16>, vector<16x64xf32> -> vector<16x64xf32>
    %607 = vector.broadcast %59 : vector<1x64xf32> to vector<16x64xf32>
    %608 = arith.addf %606, %607 : vector<16x64xf32>
    %cst_281 = arith.constant dense<0.000000e+00> : vector<16xf32>
    %609 = vector.multi_reduction <add>, %608, %cst_281 [1] : vector<16x64xf32> to vector<16xf32>
    %610 = vector.shape_cast %609 : vector<16xf32> to vector<16x1xf32>
    %cst_282 = arith.constant 6.400000e+01 : f32
    %611 = vector.broadcast %cst_282 : f32 to vector<16x1xf32>
    %612 = arith.divf %610, %611 : vector<16x1xf32>
    %613 = vector.broadcast %612 : vector<16x1xf32> to vector<16x64xf32>
    %614 = arith.subf %608, %613 : vector<16x64xf32>
    %615 = arith.mulf %614, %614 : vector<16x64xf32>
    %cst_283 = arith.constant dense<0.000000e+00> : vector<16xf32>
    %616 = vector.multi_reduction <add>, %615, %cst_283 [1] : vector<16x64xf32> to vector<16xf32>
    %617 = vector.shape_cast %616 : vector<16xf32> to vector<16x1xf32>
    %cst_284 = arith.constant 6.400000e+01 : f32
    %618 = vector.broadcast %cst_284 : f32 to vector<16x1xf32>
    %619 = arith.divf %617, %618 : vector<16x1xf32>
    %620 = vector.broadcast %612 : vector<16x1xf32> to vector<16x64xf32>
    %621 = arith.subf %608, %620 : vector<16x64xf32>
    %cst_285 = arith.constant 9.99999974E-6 : f32
    %622 = vector.broadcast %cst_285 : f32 to vector<16x1xf32>
    %623 = arith.addf %619, %622 : vector<16x1xf32>
    %624 = math.rsqrt %623 : vector<16x1xf32>
    %625 = vector.broadcast %624 : vector<16x1xf32> to vector<16x64xf32>
    %626 = arith.mulf %621, %625 : vector<16x64xf32>
    %627 = vector.broadcast %65 : vector<1x64xf32> to vector<16x64xf32>
    %628 = arith.mulf %626, %627 : vector<16x64xf32>
    %629 = vector.broadcast %61 : vector<1x64xf32> to vector<16x64xf32>
    %630 = arith.addf %628, %629 : vector<16x64xf32>
    %cst_286 = arith.constant dense<0.000000e+00> : vector<16x64xf32>
    %631 = tpu.matmul %577, %69, %cst_286 {dimension_numbers = #tpu.dot_dimension_numbers<[1], [0], [0], [1], [0, 0, 1, 1], [], []>} : vector<16x128xbf16>, vector<128x64xbf16>, vector<16x64xf32> -> vector<16x64xf32>
    %632 = vector.broadcast %63 : vector<1x64xf32> to vector<16x64xf32>
    %633 = arith.addf %631, %632 : vector<16x64xf32>
    %cst_287 = arith.constant dense<0.000000e+00> : vector<16xf32>
    %634 = vector.multi_reduction <add>, %633, %cst_287 [1] : vector<16x64xf32> to vector<16xf32>
    %635 = vector.shape_cast %634 : vector<16xf32> to vector<16x1xf32>
    %cst_288 = arith.constant 6.400000e+01 : f32
    %636 = vector.broadcast %cst_288 : f32 to vector<16x1xf32>
    %637 = arith.divf %635, %636 : vector<16x1xf32>
    %638 = vector.broadcast %637 : vector<16x1xf32> to vector<16x64xf32>
    %639 = arith.subf %633, %638 : vector<16x64xf32>
    %640 = arith.mulf %639, %639 : vector<16x64xf32>
    %cst_289 = arith.constant dense<0.000000e+00> : vector<16xf32>
    %641 = vector.multi_reduction <add>, %640, %cst_289 [1] : vector<16x64xf32> to vector<16xf32>
    %642 = vector.shape_cast %641 : vector<16xf32> to vector<16x1xf32>
    %cst_290 = arith.constant 6.400000e+01 : f32
    %643 = vector.broadcast %cst_290 : f32 to vector<16x1xf32>
    %644 = arith.divf %642, %643 : vector<16x1xf32>
    %645 = vector.broadcast %637 : vector<16x1xf32> to vector<16x64xf32>
    %646 = arith.subf %633, %645 : vector<16x64xf32>
    %cst_291 = arith.constant 9.99999974E-6 : f32
    %647 = vector.broadcast %cst_291 : f32 to vector<16x1xf32>
    %648 = arith.addf %644, %647 : vector<16x1xf32>
    %649 = math.rsqrt %648 : vector<16x1xf32>
    %650 = vector.broadcast %649 : vector<16x1xf32> to vector<16x64xf32>
    %651 = arith.mulf %646, %650 : vector<16x64xf32>
    %652 = vector.broadcast %66 : vector<1x64xf32> to vector<16x64xf32>
    %653 = arith.mulf %651, %652 : vector<16x64xf32>
    %654 = vector.broadcast %62 : vector<1x64xf32> to vector<16x64xf32>
    %655 = arith.addf %653, %654 : vector<16x64xf32>
    %656 = arith.addf %630, %655 : vector<16x64xf32>
    %cst_292 = arith.constant 0.000000e+00 : f32
    %657 = vector.broadcast %cst_292 : f32 to vector<16x64xf32>
    %658 = arith.maximumf %656, %657 : vector<16x64xf32>
    %659 = vector.extract_strided_slice %354 {offsets = [0, 0], sizes = [16, 1], strides = [1, 1]} : vector<16x4xf32> to vector<16x1xf32>
    %cst_293 = arith.constant 5.000000e-01 : f32
    %660 = vector.broadcast %cst_293 : f32 to vector<16x1xf32>
    %661 = arith.cmpf ogt, %659, %660 : vector<16x1xf32>
    %cst_294 = arith.constant -1.000000e+30 : f32
    %662 = vector.shape_cast %661 : vector<16x1xi1> to vector<16x1xi1>
    %663 = vector.broadcast %662 : vector<16x1xi1> to vector<16x64xi1>
    %664 = vector.broadcast %cst_294 : f32 to vector<16x64xf32>
    %665 = arith.select %663, %658, %664 : vector<16x64xi1>, vector<16x64xf32>
    %cst_295 = arith.constant dense<0xFF800000> : vector<64xf32>
    %666 = vector.multi_reduction <maximumf>, %665, %cst_295 [0] : vector<16x64xf32> to vector<64xf32>
    %667 = vector.shape_cast %666 : vector<64xf32> to vector<1x64xf32>
    %668 = vector.extract_strided_slice %354 {offsets = [0, 1], sizes = [16, 1], strides = [1, 1]} : vector<16x4xf32> to vector<16x1xf32>
    %cst_296 = arith.constant 5.000000e-01 : f32
    %669 = vector.broadcast %cst_296 : f32 to vector<16x1xf32>
    %670 = arith.cmpf ogt, %668, %669 : vector<16x1xf32>
    %cst_297 = arith.constant -1.000000e+30 : f32
    %671 = vector.shape_cast %670 : vector<16x1xi1> to vector<16x1xi1>
    %672 = vector.broadcast %671 : vector<16x1xi1> to vector<16x64xi1>
    %673 = vector.broadcast %cst_297 : f32 to vector<16x64xf32>
    %674 = arith.select %672, %658, %673 : vector<16x64xi1>, vector<16x64xf32>
    %cst_298 = arith.constant dense<0xFF800000> : vector<64xf32>
    %675 = vector.multi_reduction <maximumf>, %674, %cst_298 [0] : vector<16x64xf32> to vector<64xf32>
    %676 = vector.shape_cast %675 : vector<64xf32> to vector<1x64xf32>
    %677 = vector.extract_strided_slice %354 {offsets = [0, 2], sizes = [16, 1], strides = [1, 1]} : vector<16x4xf32> to vector<16x1xf32>
    %cst_299 = arith.constant 5.000000e-01 : f32
    %678 = vector.broadcast %cst_299 : f32 to vector<16x1xf32>
    %679 = arith.cmpf ogt, %677, %678 : vector<16x1xf32>
    %cst_300 = arith.constant -1.000000e+30 : f32
    %680 = vector.shape_cast %679 : vector<16x1xi1> to vector<16x1xi1>
    %681 = vector.broadcast %680 : vector<16x1xi1> to vector<16x64xi1>
    %682 = vector.broadcast %cst_300 : f32 to vector<16x64xf32>
    %683 = arith.select %681, %658, %682 : vector<16x64xi1>, vector<16x64xf32>
    %cst_301 = arith.constant dense<0xFF800000> : vector<64xf32>
    %684 = vector.multi_reduction <maximumf>, %683, %cst_301 [0] : vector<16x64xf32> to vector<64xf32>
    %685 = vector.shape_cast %684 : vector<64xf32> to vector<1x64xf32>
    %686 = vector.extract_strided_slice %354 {offsets = [0, 3], sizes = [16, 1], strides = [1, 1]} : vector<16x4xf32> to vector<16x1xf32>
    %cst_302 = arith.constant 5.000000e-01 : f32
    %687 = vector.broadcast %cst_302 : f32 to vector<16x1xf32>
    %688 = arith.cmpf ogt, %686, %687 : vector<16x1xf32>
    %cst_303 = arith.constant -1.000000e+30 : f32
    %689 = vector.shape_cast %688 : vector<16x1xi1> to vector<16x1xi1>
    %690 = vector.broadcast %689 : vector<16x1xi1> to vector<16x64xi1>
    %691 = vector.broadcast %cst_303 : f32 to vector<16x64xf32>
    %692 = arith.select %690, %658, %691 : vector<16x64xi1>, vector<16x64xf32>
    %cst_304 = arith.constant dense<0xFF800000> : vector<64xf32>
    %693 = vector.multi_reduction <maximumf>, %692, %cst_304 [0] : vector<16x64xf32> to vector<64xf32>
    %694 = vector.shape_cast %693 : vector<64xf32> to vector<1x64xf32>
    %695 = tpu.concatenate %667, %676, %685, %694 in 0 : vector<1x64xf32>, vector<1x64xf32>, vector<1x64xf32>, vector<1x64xf32> -> vector<4x64xf32>
    %696 = arith.truncf %354 : vector<16x4xf32> to vector<16x4xbf16>
    %697 = arith.truncf %695 : vector<4x64xf32> to vector<4x64xbf16>
    %cst_305 = arith.constant dense<0.000000e+00> : vector<16x64xf32>
    %698 = tpu.matmul %696, %697, %cst_305 {dimension_numbers = #tpu.dot_dimension_numbers<[1], [0], [0], [1], [0, 0, 1, 1], [], []>} : vector<16x4xbf16>, vector<4x64xbf16>, vector<16x64xf32> -> vector<16x64xf32>
    %699 = tpu.concatenate %658, %698 in 1 : vector<16x64xf32>, vector<16x64xf32> -> vector<16x128xf32>
    %700 = arith.truncf %699 : vector<16x128xf32> to vector<16x128xbf16>
    %cst_306 = arith.constant dense<0.000000e+00> : vector<16x64xf32>
    %701 = tpu.matmul %700, %70, %cst_306 {dimension_numbers = #tpu.dot_dimension_numbers<[1], [0], [0], [1], [0, 0, 1, 1], [], []>} : vector<16x128xbf16>, vector<128x64xbf16>, vector<16x64xf32> -> vector<16x64xf32>
    %702 = vector.broadcast %71 : vector<1x64xf32> to vector<16x64xf32>
    %703 = arith.addf %701, %702 : vector<16x64xf32>
    %704 = arith.mulf %703, %703 : vector<16x64xf32>
    %cst_307 = arith.constant dense<0.000000e+00> : vector<16xf32>
    %705 = vector.multi_reduction <add>, %704, %cst_307 [1] : vector<16x64xf32> to vector<16xf32>
    %706 = vector.shape_cast %705 : vector<16xf32> to vector<16x1xf32>
    %cst_308 = arith.constant 1.000000e-24 : f32
    %707 = vector.broadcast %cst_308 : f32 to vector<16x1xf32>
    %708 = arith.maximumf %706, %707 : vector<16x1xf32>
    %709 = math.rsqrt %708 : vector<16x1xf32>
    %710 = vector.broadcast %709 : vector<16x1xf32> to vector<16x64xf32>
    %711 = arith.mulf %703, %710 : vector<16x64xf32>
    %c0_309 = arith.constant 0 : index
    %c0_310 = arith.constant 0 : index
    %712 = vector.load %arg2[%c0_309, %c0_310] : memref<16x64xf32, #tpu.memory_space<vmem>>, vector<16x64xf32>
    %713 = tpu.concatenate %711, %712 in 1 : vector<16x64xf32>, vector<16x64xf32> -> vector<16x128xf32>
    %c0_311 = arith.constant 0 : index
    %c0_312 = arith.constant 0 : index
    %714 = vector.load %arg75[%c0_311, %c0_312] : memref<16x128xf32, #tpu.memory_space<vmem>>, vector<16x128xf32>
    tpu.vector_store %arg75[%c0_311, %c0_312], %713 {strides = array<i32>} : memref<16x128xf32, #tpu.memory_space<vmem>>, vector<16x128xf32>,
    return
  }
}

</mosaic_0001>

<llo_original>
// kernel: tpu_custom_call.1
$region0: #{tpu_custom_call.1}
  #allocation0 [shape = 'u32[]', space=smem, size = 0x4, offset = 0x4, fixed_abs, tag = 'smem constant byte address 0x4 - core index']
  #allocation1 [shape = 'u32[144,128]{1,0:T(1,128)}', space=vmem, size = 0x12000, scoped, tag = 'internal scratch']
  %s0 = inlined_call_operand.smem [shape: u32[76], index: -1, kind: input, shape index: {}]
  %s1 = sld [smem:[%s0]]
  %s2 = scalar_lea.smem %s0, 1
  %s3 = sld [smem:[%s2]]
  %s4 = scalar_lea.smem %s0, 2
  %s5 = sld [smem:[%s4]]
  %s6 = scalar_lea.smem %s0, 3
  %s7 = sld [smem:[%s6]]
  %s8 = scalar_lea.smem %s0, 4
  %s9 = sld [smem:[%s8]]
  %s10 = scalar_lea.smem %s0, 5
  %s11 = sld [smem:[%s10]]
  %s12 = scalar_lea.smem %s0, 6
  %s13 = sld [smem:[%s12]]
  %s14 = scalar_lea.smem %s0, 7
  %s15 = sld [smem:[%s14]]
  %s16 = scalar_lea.smem %s0, 8
  %s17 = sld [smem:[%s16]]
  %s18 = scalar_lea.smem %s0, 9
  %s19 = sld [smem:[%s18]]
  %s20 = scalar_lea.smem %s0, 10
  %s21 = sld [smem:[%s20]]
  %s22 = scalar_lea.smem %s0, 11
  %s23 = sld [smem:[%s22]]
  %s24 = scalar_lea.smem %s0, 12
  %s25 = sld [smem:[%s24]]
  %s26 = scalar_lea.smem %s0, 13
  %s27 = sld [smem:[%s26]]
  %s28 = scalar_lea.smem %s0, 14
  %s29 = sld [smem:[%s28]]
  %s30 = scalar_lea.smem %s0, 15
  %s31 = sld [smem:[%s30]]
  %s32 = scalar_lea.smem %s0, 16
  %s33 = sld [smem:[%s32]]
  %s34 = scalar_lea.smem %s0, 17
  %s35 = sld [smem:[%s34]]
  %s36 = scalar_lea.smem %s0, 18
  %s37 = sld [smem:[%s36]]
  %s38 = scalar_lea.smem %s0, 19
  %s39 = sld [smem:[%s38]]
  %s40 = scalar_lea.smem %s0, 20
  %s41 = sld [smem:[%s40]]
  %s42 = scalar_lea.smem %s0, 21
  %s43 = sld [smem:[%s42]]
  %s44 = scalar_lea.smem %s0, 22
  %s45 = sld [smem:[%s44]]
  %s46 = scalar_lea.smem %s0, 23
  %s47 = sld [smem:[%s46]]
  %s48 = scalar_lea.smem %s0, 24
  %s49 = sld [smem:[%s48]]
  %s50 = scalar_lea.smem %s0, 25
  %s51 = sld [smem:[%s50]]
  %s52 = scalar_lea.smem %s0, 26
  %s53 = sld [smem:[%s52]]
  %s54 = scalar_lea.smem %s0, 27
  %s55 = sld [smem:[%s54]]
  %s56 = scalar_lea.smem %s0, 28
  %s57 = sld [smem:[%s56]]
  %s58 = scalar_lea.smem %s0, 29
  %s59 = sld [smem:[%s58]]
  %s60 = scalar_lea.smem %s0, 30
  %s61 = sld [smem:[%s60]]
  %s62 = scalar_lea.smem %s0, 31
  %s63 = sld [smem:[%s62]]
  %s64 = scalar_lea.smem %s0, 32
  %s65 = sld [smem:[%s64]]
  %s66 = scalar_lea.smem %s0, 33
  %s67 = sld [smem:[%s66]]
  %s68 = scalar_lea.smem %s0, 34
  %s69 = sld [smem:[%s68]]
  %s70 = scalar_lea.smem %s0, 35
  %s71 = sld [smem:[%s70]]
  %s72 = scalar_lea.smem %s0, 36
  %s73 = sld [smem:[%s72]]
  %s74 = scalar_lea.smem %s0, 37
  %s75 = sld [smem:[%s74]]
  %s76 = scalar_lea.smem %s0, 38
  %s77 = sld [smem:[%s76]]
  %s78 = scalar_lea.smem %s0, 39
  %s79 = sld [smem:[%s78]]
  %s80 = scalar_lea.smem %s0, 40
  %s81 = sld [smem:[%s80]]
  %s82 = scalar_lea.smem %s0, 41
  %s83 = sld [smem:[%s82]]
  %s84 = scalar_lea.smem %s0, 42
  %s85 = sld [smem:[%s84]]
  %s86 = scalar_lea.smem %s0, 43
  %s87 = sld [smem:[%s86]]
  %s88 = scalar_lea.smem %s0, 44
  %s89 = sld [smem:[%s88]]
  %s90 = scalar_lea.smem %s0, 45
  %s91 = sld [smem:[%s90]]
  %s92 = scalar_lea.smem %s0, 46
  %s93 = sld [smem:[%s92]]
  %s94 = scalar_lea.smem %s0, 47
  %s95 = sld [smem:[%s94]]
  %s96 = scalar_lea.smem %s0, 48
  %s97 = sld [smem:[%s96]]
  %s98 = scalar_lea.smem %s0, 49
  %s99 = sld [smem:[%s98]]
  %s100 = scalar_lea.smem %s0, 50
  %s101 = sld [smem:[%s100]]
  %s102 = scalar_lea.smem %s0, 51
  %s103 = sld [smem:[%s102]]
  %s104 = scalar_lea.smem %s0, 52
  %s105 = sld [smem:[%s104]]
  %s106 = scalar_lea.smem %s0, 53
  %s107 = sld [smem:[%s106]]
  %s108 = scalar_lea.smem %s0, 54
  %s109 = sld [smem:[%s108]]
  %s110 = scalar_lea.smem %s0, 55
  %s111 = sld [smem:[%s110]]
  %s112 = scalar_lea.smem %s0, 56
  %s113 = sld [smem:[%s112]]
  %s114 = scalar_lea.smem %s0, 57
  %s115 = sld [smem:[%s114]]
  %s116 = scalar_lea.smem %s0, 58
  %s117 = sld [smem:[%s116]]
  %s118 = scalar_lea.smem %s0, 59
  %s119 = sld [smem:[%s118]]
  %s120 = scalar_lea.smem %s0, 60
  %s121 = sld [smem:[%s120]]
  %s122 = scalar_lea.smem %s0, 61
  %s123 = sld [smem:[%s122]]
  %s124 = scalar_lea.smem %s0, 62
  %s125 = sld [smem:[%s124]]
  %s126 = scalar_lea.smem %s0, 63
  %s127 = sld [smem:[%s126]]
  %s128 = scalar_lea.smem %s0, 64
  %s129 = sld [smem:[%s128]]
  %s130 = scalar_lea.smem %s0, 65
  %s131 = sld [smem:[%s130]]
  %s132 = scalar_lea.smem %s0, 66
  %s133 = sld [smem:[%s132]]
  %s134 = scalar_lea.smem %s0, 67
  %s135 = sld [smem:[%s134]]
  %s136 = scalar_lea.smem %s0, 68
  %s137 = sld [smem:[%s136]]
  %s138 = scalar_lea.smem %s0, 69
  %s139 = sld [smem:[%s138]]
  %s140 = scalar_lea.smem %s0, 70
  %s141 = sld [smem:[%s140]]
  %s142 = scalar_lea.smem %s0, 71
  %s143 = sld [smem:[%s142]]
  %s144 = scalar_lea.smem %s0, 72
  %s145 = sld [smem:[%s144]]
  %s146 = scalar_lea.smem %s0, 73
  %s147 = sld [smem:[%s146]]
  %s148 = scalar_lea.smem %s0, 74
  %s149 = sld [smem:[%s148]]
  %s150 = scalar_lea.smem %s0, 75
  %s151 = sld [smem:[%s150]]
  %s152 = sld [smem:[#allocation0]]
  $region422: #{tpu_custom_call.1} parent=0
    _
  %s154 = ssub.s32 1, %s152
  %s155 = scalar_select 0, %s154, %s152
  $region1: #{tpu_custom_call.1} parent=0
    #allocation2 [shape = 'u8[512]{0}', space=vmem, size = 0x400, scoped, tag = 'input window, operand 34, single buffered']
    #allocation3 [shape = 's32[1]{0}', space=sflag, size = 0x4, scoped, tag = 'scoped memory for tpu_custom_call.1']
    #allocation4 [shape = 's32[1]{0}', space=sflag, size = 0x4, scoped, tag = 'scoped memory for tpu_custom_call.1']
    #allocation5 [shape = 'u8[512]{0}', space=vmem, size = 0x400, scoped, tag = 'input window, operand 35, single buffered']
    #allocation6 [shape = 's32[1]{0}', space=sflag, size = 0x4, scoped, tag = 'scoped memory for tpu_custom_call.1']
    #allocation7 [shape = 'u8[512]{0}', space=vmem, size = 0x400, scoped, tag = 'input window, operand 40, single buffered']
    #allocation8 [shape = 'u8[512]{0}', space=vmem, size = 0x400, scoped, tag = 'input window, operand 41, single buffered']
    #allocation9 [shape = 's32[1]{0}', space=sflag, size = 0x4, scoped, tag = 'scoped memory for tpu_custom_call.1']
    #allocation10 [shape = 'u8[512]{0}', space=vmem, size = 0x400, scoped, tag = 'input window, operand 42, single buffered']
    #allocation11 [shape = 'u8[512]{0}', space=vmem, size = 0x400, scoped, tag = 'input window, operand 43, single buffered']
    #allocation12 [shape = 's32[1]{0}', space=sflag, size = 0x4, scoped, tag = 'scoped memory for tpu_custom_call.1']
    #allocation13 [shape = 'u8[512]{0}', space=vmem, size = 0x400, scoped, tag = 'input window, operand 44, single buffered']
    #allocation14 [shape = 'u8[512]{0}', space=vmem, size = 0x400, scoped, tag = 'input window, operand 45, single buffered']
    #allocation15 [shape = 's32[1]{0}', space=sflag, size = 0x4, scoped, tag = 'scoped memory for tpu_custom_call.1']
    #allocation16 [shape = 'u8[512]{0}', space=vmem, size = 0x400, scoped, tag = 'input window, operand 46, single buffered']
    #allocation17 [shape = 'u8[512]{0}', space=vmem, size = 0x400, scoped, tag = 'input window, operand 49, single buffered']
    #allocation18 [shape = 's32[1]{0}', space=sflag, size = 0x4, scoped, tag = 'scoped memory for tpu_custom_call.1']
    #allocation19 [shape = 'u8[512]{0}', space=vmem, size = 0x400, scoped, tag = 'input window, operand 50, single buffered']
    #allocation20 [shape = 'u8[512]{0}', space=vmem, size = 0x400, scoped, tag = 'input window, operand 51, single buffered']
    #allocation21 [shape = 's32[1]{0}', space=sflag, size = 0x4, scoped, tag = 'scoped memory for tpu_custom_call.1']
    #allocation22 [shape = 'u8[512]{0}', space=vmem, size = 0x400, scoped, tag = 'input window, operand 52, single buffered']
    #allocation23 [shape = 'u8[512]{0}', space=vmem, size = 0x400, scoped, tag = 'input window, operand 53, single buffered']
    #allocation24 [shape = 's32[1]{0}', space=sflag, size = 0x4, scoped, tag = 'scoped memory for tpu_custom_call.1']
    #allocation25 [shape = 'u8[512]{0}', space=vmem, size = 0x400, scoped, tag = 'input window, operand 54, single buffered']
    #allocation26 [shape = 'u8[512]{0}', space=vmem, size = 0x400, scoped, tag = 'input window, operand 55, single buffered']
    #allocation27 [shape = 's32[1]{0}', space=sflag, size = 0x4, scoped, tag = 'scoped memory for tpu_custom_call.1']
    #allocation28 [shape = 'u8[512]{0}', space=vmem, size = 0x400, scoped, tag = 'input window, operand 56, single buffered']
    #allocation29 [shape = 'u8[512]{0}', space=vmem, size = 0x400, scoped, tag = 'input window, operand 57, single buffered']
    #allocation30 [shape = 's32[1]{0}', space=sflag, size = 0x4, scoped, tag = 'scoped memory for tpu_custom_call.1']
    #allocation31 [shape = 'u8[512]{0}', space=vmem, size = 0x400, scoped, tag = 'input window, operand 61, single buffered']
    #allocation32 [shape = 'u8[512]{0}', space=vmem, size = 0x400, scoped, tag = 'input window, operand 62, single buffered']
    #allocation33 [shape = 's32[1]{0}', space=sflag, size = 0x4, scoped, tag = 'scoped memory for tpu_custom_call.1']
    #allocation34 [shape = 'u8[512]{0}', space=vmem, size = 0x400, scoped, tag = 'input window, operand 63, single buffered']
    #allocation35 [shape = 'u8[512]{0}', space=vmem, size = 0x400, scoped, tag = 'input window, operand 64, single buffered']
    #allocation36 [shape = 's32[1]{0}', space=sflag, size = 0x4, scoped, tag = 'scoped memory for tpu_custom_call.1']
    #allocation37 [shape = 'u8[512]{0}', space=vmem, size = 0x400, scoped, tag = 'input window, operand 65, single buffered']
    #allocation38 [shape = 'u8[512]{0}', space=vmem, size = 0x400, scoped, tag = 'input window, operand 66, single buffered']
    #allocation39 [shape = 's32[1]{0}', space=sflag, size = 0x4, scoped, tag = 'scoped memory for tpu_custom_call.1']
    #allocation40 [shape = 'u8[512]{0}', space=vmem, size = 0x400, scoped, tag = 'input window, operand 67, single buffered']
    #allocation41 [shape = 'u8[512]{0}', space=vmem, size = 0x400, scoped, tag = 'input window, operand 68, single buffered']
    #allocation42 [shape = 's32[1]{0}', space=sflag, size = 0x4, scoped, tag = 'scoped memory for tpu_custom_call.1']
    #allocation43 [shape = 'u8[512]{0}', space=vmem, size = 0x400, scoped, tag = 'input window, operand 69, single buffered']
    #allocation44 [shape = 'u8[512]{0}', space=vmem, size = 0x400, scoped, tag = 'input window, operand 74, single buffered']
    #allocation45 [shape = 's32[1]{0}', space=sflag, size = 0x4, scoped, tag = 'scoped memory for tpu_custom_call.1']
    #allocation46 [shape = 'u8[8192]{0}', space=vmem, size = 0x2000, scoped, tag = 'output window, operand 0, single buffered']
    %156 = vsyncpa [#allocation3], 0
    %157 = vsyncpa [#allocation6], 0
    %158 = vsyncpa [#allocation9], 0
    %159 = vsyncpa [#allocation12], 0
    %160 = vsyncpa [#allocation15], 0
    %161 = vsyncpa [#allocation18], 0
    %162 = vsyncpa [#allocation21], 0
    %163 = vsyncpa [#allocation24], 0
    %164 = vsyncpa [#allocation27], 0
    %165 = vsyncpa [#allocation30], 0
    %166 = vsyncpa [#allocation33], 0
    %167 = vsyncpa [#allocation36], 0
    %168 = vsyncpa [#allocation39], 0
    %169 = vsyncpa [#allocation42], 0
    %170 = vsyncpa [#allocation45], 0
    %171 = vsyncpa [#allocation4], 0
    // Predicated region
    $region2: #{tpu_custom_call.1} parent=1 // pred_check
      _
    $region3: #{tpu_custom_call.1} parent=1 // pred_check_branch
      %173 = sbr.rel (0) target = $region5
    $region4: #{tpu_custom_call.1} parent=1 // pred_region
      _
    $region5: #{tpu_custom_call.1} parent=1 // pred_fallthru
      _
    // Predicated region
    $region6: #{tpu_custom_call.1} parent=1 // pred_check
      _
    $region7: #{tpu_custom_call.1} parent=1 // pred_check_branch
      %175 = sbr.rel (0) target = $region9
    $region8: #{tpu_custom_call.1} parent=1 // pred_region
      _
    $region9: #{tpu_custom_call.1} parent=1 // pred_fallthru
      _
    // Predicated region
    $region10: #{tpu_custom_call.1} parent=1 // pred_check
      _
    $region11: #{tpu_custom_call.1} parent=1 // pred_check_branch
      %177 = sbr.rel (0) target = $region13
    $region12: #{tpu_custom_call.1} parent=1 // pred_region
      _
    $region13: #{tpu_custom_call.1} parent=1 // pred_fallthru
      _
    // Predicated region
    $region14: #{tpu_custom_call.1} parent=1 // pred_check
      _
    $region15: #{tpu_custom_call.1} parent=1 // pred_check_branch
      %179 = sbr.rel (0) target = $region17
    $region16: #{tpu_custom_call.1} parent=1 // pred_region
      _
    $region17: #{tpu_custom_call.1} parent=1 // pred_fallthru
      _
    // Predicated region
    $region18: #{tpu_custom_call.1} parent=1 // pred_check
      _
    $region19: #{tpu_custom_call.1} parent=1 // pred_check_branch
      %181 = sbr.rel (0) target = $region21
    $region20: #{tpu_custom_call.1} parent=1 // pred_region
      _
    $region21: #{tpu_custom_call.1} parent=1 // pred_fallthru
      _
    // Predicated region
    $region22: #{tpu_custom_call.1} parent=1 // pred_check
      _
    $region23: #{tpu_custom_call.1} parent=1 // pred_check_branch
      %183 = sbr.rel (0) target = $region25
    $region24: #{tpu_custom_call.1} parent=1 // pred_region
      _
    $region25: #{tpu_custom_call.1} parent=1 // pred_fallthru
      _
    // Predicated region
    $region26: #{tpu_custom_call.1} parent=1 // pred_check
      _
    $region27: #{tpu_custom_call.1} parent=1 // pred_check_branch
      %185 = sbr.rel (0) target = $region29
    $region28: #{tpu_custom_call.1} parent=1 // pred_region
      _
    $region29: #{tpu_custom_call.1} parent=1 // pred_fallthru
      _
    // Predicated region
    $region30: #{tpu_custom_call.1} parent=1 // pred_check
      _
    $region31: #{tpu_custom_call.1} parent=1 // pred_check_branch
      %187 = sbr.rel (0) target = $region33
    $region32: #{tpu_custom_call.1} parent=1 // pred_region
      _
    $region33: #{tpu_custom_call.1} parent=1 // pred_fallthru
      _
    // Predicated region
    $region34: #{tpu_custom_call.1} parent=1 // pred_check
      _
    $region35: #{tpu_custom_call.1} parent=1 // pred_check_branch
      %189 = sbr.rel (0) target = $region37
    $region36: #{tpu_custom_call.1} parent=1 // pred_region
      _
    $region37: #{tpu_custom_call.1} parent=1 // pred_fallthru
      _
    // Predicated region
    $region38: #{tpu_custom_call.1} parent=1 // pred_check
      _
    $region39: #{tpu_custom_call.1} parent=1 // pred_check_branch
      %191 = sbr.rel (0) target = $region41
    $region40: #{tpu_custom_call.1} parent=1 // pred_region
      _
    $region41: #{tpu_custom_call.1} parent=1 // pred_fallthru
      _
    // Predicated region
    $region42: #{tpu_custom_call.1} parent=1 // pred_check
      _
    $region43: #{tpu_custom_call.1} parent=1 // pred_check_branch
      %193 = sbr.rel (0) target = $region45
    $region44: #{tpu_custom_call.1} parent=1 // pred_region
      _
    $region45: #{tpu_custom_call.1} parent=1 // pred_fallthru
      _
    // Predicated region
    $region46: #{tpu_custom_call.1} parent=1 // pred_check
      _
    $region47: #{tpu_custom_call.1} parent=1 // pred_check_branch
      %195 = sbr.rel (0) target = $region49
    $region48: #{tpu_custom_call.1} parent=1 // pred_region
      _
    $region49: #{tpu_custom_call.1} parent=1 // pred_fallthru
      _
    // Predicated region
    $region50: #{tpu_custom_call.1} parent=1 // pred_check
      _
    $region51: #{tpu_custom_call.1} parent=1 // pred_check_branch
      %197 = sbr.rel (0) target = $region53
    $region52: #{tpu_custom_call.1} parent=1 // pred_region
      _
    $region53: #{tpu_custom_call.1} parent=1 // pred_fallthru
      _
    // Predicated region
    $region54: #{tpu_custom_call.1} parent=1 // pred_check
      _
    $region55: #{tpu_custom_call.1} parent=1 // pred_check_branch
      %199 = sbr.rel (0) target = $region57
    $region56: #{tpu_custom_call.1} parent=1 // pred_region
      _
    $region57: #{tpu_custom_call.1} parent=1 // pred_fallthru
      _
    // Predicated region
    $region58: #{tpu_custom_call.1} parent=1 // pred_check
      _
    $region59: #{tpu_custom_call.1} parent=1 // pred_check_branch
      %201 = sbr.rel (0) target = $region61
    $region60: #{tpu_custom_call.1} parent=1 // pred_region
      _
    $region61: #{tpu_custom_call.1} parent=1 // pred_fallthru
      _
    // Predicated region
    $region62: #{tpu_custom_call.1} parent=1 // pred_check
      _
    $region63: #{tpu_custom_call.1} parent=1 // pred_check_branch
      %203 = sbr.rel (0) target = $region65
    $region64: #{tpu_custom_call.1} parent=1 // pred_region
      _
    $region65: #{tpu_custom_call.1} parent=1 // pred_fallthru
      _
    // Predicated region
    $region66: #{tpu_custom_call.1} parent=1 // pred_check
      _
    $region67: #{tpu_custom_call.1} parent=1 // pred_check_branch
      %205 = sbr.rel (0) target = $region69
    $region68: #{tpu_custom_call.1} parent=1 // pred_region
      _
    $region69: #{tpu_custom_call.1} parent=1 // pred_fallthru
      _
    // Predicated region
    $region70: #{tpu_custom_call.1} parent=1 // pred_check
      _
    $region71: #{tpu_custom_call.1} parent=1 // pred_check_branch
      %207 = sbr.rel (0) target = $region73
    $region72: #{tpu_custom_call.1} parent=1 // pred_region
      _
    $region73: #{tpu_custom_call.1} parent=1 // pred_fallthru
      _
    // Predicated region
    $region74: #{tpu_custom_call.1} parent=1 // pred_check
      _
    $region75: #{tpu_custom_call.1} parent=1 // pred_check_branch
      %209 = sbr.rel (0) target = $region77
    $region76: #{tpu_custom_call.1} parent=1 // pred_region
      _
    $region77: #{tpu_custom_call.1} parent=1 // pred_fallthru
      _
    // Predicated region
    $region78: #{tpu_custom_call.1} parent=1 // pred_check
      _
    $region79: #{tpu_custom_call.1} parent=1 // pred_check_branch
      %211 = sbr.rel (0) target = $region81
    $region80: #{tpu_custom_call.1} parent=1 // pred_region
      _
    $region81: #{tpu_custom_call.1} parent=1 // pred_fallthru
      _
    // Predicated region
    $region82: #{tpu_custom_call.1} parent=1 // pred_check
      _
    $region83: #{tpu_custom_call.1} parent=1 // pred_check_branch
      %213 = sbr.rel (0) target = $region85
    $region84: #{tpu_custom_call.1} parent=1 // pred_region
      _
    $region85: #{tpu_custom_call.1} parent=1 // pred_fallthru
      _
    // Predicated region
    $region86: #{tpu_custom_call.1} parent=1 // pred_check
      _
    $region87: #{tpu_custom_call.1} parent=1 // pred_check_branch
      %215 = sbr.rel (0) target = $region89
    $region88: #{tpu_custom_call.1} parent=1 // pred_region
      _
    $region89: #{tpu_custom_call.1} parent=1 // pred_fallthru
      _
    // Predicated region
    $region90: #{tpu_custom_call.1} parent=1 // pred_check
      _
    $region91: #{tpu_custom_call.1} parent=1 // pred_check_branch
      %217 = sbr.rel (0) target = $region93
    $region92: #{tpu_custom_call.1} parent=1 // pred_region
      _
    $region93: #{tpu_custom_call.1} parent=1 // pred_fallthru
      _
    // Predicated region
    $region94: #{tpu_custom_call.1} parent=1 // pred_check
      _
    $region95: #{tpu_custom_call.1} parent=1 // pred_check_branch
      %219 = sbr.rel (0) target = $region97
    $region96: #{tpu_custom_call.1} parent=1 // pred_region
      _
    $region97: #{tpu_custom_call.1} parent=1 // pred_fallthru
      _
    // Predicated region
    $region98: #{tpu_custom_call.1} parent=1 // pred_check
      _
    $region99: #{tpu_custom_call.1} parent=1 // pred_check_branch
      %221 = sbr.rel (0) target = $region101
    $region100: #{tpu_custom_call.1} parent=1 // pred_region
      _
    $region101: #{tpu_custom_call.1} parent=1 // pred_fallthru
      _
    // Predicated region
    $region102: #{tpu_custom_call.1} parent=1 // pred_check
      _
    $region103: #{tpu_custom_call.1} parent=1 // pred_check_branch
      %223 = sbr.rel (0) target = $region105
    $region104: #{tpu_custom_call.1} parent=1 // pred_region
      _
    $region105: #{tpu_custom_call.1} parent=1 // pred_fallthru
      _
    // Predicated region
    $region106: #{tpu_custom_call.1} parent=1 // pred_check
      _
    $region107: #{tpu_custom_call.1} parent=1 // pred_check_branch
      %225 = sbr.rel (0) target = $region109
    $region108: #{tpu_custom_call.1} parent=1 // pred_region
      _
    $region109: #{tpu_custom_call.1} parent=1 // pred_fallthru
      _
    // Predicated region
    $region110: #{tpu_custom_call.1} parent=1 // pred_check
      _
    $region111: #{tpu_custom_call.1} parent=1 // pred_check_branch
      %227 = sbr.rel (0) target = $region113
    $region112: #{tpu_custom_call.1} parent=1 // pred_region
      _
    $region113: #{tpu_custom_call.1} parent=1 // pred_fallthru
      _
    // Predicated region
    $region114: #{tpu_custom_call.1} parent=1 // pred_check
      _
    $region115: #{tpu_custom_call.1} parent=1 // pred_check_branch
      %229 = sbr.rel (0) target = $region117
    $region116: #{tpu_custom_call.1} parent=1 // pred_region
      _
    $region117: #{tpu_custom_call.1} parent=1 // pred_fallthru
      _
    // Predicated region
    $region118: #{tpu_custom_call.1} parent=1 // pred_check
      _
    $region119: #{tpu_custom_call.1} parent=1 // pred_check_branch
      %231 = sbr.rel (0) target = $region121
    $region120: #{tpu_custom_call.1} parent=1 // pred_region
      _
    $region121: #{tpu_custom_call.1} parent=1 // pred_fallthru
      _
    // Predicated region
    $region122: #{tpu_custom_call.1} parent=1 // pred_check
      _
    $region123: #{tpu_custom_call.1} parent=1 // pred_check_branch
      %233 = sbr.rel (0) target = $region125
    $region124: #{tpu_custom_call.1} parent=1 // pred_region
      _
    $region125: #{tpu_custom_call.1} parent=1 // pred_fallthru
      _
    // Predicated region
    $region126: #{tpu_custom_call.1} parent=1 // pred_check
      _
    $region127: #{tpu_custom_call.1} parent=1 // pred_check_branch
      %235 = sbr.rel (0) target = $region129
    $region128: #{tpu_custom_call.1} parent=1 // pred_region
      _
    $region129: #{tpu_custom_call.1} parent=1 // pred_fallthru
      _
    // Predicated region
    $region130: #{tpu_custom_call.1} parent=1 // pred_check
      _
    $region131: #{tpu_custom_call.1} parent=1 // pred_check_branch
      %237 = sbr.rel (0) target = $region133
    $region132: #{tpu_custom_call.1} parent=1 // pred_region
      _
    $region133: #{tpu_custom_call.1} parent=1 // pred_fallthru
      _
    // Predicated region
    $region134: #{tpu_custom_call.1} parent=1 // pred_check
      _
    $region135: #{tpu_custom_call.1} parent=1 // pred_check_branch
      %239 = sbr.rel (0) target = $region137
    $region136: #{tpu_custom_call.1} parent=1 // pred_region
      _
    $region137: #{tpu_custom_call.1} parent=1 // pred_fallthru
      _
    // Predicated region
    $region138: #{tpu_custom_call.1} parent=1 // pred_check
      _
    $region139: #{tpu_custom_call.1} parent=1 // pred_check_branch
      %241 = sbr.rel (0) target = $region141
    $region140: #{tpu_custom_call.1} parent=1 // pred_region
      %s243 = ssub.s32 16, 16
      %244 = vsyncadd [#allocation3], %s243
      %s246 = sshll.u32 [#allocation2], 4
      %s247 = int_to_ptr.vmem [resolvable:$true] %s246
      %249 = dma.hbm_to_vmem [thread:$0]  %s69, 16, %s247, [#allocation3]
    $region141: #{tpu_custom_call.1} parent=1 // pred_fallthru
      _
    // Predicated region
    $region142: #{tpu_custom_call.1} parent=1 // pred_check
      _
    $region143: #{tpu_custom_call.1} parent=1 // pred_check_branch
      %251 = sbr.rel (0) target = $region145
    $region144: #{tpu_custom_call.1} parent=1 // pred_region
      %s253 = ssub.s32 16, 16
      %254 = vsyncadd [#allocation6], %s253
      %s256 = sshll.u32 [#allocation5], 4
      %s257 = int_to_ptr.vmem [resolvable:$true] %s256
      %259 = dma.hbm_to_vmem [thread:$0]  %s71, 16, %s257, [#allocation6]
    $region145: #{tpu_custom_call.1} parent=1 // pred_fallthru
      _
    // Predicated region
    $region146: #{tpu_custom_call.1} parent=1 // pred_check
      _
    $region147: #{tpu_custom_call.1} parent=1 // pred_check_branch
      %261 = sbr.rel (0) target = $region149
    $region148: #{tpu_custom_call.1} parent=1 // pred_region
      _
    $region149: #{tpu_custom_call.1} parent=1 // pred_fallthru
      _
    // Predicated region
    $region150: #{tpu_custom_call.1} parent=1 // pred_check
      _
    $region151: #{tpu_custom_call.1} parent=1 // pred_check_branch
      %263 = sbr.rel (0) target = $region153
    $region152: #{tpu_custom_call.1} parent=1 // pred_region
      _
    $region153: #{tpu_custom_call.1} parent=1 // pred_fallthru
      _
    // Predicated region
    $region154: #{tpu_custom_call.1} parent=1 // pred_check
      _
    $region155: #{tpu_custom_call.1} parent=1 // pred_check_branch
      %265 = sbr.rel (0) target = $region157
    $region156: #{tpu_custom_call.1} parent=1 // pred_region
      _
    $region157: #{tpu_custom_call.1} parent=1 // pred_fallthru
      _
    // Predicated region
    $region158: #{tpu_custom_call.1} parent=1 // pred_check
      _
    $region159: #{tpu_custom_call.1} parent=1 // pred_check_branch
      %267 = sbr.rel (0) target = $region161
    $region160: #{tpu_custom_call.1} parent=1 // pred_region
      _
    $region161: #{tpu_custom_call.1} parent=1 // pred_fallthru
      _
    // Predicated region
    $region162: #{tpu_custom_call.1} parent=1 // pred_check
      _
    $region163: #{tpu_custom_call.1} parent=1 // pred_check_branch
      %269 = sbr.rel (0) target = $region165
    $region164: #{tpu_custom_call.1} parent=1 // pred_region
      %s271 = ssub.s32 16, 16
      %272 = vsyncadd [#allocation6], %s271
      %s274 = sshll.u32 [#allocation7], 4
      %s275 = int_to_ptr.vmem [resolvable:$true] %s274
      %277 = dma.hbm_to_vmem [thread:$0]  %s81, 16, %s275, [#allocation6]
    $region165: #{tpu_custom_call.1} parent=1 // pred_fallthru
      _
    // Predicated region
    $region166: #{tpu_custom_call.1} parent=1 // pred_check
      _
    $region167: #{tpu_custom_call.1} parent=1 // pred_check_branch
      %279 = sbr.rel (0) target = $region169
    $region168: #{tpu_custom_call.1} parent=1 // pred_region
      %s281 = ssub.s32 16, 16
      %282 = vsyncadd [#allocation9], %s281
      %s284 = sshll.u32 [#allocation8], 4
      %s285 = int_to_ptr.vmem [resolvable:$true] %s284
      %287 = dma.hbm_to_vmem [thread:$0]  %s83, 16, %s285, [#allocation9]
    $region169: #{tpu_custom_call.1} parent=1 // pred_fallthru
      _
    // Predicated region
    $region170: #{tpu_custom_call.1} parent=1 // pred_check
      _
    $region171: #{tpu_custom_call.1} parent=1 // pred_check_branch
      %289 = sbr.rel (0) target = $region173
    $region172: #{tpu_custom_call.1} parent=1 // pred_region
      %s291 = ssub.s32 16, 16
      %292 = vsyncadd [#allocation9], %s291
      %s294 = sshll.u32 [#allocation10], 4
      %s295 = int_to_ptr.vmem [resolvable:$true] %s294
      %297 = dma.hbm_to_vmem [thread:$0]  %s85, 16, %s295, [#allocation9]
    $region173: #{tpu_custom_call.1} parent=1 // pred_fallthru
      _
    // Predicated region
    $region174: #{tpu_custom_call.1} parent=1 // pred_check
      _
    $region175: #{tpu_custom_call.1} parent=1 // pred_check_branch
      %299 = sbr.rel (0) target = $region177
    $region176: #{tpu_custom_call.1} parent=1 // pred_region
      %s301 = ssub.s32 16, 16
      %302 = vsyncadd [#allocation12], %s301
      %s304 = sshll.u32 [#allocation11], 4
      %s305 = int_to_ptr.vmem [resolvable:$true] %s304
      %307 = dma.hbm_to_vmem [thread:$0]  %s87, 16, %s305, [#allocation12]
    $region177: #{tpu_custom_call.1} parent=1 // pred_fallthru
      _
    // Predicated region
    $region178: #{tpu_custom_call.1} parent=1 // pred_check
      _
    $region179: #{tpu_custom_call.1} parent=1 // pred_check_branch
      %309 = sbr.rel (0) target = $region181
    $region180: #{tpu_custom_call.1} parent=1 // pred_region
      %s311 = ssub.s32 16, 16
      %312 = vsyncadd [#allocation12], %s311
      %s314 = sshll.u32 [#allocation13], 4
      %s315 = int_to_ptr.vmem [resolvable:$true] %s314
      %317 = dma.hbm_to_vmem [thread:$0]  %s89, 16, %s315, [#allocation12]
    $region181: #{tpu_custom_call.1} parent=1 // pred_fallthru
      _
    // Predicated region
    $region182: #{tpu_custom_call.1} parent=1 // pred_check
      _
    $region183: #{tpu_custom_call.1} parent=1 // pred_check_branch
      %319 = sbr.rel (0) target = $region185
    $region184: #{tpu_custom_call.1} parent=1 // pred_region
      %s321 = ssub.s32 16, 16
      %322 = vsyncadd [#allocation15], %s321
      %s324 = sshll.u32 [#allocation14], 4
      %s325 = int_to_ptr.vmem [resolvable:$true] %s324
      %327 = dma.hbm_to_vmem [thread:$0]  %s91, 16, %s325, [#allocation15]
    $region185: #{tpu_custom_call.1} parent=1 // pred_fallthru
      _
    // Predicated region
    $region186: #{tpu_custom_call.1} parent=1 // pred_check
      _
    $region187: #{tpu_custom_call.1} parent=1 // pred_check_branch
      %329 = sbr.rel (0) target = $region189
    $region188: #{tpu_custom_call.1} parent=1 // pred_region
      %s331 = ssub.s32 16, 16
      %332 = vsyncadd [#allocation15], %s331
      %s334 = sshll.u32 [#allocation16], 4
      %s335 = int_to_ptr.vmem [resolvable:$true] %s334
      %337 = dma.hbm_to_vmem [thread:$0]  %s93, 16, %s335, [#allocation15]
    $region189: #{tpu_custom_call.1} parent=1 // pred_fallthru
      _
    // Predicated region
    $region190: #{tpu_custom_call.1} parent=1 // pred_check
      _
    $region191: #{tpu_custom_call.1} parent=1 // pred_check_branch
      %339 = sbr.rel (0) target = $region193
    $region192: #{tpu_custom_call.1} parent=1 // pred_region
      _
    $region193: #{tpu_custom_call.1} parent=1 // pred_fallthru
      _
    // Predicated region
    $region194: #{tpu_custom_call.1} parent=1 // pred_check
      _
    $region195: #{tpu_custom_call.1} parent=1 // pred_check_branch
      %341 = sbr.rel (0) target = $region197
    $region196: #{tpu_custom_call.1} parent=1 // pred_region
      _
    $region197: #{tpu_custom_call.1} parent=1 // pred_fallthru
      _
    // Predicated region
    $region198: #{tpu_custom_call.1} parent=1 // pred_check
      _
    $region199: #{tpu_custom_call.1} parent=1 // pred_check_branch
      %343 = sbr.rel (0) target = $region201
    $region200: #{tpu_custom_call.1} parent=1 // pred_region
      %s345 = ssub.s32 16, 16
      %346 = vsyncadd [#allocation18], %s345
      %s348 = sshll.u32 [#allocation17], 4
      %s349 = int_to_ptr.vmem [resolvable:$true] %s348
      %351 = dma.hbm_to_vmem [thread:$0]  %s99, 16, %s349, [#allocation18]
    $region201: #{tpu_custom_call.1} parent=1 // pred_fallthru
      _
    // Predicated region
    $region202: #{tpu_custom_call.1} parent=1 // pred_check
      _
    $region203: #{tpu_custom_call.1} parent=1 // pred_check_branch
      %353 = sbr.rel (0) target = $region205
    $region204: #{tpu_custom_call.1} parent=1 // pred_region
      %s355 = ssub.s32 16, 16
      %356 = vsyncadd [#allocation18], %s355
      %s358 = sshll.u32 [#allocation19], 4
      %s359 = int_to_ptr.vmem [resolvable:$true] %s358
      %361 = dma.hbm_to_vmem [thread:$0]  %s101, 16, %s359, [#allocation18]
    $region205: #{tpu_custom_call.1} parent=1 // pred_fallthru
      _
    // Predicated region
    $region206: #{tpu_custom_call.1} parent=1 // pred_check
      _
    $region207: #{tpu_custom_call.1} parent=1 // pred_check_branch
      %363 = sbr.rel (0) target = $region209
    $region208: #{tpu_custom_call.1} parent=1 // pred_region
      %s365 = ssub.s32 16, 16
      %366 = vsyncadd [#allocation21], %s365
      %s368 = sshll.u32 [#allocation20], 4
      %s369 = int_to_ptr.vmem [resolvable:$true] %s368
      %371 = dma.hbm_to_vmem [thread:$0]  %s103, 16, %s369, [#allocation21]
    $region209: #{tpu_custom_call.1} parent=1 // pred_fallthru
      _
    // Predicated region
    $region210: #{tpu_custom_call.1} parent=1 // pred_check
      _
    $region211: #{tpu_custom_call.1} parent=1 // pred_check_branch
      %373 = sbr.rel (0) target = $region213
    $region212: #{tpu_custom_call.1} parent=1 // pred_region
      %s375 = ssub.s32 16, 16
      %376 = vsyncadd [#allocation21], %s375
      %s378 = sshll.u32 [#allocation22], 4
      %s379 = int_to_ptr.vmem [resolvable:$true] %s378
      %381 = dma.hbm_to_vmem [thread:$0]  %s105, 16, %s379, [#allocation21]
    $region213: #{tpu_custom_call.1} parent=1 // pred_fallthru
      _
    // Predicated region
    $region214: #{tpu_custom_call.1} parent=1 // pred_check
      _
    $region215: #{tpu_custom_call.1} parent=1 // pred_check_branch
      %383 = sbr.rel (0) target = $region217
    $region216: #{tpu_custom_call.1} parent=1 // pred_region
      %s385 = ssub.s32 16, 16
      %386 = vsyncadd [#allocation24], %s385
      %s388 = sshll.u32 [#allocation23], 4
      %s389 = int_to_ptr.vmem [resolvable:$true] %s388
      %391 = dma.hbm_to_vmem [thread:$0]  %s107, 16, %s389, [#allocation24]
    $region217: #{tpu_custom_call.1} parent=1 // pred_fallthru
      _
    // Predicated region
    $region218: #{tpu_custom_call.1} parent=1 // pred_check
      _
    $region219: #{tpu_custom_call.1} parent=1 // pred_check_branch
      %393 = sbr.rel (0) target = $region221
    $region220: #{tpu_custom_call.1} parent=1 // pred_region
      %s395 = ssub.s32 16, 16
      %396 = vsyncadd [#allocation24], %s395
      %s398 = sshll.u32 [#allocation25], 4
      %s399 = int_to_ptr.vmem [resolvable:$true] %s398
      %401 = dma.hbm_to_vmem [thread:$0]  %s109, 16, %s399, [#allocation24]
    $region221: #{tpu_custom_call.1} parent=1 // pred_fallthru
      _
    // Predicated region
    $region222: #{tpu_custom_call.1} parent=1 // pred_check
      _
    $region223: #{tpu_custom_call.1} parent=1 // pred_check_branch
      %403 = sbr.rel (0) target = $region225
    $region224: #{tpu_custom_call.1} parent=1 // pred_region
      %s405 = ssub.s32 16, 16
      %406 = vsyncadd [#allocation27], %s405
      %s408 = sshll.u32 [#allocation26], 4
      %s409 = int_to_ptr.vmem [resolvable:$true] %s408
      %411 = dma.hbm_to_vmem [thread:$0]  %s111, 16, %s409, [#allocation27]
    $region225: #{tpu_custom_call.1} parent=1 // pred_fallthru
      _
    // Predicated region
    $region226: #{tpu_custom_call.1} parent=1 // pred_check
      _
    $region227: #{tpu_custom_call.1} parent=1 // pred_check_branch
      %413 = sbr.rel (0) target = $region229
    $region228: #{tpu_custom_call.1} parent=1 // pred_region
      %s415 = ssub.s32 16, 16
      %416 = vsyncadd [#allocation27], %s415
      %s418 = sshll.u32 [#allocation28], 4
      %s419 = int_to_ptr.vmem [resolvable:$true] %s418
      %421 = dma.hbm_to_vmem [thread:$0]  %s113, 16, %s419, [#allocation27]
    $region229: #{tpu_custom_call.1} parent=1 // pred_fallthru
      _
    // Predicated region
    $region230: #{tpu_custom_call.1} parent=1 // pred_check
      _
    $region231: #{tpu_custom_call.1} parent=1 // pred_check_branch
      %423 = sbr.rel (0) target = $region233
    $region232: #{tpu_custom_call.1} parent=1 // pred_region
      %s425 = ssub.s32 16, 16
      %426 = vsyncadd [#allocation30], %s425
      %s428 = sshll.u32 [#allocation29], 4
      %s429 = int_to_ptr.vmem [resolvable:$true] %s428
      %431 = dma.hbm_to_vmem [thread:$0]  %s115, 16, %s429, [#allocation30]
    $region233: #{tpu_custom_call.1} parent=1 // pred_fallthru
      _
    // Predicated region
    $region234: #{tpu_custom_call.1} parent=1 // pred_check
      _
    $region235: #{tpu_custom_call.1} parent=1 // pred_check_branch
      %433 = sbr.rel (0) target = $region237
    $region236: #{tpu_custom_call.1} parent=1 // pred_region
      _
    $region237: #{tpu_custom_call.1} parent=1 // pred_fallthru
      _
    // Predicated region
    $region238: #{tpu_custom_call.1} parent=1 // pred_check
      _
    $region239: #{tpu_custom_call.1} parent=1 // pred_check_branch
      %435 = sbr.rel (0) target = $region241
    $region240: #{tpu_custom_call.1} parent=1 // pred_region
      _
    $region241: #{tpu_custom_call.1} parent=1 // pred_fallthru
      _
    // Predicated region
    $region242: #{tpu_custom_call.1} parent=1 // pred_check
      _
    $region243: #{tpu_custom_call.1} parent=1 // pred_check_branch
      %437 = sbr.rel (0) target = $region245
    $region244: #{tpu_custom_call.1} parent=1 // pred_region
      _
    $region245: #{tpu_custom_call.1} parent=1 // pred_fallthru
      _
    // Predicated region
    $region246: #{tpu_custom_call.1} parent=1 // pred_check
      _
    $region247: #{tpu_custom_call.1} parent=1 // pred_check_branch
      %439 = sbr.rel (0) target = $region249
    $region248: #{tpu_custom_call.1} parent=1 // pred_region
      %s441 = ssub.s32 16, 16
      %442 = vsyncadd [#allocation30], %s441
      %s444 = sshll.u32 [#allocation31], 4
      %s445 = int_to_ptr.vmem [resolvable:$true] %s444
      %447 = dma.hbm_to_vmem [thread:$0]  %s123, 16, %s445, [#allocation30]
    $region249: #{tpu_custom_call.1} parent=1 // pred_fallthru
      _
    // Predicated region
    $region250: #{tpu_custom_call.1} parent=1 // pred_check
      _
    $region251: #{tpu_custom_call.1} parent=1 // pred_check_branch
      %449 = sbr.rel (0) target = $region253
    $region252: #{tpu_custom_call.1} parent=1 // pred_region
      %s451 = ssub.s32 16, 16
      %452 = vsyncadd [#allocation33], %s451
      %s454 = sshll.u32 [#allocation32], 4
      %s455 = int_to_ptr.vmem [resolvable:$true] %s454
      %457 = dma.hbm_to_vmem [thread:$0]  %s125, 16, %s455, [#allocation33]
    $region253: #{tpu_custom_call.1} parent=1 // pred_fallthru
      _
    // Predicated region
    $region254: #{tpu_custom_call.1} parent=1 // pred_check
      _
    $region255: #{tpu_custom_call.1} parent=1 // pred_check_branch
      %459 = sbr.rel (0) target = $region257
    $region256: #{tpu_custom_call.1} parent=1 // pred_region
      %s461 = ssub.s32 16, 16
      %462 = vsyncadd [#allocation33], %s461
      %s464 = sshll.u32 [#allocation34], 4
      %s465 = int_to_ptr.vmem [resolvable:$true] %s464
      %467 = dma.hbm_to_vmem [thread:$0]  %s127, 16, %s465, [#allocation33]
    $region257: #{tpu_custom_call.1} parent=1 // pred_fallthru
      _
    // Predicated region
    $region258: #{tpu_custom_call.1} parent=1 // pred_check
      _
    $region259: #{tpu_custom_call.1} parent=1 // pred_check_branch
      %469 = sbr.rel (0) target = $region261
    $region260: #{tpu_custom_call.1} parent=1 // pred_region
      %s471 = ssub.s32 16, 16
      %472 = vsyncadd [#allocation36], %s471
      %s474 = sshll.u32 [#allocation35], 4
      %s475 = int_to_ptr.vmem [resolvable:$true] %s474
      %477 = dma.hbm_to_vmem [thread:$0]  %s129, 16, %s475, [#allocation36]
    $region261: #{tpu_custom_call.1} parent=1 // pred_fallthru
      _
    // Predicated region
    $region262: #{tpu_custom_call.1} parent=1 // pred_check
      _
    $region263: #{tpu_custom_call.1} parent=1 // pred_check_branch
      %479 = sbr.rel (0) target = $region265
    $region264: #{tpu_custom_call.1} parent=1 // pred_region
      %s481 = ssub.s32 16, 16
      %482 = vsyncadd [#allocation36], %s481
      %s484 = sshll.u32 [#allocation37], 4
      %s485 = int_to_ptr.vmem [resolvable:$true] %s484
      %487 = dma.hbm_to_vmem [thread:$0]  %s131, 16, %s485, [#allocation36]
    $region265: #{tpu_custom_call.1} parent=1 // pred_fallthru
      _
    // Predicated region
    $region266: #{tpu_custom_call.1} parent=1 // pred_check
      _
    $region267: #{tpu_custom_call.1} parent=1 // pred_check_branch
      %489 = sbr.rel (0) target = $region269
    $region268: #{tpu_custom_call.1} parent=1 // pred_region
      %s491 = ssub.s32 16, 16
      %492 = vsyncadd [#allocation39], %s491
      %s494 = sshll.u32 [#allocation38], 4
      %s495 = int_to_ptr.vmem [resolvable:$true] %s494
      %497 = dma.hbm_to_vmem [thread:$0]  %s133, 16, %s495, [#allocation39]
    $region269: #{tpu_custom_call.1} parent=1 // pred_fallthru
      _
    // Predicated region
    $region270: #{tpu_custom_call.1} parent=1 // pred_check
      _
    $region271: #{tpu_custom_call.1} parent=1 // pred_check_branch
      %499 = sbr.rel (0) target = $region273
    $region272: #{tpu_custom_call.1} parent=1 // pred_region
      %s501 = ssub.s32 16, 16
      %502 = vsyncadd [#allocation39], %s501
      %s504 = sshll.u32 [#allocation40], 4
      %s505 = int_to_ptr.vmem [resolvable:$true] %s504
      %507 = dma.hbm_to_vmem [thread:$0]  %s135, 16, %s505, [#allocation39]
    $region273: #{tpu_custom_call.1} parent=1 // pred_fallthru
      _
    // Predicated region
    $region274: #{tpu_custom_call.1} parent=1 // pred_check
      _
    $region275: #{tpu_custom_call.1} parent=1 // pred_check_branch
      %509 = sbr.rel (0) target = $region277
    $region276: #{tpu_custom_call.1} parent=1 // pred_region
      %s511 = ssub.s32 16, 16
      %512 = vsyncadd [#allocation42], %s511
      %s514 = sshll.u32 [#allocation41], 4
      %s515 = int_to_ptr.vmem [resolvable:$true] %s514
      %517 = dma.hbm_to_vmem [thread:$0]  %s137, 16, %s515, [#allocation42]
    $region277: #{tpu_custom_call.1} parent=1 // pred_fallthru
      _
    // Predicated region
    $region278: #{tpu_custom_call.1} parent=1 // pred_check
      _
    $region279: #{tpu_custom_call.1} parent=1 // pred_check_branch
      %519 = sbr.rel (0) target = $region281
    $region280: #{tpu_custom_call.1} parent=1 // pred_region
      %s521 = ssub.s32 16, 16
      %522 = vsyncadd [#allocation42], %s521
      %s524 = sshll.u32 [#allocation43], 4
      %s525 = int_to_ptr.vmem [resolvable:$true] %s524
      %527 = dma.hbm_to_vmem [thread:$0]  %s139, 16, %s525, [#allocation42]
    $region281: #{tpu_custom_call.1} parent=1 // pred_fallthru
      _
    // Predicated region
    $region282: #{tpu_custom_call.1} parent=1 // pred_check
      _
    $region283: #{tpu_custom_call.1} parent=1 // pred_check_branch
      %529 = sbr.rel (0) target = $region285
    $region284: #{tpu_custom_call.1} parent=1 // pred_region
      _
    $region285: #{tpu_custom_call.1} parent=1 // pred_fallthru
      _
    // Predicated region
    $region286: #{tpu_custom_call.1} parent=1 // pred_check
      _
    $region287: #{tpu_custom_call.1} parent=1 // pred_check_branch
      %531 = sbr.rel (0) target = $region289
    $region288: #{tpu_custom_call.1} parent=1 // pred_region
      _
    $region289: #{tpu_custom_call.1} parent=1 // pred_fallthru
      _
    // Predicated region
    $region290: #{tpu_custom_call.1} parent=1 // pred_check
      _
    $region291: #{tpu_custom_call.1} parent=1 // pred_check_branch
      %533 = sbr.rel (0) target = $region293
    $region292: #{tpu_custom_call.1} parent=1 // pred_region
      _
    $region293: #{tpu_custom_call.1} parent=1 // pred_fallthru
      _
    // Predicated region
    $region294: #{tpu_custom_call.1} parent=1 // pred_check
      _
    $region295: #{tpu_custom_call.1} parent=1 // pred_check_branch
      %535 = sbr.rel (0) target = $region297
    $region296: #{tpu_custom_call.1} parent=1 // pred_region
      _
    $region297: #{tpu_custom_call.1} parent=1 // pred_fallthru
      _
    // Predicated region
    $region298: #{tpu_custom_call.1} parent=1 // pred_check
      _
    $region299: #{tpu_custom_call.1} parent=1 // pred_check_branch
      %537 = sbr.rel (0) target = $region301
    $region300: #{tpu_custom_call.1} parent=1 // pred_region
      %s539 = ssub.s32 16, 16
      %540 = vsyncadd [#allocation45], %s539
      %s542 = sshll.u32 [#allocation44], 4
      %s543 = int_to_ptr.vmem [resolvable:$true] %s542
      %545 = dma.hbm_to_vmem [thread:$0]  %s149, 16, %s543, [#allocation45]
    $region301: #{tpu_custom_call.1} parent=1 // pred_fallthru
      _
    // Predicated region
    $region302: #{tpu_custom_call.1} parent=1 // pred_check
      _
    $region303: #{tpu_custom_call.1} parent=1 // pred_check_branch
      %547 = sbr.rel (0) target = $region305
    $region304: #{tpu_custom_call.1} parent=1 // pred_region
      %548 = dma.done [#allocation3], 16
    $region305: #{tpu_custom_call.1} parent=1 // pred_fallthru
      _
    // Predicated region
    $region306: #{tpu_custom_call.1} parent=1 // pred_check
      _
    $region307: #{tpu_custom_call.1} parent=1 // pred_check_branch
      %550 = sbr.rel (0) target = $region309
    $region308: #{tpu_custom_call.1} parent=1 // pred_region
      %551 = dma.done [#allocation6], 16
    $region309: #{tpu_custom_call.1} parent=1 // pred_fallthru
      _
    // Predicated region
    $region310: #{tpu_custom_call.1} parent=1 // pred_check
      _
    $region311: #{tpu_custom_call.1} parent=1 // pred_check_branch
      %553 = sbr.rel (0) target = $region313
    $region312: #{tpu_custom_call.1} parent=1 // pred_region
      %554 = dma.done [#allocation6], 16
    $region313: #{tpu_custom_call.1} parent=1 // pred_fallthru
      _
    // Predicated region
    $region314: #{tpu_custom_call.1} parent=1 // pred_check
      _
    $region315: #{tpu_custom_call.1} parent=1 // pred_check_branch
      %556 = sbr.rel (0) target = $region317
    $region316: #{tpu_custom_call.1} parent=1 // pred_region
      %557 = dma.done [#allocation9], 16
    $region317: #{tpu_custom_call.1} parent=1 // pred_fallthru
      _
    // Predicated region
    $region318: #{tpu_custom_call.1} parent=1 // pred_check
      _
    $region319: #{tpu_custom_call.1} parent=1 // pred_check_branch
      %559 = sbr.rel (0) target = $region321
    $region320: #{tpu_custom_call.1} parent=1 // pred_region
      %560 = dma.done [#allocation9], 16
    $region321: #{tpu_custom_call.1} parent=1 // pred_fallthru
      _
    // Predicated region
    $region322: #{tpu_custom_call.1} parent=1 // pred_check
      _
    $region323: #{tpu_custom_call.1} parent=1 // pred_check_branch
      %562 = sbr.rel (0) target = $region325
    $region324: #{tpu_custom_call.1} parent=1 // pred_region
      %563 = dma.done [#allocation12], 16
    $region325: #{tpu_custom_call.1} parent=1 // pred_fallthru
      _
    // Predicated region
    $region326: #{tpu_custom_call.1} parent=1 // pred_check
      _
    $region327: #{tpu_custom_call.1} parent=1 // pred_check_branch
      %565 = sbr.rel (0) target = $region329
    $region328: #{tpu_custom_call.1} parent=1 // pred_region
      %566 = dma.done [#allocation12], 16
    $region329: #{tpu_custom_call.1} parent=1 // pred_fallthru
      _
    // Predicated region
    $region330: #{tpu_custom_call.1} parent=1 // pred_check
      _
    $region331: #{tpu_custom_call.1} parent=1 // pred_check_branch
      %568 = sbr.rel (0) target = $region333
    $region332: #{tpu_custom_call.1} parent=1 // pred_region
      %569 = dma.done [#allocation15], 16
    $region333: #{tpu_custom_call.1} parent=1 // pred_fallthru
      _
    // Predicated region
    $region334: #{tpu_custom_call.1} parent=1 // pred_check
      _
    $region335: #{tpu_custom_call.1} parent=1 // pred_check_branch
      %571 = sbr.rel (0) target = $region337
    $region336: #{tpu_custom_call.1} parent=1 // pred_region
      %572 = dma.done [#allocation15], 16
    $region337: #{tpu_custom_call.1} parent=1 // pred_fallthru
      _
    // Predicated region
    $region338: #{tpu_custom_call.1} parent=1 // pred_check
      _
    $region339: #{tpu_custom_call.1} parent=1 // pred_check_branch
      %574 = sbr.rel (0) target = $region341
    $region340: #{tpu_custom_call.1} parent=1 // pred_region
      %575 = dma.done [#allocation18], 16
    $region341: #{tpu_custom_call.1} parent=1 // pred_fallthru
      _
    // Predicated region
    $region342: #{tpu_custom_call.1} parent=1 // pred_check
      _
    $region343: #{tpu_custom_call.1} parent=1 // pred_check_branch
      %577 = sbr.rel (0) target = $region345
    $region344: #{tpu_custom_call.1} parent=1 // pred_region
      %578 = dma.done [#allocation18], 16
    $region345: #{tpu_custom_call.1} parent=1 // pred_fallthru
      _
    // Predicated region
    $region346: #{tpu_custom_call.1} parent=1 // pred_check
      _
    $region347: #{tpu_custom_call.1} parent=1 // pred_check_branch
      %580 = sbr.rel (0) target = $region349
    $region348: #{tpu_custom_call.1} parent=1 // pred_region
      %581 = dma.done [#allocation21], 16
    $region349: #{tpu_custom_call.1} parent=1 // pred_fallthru
      _
    // Predicated region
    $region350: #{tpu_custom_call.1} parent=1 // pred_check
      _
    $region351: #{tpu_custom_call.1} parent=1 // pred_check_branch
      %583 = sbr.rel (0) target = $region353
    $region352: #{tpu_custom_call.1} parent=1 // pred_region
      %584 = dma.done [#allocation21], 16
    $region353: #{tpu_custom_call.1} parent=1 // pred_fallthru
      _
    // Predicated region
    $region354: #{tpu_custom_call.1} parent=1 // pred_check
      _
    $region355: #{tpu_custom_call.1} parent=1 // pred_check_branch
      %586 = sbr.rel (0) target = $region357
    $region356: #{tpu_custom_call.1} parent=1 // pred_region
      %587 = dma.done [#allocation24], 16
    $region357: #{tpu_custom_call.1} parent=1 // pred_fallthru
      _
    // Predicated region
    $region358: #{tpu_custom_call.1} parent=1 // pred_check
      _
    $region359: #{tpu_custom_call.1} parent=1 // pred_check_branch
      %589 = sbr.rel (0) target = $region361
    $region360: #{tpu_custom_call.1} parent=1 // pred_region
      %590 = dma.done [#allocation24], 16
    $region361: #{tpu_custom_call.1} parent=1 // pred_fallthru
      _
    // Predicated region
    $region362: #{tpu_custom_call.1} parent=1 // pred_check
      _
    $region363: #{tpu_custom_call.1} parent=1 // pred_check_branch
      %592 = sbr.rel (0) target = $region365
    $region364: #{tpu_custom_call.1} parent=1 // pred_region
      %593 = dma.done [#allocation27], 16
    $region365: #{tpu_custom_call.1} parent=1 // pred_fallthru
      _
    // Predicated region
    $region366: #{tpu_custom_call.1} parent=1 // pred_check
      _
    $region367: #{tpu_custom_call.1} parent=1 // pred_check_branch
      %595 = sbr.rel (0) target = $region369
    $region368: #{tpu_custom_call.1} parent=1 // pred_region
      %596 = dma.done [#allocation27], 16
    $region369: #{tpu_custom_call.1} parent=1 // pred_fallthru
      _
    // Predicated region
    $region370: #{tpu_custom_call.1} parent=1 // pred_check
      _
    $region371: #{tpu_custom_call.1} parent=1 // pred_check_branch
      %598 = sbr.rel (0) target = $region373
    $region372: #{tpu_custom_call.1} parent=1 // pred_region
      %599 = dma.done [#allocation30], 16
    $region373: #{tpu_custom_call.1} parent=1 // pred_fallthru
      _
    // Predicated region
    $region374: #{tpu_custom_call.1} parent=1 // pred_check
      _
    $region375: #{tpu_custom_call.1} parent=1 // pred_check_branch
      %601 = sbr.rel (0) target = $region377
    $region376: #{tpu_custom_call.1} parent=1 // pred_region
      %602 = dma.done [#allocation30], 16
    $region377: #{tpu_custom_call.1} parent=1 // pred_fallthru
      _
    // Predicated region
    $region378: #{tpu_custom_call.1} parent=1 // pred_check
      _
    $region379: #{tpu_custom_call.1} parent=1 // pred_check_branch
      %604 = sbr.rel (0) target = $region381
    $region380: #{tpu_custom_call.1} parent=1 // pred_region
      %605 = dma.done [#allocation33], 16
    $region381: #{tpu_custom_call.1} parent=1 // pred_fallthru
      _
    // Predicated region
    $region382: #{tpu_custom_call.1} parent=1 // pred_check
      _
    $region383: #{tpu_custom_call.1} parent=1 // pred_check_branch
      %607 = sbr.rel (0) target = $region385
    $region384: #{tpu_custom_call.1} parent=1 // pred_region
      %608 = dma.done [#allocation33], 16
    $region385: #{tpu_custom_call.1} parent=1 // pred_fallthru
      _
    // Predicated region
    $region386: #{tpu_custom_call.1} parent=1 // pred_check
      _
    $region387: #{tpu_custom_call.1} parent=1 // pred_check_branch
      %610 = sbr.rel (0) target = $region389
    $region388: #{tpu_custom_call.1} parent=1 // pred_region
      %611 = dma.done [#allocation36], 16
    $region389: #{tpu_custom_call.1} parent=1 // pred_fallthru
      _
    // Predicated region
    $region390: #{tpu_custom_call.1} parent=1 // pred_check
      _
    $region391: #{tpu_custom_call.1} parent=1 // pred_check_branch
      %613 = sbr.rel (0) target = $region393
    $region392: #{tpu_custom_call.1} parent=1 // pred_region
      %614 = dma.done [#allocation36], 16
    $region393: #{tpu_custom_call.1} parent=1 // pred_fallthru
      _
    // Predicated region
    $region394: #{tpu_custom_call.1} parent=1 // pred_check
      _
    $region395: #{tpu_custom_call.1} parent=1 // pred_check_branch
      %616 = sbr.rel (0) target = $region397
    $region396: #{tpu_custom_call.1} parent=1 // pred_region
      %617 = dma.done [#allocation39], 16
    $region397: #{tpu_custom_call.1} parent=1 // pred_fallthru
      _
    // Predicated region
    $region398: #{tpu_custom_call.1} parent=1 // pred_check
      _
    $region399: #{tpu_custom_call.1} parent=1 // pred_check_branch
      %619 = sbr.rel (0) target = $region401
    $region400: #{tpu_custom_call.1} parent=1 // pred_region
      %620 = dma.done [#allocation39], 16
    $region401: #{tpu_custom_call.1} parent=1 // pred_fallthru
      _
    // Predicated region
    $region402: #{tpu_custom_call.1} parent=1 // pred_check
      _
    $region403: #{tpu_custom_call.1} parent=1 // pred_check_branch
      %622 = sbr.rel (0) target = $region405
    $region404: #{tpu_custom_call.1} parent=1 // pred_region
      %623 = dma.done [#allocation42], 16
    $region405: #{tpu_custom_call.1} parent=1 // pred_fallthru
      _
    // Predicated region
    $region406: #{tpu_custom_call.1} parent=1 // pred_check
      _
    $region407: #{tpu_custom_call.1} parent=1 // pred_check_branch
      %625 = sbr.rel (0) target = $region409
    $region408: #{tpu_custom_call.1} parent=1 // pred_region
      %626 = dma.done [#allocation42], 16
    $region409: #{tpu_custom_call.1} parent=1 // pred_fallthru
      _
    // Predicated region
    $region410: #{tpu_custom_call.1} parent=1 // pred_check
      _
    $region411: #{tpu_custom_call.1} parent=1 // pred_check_branch
      %628 = sbr.rel (0) target = $region413
    $region412: #{tpu_custom_call.1} parent=1 // pred_region
      %629 = dma.done [#allocation45], 16
    $region413: #{tpu_custom_call.1} parent=1 // pred_fallthru
      _
    %v631 = vld [vmem:[%s7] sm:$0x1]
    %v632 = vld [vmem:[%s9] sm:$0x1]
    %v633 = vld [vmem:[%s11] sm:$0x1]
    %v634 = vld [vmem:[%s13] sm:$0x1]
    %v635 = vld [vmem:[%s15] sm:$0x1]
    %v636 = vld [vmem:[%s17] sm:$0x1]
    %v637 = vld [vmem:[%s19] sm:$0x1]
    %v638 = vld [vmem:[%s21] sm:$0x1]
    %v639 = vld [vmem:[%s23] sm:$0x1]
    %v640 = vld [vmem:[%s25] sm:$0xf]
    %v641 = vld [vmem:[%s27] sm:$0xf]
    %v642 = vld [vmem:[%s27 + $0x4] sm:$0xf]
    %v643 = vld [vmem:[%s27 + $0x8] sm:$0xf]
    %v644 = vld [vmem:[%s27 + $0xc] sm:$0xf]
    %v645 = vld [vmem:[%s27 + $0x10] sm:$0xf]
    %v646 = vld [vmem:[%s27 + $0x14] sm:$0xf]
    %v647 = vld [vmem:[%s27 + $0x18] sm:$0xf]
    %v648 = vld [vmem:[%s27 + $0x1c] sm:$0xf]
    %v649 = vld [vmem:[%s29] sm:$0xf]
    %v650 = vld [vmem:[%s31] sm:$0x1]
    %v651 = vld [vmem:[%s33] sm:$0x1]
    %v652 = vld [vmem:[%s35] sm:$0x1]
    %v653 = vld [vmem:[%s37] sm:$0x1]
    %v654 = vld [vmem:[%s39] sm:$0x1]
    %v655 = vld [vmem:[%s41] sm:$0x1]
    %v656 = vld [vmem:[%s43] sm:$0x1]
    %v657 = vld [vmem:[%s45] sm:$0x1]
    %v658 = vld [vmem:[%s47] sm:$0x1]
    %v659 = vld [vmem:[%s49] sm:$0xf]
    %v660 = vld [vmem:[%s49 + $0x4] sm:$0xf]
    %v661 = vld [vmem:[%s49 + $0x8] sm:$0xf]
    %v662 = vld [vmem:[%s49 + $0xc] sm:$0xf]
    %v663 = vld [vmem:[%s49 + $0x10] sm:$0xf]
    %v664 = vld [vmem:[%s49 + $0x14] sm:$0xf]
    %v665 = vld [vmem:[%s49 + $0x18] sm:$0xf]
    %v666 = vld [vmem:[%s49 + $0x1c] sm:$0xf]
    %v667 = vld [vmem:[%s49 + $0x20] sm:$0xf]
    %v668 = vld [vmem:[%s49 + $0x24] sm:$0xf]
    %v669 = vld [vmem:[%s49 + $0x28] sm:$0xf]
    %v670 = vld [vmem:[%s49 + $0x2c] sm:$0xf]
    %v671 = vld [vmem:[%s49 + $0x30] sm:$0xf]
    %v672 = vld [vmem:[%s49 + $0x34] sm:$0xf]
    %v673 = vld [vmem:[%s49 + $0x38] sm:$0xf]
    %v674 = vld [vmem:[%s49 + $0x3c] sm:$0xf]
    %v675 = vld [vmem:[%s51] sm:$0xf]
    %v676 = vld [vmem:[%s51 + $0x4] sm:$0xf]
    %v677 = vld [vmem:[%s51 + $0x8] sm:$0xf]
    %v678 = vld [vmem:[%s51 + $0xc] sm:$0xf]
    %v679 = vld [vmem:[%s51 + $0x10] sm:$0xf]
    %v680 = vld [vmem:[%s51 + $0x14] sm:$0xf]
    %v681 = vld [vmem:[%s51 + $0x18] sm:$0xf]
    %v682 = vld [vmem:[%s51 + $0x1c] sm:$0xf]
    %v683 = vld [vmem:[%s53] sm:$0xf]
    %v684 = vld [vmem:[%s53 + $0x4] sm:$0xf]
    %v685 = vld [vmem:[%s53 + $0x8] sm:$0xf]
    %v686 = vld [vmem:[%s53 + $0xc] sm:$0xf]
    %v687 = vld [vmem:[%s53 + $0x10] sm:$0xf]
    %v688 = vld [vmem:[%s53 + $0x14] sm:$0xf]
    %v689 = vld [vmem:[%s53 + $0x18] sm:$0xf]
    %v690 = vld [vmem:[%s53 + $0x1c] sm:$0xf]
    %v691 = vld [vmem:[%s53 + $0x20] sm:$0xf]
    %v692 = vld [vmem:[%s53 + $0x24] sm:$0xf]
    %v693 = vld [vmem:[%s53 + $0x28] sm:$0xf]
    %v694 = vld [vmem:[%s53 + $0x2c] sm:$0xf]
    %v695 = vld [vmem:[%s53 + $0x30] sm:$0xf]
    %v696 = vld [vmem:[%s53 + $0x34] sm:$0xf]
    %v697 = vld [vmem:[%s53 + $0x38] sm:$0xf]
    %v698 = vld [vmem:[%s53 + $0x3c] sm:$0xf]
    %v699 = vld [vmem:[%s55] sm:$0x1]
    %v700 = vld [vmem:[%s57] sm:$0x1]
    %v701 = vld [vmem:[%s59] sm:$0x1]
    %v702 = vld [vmem:[%s61] sm:$0x1]
    %v703 = vld [vmem:[%s63] sm:$0x1]
    %v704 = vld [vmem:[%s65] sm:$0x1]
    %v705 = vld [vmem:[%s67] sm:$0x1]
    %v706 = vld [vmem:[#allocation2] sm:$0x1]
    %v707 = vld [vmem:[#allocation5] sm:$0x1]
    %v708 = vld [vmem:[%s73] sm:$0xf]
    %v709 = vld [vmem:[%s73 + $0x4] sm:$0xf]
    %v710 = vld [vmem:[%s73 + $0x8] sm:$0xf]
    %v711 = vld [vmem:[%s73 + $0xc] sm:$0xf]
    %v712 = vld [vmem:[%s73 + $0x10] sm:$0xf]
    %v713 = vld [vmem:[%s73 + $0x14] sm:$0xf]
    %v714 = vld [vmem:[%s73 + $0x18] sm:$0xf]
    %v715 = vld [vmem:[%s73 + $0x1c] sm:$0xf]
    %v716 = vld [vmem:[%s73 + $0x20] sm:$0xf]
    %v717 = vld [vmem:[%s73 + $0x24] sm:$0xf]
    %v718 = vld [vmem:[%s73 + $0x28] sm:$0xf]
    %v719 = vld [vmem:[%s73 + $0x2c] sm:$0xf]
    %v720 = vld [vmem:[%s73 + $0x30] sm:$0xf]
    %v721 = vld [vmem:[%s73 + $0x34] sm:$0xf]
    %v722 = vld [vmem:[%s73 + $0x38] sm:$0xf]
    %v723 = vld [vmem:[%s73 + $0x3c] sm:$0xf]
    %v724 = vld [vmem:[%s75] sm:$0xf]
    %v725 = vld [vmem:[%s75 + $0x4] sm:$0xf]
    %v726 = vld [vmem:[%s75 + $0x8] sm:$0xf]
    %v727 = vld [vmem:[%s75 + $0xc] sm:$0xf]
    %v728 = vld [vmem:[%s75 + $0x10] sm:$0xf]
    %v729 = vld [vmem:[%s75 + $0x14] sm:$0xf]
    %v730 = vld [vmem:[%s75 + $0x18] sm:$0xf]
    %v731 = vld [vmem:[%s75 + $0x1c] sm:$0xf]
    %v732 = vld [vmem:[%s77] sm:$0xf]
    %v733 = vld [vmem:[%s77 + $0x4] sm:$0xf]
    %v734 = vld [vmem:[%s77 + $0x8] sm:$0xf]
    %v735 = vld [vmem:[%s77 + $0xc] sm:$0xf]
    %v736 = vld [vmem:[%s77 + $0x10] sm:$0xf]
    %v737 = vld [vmem:[%s77 + $0x14] sm:$0xf]
    %v738 = vld [vmem:[%s77 + $0x18] sm:$0xf]
    %v739 = vld [vmem:[%s77 + $0x1c] sm:$0xf]
    %v740 = vld [vmem:[%s77 + $0x20] sm:$0xf]
    %v741 = vld [vmem:[%s77 + $0x24] sm:$0xf]
    %v742 = vld [vmem:[%s77 + $0x28] sm:$0xf]
    %v743 = vld [vmem:[%s77 + $0x2c] sm:$0xf]
    %v744 = vld [vmem:[%s77 + $0x30] sm:$0xf]
    %v745 = vld [vmem:[%s77 + $0x34] sm:$0xf]
    %v746 = vld [vmem:[%s77 + $0x38] sm:$0xf]
    %v747 = vld [vmem:[%s77 + $0x3c] sm:$0xf]
    %v748 = vld [vmem:[%s79] sm:$0xf]
    %v749 = vld [vmem:[%s79 + $0x4] sm:$0xf]
    %v750 = vld [vmem:[%s79 + $0x8] sm:$0xf]
    %v751 = vld [vmem:[%s79 + $0xc] sm:$0xf]
    %v752 = vld [vmem:[%s79 + $0x10] sm:$0xf]
    %v753 = vld [vmem:[%s79 + $0x14] sm:$0xf]
    %v754 = vld [vmem:[%s79 + $0x18] sm:$0xf]
    %v755 = vld [vmem:[%s79 + $0x1c] sm:$0xf]
    %v756 = vld [vmem:[%s79 + $0x20] sm:$0xf]
    %v757 = vld [vmem:[%s79 + $0x24] sm:$0xf]
    %v758 = vld [vmem:[%s79 + $0x28] sm:$0xf]
    %v759 = vld [vmem:[%s79 + $0x2c] sm:$0xf]
    %v760 = vld [vmem:[%s79 + $0x30] sm:$0xf]
    %v761 = vld [vmem:[%s79 + $0x34] sm:$0xf]
    %v762 = vld [vmem:[%s79 + $0x38] sm:$0xf]
    %v763 = vld [vmem:[%s79 + $0x3c] sm:$0xf]
    %v764 = vld [vmem:[#allocation7] sm:$0x1]
    %v765 = vld [vmem:[#allocation8] sm:$0x1]
    %v766 = vld [vmem:[#allocation10] sm:$0x1]
    %v767 = vld [vmem:[#allocation11] sm:$0x1]
    %v768 = vld [vmem:[#allocation13] sm:$0x1]
    %v769 = vld [vmem:[#allocation14] sm:$0x1]
    %v770 = vld [vmem:[#allocation16] sm:$0x1]
    %v771 = vld [vmem:[%s95] sm:$0xf]
    %v772 = vld [vmem:[%s95 + $0x4] sm:$0xf]
    %v773 = vld [vmem:[%s95 + $0x8] sm:$0xf]
    %v774 = vld [vmem:[%s95 + $0xc] sm:$0xf]
    %v775 = vld [vmem:[%s95 + $0x10] sm:$0xf]
    %v776 = vld [vmem:[%s95 + $0x14] sm:$0xf]
    %v777 = vld [vmem:[%s95 + $0x18] sm:$0xf]
    %v778 = vld [vmem:[%s95 + $0x1c] sm:$0xf]
    %v779 = vld [vmem:[%s97] sm:$0xf]
    %v780 = vld [vmem:[%s97 + $0x4] sm:$0xf]
    %v781 = vld [vmem:[%s97 + $0x8] sm:$0xf]
    %v782 = vld [vmem:[%s97 + $0xc] sm:$0xf]
    %v783 = vld [vmem:[%s97 + $0x10] sm:$0xf]
    %v784 = vld [vmem:[%s97 + $0x14] sm:$0xf]
    %v785 = vld [vmem:[%s97 + $0x18] sm:$0xf]
    %v786 = vld [vmem:[%s97 + $0x1c] sm:$0xf]
    %v787 = vld [vmem:[#allocation17] sm:$0x1]
    %v788 = vld [vmem:[#allocation19] sm:$0x1]
    %v789 = vld [vmem:[#allocation20] sm:$0x1]
    %v790 = vld [vmem:[#allocation22] sm:$0x1]
    %v791 = vld [vmem:[#allocation23] sm:$0x1]
    %v792 = vld [vmem:[#allocation25] sm:$0x1]
    %v793 = vld [vmem:[#allocation26] sm:$0x1]
    %v794 = vld [vmem:[#allocation28] sm:$0x1]
    %v795 = vld [vmem:[#allocation29] sm:$0x1]
    %v796 = vld [vmem:[%s117] sm:$0xf]
    %v797 = vld [vmem:[%s117 + $0x4] sm:$0xf]
    %v798 = vld [vmem:[%s117 + $0x8] sm:$0xf]
    %v799 = vld [vmem:[%s117 + $0xc] sm:$0xf]
    %v800 = vld [vmem:[%s117 + $0x10] sm:$0xf]
    %v801 = vld [vmem:[%s117 + $0x14] sm:$0xf]
    %v802 = vld [vmem:[%s117 + $0x18] sm:$0xf]
    %v803 = vld [vmem:[%s117 + $0x1c] sm:$0xf]
    %v804 = vld [vmem:[%s117 + $0x20] sm:$0xf]
    %v805 = vld [vmem:[%s117 + $0x24] sm:$0xf]
    %v806 = vld [vmem:[%s117 + $0x28] sm:$0xf]
    %v807 = vld [vmem:[%s117 + $0x2c] sm:$0xf]
    %v808 = vld [vmem:[%s117 + $0x30] sm:$0xf]
    %v809 = vld [vmem:[%s117 + $0x34] sm:$0xf]
    %v810 = vld [vmem:[%s117 + $0x38] sm:$0xf]
    %v811 = vld [vmem:[%s117 + $0x3c] sm:$0xf]
    %v812 = vld [vmem:[%s119] sm:$0xf]
    %v813 = vld [vmem:[%s119 + $0x4] sm:$0xf]
    %v814 = vld [vmem:[%s119 + $0x8] sm:$0xf]
    %v815 = vld [vmem:[%s119 + $0xc] sm:$0xf]
    %v816 = vld [vmem:[%s119 + $0x10] sm:$0xf]
    %v817 = vld [vmem:[%s119 + $0x14] sm:$0xf]
    %v818 = vld [vmem:[%s119 + $0x18] sm:$0xf]
    %v819 = vld [vmem:[%s119 + $0x1c] sm:$0xf]
    %v820 = vld [vmem:[%s121] sm:$0xf]
    %v821 = vld [vmem:[%s121 + $0x4] sm:$0xf]
    %v822 = vld [vmem:[%s121 + $0x8] sm:$0xf]
    %v823 = vld [vmem:[%s121 + $0xc] sm:$0xf]
    %v824 = vld [vmem:[%s121 + $0x10] sm:$0xf]
    %v825 = vld [vmem:[%s121 + $0x14] sm:$0xf]
    %v826 = vld [vmem:[%s121 + $0x18] sm:$0xf]
    %v827 = vld [vmem:[%s121 + $0x1c] sm:$0xf]
    %v828 = vld [vmem:[%s121 + $0x20] sm:$0xf]
    %v829 = vld [vmem:[%s121 + $0x24] sm:$0xf]
    %v830 = vld [vmem:[%s121 + $0x28] sm:$0xf]
    %v831 = vld [vmem:[%s121 + $0x2c] sm:$0xf]
    %v832 = vld [vmem:[%s121 + $0x30] sm:$0xf]
    %v833 = vld [vmem:[%s121 + $0x34] sm:$0xf]
    %v834 = vld [vmem:[%s121 + $0x38] sm:$0xf]
    %v835 = vld [vmem:[%s121 + $0x3c] sm:$0xf]
    %v836 = vld [vmem:[#allocation31] sm:$0x1]
    %v837 = vld [vmem:[#allocation32] sm:$0x1]
    %v838 = vld [vmem:[#allocation34] sm:$0x1]
    %v839 = vld [vmem:[#allocation35] sm:$0x1]
    %v840 = vld [vmem:[#allocation37] sm:$0x1]
    %v841 = vld [vmem:[#allocation38] sm:$0x1]
    %v842 = vld [vmem:[#allocation40] sm:$0x1]
    %v843 = vld [vmem:[#allocation41] sm:$0x1]
    %v844 = vld [vmem:[#allocation43] sm:$0x1]
    %v845 = vld [vmem:[%s141] sm:$0xf]
    %v846 = vld [vmem:[%s141 + $0x4] sm:$0xf]
    %v847 = vld [vmem:[%s141 + $0x8] sm:$0xf]
    %v848 = vld [vmem:[%s141 + $0xc] sm:$0xf]
    %v849 = vld [vmem:[%s141 + $0x10] sm:$0xf]
    %v850 = vld [vmem:[%s141 + $0x14] sm:$0xf]
    %v851 = vld [vmem:[%s141 + $0x18] sm:$0xf]
    %v852 = vld [vmem:[%s141 + $0x1c] sm:$0xf]
    %v853 = vld [vmem:[%s141 + $0x20] sm:$0xf]
    %v854 = vld [vmem:[%s141 + $0x24] sm:$0xf]
    %v855 = vld [vmem:[%s141 + $0x28] sm:$0xf]
    %v856 = vld [vmem:[%s141 + $0x2c] sm:$0xf]
    %v857 = vld [vmem:[%s141 + $0x30] sm:$0xf]
    %v858 = vld [vmem:[%s141 + $0x34] sm:$0xf]
    %v859 = vld [vmem:[%s141 + $0x38] sm:$0xf]
    %v860 = vld [vmem:[%s141 + $0x3c] sm:$0xf]
    %v861 = vld [vmem:[%s143] sm:$0xf]
    %v862 = vld [vmem:[%s143 + $0x4] sm:$0xf]
    %v863 = vld [vmem:[%s143 + $0x8] sm:$0xf]
    %v864 = vld [vmem:[%s143 + $0xc] sm:$0xf]
    %v865 = vld [vmem:[%s143 + $0x10] sm:$0xf]
    %v866 = vld [vmem:[%s143 + $0x14] sm:$0xf]
    %v867 = vld [vmem:[%s143 + $0x18] sm:$0xf]
    %v868 = vld [vmem:[%s143 + $0x1c] sm:$0xf]
    %v869 = vld [vmem:[%s145] sm:$0xf]
    %v870 = vld [vmem:[%s145 + $0x4] sm:$0xf]
    %v871 = vld [vmem:[%s145 + $0x8] sm:$0xf]
    %v872 = vld [vmem:[%s145 + $0xc] sm:$0xf]
    %v873 = vld [vmem:[%s145 + $0x10] sm:$0xf]
    %v874 = vld [vmem:[%s145 + $0x14] sm:$0xf]
    %v875 = vld [vmem:[%s145 + $0x18] sm:$0xf]
    %v876 = vld [vmem:[%s145 + $0x1c] sm:$0xf]
    %v877 = vld [vmem:[%s145 + $0x20] sm:$0xf]
    %v878 = vld [vmem:[%s145 + $0x24] sm:$0xf]
    %v879 = vld [vmem:[%s145 + $0x28] sm:$0xf]
    %v880 = vld [vmem:[%s145 + $0x2c] sm:$0xf]
    %v881 = vld [vmem:[%s145 + $0x30] sm:$0xf]
    %v882 = vld [vmem:[%s145 + $0x34] sm:$0xf]
    %v883 = vld [vmem:[%s145 + $0x38] sm:$0xf]
    %v884 = vld [vmem:[%s145 + $0x3c] sm:$0xf]
    %v885 = vld [vmem:[%s147] sm:$0xf]
    %v886 = vld [vmem:[%s147 + $0x4] sm:$0xf]
    %v887 = vld [vmem:[%s147 + $0x8] sm:$0xf]
    %v888 = vld [vmem:[%s147 + $0xc] sm:$0xf]
    %v889 = vld [vmem:[%s147 + $0x10] sm:$0xf]
    %v890 = vld [vmem:[%s147 + $0x14] sm:$0xf]
    %v891 = vld [vmem:[%s147 + $0x18] sm:$0xf]
    %v892 = vld [vmem:[%s147 + $0x1c] sm:$0xf]
    %v893 = vld [vmem:[%s147 + $0x20] sm:$0xf]
    %v894 = vld [vmem:[%s147 + $0x24] sm:$0xf]
    %v895 = vld [vmem:[%s147 + $0x28] sm:$0xf]
    %v896 = vld [vmem:[%s147 + $0x2c] sm:$0xf]
    %v897 = vld [vmem:[%s147 + $0x30] sm:$0xf]
    %v898 = vld [vmem:[%s147 + $0x34] sm:$0xf]
    %v899 = vld [vmem:[%s147 + $0x38] sm:$0xf]
    %v900 = vld [vmem:[%s147 + $0x3c] sm:$0xf]
    %v901 = vld [vmem:[#allocation44] sm:$0x1]
    %v902 = vld [vmem:[%s1] sm:$0xff]
    %v903 = vld [vmem:[%s1 + $0x8] sm:$0xff]
    %v904 = vld [vmem:[%s1 + $0x10] sm:$0xff]
    %v905 = vld [vmem:[%s1 + $0x18] sm:$0xff]
    %v906 = vld [vmem:[%s1 + $0x20] sm:$0xff]
    %v907 = vld [vmem:[%s1 + $0x28] sm:$0xff]
    %v908 = vld [vmem:[%s1 + $0x30] sm:$0xff]
    %v909 = vld [vmem:[%s1 + $0x38] sm:$0xff]
    %v910 = vpack.c.bf16 %v903, %v902
    %v911 = vpack.c.bf16 %v905, %v904
    %v912 = vpack.c.bf16 %v907, %v906
    %v913 = vpack.c.bf16 %v909, %v908
    %v915 = vlaneseq
    %v916 = vshrl.u32 %v915, 7
    %v917 = vsub.s32 0, %v916
    %v918 = vrot.slane %v631, %v917
    %vm920 = vcmask 64512
    %v922 = vsel %vm920, %v910, 0
    %v925 = vsel %vm920, %v911, 0
    %v928 = vsel %vm920, %v912, 0
    %v931 = vsel %vm920, %v913, 0
    %vm933 = vcmask 1043456
    %v935 = vsel %vm933, %v640, 0
    %937 = vmatprep.subr.bf16.mxu0 0
    %938 = vmatpush1.bf16.msra.mxu0 0
    %939 = vmatprep.subr.bf16.mxu0 0
    %940 = vmatpush1.bf16.msra.mxu0 0
    %941 = vmatprep.subr.bf16.mxu0 0
    %942 = vmatpush1.bf16.msra.mxu0 0
    %943 = vmatprep.subr.bf16.mxu0 0
    %944 = vmatpush1.bf16.msra.mxu0 0
    %945 = vmatprep.subr.bf16.mxu0 0
    %946 = vmatpush1.bf16.msra.mxu0 0
    %947 = vmatprep.subr.bf16.mxu0 0
    %948 = vmatpush1.bf16.msra.mxu0 0
    %949 = vmatprep.subr.bf16.mxu0 0
    %950 = vmatpush1.bf16.msra.mxu0 0
    %951 = vmatprep.subr.bf16.mxu0 0
    %952 = vmatpush1.bf16.msra.mxu0 %v935
    %953 = vmatprep.subr.bf16.mxu0 0
    %954 = vmatpush2.bf16.msra.mxu0 0
    %955 = vmatprep.subr.bf16.mxu0 0
    %956 = vmatpush2.bf16.msra.mxu0 0
    %957 = vmatprep.subr.bf16.mxu0 0
    %958 = vmatpush2.bf16.msra.mxu0 0
    %959 = vmatprep.subr.bf16.mxu0 0
    %960 = vmatpush2.bf16.msra.mxu0 0
    %961 = vmatprep.subr.bf16.mxu0 0
    %962 = vmatpush2.bf16.msra.mxu0 0
    %963 = vmatprep.subr.bf16.mxu0 0
    %964 = vmatpush2.bf16.msra.mxu0 0
    %965 = vmatprep.subr.bf16.mxu0 0
    %966 = vmatpush2.bf16.msra.mxu0 0
    %967 = vmatprep.subr.bf16.mxu0 0
    %968 = vmatpush2.bf16.msra.mxu0 0
    %969 = vmatprep.mubr.bf16.mxu0 0
    %970 = vmatmul.mubr.bf16.gmra.mxu0 %v922
    %v971 = vpop.f32.mrf.mxu0
    %v972 = vadd.f32 %v918, %v971
    %v973 = vpop.f32.mrf.mxu0
    %v974 = vpop.f32.mrf.mxu0
    %v975 = vadd.f32 %v918, %v974
    %v976 = vpop.f32.mrf.mxu0
    %977 = vmatprep.mubr.bf16.mxu0 0
    %978 = vmatmul.mubr.bf16.gmra.mxu0 %v925
    %v979 = vpop.f32.mrf.mxu0
    %v980 = vadd.f32 %v918, %v979
    %v981 = vpop.f32.mrf.mxu0
    %v982 = vpop.f32.mrf.mxu0
    %v983 = vadd.f32 %v918, %v982
    %v984 = vpop.f32.mrf.mxu0
    %985 = vmatprep.mubr.bf16.mxu0 0
    %986 = vmatmul.mubr.bf16.gmra.mxu0 %v928
    %v987 = vpop.f32.mrf.mxu0
    %v988 = vadd.f32 %v918, %v987
    %v989 = vpop.f32.mrf.mxu0
    %v990 = vpop.f32.mrf.mxu0
    %v991 = vadd.f32 %v918, %v990
    %v992 = vpop.f32.mrf.mxu0
    %993 = vmatprep.mubr.bf16.mxu0 0
    %994 = vmatmul.mubr.bf16.gmra.mxu0 %v931
    %v995 = vpop.f32.mrf.mxu0
    %v996 = vadd.f32 %v918, %v995
    %v997 = vpop.f32.mrf.mxu0
    %v998 = vpop.f32.mrf.mxu0
    %v999 = vadd.f32 %v918, %v998
    %v1000 = vpop.f32.mrf.mxu0
    %1001 = vdwg.mxu0
    %vm1002 = vcmask 523264
    %v1003 = vsel %vm1002, %v972, 0.0
    %1004 = vadd.xlane.f32.xlu0 %v1003
    %v1005 = vpop.xlane.xlu0 %1004
    %v1006 = vsel %vm1002, %v975, 0.0
    %1007 = vadd.xlane.f32.xlu0 %v1006
    %v1008 = vpop.xlane.xlu0 %1007
    %v1009 = vsel %vm1002, %v980, 0.0
    %1010 = vadd.xlane.f32.xlu0 %v1009
    %v1011 = vpop.xlane.xlu0 %1010
    %v1012 = vsel %vm1002, %v983, 0.0
    %1013 = vadd.xlane.f32.xlu0 %v1012
    %v1014 = vpop.xlane.xlu0 %1013
    %v1015 = vsel %vm1002, %v988, 0.0
    %1016 = vadd.xlane.f32.xlu0 %v1015
    %v1017 = vpop.xlane.xlu0 %1016
    %v1018 = vsel %vm1002, %v991, 0.0
    %1019 = vadd.xlane.f32.xlu0 %v1018
    %v1020 = vpop.xlane.xlu0 %1019
    %v1021 = vsel %vm1002, %v996, 0.0
    %1022 = vadd.xlane.f32.xlu0 %v1021
    %v1023 = vpop.xlane.xlu0 %1022
    %v1024 = vsel %vm1002, %v999, 0.0
    %1025 = vadd.xlane.f32.xlu0 %v1024
    %v1026 = vpop.xlane.xlu0 %1025
    %v1027 = vrcp.pop 64.0
    %v1028 = vmul.f32 %v1005, %v1027
    %v1029 = vmul.f32 %v1008, %v1027
    %v1030 = vmul.f32 %v1011, %v1027
    %v1031 = vmul.f32 %v1014, %v1027
    %v1032 = vmul.f32 %v1017, %v1027
    %v1033 = vmul.f32 %v1020, %v1027
    %v1034 = vmul.f32 %v1023, %v1027
    %v1035 = vmul.f32 %v1026, %v1027
    %v1036 = vsub.f32 %v972, %v1028
    %v1037 = vsub.f32 %v975, %v1029
    %v1038 = vsub.f32 %v980, %v1030
    %v1039 = vsub.f32 %v983, %v1031
    %v1040 = vsub.f32 %v988, %v1032
    %v1041 = vsub.f32 %v991, %v1033
    %v1042 = vsub.f32 %v996, %v1034
    %v1043 = vsub.f32 %v999, %v1035
    %v1044 = vmul.f32 %v1036, %v1036
    %v1045 = vmul.f32 %v1037, %v1037
    %v1046 = vmul.f32 %v1038, %v1038
    %v1047 = vmul.f32 %v1039, %v1039
    %v1048 = vmul.f32 %v1040, %v1040
    %v1049 = vmul.f32 %v1041, %v1041
    %v1050 = vmul.f32 %v1042, %v1042
    %v1051 = vmul.f32 %v1043, %v1043
    %v1052 = vsel %vm1002, %v1044, 0.0
    %1053 = vadd.xlane.f32.xlu0 %v1052
    %v1054 = vpop.xlane.xlu0 %1053
    %v1055 = vsel %vm1002, %v1045, 0.0
    %1056 = vadd.xlane.f32.xlu0 %v1055
    %v1057 = vpop.xlane.xlu0 %1056
    %v1058 = vsel %vm1002, %v1046, 0.0
    %1059 = vadd.xlane.f32.xlu0 %v1058
    %v1060 = vpop.xlane.xlu0 %1059
    %v1061 = vsel %vm1002, %v1047, 0.0
    %1062 = vadd.xlane.f32.xlu0 %v1061
    %v1063 = vpop.xlane.xlu0 %1062
    %v1064 = vsel %vm1002, %v1048, 0.0
    %1065 = vadd.xlane.f32.xlu0 %v1064
    %v1066 = vpop.xlane.xlu0 %1065
    %v1067 = vsel %vm1002, %v1049, 0.0
    %1068 = vadd.xlane.f32.xlu0 %v1067
    %v1069 = vpop.xlane.xlu0 %1068
    %v1070 = vsel %vm1002, %v1050, 0.0
    %1071 = vadd.xlane.f32.xlu0 %v1070
    %v1072 = vpop.xlane.xlu0 %1071
    %v1073 = vsel %vm1002, %v1051, 0.0
    %1074 = vadd.xlane.f32.xlu0 %v1073
    %v1075 = vpop.xlane.xlu0 %1074
    %v1076 = vmul.f32 %v1054, %v1027
    %v1077 = vmul.f32 %v1057, %v1027
    %v1078 = vmul.f32 %v1060, %v1027
    %v1079 = vmul.f32 %v1063, %v1027
    %v1080 = vmul.f32 %v1066, %v1027
    %v1081 = vmul.f32 %v1069, %v1027
    %v1082 = vmul.f32 %v1072, %v1027
    %v1083 = vmul.f32 %v1075, %v1027
    %v1084 = vadd.f32 %v1076, 1e-05
    %v1085 = vadd.f32 %v1077, 1e-05
    %v1086 = vadd.f32 %v1078, 1e-05
    %v1087 = vadd.f32 %v1079, 1e-05
    %v1088 = vadd.f32 %v1080, 1e-05
    %v1089 = vadd.f32 %v1081, 1e-05
    %v1090 = vadd.f32 %v1082, 1e-05
    %v1091 = vadd.f32 %v1083, 1e-05
    %v1092 = vrsqrt.pop %v1084
    %v1093 = vrsqrt.pop %v1085
    %v1094 = vrsqrt.pop %v1086
    %v1095 = vrsqrt.pop %v1087
    %v1096 = vrsqrt.pop %v1088
    %v1097 = vrsqrt.pop %v1089
    %v1098 = vrsqrt.pop %v1090
    %v1099 = vrsqrt.pop %v1091
    %v1100 = vmul.f32 %v1036, %v1092
    %v1101 = vmul.f32 %v1037, %v1093
    %v1102 = vmul.f32 %v1038, %v1094
    %v1103 = vmul.f32 %v1039, %v1095
    %v1104 = vmul.f32 %v1040, %v1096
    %v1105 = vmul.f32 %v1041, %v1097
    %v1106 = vmul.f32 %v1042, %v1098
    %v1107 = vmul.f32 %v1043, %v1099
    %v1109 = vlaneseq
    %v1110 = vshrl.u32 %v1109, 7
    %v1111 = vsub.s32 0, %v1110
    %v1112 = vrot.slane %v637, %v1111
    %v1114 = vmul.f32 %v1100, %v1112
    %v1115 = vmul.f32 %v1101, %v1112
    %v1116 = vmul.f32 %v1102, %v1112
    %v1117 = vmul.f32 %v1103, %v1112
    %v1118 = vmul.f32 %v1104, %v1112
    %v1119 = vmul.f32 %v1105, %v1112
    %v1120 = vmul.f32 %v1106, %v1112
    %v1121 = vmul.f32 %v1107, %v1112
    %v1123 = vlaneseq
    %v1124 = vshrl.u32 %v1123, 7
    %v1125 = vsub.s32 0, %v1124
    %v1126 = vrot.slane %v633, %v1125
    %v1128 = vadd.f32 %v1114, %v1126
    %v1129 = vadd.f32 %v1115, %v1126
    %v1130 = vadd.f32 %v1116, %v1126
    %v1131 = vadd.f32 %v1117, %v1126
    %v1132 = vadd.f32 %v1118, %v1126
    %v1133 = vadd.f32 %v1119, %v1126
    %v1134 = vadd.f32 %v1120, %v1126
    %v1135 = vadd.f32 %v1121, %v1126
    %v1136 = vmax.f32 %v1128, 0.0
    %v1137 = vmax.f32 %v1129, 0.0
    %v1138 = vmax.f32 %v1130, 0.0
    %v1139 = vmax.f32 %v1131, 0.0
    %v1140 = vmax.f32 %v1132, 0.0
    %v1141 = vmax.f32 %v1133, 0.0
    %v1142 = vmax.f32 %v1134, 0.0
    %v1143 = vmax.f32 %v1135, 0.0
    %v1144 = vpack.c.bf16 %v1137, %v1136
    %v1145 = vpack.c.bf16 %v1139, %v1138
    %v1146 = vpack.c.bf16 %v1141, %v1140
    %v1147 = vpack.c.bf16 %v1143, %v1142
    %v1149 = vlaneseq
    %v1150 = vshrl.u32 %v1149, 7
    %v1151 = vsub.s32 0, %v1150
    %v1152 = vrot.slane %v632, %v1151
    %v1162 = vunpack.c.l.b16 %v641
    %v1163 = vunpack.c.l.b16 %v642
    %v1164 = vunpack.c.l.b16 %v643
    %v1165 = vunpack.c.l.b16 %v644
    %v1166 = vunpack.c.l.b16 %v645
    %v1167 = vunpack.c.l.b16 %v646
    %v1168 = vunpack.c.l.b16 %v647
    %v1169 = vunpack.c.l.b16 %v648
    %v1170 = vpack.c.b16 %v1163, %v1162
    %v1171 = vpack.c.b16 %v1165, %v1164
    %v1172 = vpack.c.b16 %v1167, %v1166
    %v1173 = vpack.c.b16 %v1169, %v1168
    %v1179 = vsel %vm1002, %v1144, 0
    %v1182 = vsel %vm1002, %v1145, 0
    %v1185 = vsel %vm1002, %v1146, 0
    %v1188 = vsel %vm1002, %v1147, 0
    %1190 = vmatprep.subr.bf16.mxu0 0
    %1191 = vmatpush1.bf16.msra.mxu0 0
    %1192 = vmatprep.subr.bf16.mxu0 0
    %1193 = vmatpush1.bf16.msra.mxu0 0
    %1194 = vmatprep.subr.bf16.mxu0 0
    %1195 = vmatpush1.bf16.msra.mxu0 0
    %1196 = vmatprep.subr.bf16.mxu0 0
    %1197 = vmatpush1.bf16.msra.mxu0 0
    %1198 = vmatprep.subr.bf16.mxu0 0
    %1199 = vmatpush1.bf16.msra.mxu0 %v1173
    %1200 = vmatprep.subr.bf16.mxu0 0
    %1201 = vmatpush1.bf16.msra.mxu0 %v1172
    %1202 = vmatprep.subr.bf16.mxu0 0
    %1203 = vmatpush1.bf16.msra.mxu0 %v1171
    %1204 = vmatprep.subr.bf16.mxu0 0
    %1205 = vmatpush1.bf16.msra.mxu0 %v1170
    %1206 = vmatprep.subr.bf16.mxu0 0
    %1207 = vmatpush2.bf16.msra.mxu0 0
    %1208 = vmatprep.subr.bf16.mxu0 0
    %1209 = vmatpush2.bf16.msra.mxu0 0
    %1210 = vmatprep.subr.bf16.mxu0 0
    %1211 = vmatpush2.bf16.msra.mxu0 0
    %1212 = vmatprep.subr.bf16.mxu0 0
    %1213 = vmatpush2.bf16.msra.mxu0 0
    %1214 = vmatprep.subr.bf16.mxu0 0
    %1215 = vmatpush2.bf16.msra.mxu0 0
    %1216 = vmatprep.subr.bf16.mxu0 0
    %1217 = vmatpush2.bf16.msra.mxu0 0
    %1218 = vmatprep.subr.bf16.mxu0 0
    %1219 = vmatpush2.bf16.msra.mxu0 0
    %1220 = vmatprep.subr.bf16.mxu0 0
    %1221 = vmatpush2.bf16.msra.mxu0 0
    %1222 = vmatprep.mubr.bf16.mxu0 0
    %1223 = vmatmul.mubr.bf16.gmra.mxu0 %v1179
    %v1224 = vpop.f32.mrf.mxu0
    %v1225 = vadd.f32 %v1152, %v1224
    %v1226 = vpop.f32.mrf.mxu0
    %v1227 = vpop.f32.mrf.mxu0
    %v1228 = vadd.f32 %v1152, %v1227
    %v1229 = vpop.f32.mrf.mxu0
    %1230 = vmatprep.mubr.bf16.mxu0 0
    %1231 = vmatmul.mubr.bf16.gmra.mxu0 %v1182
    %v1232 = vpop.f32.mrf.mxu0
    %v1233 = vadd.f32 %v1152, %v1232
    %v1234 = vpop.f32.mrf.mxu0
    %v1235 = vpop.f32.mrf.mxu0
    %v1236 = vadd.f32 %v1152, %v1235
    %v1237 = vpop.f32.mrf.mxu0
    %1238 = vmatprep.mubr.bf16.mxu0 0
    %1239 = vmatmul.mubr.bf16.gmra.mxu0 %v1185
    %v1240 = vpop.f32.mrf.mxu0
    %v1241 = vadd.f32 %v1152, %v1240
    %v1242 = vpop.f32.mrf.mxu0
    %v1243 = vpop.f32.mrf.mxu0
    %v1244 = vadd.f32 %v1152, %v1243
    %v1245 = vpop.f32.mrf.mxu0
    %1246 = vmatprep.mubr.bf16.mxu0 0
    %1247 = vmatmul.mubr.bf16.gmra.mxu0 %v1188
    %v1248 = vpop.f32.mrf.mxu0
    %v1249 = vadd.f32 %v1152, %v1248
    %v1250 = vpop.f32.mrf.mxu0
    %v1251 = vpop.f32.mrf.mxu0
    %v1252 = vadd.f32 %v1152, %v1251
    %v1253 = vpop.f32.mrf.mxu0
    %1254 = vdwg.mxu0
    %v1255 = vsel %vm1002, %v1225, 0.0
    %1256 = vadd.xlane.f32.xlu0 %v1255
    %v1257 = vpop.xlane.xlu0 %1256
    %v1258 = vsel %vm1002, %v1228, 0.0
    %1259 = vadd.xlane.f32.xlu0 %v1258
    %v1260 = vpop.xlane.xlu0 %1259
    %v1261 = vsel %vm1002, %v1233, 0.0
    %1262 = vadd.xlane.f32.xlu0 %v1261
    %v1263 = vpop.xlane.xlu0 %1262
    %v1264 = vsel %vm1002, %v1236, 0.0
    %1265 = vadd.xlane.f32.xlu0 %v1264
    %v1266 = vpop.xlane.xlu0 %1265
    %v1267 = vsel %vm1002, %v1241, 0.0
    %1268 = vadd.xlane.f32.xlu0 %v1267
    %v1269 = vpop.xlane.xlu0 %1268
    %v1270 = vsel %vm1002, %v1244, 0.0
    %1271 = vadd.xlane.f32.xlu0 %v1270
    %v1272 = vpop.xlane.xlu0 %1271
    %v1273 = vsel %vm1002, %v1249, 0.0
    %1274 = vadd.xlane.f32.xlu0 %v1273
    %v1275 = vpop.xlane.xlu0 %1274
    %v1276 = vsel %vm1002, %v1252, 0.0
    %1277 = vadd.xlane.f32.xlu0 %v1276
    %v1278 = vpop.xlane.xlu0 %1277
    %v1279 = vmul.f32 %v1257, %v1027
    %v1280 = vmul.f32 %v1260, %v1027
    %v1281 = vmul.f32 %v1263, %v1027
    %v1282 = vmul.f32 %v1266, %v1027
    %v1283 = vmul.f32 %v1269, %v1027
    %v1284 = vmul.f32 %v1272, %v1027
    %v1285 = vmul.f32 %v1275, %v1027
    %v1286 = vmul.f32 %v1278, %v1027
    %v1287 = vsub.f32 %v1225, %v1279
    %v1288 = vsub.f32 %v1228, %v1280
    %v1289 = vsub.f32 %v1233, %v1281
    %v1290 = vsub.f32 %v1236, %v1282
    %v1291 = vsub.f32 %v1241, %v1283
    %v1292 = vsub.f32 %v1244, %v1284
    %v1293 = vsub.f32 %v1249, %v1285
    %v1294 = vsub.f32 %v1252, %v1286
    %v1295 = vmul.f32 %v1287, %v1287
    %v1296 = vmul.f32 %v1288, %v1288
    %v1297 = vmul.f32 %v1289, %v1289
    %v1298 = vmul.f32 %v1290, %v1290
    %v1299 = vmul.f32 %v1291, %v1291
    %v1300 = vmul.f32 %v1292, %v1292
    %v1301 = vmul.f32 %v1293, %v1293
    %v1302 = vmul.f32 %v1294, %v1294
    %v1303 = vsel %vm1002, %v1295, 0.0
    %1304 = vadd.xlane.f32.xlu0 %v1303
    %v1305 = vpop.xlane.xlu0 %1304
    %v1306 = vsel %vm1002, %v1296, 0.0
    %1307 = vadd.xlane.f32.xlu0 %v1306
    %v1308 = vpop.xlane.xlu0 %1307
    %v1309 = vsel %vm1002, %v1297, 0.0
    %1310 = vadd.xlane.f32.xlu0 %v1309
    %v1311 = vpop.xlane.xlu0 %1310
    %v1312 = vsel %vm1002, %v1298, 0.0
    %1313 = vadd.xlane.f32.xlu0 %v1312
    %v1314 = vpop.xlane.xlu0 %1313
    %v1315 = vsel %vm1002, %v1299, 0.0
    %1316 = vadd.xlane.f32.xlu0 %v1315
    %v1317 = vpop.xlane.xlu0 %1316
    %v1318 = vsel %vm1002, %v1300, 0.0
    %1319 = vadd.xlane.f32.xlu0 %v1318
    %v1320 = vpop.xlane.xlu0 %1319
    %v1321 = vsel %vm1002, %v1301, 0.0
    %1322 = vadd.xlane.f32.xlu0 %v1321
    %v1323 = vpop.xlane.xlu0 %1322
    %v1324 = vsel %vm1002, %v1302, 0.0
    %1325 = vadd.xlane.f32.xlu0 %v1324
    %v1326 = vpop.xlane.xlu0 %1325
    %v1327 = vmul.f32 %v1305, %v1027
    %v1328 = vmul.f32 %v1308, %v1027
    %v1329 = vmul.f32 %v1311, %v1027
    %v1330 = vmul.f32 %v1314, %v1027
    %v1331 = vmul.f32 %v1317, %v1027
    %v1332 = vmul.f32 %v1320, %v1027
    %v1333 = vmul.f32 %v1323, %v1027
    %v1334 = vmul.f32 %v1326, %v1027
    %v1335 = vadd.f32 %v1327, 1e-05
    %v1336 = vadd.f32 %v1328, 1e-05
    %v1337 = vadd.f32 %v1329, 1e-05
    %v1338 = vadd.f32 %v1330, 1e-05
    %v1339 = vadd.f32 %v1331, 1e-05
    %v1340 = vadd.f32 %v1332, 1e-05
    %v1341 = vadd.f32 %v1333, 1e-05
    %v1342 = vadd.f32 %v1334, 1e-05
    %v1343 = vrsqrt.pop %v1335
    %v1344 = vrsqrt.pop %v1336
    %v1345 = vrsqrt.pop %v1337
    %v1346 = vrsqrt.pop %v1338
    %v1347 = vrsqrt.pop %v1339
    %v1348 = vrsqrt.pop %v1340
    %v1349 = vrsqrt.pop %v1341
    %v1350 = vrsqrt.pop %v1342
    %v1351 = vmul.f32 %v1287, %v1343
    %v1352 = vmul.f32 %v1288, %v1344
    %v1353 = vmul.f32 %v1289, %v1345
    %v1354 = vmul.f32 %v1290, %v1346
    %v1355 = vmul.f32 %v1291, %v1347
    %v1356 = vmul.f32 %v1292, %v1348
    %v1357 = vmul.f32 %v1293, %v1349
    %v1358 = vmul.f32 %v1294, %v1350
    %v1360 = vlaneseq
    %v1361 = vshrl.u32 %v1360, 7
    %v1362 = vsub.s32 0, %v1361
    %v1363 = vrot.slane %v638, %v1362
    %v1365 = vmul.f32 %v1351, %v1363
    %v1366 = vmul.f32 %v1352, %v1363
    %v1367 = vmul.f32 %v1353, %v1363
    %v1368 = vmul.f32 %v1354, %v1363
    %v1369 = vmul.f32 %v1355, %v1363
    %v1370 = vmul.f32 %v1356, %v1363
    %v1371 = vmul.f32 %v1357, %v1363
    %v1372 = vmul.f32 %v1358, %v1363
    %v1374 = vlaneseq
    %v1375 = vshrl.u32 %v1374, 7
    %v1376 = vsub.s32 0, %v1375
    %v1377 = vrot.slane %v634, %v1376
    %v1379 = vadd.f32 %v1365, %v1377
    %v1380 = vadd.f32 %v1366, %v1377
    %v1381 = vadd.f32 %v1367, %v1377
    %v1382 = vadd.f32 %v1368, %v1377
    %v1383 = vadd.f32 %v1369, %v1377
    %v1384 = vadd.f32 %v1370, %v1377
    %v1385 = vadd.f32 %v1371, %v1377
    %v1386 = vadd.f32 %v1372, %v1377
    %v1388 = vlaneseq
    %v1389 = vshrl.u32 %v1388, 7
    %v1390 = vsub.s32 0, %v1389
    %v1391 = vrot.slane %v636, %v1390
    %v1394 = vsel %vm933, %v649, 0
    %1396 = vmatprep.subr.bf16.mxu0 0
    %1397 = vmatpush1.bf16.msra.mxu0 0
    %1398 = vmatprep.subr.bf16.mxu0 0
    %1399 = vmatpush1.bf16.msra.mxu0 0
    %1400 = vmatprep.subr.bf16.mxu0 0
    %1401 = vmatpush1.bf16.msra.mxu0 0
    %1402 = vmatprep.subr.bf16.mxu0 0
    %1403 = vmatpush1.bf16.msra.mxu0 0
    %1404 = vmatprep.subr.bf16.mxu0 0
    %1405 = vmatpush1.bf16.msra.mxu0 0
    %1406 = vmatprep.subr.bf16.mxu0 0
    %1407 = vmatpush1.bf16.msra.mxu0 0
    %1408 = vmatprep.subr.bf16.mxu0 0
    %1409 = vmatpush1.bf16.msra.mxu0 0
    %1410 = vmatprep.subr.bf16.mxu0 0
    %1411 = vmatpush1.bf16.msra.mxu0 %v1394
    %1412 = vmatprep.subr.bf16.mxu0 0
    %1413 = vmatpush2.bf16.msra.mxu0 0
    %1414 = vmatprep.subr.bf16.mxu0 0
    %1415 = vmatpush2.bf16.msra.mxu0 0
    %1416 = vmatprep.subr.bf16.mxu0 0
    %1417 = vmatpush2.bf16.msra.mxu0 0
    %1418 = vmatprep.subr.bf16.mxu0 0
    %1419 = vmatpush2.bf16.msra.mxu0 0
    %1420 = vmatprep.subr.bf16.mxu0 0
    %1421 = vmatpush2.bf16.msra.mxu0 0
    %1422 = vmatprep.subr.bf16.mxu0 0
    %1423 = vmatpush2.bf16.msra.mxu0 0
    %1424 = vmatprep.subr.bf16.mxu0 0
    %1425 = vmatpush2.bf16.msra.mxu0 0
    %1426 = vmatprep.subr.bf16.mxu0 0
    %1427 = vmatpush2.bf16.msra.mxu0 0
    %1428 = vmatprep.mubr.bf16.mxu0 0
    %1429 = vmatmul.mubr.bf16.gmra.mxu0 %v922
    %v1430 = vpop.f32.mrf.mxu0
    %v1431 = vadd.f32 %v1391, %v1430
    %v1432 = vpop.f32.mrf.mxu0
    %v1433 = vpop.f32.mrf.mxu0
    %v1434 = vadd.f32 %v1391, %v1433
    %v1435 = vpop.f32.mrf.mxu0
    %1436 = vmatprep.mubr.bf16.mxu0 0
    %1437 = vmatmul.mubr.bf16.gmra.mxu0 %v925
    %v1438 = vpop.f32.mrf.mxu0
    %v1439 = vadd.f32 %v1391, %v1438
    %v1440 = vpop.f32.mrf.mxu0
    %v1441 = vpop.f32.mrf.mxu0
    %v1442 = vadd.f32 %v1391, %v1441
    %v1443 = vpop.f32.mrf.mxu0
    %1444 = vmatprep.mubr.bf16.mxu0 0
    %1445 = vmatmul.mubr.bf16.gmra.mxu0 %v928
    %v1446 = vpop.f32.mrf.mxu0
    %v1447 = vadd.f32 %v1391, %v1446
    %v1448 = vpop.f32.mrf.mxu0
    %v1449 = vpop.f32.mrf.mxu0
    %v1450 = vadd.f32 %v1391, %v1449
    %v1451 = vpop.f32.mrf.mxu0
    %1452 = vmatprep.mubr.bf16.mxu0 0
    %1453 = vmatmul.mubr.bf16.gmra.mxu0 %v931
    %v1454 = vpop.f32.mrf.mxu0
    %v1455 = vadd.f32 %v1391, %v1454
    %v1456 = vpop.f32.mrf.mxu0
    %v1457 = vpop.f32.mrf.mxu0
    %v1458 = vadd.f32 %v1391, %v1457
    %v1459 = vpop.f32.mrf.mxu0
    %1460 = vdwg.mxu0
    %v1461 = vsel %vm1002, %v1431, 0.0
    %1462 = vadd.xlane.f32.xlu0 %v1461
    %v1463 = vpop.xlane.xlu0 %1462
    %v1464 = vsel %vm1002, %v1434, 0.0
    %1465 = vadd.xlane.f32.xlu0 %v1464
    %v1466 = vpop.xlane.xlu0 %1465
    %v1467 = vsel %vm1002, %v1439, 0.0
    %1468 = vadd.xlane.f32.xlu0 %v1467
    %v1469 = vpop.xlane.xlu0 %1468
    %v1470 = vsel %vm1002, %v1442, 0.0
    %1471 = vadd.xlane.f32.xlu0 %v1470
    %v1472 = vpop.xlane.xlu0 %1471
    %v1473 = vsel %vm1002, %v1447, 0.0
    %1474 = vadd.xlane.f32.xlu0 %v1473
    %v1475 = vpop.xlane.xlu0 %1474
    %v1476 = vsel %vm1002, %v1450, 0.0
    %1477 = vadd.xlane.f32.xlu0 %v1476
    %v1478 = vpop.xlane.xlu0 %1477
    %v1479 = vsel %vm1002, %v1455, 0.0
    %1480 = vadd.xlane.f32.xlu0 %v1479
    %v1481 = vpop.xlane.xlu0 %1480
    %v1482 = vsel %vm1002, %v1458, 0.0
    %1483 = vadd.xlane.f32.xlu0 %v1482
    %v1484 = vpop.xlane.xlu0 %1483
    %v1485 = vmul.f32 %v1463, %v1027
    %v1486 = vmul.f32 %v1466, %v1027
    %v1487 = vmul.f32 %v1469, %v1027
    %v1488 = vmul.f32 %v1472, %v1027
    %v1489 = vmul.f32 %v1475, %v1027
    %v1490 = vmul.f32 %v1478, %v1027
    %v1491 = vmul.f32 %v1481, %v1027
    %v1492 = vmul.f32 %v1484, %v1027
    %v1493 = vsub.f32 %v1431, %v1485
    %v1494 = vsub.f32 %v1434, %v1486
    %v1495 = vsub.f32 %v1439, %v1487
    %v1496 = vsub.f32 %v1442, %v1488
    %v1497 = vsub.f32 %v1447, %v1489
    %v1498 = vsub.f32 %v1450, %v1490
    %v1499 = vsub.f32 %v1455, %v1491
    %v1500 = vsub.f32 %v1458, %v1492
    %v1501 = vmul.f32 %v1493, %v1493
    %v1502 = vmul.f32 %v1494, %v1494
    %v1503 = vmul.f32 %v1495, %v1495
    %v1504 = vmul.f32 %v1496, %v1496
    %v1505 = vmul.f32 %v1497, %v1497
    %v1506 = vmul.f32 %v1498, %v1498
    %v1507 = vmul.f32 %v1499, %v1499
    %v1508 = vmul.f32 %v1500, %v1500
    %v1509 = vsel %vm1002, %v1501, 0.0
    %1510 = vadd.xlane.f32.xlu0 %v1509
    %v1511 = vpop.xlane.xlu0 %1510
    %v1512 = vsel %vm1002, %v1502, 0.0
    %1513 = vadd.xlane.f32.xlu0 %v1512
    %v1514 = vpop.xlane.xlu0 %1513
    %v1515 = vsel %vm1002, %v1503, 0.0
    %1516 = vadd.xlane.f32.xlu0 %v1515
    %v1517 = vpop.xlane.xlu0 %1516
    %v1518 = vsel %vm1002, %v1504, 0.0
    %1519 = vadd.xlane.f32.xlu0 %v1518
    %v1520 = vpop.xlane.xlu0 %1519
    %v1521 = vsel %vm1002, %v1505, 0.0
    %1522 = vadd.xlane.f32.xlu0 %v1521
    %v1523 = vpop.xlane.xlu0 %1522
    %v1524 = vsel %vm1002, %v1506, 0.0
    %1525 = vadd.xlane.f32.xlu0 %v1524
    %v1526 = vpop.xlane.xlu0 %1525
    %v1527 = vsel %vm1002, %v1507, 0.0
    %1528 = vadd.xlane.f32.xlu0 %v1527
    %v1529 = vpop.xlane.xlu0 %1528
    %v1530 = vsel %vm1002, %v1508, 0.0
    %1531 = vadd.xlane.f32.xlu0 %v1530
    %v1532 = vpop.xlane.xlu0 %1531
    %v1533 = vmul.f32 %v1511, %v1027
    %v1534 = vmul.f32 %v1514, %v1027
    %v1535 = vmul.f32 %v1517, %v1027
    %v1536 = vmul.f32 %v1520, %v1027
    %v1537 = vmul.f32 %v1523, %v1027
    %v1538 = vmul.f32 %v1526, %v1027
    %v1539 = vmul.f32 %v1529, %v1027
    %v1540 = vmul.f32 %v1532, %v1027
    %v1541 = vadd.f32 %v1533, 1e-05
    %v1542 = vadd.f32 %v1534, 1e-05
    %v1543 = vadd.f32 %v1535, 1e-05
    %v1544 = vadd.f32 %v1536, 1e-05
    %v1545 = vadd.f32 %v1537, 1e-05
    %v1546 = vadd.f32 %v1538, 1e-05
    %v1547 = vadd.f32 %v1539, 1e-05
    %v1548 = vadd.f32 %v1540, 1e-05
    %v1549 = vrsqrt.pop %v1541
    %v1550 = vrsqrt.pop %v1542
    %v1551 = vrsqrt.pop %v1543
    %v1552 = vrsqrt.pop %v1544
    %v1553 = vrsqrt.pop %v1545
    %v1554 = vrsqrt.pop %v1546
    %v1555 = vrsqrt.pop %v1547
    %v1556 = vrsqrt.pop %v1548
    %v1557 = vmul.f32 %v1493, %v1549
    %v1558 = vmul.f32 %v1494, %v1550
    %v1559 = vmul.f32 %v1495, %v1551
    %v1560 = vmul.f32 %v1496, %v1552
    %v1561 = vmul.f32 %v1497, %v1553
    %v1562 = vmul.f32 %v1498, %v1554
    %v1563 = vmul.f32 %v1499, %v1555
    %v1564 = vmul.f32 %v1500, %v1556
    %v1566 = vlaneseq
    %v1567 = vshrl.u32 %v1566, 7
    %v1568 = vsub.s32 0, %v1567
    %v1569 = vrot.slane %v639, %v1568
    %v1571 = vmul.f32 %v1557, %v1569
    %v1572 = vmul.f32 %v1558, %v1569
    %v1573 = vmul.f32 %v1559, %v1569
    %v1574 = vmul.f32 %v1560, %v1569
    %v1575 = vmul.f32 %v1561, %v1569
    %v1576 = vmul.f32 %v1562, %v1569
    %v1577 = vmul.f32 %v1563, %v1569
    %v1578 = vmul.f32 %v1564, %v1569
    %v1580 = vlaneseq
    %v1581 = vshrl.u32 %v1580, 7
    %v1582 = vsub.s32 0, %v1581
    %v1583 = vrot.slane %v635, %v1582
    %v1585 = vadd.f32 %v1571, %v1583
    %v1586 = vadd.f32 %v1572, %v1583
    %v1587 = vadd.f32 %v1573, %v1583
    %v1588 = vadd.f32 %v1574, %v1583
    %v1589 = vadd.f32 %v1575, %v1583
    %v1590 = vadd.f32 %v1576, %v1583
    %v1591 = vadd.f32 %v1577, %v1583
    %v1592 = vadd.f32 %v1578, %v1583
    %v1593 = vadd.f32 %v1379, %v1585
    %v1594 = vadd.f32 %v1380, %v1586
    %v1595 = vadd.f32 %v1381, %v1587
    %v1596 = vadd.f32 %v1382, %v1588
    %v1597 = vadd.f32 %v1383, %v1589
    %v1598 = vadd.f32 %v1384, %v1590
    %v1599 = vadd.f32 %v1385, %v1591
    %v1600 = vadd.f32 %v1386, %v1592
    %v1601 = vmax.f32 %v1593, 0.0
    %v1602 = vmax.f32 %v1594, 0.0
    %v1603 = vmax.f32 %v1595, 0.0
    %v1604 = vmax.f32 %v1596, 0.0
    %v1605 = vmax.f32 %v1597, 0.0
    %v1606 = vmax.f32 %v1598, 0.0
    %v1607 = vmax.f32 %v1599, 0.0
    %v1608 = vmax.f32 %v1600, 0.0
    %v1617 = vcombine.high %v1601, %v1601
    %v1618 = vcombine.high %v1602, %v1602
    %v1619 = vcombine.high %v1603, %v1603
    %v1620 = vcombine.high %v1604, %v1604
    %v1621 = vcombine.high %v1605, %v1605
    %v1622 = vcombine.high %v1606, %v1606
    %v1623 = vcombine.high %v1607, %v1607
    %v1624 = vcombine.high %v1608, %v1608
    %vm1633 = vcmask 519168
    %v1634 = vsel %vm1633, %v1601, -inf
    %v1635 = vrot.slane %v1634, 4
    %v1636 = vmax.f32 %v1634, %v1635
    %v1637 = vrot.slane %v1636, 2
    %v1638 = vmax.f32 %v1636, %v1637
    %v1639 = vrot.slane %v1638, 1
    %v1640 = vmax.f32 %v1638, %v1639
    %v1641 = vsel %vm1633, %v1617, -inf
    %v1642 = vrot.slane %v1641, 4
    %v1643 = vmax.f32 %v1641, %v1642
    %v1644 = vrot.slane %v1643, 2
    %v1645 = vmax.f32 %v1643, %v1644
    %v1646 = vrot.slane %v1645, 1
    %v1647 = vmax.f32 %v1645, %v1646
    %v1648 = vsel %vm1633, %v1602, -inf
    %v1649 = vrot.slane %v1648, 4
    %v1650 = vmax.f32 %v1648, %v1649
    %v1651 = vrot.slane %v1650, 2
    %v1652 = vmax.f32 %v1650, %v1651
    %v1653 = vrot.slane %v1652, 1
    %v1654 = vmax.f32 %v1652, %v1653
    %v1655 = vsel %vm1633, %v1618, -inf
    %v1656 = vrot.slane %v1655, 4
    %v1657 = vmax.f32 %v1655, %v1656
    %v1658 = vrot.slane %v1657, 2
    %v1659 = vmax.f32 %v1657, %v1658
    %v1660 = vrot.slane %v1659, 1
    %v1661 = vmax.f32 %v1659, %v1660
    %v1662 = vsel %vm1633, %v1603, -inf
    %v1663 = vrot.slane %v1662, 4
    %v1664 = vmax.f32 %v1662, %v1663
    %v1665 = vrot.slane %v1664, 2
    %v1666 = vmax.f32 %v1664, %v1665
    %v1667 = vrot.slane %v1666, 1
    %v1668 = vmax.f32 %v1666, %v1667
    %v1669 = vsel %vm1633, %v1619, -inf
    %v1670 = vrot.slane %v1669, 4
    %v1671 = vmax.f32 %v1669, %v1670
    %v1672 = vrot.slane %v1671, 2
    %v1673 = vmax.f32 %v1671, %v1672
    %v1674 = vrot.slane %v1673, 1
    %v1675 = vmax.f32 %v1673, %v1674
    %v1676 = vsel %vm1633, %v1604, -inf
    %v1677 = vrot.slane %v1676, 4
    %v1678 = vmax.f32 %v1676, %v1677
    %v1679 = vrot.slane %v1678, 2
    %v1680 = vmax.f32 %v1678, %v1679
    %v1681 = vrot.slane %v1680, 1
    %v1682 = vmax.f32 %v1680, %v1681
    %v1683 = vsel %vm1633, %v1620, -inf
    %v1684 = vrot.slane %v1683, 4
    %v1685 = vmax.f32 %v1683, %v1684
    %v1686 = vrot.slane %v1685, 2
    %v1687 = vmax.f32 %v1685, %v1686
    %v1688 = vrot.slane %v1687, 1
    %v1689 = vmax.f32 %v1687, %v1688
    %v1690 = vsel %vm1633, %v1605, -inf
    %v1691 = vrot.slane %v1690, 4
    %v1692 = vmax.f32 %v1690, %v1691
    %v1693 = vrot.slane %v1692, 2
    %v1694 = vmax.f32 %v1692, %v1693
    %v1695 = vrot.slane %v1694, 1
    %v1696 = vmax.f32 %v1694, %v1695
    %v1697 = vsel %vm1633, %v1621, -inf
    %v1698 = vrot.slane %v1697, 4
    %v1699 = vmax.f32 %v1697, %v1698
    %v1700 = vrot.slane %v1699, 2
    %v1701 = vmax.f32 %v1699, %v1700
    %v1702 = vrot.slane %v1701, 1
    %v1703 = vmax.f32 %v1701, %v1702
    %v1704 = vsel %vm1633, %v1606, -inf
    %v1705 = vrot.slane %v1704, 4
    %v1706 = vmax.f32 %v1704, %v1705
    %v1707 = vrot.slane %v1706, 2
    %v1708 = vmax.f32 %v1706, %v1707
    %v1709 = vrot.slane %v1708, 1
    %v1710 = vmax.f32 %v1708, %v1709
    %v1711 = vsel %vm1633, %v1622, -inf
    %v1712 = vrot.slane %v1711, 4
    %v1713 = vmax.f32 %v1711, %v1712
    %v1714 = vrot.slane %v1713, 2
    %v1715 = vmax.f32 %v1713, %v1714
    %v1716 = vrot.slane %v1715, 1
    %v1717 = vmax.f32 %v1715, %v1716
    %v1718 = vsel %vm1633, %v1607, -inf
    %v1719 = vrot.slane %v1718, 4
    %v1720 = vmax.f32 %v1718, %v1719
    %v1721 = vrot.slane %v1720, 2
    %v1722 = vmax.f32 %v1720, %v1721
    %v1723 = vrot.slane %v1722, 1
    %v1724 = vmax.f32 %v1722, %v1723
    %v1725 = vsel %vm1633, %v1623, -inf
    %v1726 = vrot.slane %v1725, 4
    %v1727 = vmax.f32 %v1725, %v1726
    %v1728 = vrot.slane %v1727, 2
    %v1729 = vmax.f32 %v1727, %v1728
    %v1730 = vrot.slane %v1729, 1
    %v1731 = vmax.f32 %v1729, %v1730
    %v1732 = vsel %vm1633, %v1608, -inf
    %v1733 = vrot.slane %v1732, 4
    %v1734 = vmax.f32 %v1732, %v1733
    %v1735 = vrot.slane %v1734, 2
    %v1736 = vmax.f32 %v1734, %v1735
    %v1737 = vrot.slane %v1736, 1
    %v1738 = vmax.f32 %v1736, %v1737
    %v1739 = vsel %vm1633, %v1624, -inf
    %v1740 = vrot.slane %v1739, 4
    %v1741 = vmax.f32 %v1739, %v1740
    %v1742 = vrot.slane %v1741, 2
    %v1743 = vmax.f32 %v1741, %v1742
    %v1744 = vrot.slane %v1743, 1
    %v1745 = vmax.f32 %v1743, %v1744
    %v1762 = vcombine.low %v1640, %v1647
    %v1763 = vcombine.low %v1654, %v1661
    %v1764 = vcombine.low %v1668, %v1675
    %v1765 = vcombine.low %v1682, %v1689
    %v1766 = vcombine.low %v1696, %v1703
    %v1767 = vcombine.low %v1710, %v1717
    %v1768 = vcombine.low %v1724, %v1731
    %v1769 = vcombine.low %v1738, %v1745
    %1770 = vrot.lane.b32.xlu0 %v1762, 64
    %v1771 = vpop.permute.xlu0 %1770
    %1772 = vrot.lane.b32.xlu0 %v1763, 64
    %v1773 = vpop.permute.xlu0 %1772
    %1774 = vrot.lane.b32.xlu0 %v1764, 64
    %v1775 = vpop.permute.xlu0 %1774
    %1776 = vrot.lane.b32.xlu0 %v1765, 64
    %v1777 = vpop.permute.xlu0 %1776
    %1778 = vrot.lane.b32.xlu0 %v1766, 64
    %v1779 = vpop.permute.xlu0 %1778
    %1780 = vrot.lane.b32.xlu0 %v1767, 64
    %v1781 = vpop.permute.xlu0 %1780
    %1782 = vrot.lane.b32.xlu0 %v1768, 64
    %v1783 = vpop.permute.xlu0 %1782
    %1784 = vrot.lane.b32.xlu0 %v1769, 64
    %v1785 = vpop.permute.xlu0 %1784
    %v1794 = vsel %vm1002, %v1601, %v1771
    %v1795 = vsel %vm1002, %v1602, %v1773
    %v1796 = vsel %vm1002, %v1603, %v1775
    %v1797 = vsel %vm1002, %v1604, %v1777
    %v1798 = vsel %vm1002, %v1605, %v1779
    %v1799 = vsel %vm1002, %v1606, %v1781
    %v1800 = vsel %vm1002, %v1607, %v1783
    %v1801 = vsel %vm1002, %v1608, %v1785
    %v1802 = vpack.c.bf16 %v1795, %v1794
    %v1803 = vpack.c.bf16 %v1797, %v1796
    %v1804 = vpack.c.bf16 %v1799, %v1798
    %v1805 = vpack.c.bf16 %v1801, %v1800
    %v1807 = vlaneseq
    %v1808 = vshrl.u32 %v1807, 7
    %v1809 = vsub.s32 0, %v1808
    %v1810 = vrot.slane %v650, %v1809
    %v1828 = vunpack.c.l.b16 %v659
    %v1829 = vunpack.c.l.b16 %v660
    %v1830 = vunpack.c.l.b16 %v661
    %v1831 = vunpack.c.l.b16 %v662
    %v1832 = vunpack.c.l.b16 %v663
    %v1833 = vunpack.c.l.b16 %v664
    %v1834 = vunpack.c.l.b16 %v665
    %v1835 = vunpack.c.l.b16 %v666
    %v1836 = vunpack.c.l.b16 %v667
    %v1837 = vunpack.c.l.b16 %v668
    %v1838 = vunpack.c.l.b16 %v669
    %v1839 = vunpack.c.l.b16 %v670
    %v1840 = vunpack.c.l.b16 %v671
    %v1841 = vunpack.c.l.b16 %v672
    %v1842 = vunpack.c.l.b16 %v673
    %v1843 = vunpack.c.l.b16 %v674
    %v1844 = vpack.c.b16 %v1829, %v1828
    %v1845 = vpack.c.b16 %v1831, %v1830
    %v1846 = vpack.c.b16 %v1833, %v1832
    %v1847 = vpack.c.b16 %v1835, %v1834
    %v1848 = vpack.c.b16 %v1837, %v1836
    %v1849 = vpack.c.b16 %v1839, %v1838
    %v1850 = vpack.c.b16 %v1841, %v1840
    %v1851 = vpack.c.b16 %v1843, %v1842
    %1860 = vmatprep.subr.bf16.mxu0 0
    %1861 = vmatpush1.bf16.msra.mxu0 %v1851
    %1862 = vmatprep.subr.bf16.mxu0 0
    %1863 = vmatpush1.bf16.msra.mxu0 %v1850
    %1864 = vmatprep.subr.bf16.mxu0 0
    %1865 = vmatpush1.bf16.msra.mxu0 %v1849
    %1866 = vmatprep.subr.bf16.mxu0 0
    %1867 = vmatpush1.bf16.msra.mxu0 %v1848
    %1868 = vmatprep.subr.bf16.mxu0 0
    %1869 = vmatpush1.bf16.msra.mxu0 %v1847
    %1870 = vmatprep.subr.bf16.mxu0 0
    %1871 = vmatpush1.bf16.msra.mxu0 %v1846
    %1872 = vmatprep.subr.bf16.mxu0 0
    %1873 = vmatpush1.bf16.msra.mxu0 %v1845
    %1874 = vmatprep.subr.bf16.mxu0 0
    %1875 = vmatpush1.bf16.msra.mxu0 %v1844
    %1876 = vmatprep.subr.bf16.mxu0 0
    %1877 = vmatpush2.bf16.msra.mxu0 0
    %1878 = vmatprep.subr.bf16.mxu0 0
    %1879 = vmatpush2.bf16.msra.mxu0 0
    %1880 = vmatprep.subr.bf16.mxu0 0
    %1881 = vmatpush2.bf16.msra.mxu0 0
    %1882 = vmatprep.subr.bf16.mxu0 0
    %1883 = vmatpush2.bf16.msra.mxu0 0
    %1884 = vmatprep.subr.bf16.mxu0 0
    %1885 = vmatpush2.bf16.msra.mxu0 0
    %1886 = vmatprep.subr.bf16.mxu0 0
    %1887 = vmatpush2.bf16.msra.mxu0 0
    %1888 = vmatprep.subr.bf16.mxu0 0
    %1889 = vmatpush2.bf16.msra.mxu0 0
    %1890 = vmatprep.subr.bf16.mxu0 0
    %1891 = vmatpush2.bf16.msra.mxu0 0
    %1892 = vmatprep.mubr.bf16.mxu0 0
    %1893 = vmatmul.mubr.bf16.gmra.mxu0 %v1802
    %v1894 = vpop.f32.mrf.mxu0
    %v1895 = vadd.f32 %v1810, %v1894
    %v1896 = vpop.f32.mrf.mxu0
    %v1897 = vpop.f32.mrf.mxu0
    %v1898 = vadd.f32 %v1810, %v1897
    %v1899 = vpop.f32.mrf.mxu0
    %1900 = vmatprep.mubr.bf16.mxu0 0
    %1901 = vmatmul.mubr.bf16.gmra.mxu0 %v1803
    %v1902 = vpop.f32.mrf.mxu0
    %v1903 = vadd.f32 %v1810, %v1902
    %v1904 = vpop.f32.mrf.mxu0
    %v1905 = vpop.f32.mrf.mxu0
    %v1906 = vadd.f32 %v1810, %v1905
    %v1907 = vpop.f32.mrf.mxu0
    %1908 = vmatprep.mubr.bf16.mxu0 0
    %1909 = vmatmul.mubr.bf16.gmra.mxu0 %v1804
    %v1910 = vpop.f32.mrf.mxu0
    %v1911 = vadd.f32 %v1810, %v1910
    %v1912 = vpop.f32.mrf.mxu0
    %v1913 = vpop.f32.mrf.mxu0
    %v1914 = vadd.f32 %v1810, %v1913
    %v1915 = vpop.f32.mrf.mxu0
    %1916 = vmatprep.mubr.bf16.mxu0 0
    %1917 = vmatmul.mubr.bf16.gmra.mxu0 %v1805
    %v1918 = vpop.f32.mrf.mxu0
    %v1919 = vadd.f32 %v1810, %v1918
    %v1920 = vpop.f32.mrf.mxu0
    %v1921 = vpop.f32.mrf.mxu0
    %v1922 = vadd.f32 %v1810, %v1921
    %v1923 = vpop.f32.mrf.mxu0
    %1924 = vdwg.mxu0
    %v1925 = vsel %vm1002, %v1895, 0.0
    %1926 = vadd.xlane.f32.xlu0 %v1925
    %v1927 = vpop.xlane.xlu0 %1926
    %v1928 = vsel %vm1002, %v1898, 0.0
    %1929 = vadd.xlane.f32.xlu0 %v1928
    %v1930 = vpop.xlane.xlu0 %1929
    %v1931 = vsel %vm1002, %v1903, 0.0
    %1932 = vadd.xlane.f32.xlu0 %v1931
    %v1933 = vpop.xlane.xlu0 %1932
    %v1934 = vsel %vm1002, %v1906, 0.0
    %1935 = vadd.xlane.f32.xlu0 %v1934
    %v1936 = vpop.xlane.xlu0 %1935
    %v1937 = vsel %vm1002, %v1911, 0.0
    %1938 = vadd.xlane.f32.xlu0 %v1937
    %v1939 = vpop.xlane.xlu0 %1938
    %v1940 = vsel %vm1002, %v1914, 0.0
    %1941 = vadd.xlane.f32.xlu0 %v1940
    %v1942 = vpop.xlane.xlu0 %1941
    %v1943 = vsel %vm1002, %v1919, 0.0
    %1944 = vadd.xlane.f32.xlu0 %v1943
    %v1945 = vpop.xlane.xlu0 %1944
    %v1946 = vsel %vm1002, %v1922, 0.0
    %1947 = vadd.xlane.f32.xlu0 %v1946
    %v1948 = vpop.xlane.xlu0 %1947
    %v1949 = vmul.f32 %v1927, %v1027
    %v1950 = vmul.f32 %v1930, %v1027
    %v1951 = vmul.f32 %v1933, %v1027
    %v1952 = vmul.f32 %v1936, %v1027
    %v1953 = vmul.f32 %v1939, %v1027
    %v1954 = vmul.f32 %v1942, %v1027
    %v1955 = vmul.f32 %v1945, %v1027
    %v1956 = vmul.f32 %v1948, %v1027
    %v1957 = vsub.f32 %v1895, %v1949
    %v1958 = vsub.f32 %v1898, %v1950
    %v1959 = vsub.f32 %v1903, %v1951
    %v1960 = vsub.f32 %v1906, %v1952
    %v1961 = vsub.f32 %v1911, %v1953
    %v1962 = vsub.f32 %v1914, %v1954
    %v1963 = vsub.f32 %v1919, %v1955
    %v1964 = vsub.f32 %v1922, %v1956
    %v1965 = vmul.f32 %v1957, %v1957
    %v1966 = vmul.f32 %v1958, %v1958
    %v1967 = vmul.f32 %v1959, %v1959
    %v1968 = vmul.f32 %v1960, %v1960
    %v1969 = vmul.f32 %v1961, %v1961
    %v1970 = vmul.f32 %v1962, %v1962
    %v1971 = vmul.f32 %v1963, %v1963
    %v1972 = vmul.f32 %v1964, %v1964
    %v1973 = vsel %vm1002, %v1965, 0.0
    %1974 = vadd.xlane.f32.xlu0 %v1973
    %v1975 = vpop.xlane.xlu0 %1974
    %v1976 = vsel %vm1002, %v1966, 0.0
    %1977 = vadd.xlane.f32.xlu0 %v1976
    %v1978 = vpop.xlane.xlu0 %1977
    %v1979 = vsel %vm1002, %v1967, 0.0
    %1980 = vadd.xlane.f32.xlu0 %v1979
    %v1981 = vpop.xlane.xlu0 %1980
    %v1982 = vsel %vm1002, %v1968, 0.0
    %1983 = vadd.xlane.f32.xlu0 %v1982
    %v1984 = vpop.xlane.xlu0 %1983
    %v1985 = vsel %vm1002, %v1969, 0.0
    %1986 = vadd.xlane.f32.xlu0 %v1985
    %v1987 = vpop.xlane.xlu0 %1986
    %v1988 = vsel %vm1002, %v1970, 0.0
    %1989 = vadd.xlane.f32.xlu0 %v1988
    %v1990 = vpop.xlane.xlu0 %1989
    %v1991 = vsel %vm1002, %v1971, 0.0
    %1992 = vadd.xlane.f32.xlu0 %v1991
    %v1993 = vpop.xlane.xlu0 %1992
    %v1994 = vsel %vm1002, %v1972, 0.0
    %1995 = vadd.xlane.f32.xlu0 %v1994
    %v1996 = vpop.xlane.xlu0 %1995
    %v1997 = vmul.f32 %v1975, %v1027
    %v1998 = vmul.f32 %v1978, %v1027
    %v1999 = vmul.f32 %v1981, %v1027
    %v2000 = vmul.f32 %v1984, %v1027
    %v2001 = vmul.f32 %v1987, %v1027
    %v2002 = vmul.f32 %v1990, %v1027
    %v2003 = vmul.f32 %v1993, %v1027
    %v2004 = vmul.f32 %v1996, %v1027
    %v2005 = vadd.f32 %v1997, 1e-05
    %v2006 = vadd.f32 %v1998, 1e-05
    %v2007 = vadd.f32 %v1999, 1e-05
    %v2008 = vadd.f32 %v2000, 1e-05
    %v2009 = vadd.f32 %v2001, 1e-05
    %v2010 = vadd.f32 %v2002, 1e-05
    %v2011 = vadd.f32 %v2003, 1e-05
    %v2012 = vadd.f32 %v2004, 1e-05
    %v2013 = vrsqrt.pop %v2005
    %v2014 = vrsqrt.pop %v2006
    %v2015 = vrsqrt.pop %v2007
    %v2016 = vrsqrt.pop %v2008
    %v2017 = vrsqrt.pop %v2009
    %v2018 = vrsqrt.pop %v2010
    %v2019 = vrsqrt.pop %v2011
    %v2020 = vrsqrt.pop %v2012
    %v2021 = vmul.f32 %v1957, %v2013
    %v2022 = vmul.f32 %v1958, %v2014
    %v2023 = vmul.f32 %v1959, %v2015
    %v2024 = vmul.f32 %v1960, %v2016
    %v2025 = vmul.f32 %v1961, %v2017
    %v2026 = vmul.f32 %v1962, %v2018
    %v2027 = vmul.f32 %v1963, %v2019
    %v2028 = vmul.f32 %v1964, %v2020
    %v2030 = vlaneseq
    %v2031 = vshrl.u32 %v2030, 7
    %v2032 = vsub.s32 0, %v2031
    %v2033 = vrot.slane %v656, %v2032
    %v2035 = vmul.f32 %v2021, %v2033
    %v2036 = vmul.f32 %v2022, %v2033
    %v2037 = vmul.f32 %v2023, %v2033
    %v2038 = vmul.f32 %v2024, %v2033
    %v2039 = vmul.f32 %v2025, %v2033
    %v2040 = vmul.f32 %v2026, %v2033
    %v2041 = vmul.f32 %v2027, %v2033
    %v2042 = vmul.f32 %v2028, %v2033
    %v2044 = vlaneseq
    %v2045 = vshrl.u32 %v2044, 7
    %v2046 = vsub.s32 0, %v2045
    %v2047 = vrot.slane %v652, %v2046
    %v2049 = vadd.f32 %v2035, %v2047
    %v2050 = vadd.f32 %v2036, %v2047
    %v2051 = vadd.f32 %v2037, %v2047
    %v2052 = vadd.f32 %v2038, %v2047
    %v2053 = vadd.f32 %v2039, %v2047
    %v2054 = vadd.f32 %v2040, %v2047
    %v2055 = vadd.f32 %v2041, %v2047
    %v2056 = vadd.f32 %v2042, %v2047
    %v2057 = vmax.f32 %v2049, 0.0
    %v2058 = vmax.f32 %v2050, 0.0
    %v2059 = vmax.f32 %v2051, 0.0
    %v2060 = vmax.f32 %v2052, 0.0
    %v2061 = vmax.f32 %v2053, 0.0
    %v2062 = vmax.f32 %v2054, 0.0
    %v2063 = vmax.f32 %v2055, 0.0
    %v2064 = vmax.f32 %v2056, 0.0
    %v2065 = vpack.c.bf16 %v2058, %v2057
    %v2066 = vpack.c.bf16 %v2060, %v2059
    %v2067 = vpack.c.bf16 %v2062, %v2061
    %v2068 = vpack.c.bf16 %v2064, %v2063
    %v2070 = vlaneseq
    %v2071 = vshrl.u32 %v2070, 7
    %v2072 = vsub.s32 0, %v2071
    %v2073 = vrot.slane %v651, %v2072
    %v2083 = vunpack.c.l.b16 %v675
    %v2084 = vunpack.c.l.b16 %v676
    %v2085 = vunpack.c.l.b16 %v677
    %v2086 = vunpack.c.l.b16 %v678
    %v2087 = vunpack.c.l.b16 %v679
    %v2088 = vunpack.c.l.b16 %v680
    %v2089 = vunpack.c.l.b16 %v681
    %v2090 = vunpack.c.l.b16 %v682
    %v2091 = vpack.c.b16 %v2084, %v2083
    %v2092 = vpack.c.b16 %v2086, %v2085
    %v2093 = vpack.c.b16 %v2088, %v2087
    %v2094 = vpack.c.b16 %v2090, %v2089
    %v2100 = vsel %vm1002, %v2065, 0
    %v2103 = vsel %vm1002, %v2066, 0
    %v2106 = vsel %vm1002, %v2067, 0
    %v2109 = vsel %vm1002, %v2068, 0
    %2111 = vmatprep.subr.bf16.mxu0 0
    %2112 = vmatpush1.bf16.msra.mxu0 0
    %2113 = vmatprep.subr.bf16.mxu0 0
    %2114 = vmatpush1.bf16.msra.mxu0 0
    %2115 = vmatprep.subr.bf16.mxu0 0
    %2116 = vmatpush1.bf16.msra.mxu0 0
    %2117 = vmatprep.subr.bf16.mxu0 0
    %2118 = vmatpush1.bf16.msra.mxu0 0
    %2119 = vmatprep.subr.bf16.mxu0 0
    %2120 = vmatpush1.bf16.msra.mxu0 %v2094
    %2121 = vmatprep.subr.bf16.mxu0 0
    %2122 = vmatpush1.bf16.msra.mxu0 %v2093
    %2123 = vmatprep.subr.bf16.mxu0 0
    %2124 = vmatpush1.bf16.msra.mxu0 %v2092
    %2125 = vmatprep.subr.bf16.mxu0 0
    %2126 = vmatpush1.bf16.msra.mxu0 %v2091
    %2127 = vmatprep.subr.bf16.mxu0 0
    %2128 = vmatpush2.bf16.msra.mxu0 0
    %2129 = vmatprep.subr.bf16.mxu0 0
    %2130 = vmatpush2.bf16.msra.mxu0 0
    %2131 = vmatprep.subr.bf16.mxu0 0
    %2132 = vmatpush2.bf16.msra.mxu0 0
    %2133 = vmatprep.subr.bf16.mxu0 0
    %2134 = vmatpush2.bf16.msra.mxu0 0
    %2135 = vmatprep.subr.bf16.mxu0 0
    %2136 = vmatpush2.bf16.msra.mxu0 0
    %2137 = vmatprep.subr.bf16.mxu0 0
    %2138 = vmatpush2.bf16.msra.mxu0 0
    %2139 = vmatprep.subr.bf16.mxu0 0
    %2140 = vmatpush2.bf16.msra.mxu0 0
    %2141 = vmatprep.subr.bf16.mxu0 0
    %2142 = vmatpush2.bf16.msra.mxu0 0
    %2143 = vmatprep.mubr.bf16.mxu0 0
    %2144 = vmatmul.mubr.bf16.gmra.mxu0 %v2100
    %v2145 = vpop.f32.mrf.mxu0
    %v2146 = vadd.f32 %v2073, %v2145
    %v2147 = vpop.f32.mrf.mxu0
    %v2148 = vpop.f32.mrf.mxu0
    %v2149 = vadd.f32 %v2073, %v2148
    %v2150 = vpop.f32.mrf.mxu0
    %2151 = vmatprep.mubr.bf16.mxu0 0
    %2152 = vmatmul.mubr.bf16.gmra.mxu0 %v2103
    %v2153 = vpop.f32.mrf.mxu0
    %v2154 = vadd.f32 %v2073, %v2153
    %v2155 = vpop.f32.mrf.mxu0
    %v2156 = vpop.f32.mrf.mxu0
    %v2157 = vadd.f32 %v2073, %v2156
    %v2158 = vpop.f32.mrf.mxu0
    %2159 = vmatprep.mubr.bf16.mxu0 0
    %2160 = vmatmul.mubr.bf16.gmra.mxu0 %v2106
    %v2161 = vpop.f32.mrf.mxu0
    %v2162 = vadd.f32 %v2073, %v2161
    %v2163 = vpop.f32.mrf.mxu0
    %v2164 = vpop.f32.mrf.mxu0
    %v2165 = vadd.f32 %v2073, %v2164
    %v2166 = vpop.f32.mrf.mxu0
    %2167 = vmatprep.mubr.bf16.mxu0 0
    %2168 = vmatmul.mubr.bf16.gmra.mxu0 %v2109
    %v2169 = vpop.f32.mrf.mxu0
    %v2170 = vadd.f32 %v2073, %v2169
    %v2171 = vpop.f32.mrf.mxu0
    %v2172 = vpop.f32.mrf.mxu0
    %v2173 = vadd.f32 %v2073, %v2172
    %v2174 = vpop.f32.mrf.mxu0
    %2175 = vdwg.mxu0
    %v2176 = vsel %vm1002, %v2146, 0.0
    %2177 = vadd.xlane.f32.xlu0 %v2176
    %v2178 = vpop.xlane.xlu0 %2177
    %v2179 = vsel %vm1002, %v2149, 0.0
    %2180 = vadd.xlane.f32.xlu0 %v2179
    %v2181 = vpop.xlane.xlu0 %2180
    %v2182 = vsel %vm1002, %v2154, 0.0
    %2183 = vadd.xlane.f32.xlu0 %v2182
    %v2184 = vpop.xlane.xlu0 %2183
    %v2185 = vsel %vm1002, %v2157, 0.0
    %2186 = vadd.xlane.f32.xlu0 %v2185
    %v2187 = vpop.xlane.xlu0 %2186
    %v2188 = vsel %vm1002, %v2162, 0.0
    %2189 = vadd.xlane.f32.xlu0 %v2188
    %v2190 = vpop.xlane.xlu0 %2189
    %v2191 = vsel %vm1002, %v2165, 0.0
    %2192 = vadd.xlane.f32.xlu0 %v2191
    %v2193 = vpop.xlane.xlu0 %2192
    %v2194 = vsel %vm1002, %v2170, 0.0
    %2195 = vadd.xlane.f32.xlu0 %v2194
    %v2196 = vpop.xlane.xlu0 %2195
    %v2197 = vsel %vm1002, %v2173, 0.0
    %2198 = vadd.xlane.f32.xlu0 %v2197
    %v2199 = vpop.xlane.xlu0 %2198
    %v2200 = vmul.f32 %v2178, %v1027
    %v2201 = vmul.f32 %v2181, %v1027
    %v2202 = vmul.f32 %v2184, %v1027
    %v2203 = vmul.f32 %v2187, %v1027
    %v2204 = vmul.f32 %v2190, %v1027
    %v2205 = vmul.f32 %v2193, %v1027
    %v2206 = vmul.f32 %v2196, %v1027
    %v2207 = vmul.f32 %v2199, %v1027
    %v2208 = vsub.f32 %v2146, %v2200
    %v2209 = vsub.f32 %v2149, %v2201
    %v2210 = vsub.f32 %v2154, %v2202
    %v2211 = vsub.f32 %v2157, %v2203
    %v2212 = vsub.f32 %v2162, %v2204
    %v2213 = vsub.f32 %v2165, %v2205
    %v2214 = vsub.f32 %v2170, %v2206
    %v2215 = vsub.f32 %v2173, %v2207
    %v2216 = vmul.f32 %v2208, %v2208
    %v2217 = vmul.f32 %v2209, %v2209
    %v2218 = vmul.f32 %v2210, %v2210
    %v2219 = vmul.f32 %v2211, %v2211
    %v2220 = vmul.f32 %v2212, %v2212
    %v2221 = vmul.f32 %v2213, %v2213
    %v2222 = vmul.f32 %v2214, %v2214
    %v2223 = vmul.f32 %v2215, %v2215
    %v2224 = vsel %vm1002, %v2216, 0.0
    %2225 = vadd.xlane.f32.xlu0 %v2224
    %v2226 = vpop.xlane.xlu0 %2225
    %v2227 = vsel %vm1002, %v2217, 0.0
    %2228 = vadd.xlane.f32.xlu0 %v2227
    %v2229 = vpop.xlane.xlu0 %2228
    %v2230 = vsel %vm1002, %v2218, 0.0
    %2231 = vadd.xlane.f32.xlu0 %v2230
    %v2232 = vpop.xlane.xlu0 %2231
    %v2233 = vsel %vm1002, %v2219, 0.0
    %2234 = vadd.xlane.f32.xlu0 %v2233
    %v2235 = vpop.xlane.xlu0 %2234
    %v2236 = vsel %vm1002, %v2220, 0.0
    %2237 = vadd.xlane.f32.xlu0 %v2236
    %v2238 = vpop.xlane.xlu0 %2237
    %v2239 = vsel %vm1002, %v2221, 0.0
    %2240 = vadd.xlane.f32.xlu0 %v2239
    %v2241 = vpop.xlane.xlu0 %2240
    %v2242 = vsel %vm1002, %v2222, 0.0
    %2243 = vadd.xlane.f32.xlu0 %v2242
    %v2244 = vpop.xlane.xlu0 %2243
    %v2245 = vsel %vm1002, %v2223, 0.0
    %2246 = vadd.xlane.f32.xlu0 %v2245
    %v2247 = vpop.xlane.xlu0 %2246
    %v2248 = vmul.f32 %v2226, %v1027
    %v2249 = vmul.f32 %v2229, %v1027
    %v2250 = vmul.f32 %v2232, %v1027
    %v2251 = vmul.f32 %v2235, %v1027
    %v2252 = vmul.f32 %v2238, %v1027
    %v2253 = vmul.f32 %v2241, %v1027
    %v2254 = vmul.f32 %v2244, %v1027
    %v2255 = vmul.f32 %v2247, %v1027
    %v2256 = vadd.f32 %v2248, 1e-05
    %v2257 = vadd.f32 %v2249, 1e-05
    %v2258 = vadd.f32 %v2250, 1e-05
    %v2259 = vadd.f32 %v2251, 1e-05
    %v2260 = vadd.f32 %v2252, 1e-05
    %v2261 = vadd.f32 %v2253, 1e-05
    %v2262 = vadd.f32 %v2254, 1e-05
    %v2263 = vadd.f32 %v2255, 1e-05
    %v2264 = vrsqrt.pop %v2256
    %v2265 = vrsqrt.pop %v2257
    %v2266 = vrsqrt.pop %v2258
    %v2267 = vrsqrt.pop %v2259
    %v2268 = vrsqrt.pop %v2260
    %v2269 = vrsqrt.pop %v2261
    %v2270 = vrsqrt.pop %v2262
    %v2271 = vrsqrt.pop %v2263
    %v2272 = vmul.f32 %v2208, %v2264
    %v2273 = vmul.f32 %v2209, %v2265
    %v2274 = vmul.f32 %v2210, %v2266
    %v2275 = vmul.f32 %v2211, %v2267
    %v2276 = vmul.f32 %v2212, %v2268
    %v2277 = vmul.f32 %v2213, %v2269
    %v2278 = vmul.f32 %v2214, %v2270
    %v2279 = vmul.f32 %v2215, %v2271
    %v2281 = vlaneseq
    %v2282 = vshrl.u32 %v2281, 7
    %v2283 = vsub.s32 0, %v2282
    %v2284 = vrot.slane %v657, %v2283
    %v2286 = vmul.f32 %v2272, %v2284
    %v2287 = vmul.f32 %v2273, %v2284
    %v2288 = vmul.f32 %v2274, %v2284
    %v2289 = vmul.f32 %v2275, %v2284
    %v2290 = vmul.f32 %v2276, %v2284
    %v2291 = vmul.f32 %v2277, %v2284
    %v2292 = vmul.f32 %v2278, %v2284
    %v2293 = vmul.f32 %v2279, %v2284
    %v2295 = vlaneseq
    %v2296 = vshrl.u32 %v2295, 7
    %v2297 = vsub.s32 0, %v2296
    %v2298 = vrot.slane %v653, %v2297
    %v2300 = vadd.f32 %v2286, %v2298
    %v2301 = vadd.f32 %v2287, %v2298
    %v2302 = vadd.f32 %v2288, %v2298
    %v2303 = vadd.f32 %v2289, %v2298
    %v2304 = vadd.f32 %v2290, %v2298
    %v2305 = vadd.f32 %v2291, %v2298
    %v2306 = vadd.f32 %v2292, %v2298
    %v2307 = vadd.f32 %v2293, %v2298
    %v2309 = vlaneseq
    %v2310 = vshrl.u32 %v2309, 7
    %v2311 = vsub.s32 0, %v2310
    %v2312 = vrot.slane %v655, %v2311
    %v2330 = vunpack.c.l.b16 %v683
    %v2331 = vunpack.c.l.b16 %v684
    %v2332 = vunpack.c.l.b16 %v685
    %v2333 = vunpack.c.l.b16 %v686
    %v2334 = vunpack.c.l.b16 %v687
    %v2335 = vunpack.c.l.b16 %v688
    %v2336 = vunpack.c.l.b16 %v689
    %v2337 = vunpack.c.l.b16 %v690
    %v2338 = vunpack.c.l.b16 %v691
    %v2339 = vunpack.c.l.b16 %v692
    %v2340 = vunpack.c.l.b16 %v693
    %v2341 = vunpack.c.l.b16 %v694
    %v2342 = vunpack.c.l.b16 %v695
    %v2343 = vunpack.c.l.b16 %v696
    %v2344 = vunpack.c.l.b16 %v697
    %v2345 = vunpack.c.l.b16 %v698
    %v2346 = vpack.c.b16 %v2331, %v2330
    %v2347 = vpack.c.b16 %v2333, %v2332
    %v2348 = vpack.c.b16 %v2335, %v2334
    %v2349 = vpack.c.b16 %v2337, %v2336
    %v2350 = vpack.c.b16 %v2339, %v2338
    %v2351 = vpack.c.b16 %v2341, %v2340
    %v2352 = vpack.c.b16 %v2343, %v2342
    %v2353 = vpack.c.b16 %v2345, %v2344
    %2362 = vmatprep.subr.bf16.mxu0 0
    %2363 = vmatpush1.bf16.msra.mxu0 %v2353
    %2364 = vmatprep.subr.bf16.mxu0 0
    %2365 = vmatpush1.bf16.msra.mxu0 %v2352
    %2366 = vmatprep.subr.bf16.mxu0 0
    %2367 = vmatpush1.bf16.msra.mxu0 %v2351
    %2368 = vmatprep.subr.bf16.mxu0 0
    %2369 = vmatpush1.bf16.msra.mxu0 %v2350
    %2370 = vmatprep.subr.bf16.mxu0 0
    %2371 = vmatpush1.bf16.msra.mxu0 %v2349
    %2372 = vmatprep.subr.bf16.mxu0 0
    %2373 = vmatpush1.bf16.msra.mxu0 %v2348
    %2374 = vmatprep.subr.bf16.mxu0 0
    %2375 = vmatpush1.bf16.msra.mxu0 %v2347
    %2376 = vmatprep.subr.bf16.mxu0 0
    %2377 = vmatpush1.bf16.msra.mxu0 %v2346
    %2378 = vmatprep.subr.bf16.mxu0 0
    %2379 = vmatpush2.bf16.msra.mxu0 0
    %2380 = vmatprep.subr.bf16.mxu0 0
    %2381 = vmatpush2.bf16.msra.mxu0 0
    %2382 = vmatprep.subr.bf16.mxu0 0
    %2383 = vmatpush2.bf16.msra.mxu0 0
    %2384 = vmatprep.subr.bf16.mxu0 0
    %2385 = vmatpush2.bf16.msra.mxu0 0
    %2386 = vmatprep.subr.bf16.mxu0 0
    %2387 = vmatpush2.bf16.msra.mxu0 0
    %2388 = vmatprep.subr.bf16.mxu0 0
    %2389 = vmatpush2.bf16.msra.mxu0 0
    %2390 = vmatprep.subr.bf16.mxu0 0
    %2391 = vmatpush2.bf16.msra.mxu0 0
    %2392 = vmatprep.subr.bf16.mxu0 0
    %2393 = vmatpush2.bf16.msra.mxu0 0
    %2394 = vmatprep.mubr.bf16.mxu0 0
    %2395 = vmatmul.mubr.bf16.gmra.mxu0 %v1802
    %v2396 = vpop.f32.mrf.mxu0
    %v2397 = vadd.f32 %v2312, %v2396
    %v2398 = vpop.f32.mrf.mxu0
    %v2399 = vpop.f32.mrf.mxu0
    %v2400 = vadd.f32 %v2312, %v2399
    %v2401 = vpop.f32.mrf.mxu0
    %2402 = vmatprep.mubr.bf16.mxu0 0
    %2403 = vmatmul.mubr.bf16.gmra.mxu0 %v1803
    %v2404 = vpop.f32.mrf.mxu0
    %v2405 = vadd.f32 %v2312, %v2404
    %v2406 = vpop.f32.mrf.mxu0
    %v2407 = vpop.f32.mrf.mxu0
    %v2408 = vadd.f32 %v2312, %v2407
    %v2409 = vpop.f32.mrf.mxu0
    %2410 = vmatprep.mubr.bf16.mxu0 0
    %2411 = vmatmul.mubr.bf16.gmra.mxu0 %v1804
    %v2412 = vpop.f32.mrf.mxu0
    %v2413 = vadd.f32 %v2312, %v2412
    %v2414 = vpop.f32.mrf.mxu0
    %v2415 = vpop.f32.mrf.mxu0
    %v2416 = vadd.f32 %v2312, %v2415
    %v2417 = vpop.f32.mrf.mxu0
    %2418 = vmatprep.mubr.bf16.mxu0 0
    %2419 = vmatmul.mubr.bf16.gmra.mxu0 %v1805
    %v2420 = vpop.f32.mrf.mxu0
    %v2421 = vadd.f32 %v2312, %v2420
    %v2422 = vpop.f32.mrf.mxu0
    %v2423 = vpop.f32.mrf.mxu0
    %v2424 = vadd.f32 %v2312, %v2423
    %v2425 = vpop.f32.mrf.mxu0
    %2426 = vdwg.mxu0
    %v2427 = vsel %vm1002, %v2397, 0.0
    %2428 = vadd.xlane.f32.xlu0 %v2427
    %v2429 = vpop.xlane.xlu0 %2428
    %v2430 = vsel %vm1002, %v2400, 0.0
    %2431 = vadd.xlane.f32.xlu0 %v2430
    %v2432 = vpop.xlane.xlu0 %2431
    %v2433 = vsel %vm1002, %v2405, 0.0
    %2434 = vadd.xlane.f32.xlu0 %v2433
    %v2435 = vpop.xlane.xlu0 %2434
    %v2436 = vsel %vm1002, %v2408, 0.0
    %2437 = vadd.xlane.f32.xlu0 %v2436
    %v2438 = vpop.xlane.xlu0 %2437
    %v2439 = vsel %vm1002, %v2413, 0.0
    %2440 = vadd.xlane.f32.xlu0 %v2439
    %v2441 = vpop.xlane.xlu0 %2440
    %v2442 = vsel %vm1002, %v2416, 0.0
    %2443 = vadd.xlane.f32.xlu0 %v2442
    %v2444 = vpop.xlane.xlu0 %2443
    %v2445 = vsel %vm1002, %v2421, 0.0
    %2446 = vadd.xlane.f32.xlu0 %v2445
    %v2447 = vpop.xlane.xlu0 %2446
    %v2448 = vsel %vm1002, %v2424, 0.0
    %2449 = vadd.xlane.f32.xlu0 %v2448
    %v2450 = vpop.xlane.xlu0 %2449
    %v2451 = vmul.f32 %v2429, %v1027
    %v2452 = vmul.f32 %v2432, %v1027
    %v2453 = vmul.f32 %v2435, %v1027
    %v2454 = vmul.f32 %v2438, %v1027
    %v2455 = vmul.f32 %v2441, %v1027
    %v2456 = vmul.f32 %v2444, %v1027
    %v2457 = vmul.f32 %v2447, %v1027
    %v2458 = vmul.f32 %v2450, %v1027
    %v2459 = vsub.f32 %v2397, %v2451
    %v2460 = vsub.f32 %v2400, %v2452
    %v2461 = vsub.f32 %v2405, %v2453
    %v2462 = vsub.f32 %v2408, %v2454
    %v2463 = vsub.f32 %v2413, %v2455
    %v2464 = vsub.f32 %v2416, %v2456
    %v2465 = vsub.f32 %v2421, %v2457
    %v2466 = vsub.f32 %v2424, %v2458
    %v2467 = vmul.f32 %v2459, %v2459
    %v2468 = vmul.f32 %v2460, %v2460
    %v2469 = vmul.f32 %v2461, %v2461
    %v2470 = vmul.f32 %v2462, %v2462
    %v2471 = vmul.f32 %v2463, %v2463
    %v2472 = vmul.f32 %v2464, %v2464
    %v2473 = vmul.f32 %v2465, %v2465
    %v2474 = vmul.f32 %v2466, %v2466
    %v2475 = vsel %vm1002, %v2467, 0.0
    %2476 = vadd.xlane.f32.xlu0 %v2475
    %v2477 = vpop.xlane.xlu0 %2476
    %v2478 = vsel %vm1002, %v2468, 0.0
    %2479 = vadd.xlane.f32.xlu0 %v2478
    %v2480 = vpop.xlane.xlu0 %2479
    %v2481 = vsel %vm1002, %v2469, 0.0
    %2482 = vadd.xlane.f32.xlu0 %v2481
    %v2483 = vpop.xlane.xlu0 %2482
    %v2484 = vsel %vm1002, %v2470, 0.0
    %2485 = vadd.xlane.f32.xlu0 %v2484
    %v2486 = vpop.xlane.xlu0 %2485
    %v2487 = vsel %vm1002, %v2471, 0.0
    %2488 = vadd.xlane.f32.xlu0 %v2487
    %v2489 = vpop.xlane.xlu0 %2488
    %v2490 = vsel %vm1002, %v2472, 0.0
    %2491 = vadd.xlane.f32.xlu0 %v2490
    %v2492 = vpop.xlane.xlu0 %2491
    %v2493 = vsel %vm1002, %v2473, 0.0
    %2494 = vadd.xlane.f32.xlu0 %v2493
    %v2495 = vpop.xlane.xlu0 %2494
    %v2496 = vsel %vm1002, %v2474, 0.0
    %2497 = vadd.xlane.f32.xlu0 %v2496
    %v2498 = vpop.xlane.xlu0 %2497
    %v2499 = vmul.f32 %v2477, %v1027
    %v2500 = vmul.f32 %v2480, %v1027
    %v2501 = vmul.f32 %v2483, %v1027
    %v2502 = vmul.f32 %v2486, %v1027
    %v2503 = vmul.f32 %v2489, %v1027
    %v2504 = vmul.f32 %v2492, %v1027
    %v2505 = vmul.f32 %v2495, %v1027
    %v2506 = vmul.f32 %v2498, %v1027
    %v2507 = vadd.f32 %v2499, 1e-05
    %v2508 = vadd.f32 %v2500, 1e-05
    %v2509 = vadd.f32 %v2501, 1e-05
    %v2510 = vadd.f32 %v2502, 1e-05
    %v2511 = vadd.f32 %v2503, 1e-05
    %v2512 = vadd.f32 %v2504, 1e-05
    %v2513 = vadd.f32 %v2505, 1e-05
    %v2514 = vadd.f32 %v2506, 1e-05
    %v2515 = vrsqrt.pop %v2507
    %v2516 = vrsqrt.pop %v2508
    %v2517 = vrsqrt.pop %v2509
    %v2518 = vrsqrt.pop %v2510
    %v2519 = vrsqrt.pop %v2511
    %v2520 = vrsqrt.pop %v2512
    %v2521 = vrsqrt.pop %v2513
    %v2522 = vrsqrt.pop %v2514
    %v2523 = vmul.f32 %v2459, %v2515
    %v2524 = vmul.f32 %v2460, %v2516
    %v2525 = vmul.f32 %v2461, %v2517
    %v2526 = vmul.f32 %v2462, %v2518
    %v2527 = vmul.f32 %v2463, %v2519
    %v2528 = vmul.f32 %v2464, %v2520
    %v2529 = vmul.f32 %v2465, %v2521
    %v2530 = vmul.f32 %v2466, %v2522
    %v2532 = vlaneseq
    %v2533 = vshrl.u32 %v2532, 7
    %v2534 = vsub.s32 0, %v2533
    %v2535 = vrot.slane %v658, %v2534
    %v2537 = vmul.f32 %v2523, %v2535
    %v2538 = vmul.f32 %v2524, %v2535
    %v2539 = vmul.f32 %v2525, %v2535
    %v2540 = vmul.f32 %v2526, %v2535
    %v2541 = vmul.f32 %v2527, %v2535
    %v2542 = vmul.f32 %v2528, %v2535
    %v2543 = vmul.f32 %v2529, %v2535
    %v2544 = vmul.f32 %v2530, %v2535
    %v2546 = vlaneseq
    %v2547 = vshrl.u32 %v2546, 7
    %v2548 = vsub.s32 0, %v2547
    %v2549 = vrot.slane %v654, %v2548
    %v2551 = vadd.f32 %v2537, %v2549
    %v2552 = vadd.f32 %v2538, %v2549
    %v2553 = vadd.f32 %v2539, %v2549
    %v2554 = vadd.f32 %v2540, %v2549
    %v2555 = vadd.f32 %v2541, %v2549
    %v2556 = vadd.f32 %v2542, %v2549
    %v2557 = vadd.f32 %v2543, %v2549
    %v2558 = vadd.f32 %v2544, %v2549
    %v2559 = vadd.f32 %v2300, %v2551
    %v2560 = vadd.f32 %v2301, %v2552
    %v2561 = vadd.f32 %v2302, %v2553
    %v2562 = vadd.f32 %v2303, %v2554
    %v2563 = vadd.f32 %v2304, %v2555
    %v2564 = vadd.f32 %v2305, %v2556
    %v2565 = vadd.f32 %v2306, %v2557
    %v2566 = vadd.f32 %v2307, %v2558
    %v2567 = vmax.f32 %v2559, 0.0
    %v2568 = vmax.f32 %v2560, 0.0
    %v2569 = vmax.f32 %v2561, 0.0
    %v2570 = vmax.f32 %v2562, 0.0
    %v2571 = vmax.f32 %v2563, 0.0
    %v2572 = vmax.f32 %v2564, 0.0
    %v2573 = vmax.f32 %v2565, 0.0
    %v2574 = vmax.f32 %v2566, 0.0
    %v2583 = vcombine.high %v2567, %v2567
    %v2584 = vcombine.high %v2568, %v2568
    %v2585 = vcombine.high %v2569, %v2569
    %v2586 = vcombine.high %v2570, %v2570
    %v2587 = vcombine.high %v2571, %v2571
    %v2588 = vcombine.high %v2572, %v2572
    %v2589 = vcombine.high %v2573, %v2573
    %v2590 = vcombine.high %v2574, %v2574
    %v2599 = vsel %vm1633, %v2567, -inf
    %v2600 = vrot.slane %v2599, 4
    %v2601 = vmax.f32 %v2599, %v2600
    %v2602 = vrot.slane %v2601, 2
    %v2603 = vmax.f32 %v2601, %v2602
    %v2604 = vrot.slane %v2603, 1
    %v2605 = vmax.f32 %v2603, %v2604
    %v2606 = vsel %vm1633, %v2583, -inf
    %v2607 = vrot.slane %v2606, 4
    %v2608 = vmax.f32 %v2606, %v2607
    %v2609 = vrot.slane %v2608, 2
    %v2610 = vmax.f32 %v2608, %v2609
    %v2611 = vrot.slane %v2610, 1
    %v2612 = vmax.f32 %v2610, %v2611
    %v2613 = vsel %vm1633, %v2568, -inf
    %v2614 = vrot.slane %v2613, 4
    %v2615 = vmax.f32 %v2613, %v2614
    %v2616 = vrot.slane %v2615, 2
    %v2617 = vmax.f32 %v2615, %v2616
    %v2618 = vrot.slane %v2617, 1
    %v2619 = vmax.f32 %v2617, %v2618
    %v2620 = vsel %vm1633, %v2584, -inf
    %v2621 = vrot.slane %v2620, 4
    %v2622 = vmax.f32 %v2620, %v2621
    %v2623 = vrot.slane %v2622, 2
    %v2624 = vmax.f32 %v2622, %v2623
    %v2625 = vrot.slane %v2624, 1
    %v2626 = vmax.f32 %v2624, %v2625
    %v2627 = vsel %vm1633, %v2569, -inf
    %v2628 = vrot.slane %v2627, 4
    %v2629 = vmax.f32 %v2627, %v2628
    %v2630 = vrot.slane %v2629, 2
    %v2631 = vmax.f32 %v2629, %v2630
    %v2632 = vrot.slane %v2631, 1
    %v2633 = vmax.f32 %v2631, %v2632
    %v2634 = vsel %vm1633, %v2585, -inf
    %v2635 = vrot.slane %v2634, 4
    %v2636 = vmax.f32 %v2634, %v2635
    %v2637 = vrot.slane %v2636, 2
    %v2638 = vmax.f32 %v2636, %v2637
    %v2639 = vrot.slane %v2638, 1
    %v2640 = vmax.f32 %v2638, %v2639
    %v2641 = vsel %vm1633, %v2570, -inf
    %v2642 = vrot.slane %v2641, 4
    %v2643 = vmax.f32 %v2641, %v2642
    %v2644 = vrot.slane %v2643, 2
    %v2645 = vmax.f32 %v2643, %v2644
    %v2646 = vrot.slane %v2645, 1
    %v2647 = vmax.f32 %v2645, %v2646
    %v2648 = vsel %vm1633, %v2586, -inf
    %v2649 = vrot.slane %v2648, 4
    %v2650 = vmax.f32 %v2648, %v2649
    %v2651 = vrot.slane %v2650, 2
    %v2652 = vmax.f32 %v2650, %v2651
    %v2653 = vrot.slane %v2652, 1
    %v2654 = vmax.f32 %v2652, %v2653
    %v2655 = vsel %vm1633, %v2571, -inf
    %v2656 = vrot.slane %v2655, 4
    %v2657 = vmax.f32 %v2655, %v2656
    %v2658 = vrot.slane %v2657, 2
    %v2659 = vmax.f32 %v2657, %v2658
    %v2660 = vrot.slane %v2659, 1
    %v2661 = vmax.f32 %v2659, %v2660
    %v2662 = vsel %vm1633, %v2587, -inf
    %v2663 = vrot.slane %v2662, 4
    %v2664 = vmax.f32 %v2662, %v2663
    %v2665 = vrot.slane %v2664, 2
    %v2666 = vmax.f32 %v2664, %v2665
    %v2667 = vrot.slane %v2666, 1
    %v2668 = vmax.f32 %v2666, %v2667
    %v2669 = vsel %vm1633, %v2572, -inf
    %v2670 = vrot.slane %v2669, 4
    %v2671 = vmax.f32 %v2669, %v2670
    %v2672 = vrot.slane %v2671, 2
    %v2673 = vmax.f32 %v2671, %v2672
    %v2674 = vrot.slane %v2673, 1
    %v2675 = vmax.f32 %v2673, %v2674
    %v2676 = vsel %vm1633, %v2588, -inf
    %v2677 = vrot.slane %v2676, 4
    %v2678 = vmax.f32 %v2676, %v2677
    %v2679 = vrot.slane %v2678, 2
    %v2680 = vmax.f32 %v2678, %v2679
    %v2681 = vrot.slane %v2680, 1
    %v2682 = vmax.f32 %v2680, %v2681
    %v2683 = vsel %vm1633, %v2573, -inf
    %v2684 = vrot.slane %v2683, 4
    %v2685 = vmax.f32 %v2683, %v2684
    %v2686 = vrot.slane %v2685, 2
    %v2687 = vmax.f32 %v2685, %v2686
    %v2688 = vrot.slane %v2687, 1
    %v2689 = vmax.f32 %v2687, %v2688
    %v2690 = vsel %vm1633, %v2589, -inf
    %v2691 = vrot.slane %v2690, 4
    %v2692 = vmax.f32 %v2690, %v2691
    %v2693 = vrot.slane %v2692, 2
    %v2694 = vmax.f32 %v2692, %v2693
    %v2695 = vrot.slane %v2694, 1
    %v2696 = vmax.f32 %v2694, %v2695
    %v2697 = vsel %vm1633, %v2574, -inf
    %v2698 = vrot.slane %v2697, 4
    %v2699 = vmax.f32 %v2697, %v2698
    %v2700 = vrot.slane %v2699, 2
    %v2701 = vmax.f32 %v2699, %v2700
    %v2702 = vrot.slane %v2701, 1
    %v2703 = vmax.f32 %v2701, %v2702
    %v2704 = vsel %vm1633, %v2590, -inf
    %v2705 = vrot.slane %v2704, 4
    %v2706 = vmax.f32 %v2704, %v2705
    %v2707 = vrot.slane %v2706, 2
    %v2708 = vmax.f32 %v2706, %v2707
    %v2709 = vrot.slane %v2708, 1
    %v2710 = vmax.f32 %v2708, %v2709
    %v2727 = vcombine.low %v2605, %v2612
    %v2728 = vcombine.low %v2619, %v2626
    %v2729 = vcombine.low %v2633, %v2640
    %v2730 = vcombine.low %v2647, %v2654
    %v2731 = vcombine.low %v2661, %v2668
    %v2732 = vcombine.low %v2675, %v2682
    %v2733 = vcombine.low %v2689, %v2696
    %v2734 = vcombine.low %v2703, %v2710
    %2735 = vrot.lane.b32.xlu0 %v2727, 64
    %v2736 = vpop.permute.xlu0 %2735
    %2737 = vrot.lane.b32.xlu0 %v2728, 64
    %v2738 = vpop.permute.xlu0 %2737
    %2739 = vrot.lane.b32.xlu0 %v2729, 64
    %v2740 = vpop.permute.xlu0 %2739
    %2741 = vrot.lane.b32.xlu0 %v2730, 64
    %v2742 = vpop.permute.xlu0 %2741
    %2743 = vrot.lane.b32.xlu0 %v2731, 64
    %v2744 = vpop.permute.xlu0 %2743
    %2745 = vrot.lane.b32.xlu0 %v2732, 64
    %v2746 = vpop.permute.xlu0 %2745
    %2747 = vrot.lane.b32.xlu0 %v2733, 64
    %v2748 = vpop.permute.xlu0 %2747
    %2749 = vrot.lane.b32.xlu0 %v2734, 64
    %v2750 = vpop.permute.xlu0 %2749
    %v2759 = vsel %vm1002, %v2567, %v2736
    %v2760 = vsel %vm1002, %v2568, %v2738
    %v2761 = vsel %vm1002, %v2569, %v2740
    %v2762 = vsel %vm1002, %v2570, %v2742
    %v2763 = vsel %vm1002, %v2571, %v2744
    %v2764 = vsel %vm1002, %v2572, %v2746
    %v2765 = vsel %vm1002, %v2573, %v2748
    %v2766 = vsel %vm1002, %v2574, %v2750
    %v2767 = vpack.c.bf16 %v2760, %v2759
    %v2768 = vpack.c.bf16 %v2762, %v2761
    %v2769 = vpack.c.bf16 %v2764, %v2763
    %v2770 = vpack.c.bf16 %v2766, %v2765
    %v2772 = vlaneseq
    %v2773 = vshrl.u32 %v2772, 7
    %v2774 = vsub.s32 0, %v2773
    %v2775 = vrot.slane %v699, %v2774
    %v2793 = vunpack.c.l.b16 %v708
    %v2794 = vunpack.c.l.b16 %v709
    %v2795 = vunpack.c.l.b16 %v710
    %v2796 = vunpack.c.l.b16 %v711
    %v2797 = vunpack.c.l.b16 %v712
    %v2798 = vunpack.c.l.b16 %v713
    %v2799 = vunpack.c.l.b16 %v714
    %v2800 = vunpack.c.l.b16 %v715
    %v2801 = vunpack.c.l.b16 %v716
    %v2802 = vunpack.c.l.b16 %v717
    %v2803 = vunpack.c.l.b16 %v718
    %v2804 = vunpack.c.l.b16 %v719
    %v2805 = vunpack.c.l.b16 %v720
    %v2806 = vunpack.c.l.b16 %v721
    %v2807 = vunpack.c.l.b16 %v722
    %v2808 = vunpack.c.l.b16 %v723
    %v2809 = vpack.c.b16 %v2794, %v2793
    %v2810 = vpack.c.b16 %v2796, %v2795
    %v2811 = vpack.c.b16 %v2798, %v2797
    %v2812 = vpack.c.b16 %v2800, %v2799
    %v2813 = vpack.c.b16 %v2802, %v2801
    %v2814 = vpack.c.b16 %v2804, %v2803
    %v2815 = vpack.c.b16 %v2806, %v2805
    %v2816 = vpack.c.b16 %v2808, %v2807
    %2825 = vmatprep.subr.bf16.mxu0 0
    %2826 = vmatpush1.bf16.msra.mxu0 %v2816
    %2827 = vmatprep.subr.bf16.mxu0 0
    %2828 = vmatpush1.bf16.msra.mxu0 %v2815
    %2829 = vmatprep.subr.bf16.mxu0 0
    %2830 = vmatpush1.bf16.msra.mxu0 %v2814
    %2831 = vmatprep.subr.bf16.mxu0 0
    %2832 = vmatpush1.bf16.msra.mxu0 %v2813
    %2833 = vmatprep.subr.bf16.mxu0 0
    %2834 = vmatpush1.bf16.msra.mxu0 %v2812
    %2835 = vmatprep.subr.bf16.mxu0 0
    %2836 = vmatpush1.bf16.msra.mxu0 %v2811
    %2837 = vmatprep.subr.bf16.mxu0 0
    %2838 = vmatpush1.bf16.msra.mxu0 %v2810
    %2839 = vmatprep.subr.bf16.mxu0 0
    %2840 = vmatpush1.bf16.msra.mxu0 %v2809
    %2841 = vmatprep.subr.bf16.mxu0 0
    %2842 = vmatpush2.bf16.msra.mxu0 0
    %2843 = vmatprep.subr.bf16.mxu0 0
    %2844 = vmatpush2.bf16.msra.mxu0 0
    %2845 = vmatprep.subr.bf16.mxu0 0
    %2846 = vmatpush2.bf16.msra.mxu0 0
    %2847 = vmatprep.subr.bf16.mxu0 0
    %2848 = vmatpush2.bf16.msra.mxu0 0
    %2849 = vmatprep.subr.bf16.mxu0 0
    %2850 = vmatpush2.bf16.msra.mxu0 0
    %2851 = vmatprep.subr.bf16.mxu0 0
    %2852 = vmatpush2.bf16.msra.mxu0 0
    %2853 = vmatprep.subr.bf16.mxu0 0
    %2854 = vmatpush2.bf16.msra.mxu0 0
    %2855 = vmatprep.subr.bf16.mxu0 0
    %2856 = vmatpush2.bf16.msra.mxu0 0
    %2857 = vmatprep.mubr.bf16.mxu0 0
    %2858 = vmatmul.mubr.bf16.gmra.mxu0 %v2767
    %v2859 = vpop.f32.mrf.mxu0
    %v2860 = vadd.f32 %v2775, %v2859
    %v2861 = vpop.f32.mrf.mxu0
    %v2862 = vpop.f32.mrf.mxu0
    %v2863 = vadd.f32 %v2775, %v2862
    %v2864 = vpop.f32.mrf.mxu0
    %2865 = vmatprep.mubr.bf16.mxu0 0
    %2866 = vmatmul.mubr.bf16.gmra.mxu0 %v2768
    %v2867 = vpop.f32.mrf.mxu0
    %v2868 = vadd.f32 %v2775, %v2867
    %v2869 = vpop.f32.mrf.mxu0
    %v2870 = vpop.f32.mrf.mxu0
    %v2871 = vadd.f32 %v2775, %v2870
    %v2872 = vpop.f32.mrf.mxu0
    %2873 = vmatprep.mubr.bf16.mxu0 0
    %2874 = vmatmul.mubr.bf16.gmra.mxu0 %v2769
    %v2875 = vpop.f32.mrf.mxu0
    %v2876 = vadd.f32 %v2775, %v2875
    %v2877 = vpop.f32.mrf.mxu0
    %v2878 = vpop.f32.mrf.mxu0
    %v2879 = vadd.f32 %v2775, %v2878
    %v2880 = vpop.f32.mrf.mxu0
    %2881 = vmatprep.mubr.bf16.mxu0 0
    %2882 = vmatmul.mubr.bf16.gmra.mxu0 %v2770
    %v2883 = vpop.f32.mrf.mxu0
    %v2884 = vadd.f32 %v2775, %v2883
    %v2885 = vpop.f32.mrf.mxu0
    %v2886 = vpop.f32.mrf.mxu0
    %v2887 = vadd.f32 %v2775, %v2886
    %v2888 = vpop.f32.mrf.mxu0
    %2889 = vdwg.mxu0
    %v2890 = vsel %vm1002, %v2860, 0.0
    %2891 = vadd.xlane.f32.xlu0 %v2890
    %v2892 = vpop.xlane.xlu0 %2891
    %v2893 = vsel %vm1002, %v2863, 0.0
    %2894 = vadd.xlane.f32.xlu0 %v2893
    %v2895 = vpop.xlane.xlu0 %2894
    %v2896 = vsel %vm1002, %v2868, 0.0
    %2897 = vadd.xlane.f32.xlu0 %v2896
    %v2898 = vpop.xlane.xlu0 %2897
    %v2899 = vsel %vm1002, %v2871, 0.0
    %2900 = vadd.xlane.f32.xlu0 %v2899
    %v2901 = vpop.xlane.xlu0 %2900
    %v2902 = vsel %vm1002, %v2876, 0.0
    %2903 = vadd.xlane.f32.xlu0 %v2902
    %v2904 = vpop.xlane.xlu0 %2903
    %v2905 = vsel %vm1002, %v2879, 0.0
    %2906 = vadd.xlane.f32.xlu0 %v2905
    %v2907 = vpop.xlane.xlu0 %2906
    %v2908 = vsel %vm1002, %v2884, 0.0
    %2909 = vadd.xlane.f32.xlu0 %v2908
    %v2910 = vpop.xlane.xlu0 %2909
    %v2911 = vsel %vm1002, %v2887, 0.0
    %2912 = vadd.xlane.f32.xlu0 %v2911
    %v2913 = vpop.xlane.xlu0 %2912
    %v2914 = vmul.f32 %v2892, %v1027
    %v2915 = vmul.f32 %v2895, %v1027
    %v2916 = vmul.f32 %v2898, %v1027
    %v2917 = vmul.f32 %v2901, %v1027
    %v2918 = vmul.f32 %v2904, %v1027
    %v2919 = vmul.f32 %v2907, %v1027
    %v2920 = vmul.f32 %v2910, %v1027
    %v2921 = vmul.f32 %v2913, %v1027
    %v2922 = vsub.f32 %v2860, %v2914
    %v2923 = vsub.f32 %v2863, %v2915
    %v2924 = vsub.f32 %v2868, %v2916
    %v2925 = vsub.f32 %v2871, %v2917
    %v2926 = vsub.f32 %v2876, %v2918
    %v2927 = vsub.f32 %v2879, %v2919
    %v2928 = vsub.f32 %v2884, %v2920
    %v2929 = vsub.f32 %v2887, %v2921
    %v2930 = vmul.f32 %v2922, %v2922
    %v2931 = vmul.f32 %v2923, %v2923
    %v2932 = vmul.f32 %v2924, %v2924
    %v2933 = vmul.f32 %v2925, %v2925
    %v2934 = vmul.f32 %v2926, %v2926
    %v2935 = vmul.f32 %v2927, %v2927
    %v2936 = vmul.f32 %v2928, %v2928
    %v2937 = vmul.f32 %v2929, %v2929
    %v2938 = vsel %vm1002, %v2930, 0.0
    %2939 = vadd.xlane.f32.xlu0 %v2938
    %v2940 = vpop.xlane.xlu0 %2939
    %v2941 = vsel %vm1002, %v2931, 0.0
    %2942 = vadd.xlane.f32.xlu0 %v2941
    %v2943 = vpop.xlane.xlu0 %2942
    %v2944 = vsel %vm1002, %v2932, 0.0
    %2945 = vadd.xlane.f32.xlu0 %v2944
    %v2946 = vpop.xlane.xlu0 %2945
    %v2947 = vsel %vm1002, %v2933, 0.0
    %2948 = vadd.xlane.f32.xlu0 %v2947
    %v2949 = vpop.xlane.xlu0 %2948
    %v2950 = vsel %vm1002, %v2934, 0.0
    %2951 = vadd.xlane.f32.xlu0 %v2950
    %v2952 = vpop.xlane.xlu0 %2951
    %v2953 = vsel %vm1002, %v2935, 0.0
    %2954 = vadd.xlane.f32.xlu0 %v2953
    %v2955 = vpop.xlane.xlu0 %2954
    %v2956 = vsel %vm1002, %v2936, 0.0
    %2957 = vadd.xlane.f32.xlu0 %v2956
    %v2958 = vpop.xlane.xlu0 %2957
    %v2959 = vsel %vm1002, %v2937, 0.0
    %2960 = vadd.xlane.f32.xlu0 %v2959
    %v2961 = vpop.xlane.xlu0 %2960
    %v2962 = vmul.f32 %v2940, %v1027
    %v2963 = vmul.f32 %v2943, %v1027
    %v2964 = vmul.f32 %v2946, %v1027
    %v2965 = vmul.f32 %v2949, %v1027
    %v2966 = vmul.f32 %v2952, %v1027
    %v2967 = vmul.f32 %v2955, %v1027
    %v2968 = vmul.f32 %v2958, %v1027
    %v2969 = vmul.f32 %v2961, %v1027
    %v2970 = vadd.f32 %v2962, 1e-05
    %v2971 = vadd.f32 %v2963, 1e-05
    %v2972 = vadd.f32 %v2964, 1e-05
    %v2973 = vadd.f32 %v2965, 1e-05
    %v2974 = vadd.f32 %v2966, 1e-05
    %v2975 = vadd.f32 %v2967, 1e-05
    %v2976 = vadd.f32 %v2968, 1e-05
    %v2977 = vadd.f32 %v2969, 1e-05
    %v2978 = vrsqrt.pop %v2970
    %v2979 = vrsqrt.pop %v2971
    %v2980 = vrsqrt.pop %v2972
    %v2981 = vrsqrt.pop %v2973
    %v2982 = vrsqrt.pop %v2974
    %v2983 = vrsqrt.pop %v2975
    %v2984 = vrsqrt.pop %v2976
    %v2985 = vrsqrt.pop %v2977
    %v2986 = vmul.f32 %v2922, %v2978
    %v2987 = vmul.f32 %v2923, %v2979
    %v2988 = vmul.f32 %v2924, %v2980
    %v2989 = vmul.f32 %v2925, %v2981
    %v2990 = vmul.f32 %v2926, %v2982
    %v2991 = vmul.f32 %v2927, %v2983
    %v2992 = vmul.f32 %v2928, %v2984
    %v2993 = vmul.f32 %v2929, %v2985
    %v2995 = vlaneseq
    %v2996 = vshrl.u32 %v2995, 7
    %v2997 = vsub.s32 0, %v2996
    %v2998 = vrot.slane %v705, %v2997
    %v3000 = vmul.f32 %v2986, %v2998
    %v3001 = vmul.f32 %v2987, %v2998
    %v3002 = vmul.f32 %v2988, %v2998
    %v3003 = vmul.f32 %v2989, %v2998
    %v3004 = vmul.f32 %v2990, %v2998
    %v3005 = vmul.f32 %v2991, %v2998
    %v3006 = vmul.f32 %v2992, %v2998
    %v3007 = vmul.f32 %v2993, %v2998
    %v3009 = vlaneseq
    %v3010 = vshrl.u32 %v3009, 7
    %v3011 = vsub.s32 0, %v3010
    %v3012 = vrot.slane %v701, %v3011
    %v3014 = vadd.f32 %v3000, %v3012
    %v3015 = vadd.f32 %v3001, %v3012
    %v3016 = vadd.f32 %v3002, %v3012
    %v3017 = vadd.f32 %v3003, %v3012
    %v3018 = vadd.f32 %v3004, %v3012
    %v3019 = vadd.f32 %v3005, %v3012
    %v3020 = vadd.f32 %v3006, %v3012
    %v3021 = vadd.f32 %v3007, %v3012
    %v3022 = vmax.f32 %v3014, 0.0
    %v3023 = vmax.f32 %v3015, 0.0
    %v3024 = vmax.f32 %v3016, 0.0
    %v3025 = vmax.f32 %v3017, 0.0
    %v3026 = vmax.f32 %v3018, 0.0
    %v3027 = vmax.f32 %v3019, 0.0
    %v3028 = vmax.f32 %v3020, 0.0
    %v3029 = vmax.f32 %v3021, 0.0
    %v3030 = vpack.c.bf16 %v3023, %v3022
    %v3031 = vpack.c.bf16 %v3025, %v3024
    %v3032 = vpack.c.bf16 %v3027, %v3026
    %v3033 = vpack.c.bf16 %v3029, %v3028
    %v3035 = vlaneseq
    %v3036 = vshrl.u32 %v3035, 7
    %v3037 = vsub.s32 0, %v3036
    %v3038 = vrot.slane %v700, %v3037
    %v3048 = vunpack.c.l.b16 %v724
    %v3049 = vunpack.c.l.b16 %v725
    %v3050 = vunpack.c.l.b16 %v726
    %v3051 = vunpack.c.l.b16 %v727
    %v3052 = vunpack.c.l.b16 %v728
    %v3053 = vunpack.c.l.b16 %v729
    %v3054 = vunpack.c.l.b16 %v730
    %v3055 = vunpack.c.l.b16 %v731
    %v3056 = vpack.c.b16 %v3049, %v3048
    %v3057 = vpack.c.b16 %v3051, %v3050
    %v3058 = vpack.c.b16 %v3053, %v3052
    %v3059 = vpack.c.b16 %v3055, %v3054
    %v3065 = vsel %vm1002, %v3030, 0
    %v3068 = vsel %vm1002, %v3031, 0
    %v3071 = vsel %vm1002, %v3032, 0
    %v3074 = vsel %vm1002, %v3033, 0
    %3076 = vmatprep.subr.bf16.mxu0 0
    %3077 = vmatpush1.bf16.msra.mxu0 0
    %3078 = vmatprep.subr.bf16.mxu0 0
    %3079 = vmatpush1.bf16.msra.mxu0 0
    %3080 = vmatprep.subr.bf16.mxu0 0
    %3081 = vmatpush1.bf16.msra.mxu0 0
    %3082 = vmatprep.subr.bf16.mxu0 0
    %3083 = vmatpush1.bf16.msra.mxu0 0
    %3084 = vmatprep.subr.bf16.mxu0 0
    %3085 = vmatpush1.bf16.msra.mxu0 %v3059
    %3086 = vmatprep.subr.bf16.mxu0 0
    %3087 = vmatpush1.bf16.msra.mxu0 %v3058
    %3088 = vmatprep.subr.bf16.mxu0 0
    %3089 = vmatpush1.bf16.msra.mxu0 %v3057
    %3090 = vmatprep.subr.bf16.mxu0 0
    %3091 = vmatpush1.bf16.msra.mxu0 %v3056
    %3092 = vmatprep.subr.bf16.mxu0 0
    %3093 = vmatpush2.bf16.msra.mxu0 0
    %3094 = vmatprep.subr.bf16.mxu0 0
    %3095 = vmatpush2.bf16.msra.mxu0 0
    %3096 = vmatprep.subr.bf16.mxu0 0
    %3097 = vmatpush2.bf16.msra.mxu0 0
    %3098 = vmatprep.subr.bf16.mxu0 0
    %3099 = vmatpush2.bf16.msra.mxu0 0
    %3100 = vmatprep.subr.bf16.mxu0 0
    %3101 = vmatpush2.bf16.msra.mxu0 0
    %3102 = vmatprep.subr.bf16.mxu0 0
    %3103 = vmatpush2.bf16.msra.mxu0 0
    %3104 = vmatprep.subr.bf16.mxu0 0
    %3105 = vmatpush2.bf16.msra.mxu0 0
    %3106 = vmatprep.subr.bf16.mxu0 0
    %3107 = vmatpush2.bf16.msra.mxu0 0
    %3108 = vmatprep.mubr.bf16.mxu0 0
    %3109 = vmatmul.mubr.bf16.gmra.mxu0 %v3065
    %v3110 = vpop.f32.mrf.mxu0
    %v3111 = vadd.f32 %v3038, %v3110
    %v3112 = vpop.f32.mrf.mxu0
    %v3113 = vpop.f32.mrf.mxu0
    %v3114 = vadd.f32 %v3038, %v3113
    %v3115 = vpop.f32.mrf.mxu0
    %3116 = vmatprep.mubr.bf16.mxu0 0
    %3117 = vmatmul.mubr.bf16.gmra.mxu0 %v3068
    %v3118 = vpop.f32.mrf.mxu0
    %v3119 = vadd.f32 %v3038, %v3118
    %v3120 = vpop.f32.mrf.mxu0
    %v3121 = vpop.f32.mrf.mxu0
    %v3122 = vadd.f32 %v3038, %v3121
    %v3123 = vpop.f32.mrf.mxu0
    %3124 = vmatprep.mubr.bf16.mxu0 0
    %3125 = vmatmul.mubr.bf16.gmra.mxu0 %v3071
    %v3126 = vpop.f32.mrf.mxu0
    %v3127 = vadd.f32 %v3038, %v3126
    %v3128 = vpop.f32.mrf.mxu0
    %v3129 = vpop.f32.mrf.mxu0
    %v3130 = vadd.f32 %v3038, %v3129
    %v3131 = vpop.f32.mrf.mxu0
    %3132 = vmatprep.mubr.bf16.mxu0 0
    %3133 = vmatmul.mubr.bf16.gmra.mxu0 %v3074
    %v3134 = vpop.f32.mrf.mxu0
    %v3135 = vadd.f32 %v3038, %v3134
    %v3136 = vpop.f32.mrf.mxu0
    %v3137 = vpop.f32.mrf.mxu0
    %v3138 = vadd.f32 %v3038, %v3137
    %v3139 = vpop.f32.mrf.mxu0
    %3140 = vdwg.mxu0
    %v3141 = vsel %vm1002, %v3111, 0.0
    %3142 = vadd.xlane.f32.xlu0 %v3141
    %v3143 = vpop.xlane.xlu0 %3142
    %v3144 = vsel %vm1002, %v3114, 0.0
    %3145 = vadd.xlane.f32.xlu0 %v3144
    %v3146 = vpop.xlane.xlu0 %3145
    %v3147 = vsel %vm1002, %v3119, 0.0
    %3148 = vadd.xlane.f32.xlu0 %v3147
    %v3149 = vpop.xlane.xlu0 %3148
    %v3150 = vsel %vm1002, %v3122, 0.0
    %3151 = vadd.xlane.f32.xlu0 %v3150
    %v3152 = vpop.xlane.xlu0 %3151
    %v3153 = vsel %vm1002, %v3127, 0.0
    %3154 = vadd.xlane.f32.xlu0 %v3153
    %v3155 = vpop.xlane.xlu0 %3154
    %v3156 = vsel %vm1002, %v3130, 0.0
    %3157 = vadd.xlane.f32.xlu0 %v3156
    %v3158 = vpop.xlane.xlu0 %3157
    %v3159 = vsel %vm1002, %v3135, 0.0
    %3160 = vadd.xlane.f32.xlu0 %v3159
    %v3161 = vpop.xlane.xlu0 %3160
    %v3162 = vsel %vm1002, %v3138, 0.0
    %3163 = vadd.xlane.f32.xlu0 %v3162
    %v3164 = vpop.xlane.xlu0 %3163
    %v3165 = vmul.f32 %v3143, %v1027
    %v3166 = vmul.f32 %v3146, %v1027
    %v3167 = vmul.f32 %v3149, %v1027
    %v3168 = vmul.f32 %v3152, %v1027
    %v3169 = vmul.f32 %v3155, %v1027
    %v3170 = vmul.f32 %v3158, %v1027
    %v3171 = vmul.f32 %v3161, %v1027
    %v3172 = vmul.f32 %v3164, %v1027
    %v3173 = vsub.f32 %v3111, %v3165
    %v3174 = vsub.f32 %v3114, %v3166
    %v3175 = vsub.f32 %v3119, %v3167
    %v3176 = vsub.f32 %v3122, %v3168
    %v3177 = vsub.f32 %v3127, %v3169
    %v3178 = vsub.f32 %v3130, %v3170
    %v3179 = vsub.f32 %v3135, %v3171
    %v3180 = vsub.f32 %v3138, %v3172
    %v3181 = vmul.f32 %v3173, %v3173
    %v3182 = vmul.f32 %v3174, %v3174
    %v3183 = vmul.f32 %v3175, %v3175
    %v3184 = vmul.f32 %v3176, %v3176
    %v3185 = vmul.f32 %v3177, %v3177
    %v3186 = vmul.f32 %v3178, %v3178
    %v3187 = vmul.f32 %v3179, %v3179
    %v3188 = vmul.f32 %v3180, %v3180
    %v3189 = vsel %vm1002, %v3181, 0.0
    %3190 = vadd.xlane.f32.xlu0 %v3189
    %v3191 = vpop.xlane.xlu0 %3190
    %v3192 = vsel %vm1002, %v3182, 0.0
    %3193 = vadd.xlane.f32.xlu0 %v3192
    %v3194 = vpop.xlane.xlu0 %3193
    %v3195 = vsel %vm1002, %v3183, 0.0
    %3196 = vadd.xlane.f32.xlu0 %v3195
    %v3197 = vpop.xlane.xlu0 %3196
    %v3198 = vsel %vm1002, %v3184, 0.0
    %3199 = vadd.xlane.f32.xlu0 %v3198
    %v3200 = vpop.xlane.xlu0 %3199
    %v3201 = vsel %vm1002, %v3185, 0.0
    %3202 = vadd.xlane.f32.xlu0 %v3201
    %v3203 = vpop.xlane.xlu0 %3202
    %v3204 = vsel %vm1002, %v3186, 0.0
    %3205 = vadd.xlane.f32.xlu0 %v3204
    %v3206 = vpop.xlane.xlu0 %3205
    %v3207 = vsel %vm1002, %v3187, 0.0
    %3208 = vadd.xlane.f32.xlu0 %v3207
    %v3209 = vpop.xlane.xlu0 %3208
    %v3210 = vsel %vm1002, %v3188, 0.0
    %3211 = vadd.xlane.f32.xlu0 %v3210
    %v3212 = vpop.xlane.xlu0 %3211
    %v3213 = vmul.f32 %v3191, %v1027
    %v3214 = vmul.f32 %v3194, %v1027
    %v3215 = vmul.f32 %v3197, %v1027
    %v3216 = vmul.f32 %v3200, %v1027
    %v3217 = vmul.f32 %v3203, %v1027
    %v3218 = vmul.f32 %v3206, %v1027
    %v3219 = vmul.f32 %v3209, %v1027
    %v3220 = vmul.f32 %v3212, %v1027
    %v3221 = vadd.f32 %v3213, 1e-05
    %v3222 = vadd.f32 %v3214, 1e-05
    %v3223 = vadd.f32 %v3215, 1e-05
    %v3224 = vadd.f32 %v3216, 1e-05
    %v3225 = vadd.f32 %v3217, 1e-05
    %v3226 = vadd.f32 %v3218, 1e-05
    %v3227 = vadd.f32 %v3219, 1e-05
    %v3228 = vadd.f32 %v3220, 1e-05
    %v3229 = vrsqrt.pop %v3221
    %v3230 = vrsqrt.pop %v3222
    %v3231 = vrsqrt.pop %v3223
    %v3232 = vrsqrt.pop %v3224
    %v3233 = vrsqrt.pop %v3225
    %v3234 = vrsqrt.pop %v3226
    %v3235 = vrsqrt.pop %v3227
    %v3236 = vrsqrt.pop %v3228
    %v3237 = vmul.f32 %v3173, %v3229
    %v3238 = vmul.f32 %v3174, %v3230
    %v3239 = vmul.f32 %v3175, %v3231
    %v3240 = vmul.f32 %v3176, %v3232
    %v3241 = vmul.f32 %v3177, %v3233
    %v3242 = vmul.f32 %v3178, %v3234
    %v3243 = vmul.f32 %v3179, %v3235
    %v3244 = vmul.f32 %v3180, %v3236
    %v3246 = vlaneseq
    %v3247 = vshrl.u32 %v3246, 7
    %v3248 = vsub.s32 0, %v3247
    %v3249 = vrot.slane %v706, %v3248
    %v3251 = vmul.f32 %v3237, %v3249
    %v3252 = vmul.f32 %v3238, %v3249
    %v3253 = vmul.f32 %v3239, %v3249
    %v3254 = vmul.f32 %v3240, %v3249
    %v3255 = vmul.f32 %v3241, %v3249
    %v3256 = vmul.f32 %v3242, %v3249
    %v3257 = vmul.f32 %v3243, %v3249
    %v3258 = vmul.f32 %v3244, %v3249
    %v3260 = vlaneseq
    %v3261 = vshrl.u32 %v3260, 7
    %v3262 = vsub.s32 0, %v3261
    %v3263 = vrot.slane %v702, %v3262
    %v3265 = vadd.f32 %v3251, %v3263
    %v3266 = vadd.f32 %v3252, %v3263
    %v3267 = vadd.f32 %v3253, %v3263
    %v3268 = vadd.f32 %v3254, %v3263
    %v3269 = vadd.f32 %v3255, %v3263
    %v3270 = vadd.f32 %v3256, %v3263
    %v3271 = vadd.f32 %v3257, %v3263
    %v3272 = vadd.f32 %v3258, %v3263
    %v3274 = vlaneseq
    %v3275 = vshrl.u32 %v3274, 7
    %v3276 = vsub.s32 0, %v3275
    %v3277 = vrot.slane %v704, %v3276
    %v3295 = vunpack.c.l.b16 %v732
    %v3296 = vunpack.c.l.b16 %v733
    %v3297 = vunpack.c.l.b16 %v734
    %v3298 = vunpack.c.l.b16 %v735
    %v3299 = vunpack.c.l.b16 %v736
    %v3300 = vunpack.c.l.b16 %v737
    %v3301 = vunpack.c.l.b16 %v738
    %v3302 = vunpack.c.l.b16 %v739
    %v3303 = vunpack.c.l.b16 %v740
    %v3304 = vunpack.c.l.b16 %v741
    %v3305 = vunpack.c.l.b16 %v742
    %v3306 = vunpack.c.l.b16 %v743
    %v3307 = vunpack.c.l.b16 %v744
    %v3308 = vunpack.c.l.b16 %v745
    %v3309 = vunpack.c.l.b16 %v746
    %v3310 = vunpack.c.l.b16 %v747
    %v3311 = vpack.c.b16 %v3296, %v3295
    %v3312 = vpack.c.b16 %v3298, %v3297
    %v3313 = vpack.c.b16 %v3300, %v3299
    %v3314 = vpack.c.b16 %v3302, %v3301
    %v3315 = vpack.c.b16 %v3304, %v3303
    %v3316 = vpack.c.b16 %v3306, %v3305
    %v3317 = vpack.c.b16 %v3308, %v3307
    %v3318 = vpack.c.b16 %v3310, %v3309
    %3327 = vmatprep.subr.bf16.mxu0 0
    %3328 = vmatpush1.bf16.msra.mxu0 %v3318
    %3329 = vmatprep.subr.bf16.mxu0 0
    %3330 = vmatpush1.bf16.msra.mxu0 %v3317
    %3331 = vmatprep.subr.bf16.mxu0 0
    %3332 = vmatpush1.bf16.msra.mxu0 %v3316
    %3333 = vmatprep.subr.bf16.mxu0 0
    %3334 = vmatpush1.bf16.msra.mxu0 %v3315
    %3335 = vmatprep.subr.bf16.mxu0 0
    %3336 = vmatpush1.bf16.msra.mxu0 %v3314
    %3337 = vmatprep.subr.bf16.mxu0 0
    %3338 = vmatpush1.bf16.msra.mxu0 %v3313
    %3339 = vmatprep.subr.bf16.mxu0 0
    %3340 = vmatpush1.bf16.msra.mxu0 %v3312
    %3341 = vmatprep.subr.bf16.mxu0 0
    %3342 = vmatpush1.bf16.msra.mxu0 %v3311
    %3343 = vmatprep.subr.bf16.mxu0 0
    %3344 = vmatpush2.bf16.msra.mxu0 0
    %3345 = vmatprep.subr.bf16.mxu0 0
    %3346 = vmatpush2.bf16.msra.mxu0 0
    %3347 = vmatprep.subr.bf16.mxu0 0
    %3348 = vmatpush2.bf16.msra.mxu0 0
    %3349 = vmatprep.subr.bf16.mxu0 0
    %3350 = vmatpush2.bf16.msra.mxu0 0
    %3351 = vmatprep.subr.bf16.mxu0 0
    %3352 = vmatpush2.bf16.msra.mxu0 0
    %3353 = vmatprep.subr.bf16.mxu0 0
    %3354 = vmatpush2.bf16.msra.mxu0 0
    %3355 = vmatprep.subr.bf16.mxu0 0
    %3356 = vmatpush2.bf16.msra.mxu0 0
    %3357 = vmatprep.subr.bf16.mxu0 0
    %3358 = vmatpush2.bf16.msra.mxu0 0
    %3359 = vmatprep.mubr.bf16.mxu0 0
    %3360 = vmatmul.mubr.bf16.gmra.mxu0 %v2767
    %v3361 = vpop.f32.mrf.mxu0
    %v3362 = vadd.f32 %v3277, %v3361
    %v3363 = vpop.f32.mrf.mxu0
    %v3364 = vpop.f32.mrf.mxu0
    %v3365 = vadd.f32 %v3277, %v3364
    %v3366 = vpop.f32.mrf.mxu0
    %3367 = vmatprep.mubr.bf16.mxu0 0
    %3368 = vmatmul.mubr.bf16.gmra.mxu0 %v2768
    %v3369 = vpop.f32.mrf.mxu0
    %v3370 = vadd.f32 %v3277, %v3369
    %v3371 = vpop.f32.mrf.mxu0
    %v3372 = vpop.f32.mrf.mxu0
    %v3373 = vadd.f32 %v3277, %v3372
    %v3374 = vpop.f32.mrf.mxu0
    %3375 = vmatprep.mubr.bf16.mxu0 0
    %3376 = vmatmul.mubr.bf16.gmra.mxu0 %v2769
    %v3377 = vpop.f32.mrf.mxu0
    %v3378 = vadd.f32 %v3277, %v3377
    %v3379 = vpop.f32.mrf.mxu0
    %v3380 = vpop.f32.mrf.mxu0
    %v3381 = vadd.f32 %v3277, %v3380
    %v3382 = vpop.f32.mrf.mxu0
    %3383 = vmatprep.mubr.bf16.mxu0 0
    %3384 = vmatmul.mubr.bf16.gmra.mxu0 %v2770
    %v3385 = vpop.f32.mrf.mxu0
    %v3386 = vadd.f32 %v3277, %v3385
    %v3387 = vpop.f32.mrf.mxu0
    %v3388 = vpop.f32.mrf.mxu0
    %v3389 = vadd.f32 %v3277, %v3388
    %v3390 = vpop.f32.mrf.mxu0
    %3391 = vdwg.mxu0
    %v3392 = vsel %vm1002, %v3362, 0.0
    %3393 = vadd.xlane.f32.xlu0 %v3392
    %v3394 = vpop.xlane.xlu0 %3393
    %v3395 = vsel %vm1002, %v3365, 0.0
    %3396 = vadd.xlane.f32.xlu0 %v3395
    %v3397 = vpop.xlane.xlu0 %3396
    %v3398 = vsel %vm1002, %v3370, 0.0
    %3399 = vadd.xlane.f32.xlu0 %v3398
    %v3400 = vpop.xlane.xlu0 %3399
    %v3401 = vsel %vm1002, %v3373, 0.0
    %3402 = vadd.xlane.f32.xlu0 %v3401
    %v3403 = vpop.xlane.xlu0 %3402
    %v3404 = vsel %vm1002, %v3378, 0.0
    %3405 = vadd.xlane.f32.xlu0 %v3404
    %v3406 = vpop.xlane.xlu0 %3405
    %v3407 = vsel %vm1002, %v3381, 0.0
    %3408 = vadd.xlane.f32.xlu0 %v3407
    %v3409 = vpop.xlane.xlu0 %3408
    %v3410 = vsel %vm1002, %v3386, 0.0
    %3411 = vadd.xlane.f32.xlu0 %v3410
    %v3412 = vpop.xlane.xlu0 %3411
    %v3413 = vsel %vm1002, %v3389, 0.0
    %3414 = vadd.xlane.f32.xlu0 %v3413
    %v3415 = vpop.xlane.xlu0 %3414
    %v3416 = vmul.f32 %v3394, %v1027
    %v3417 = vmul.f32 %v3397, %v1027
    %v3418 = vmul.f32 %v3400, %v1027
    %v3419 = vmul.f32 %v3403, %v1027
    %v3420 = vmul.f32 %v3406, %v1027
    %v3421 = vmul.f32 %v3409, %v1027
    %v3422 = vmul.f32 %v3412, %v1027
    %v3423 = vmul.f32 %v3415, %v1027
    %v3424 = vsub.f32 %v3362, %v3416
    %v3425 = vsub.f32 %v3365, %v3417
    %v3426 = vsub.f32 %v3370, %v3418
    %v3427 = vsub.f32 %v3373, %v3419
    %v3428 = vsub.f32 %v3378, %v3420
    %v3429 = vsub.f32 %v3381, %v3421
    %v3430 = vsub.f32 %v3386, %v3422
    %v3431 = vsub.f32 %v3389, %v3423
    %v3432 = vmul.f32 %v3424, %v3424
    %v3433 = vmul.f32 %v3425, %v3425
    %v3434 = vmul.f32 %v3426, %v3426
    %v3435 = vmul.f32 %v3427, %v3427
    %v3436 = vmul.f32 %v3428, %v3428
    %v3437 = vmul.f32 %v3429, %v3429
    %v3438 = vmul.f32 %v3430, %v3430
    %v3439 = vmul.f32 %v3431, %v3431
    %v3440 = vsel %vm1002, %v3432, 0.0
    %3441 = vadd.xlane.f32.xlu0 %v3440
    %v3442 = vpop.xlane.xlu0 %3441
    %v3443 = vsel %vm1002, %v3433, 0.0
    %3444 = vadd.xlane.f32.xlu0 %v3443
    %v3445 = vpop.xlane.xlu0 %3444
    %v3446 = vsel %vm1002, %v3434, 0.0
    %3447 = vadd.xlane.f32.xlu0 %v3446
    %v3448 = vpop.xlane.xlu0 %3447
    %v3449 = vsel %vm1002, %v3435, 0.0
    %3450 = vadd.xlane.f32.xlu0 %v3449
    %v3451 = vpop.xlane.xlu0 %3450
    %v3452 = vsel %vm1002, %v3436, 0.0
    %3453 = vadd.xlane.f32.xlu0 %v3452
    %v3454 = vpop.xlane.xlu0 %3453
    %v3455 = vsel %vm1002, %v3437, 0.0
    %3456 = vadd.xlane.f32.xlu0 %v3455
    %v3457 = vpop.xlane.xlu0 %3456
    %v3458 = vsel %vm1002, %v3438, 0.0
    %3459 = vadd.xlane.f32.xlu0 %v3458
    %v3460 = vpop.xlane.xlu0 %3459
    %v3461 = vsel %vm1002, %v3439, 0.0
    %3462 = vadd.xlane.f32.xlu0 %v3461
    %v3463 = vpop.xlane.xlu0 %3462
    %v3464 = vmul.f32 %v3442, %v1027
    %v3465 = vmul.f32 %v3445, %v1027
    %v3466 = vmul.f32 %v3448, %v1027
    %v3467 = vmul.f32 %v3451, %v1027
    %v3468 = vmul.f32 %v3454, %v1027
    %v3469 = vmul.f32 %v3457, %v1027
    %v3470 = vmul.f32 %v3460, %v1027
    %v3471 = vmul.f32 %v3463, %v1027
    %v3472 = vadd.f32 %v3464, 1e-05
    %v3473 = vadd.f32 %v3465, 1e-05
    %v3474 = vadd.f32 %v3466, 1e-05
    %v3475 = vadd.f32 %v3467, 1e-05
    %v3476 = vadd.f32 %v3468, 1e-05
    %v3477 = vadd.f32 %v3469, 1e-05
    %v3478 = vadd.f32 %v3470, 1e-05
    %v3479 = vadd.f32 %v3471, 1e-05
    %v3480 = vrsqrt.pop %v3472
    %v3481 = vrsqrt.pop %v3473
    %v3482 = vrsqrt.pop %v3474
    %v3483 = vrsqrt.pop %v3475
    %v3484 = vrsqrt.pop %v3476
    %v3485 = vrsqrt.pop %v3477
    %v3486 = vrsqrt.pop %v3478
    %v3487 = vrsqrt.pop %v3479
    %v3488 = vmul.f32 %v3424, %v3480
    %v3489 = vmul.f32 %v3425, %v3481
    %v3490 = vmul.f32 %v3426, %v3482
    %v3491 = vmul.f32 %v3427, %v3483
    %v3492 = vmul.f32 %v3428, %v3484
    %v3493 = vmul.f32 %v3429, %v3485
    %v3494 = vmul.f32 %v3430, %v3486
    %v3495 = vmul.f32 %v3431, %v3487
    %v3497 = vlaneseq
    %v3498 = vshrl.u32 %v3497, 7
    %v3499 = vsub.s32 0, %v3498
    %v3500 = vrot.slane %v707, %v3499
    %v3502 = vmul.f32 %v3488, %v3500
    %v3503 = vmul.f32 %v3489, %v3500
    %v3504 = vmul.f32 %v3490, %v3500
    %v3505 = vmul.f32 %v3491, %v3500
    %v3506 = vmul.f32 %v3492, %v3500
    %v3507 = vmul.f32 %v3493, %v3500
    %v3508 = vmul.f32 %v3494, %v3500
    %v3509 = vmul.f32 %v3495, %v3500
    %v3511 = vlaneseq
    %v3512 = vshrl.u32 %v3511, 7
    %v3513 = vsub.s32 0, %v3512
    %v3514 = vrot.slane %v703, %v3513
    %v3516 = vadd.f32 %v3502, %v3514
    %v3517 = vadd.f32 %v3503, %v3514
    %v3518 = vadd.f32 %v3504, %v3514
    %v3519 = vadd.f32 %v3505, %v3514
    %v3520 = vadd.f32 %v3506, %v3514
    %v3521 = vadd.f32 %v3507, %v3514
    %v3522 = vadd.f32 %v3508, %v3514
    %v3523 = vadd.f32 %v3509, %v3514
    %v3524 = vadd.f32 %v3265, %v3516
    %v3525 = vadd.f32 %v3266, %v3517
    %v3526 = vadd.f32 %v3267, %v3518
    %v3527 = vadd.f32 %v3268, %v3519
    %v3528 = vadd.f32 %v3269, %v3520
    %v3529 = vadd.f32 %v3270, %v3521
    %v3530 = vadd.f32 %v3271, %v3522
    %v3531 = vadd.f32 %v3272, %v3523
    %v3532 = vmax.f32 %v3524, 0.0
    %v3533 = vmax.f32 %v3525, 0.0
    %v3534 = vmax.f32 %v3526, 0.0
    %v3535 = vmax.f32 %v3527, 0.0
    %v3536 = vmax.f32 %v3528, 0.0
    %v3537 = vmax.f32 %v3529, 0.0
    %v3538 = vmax.f32 %v3530, 0.0
    %v3539 = vmax.f32 %v3531, 0.0
    %v3548 = vcombine.high %v3532, %v3532
    %v3549 = vcombine.high %v3533, %v3533
    %v3550 = vcombine.high %v3534, %v3534
    %v3551 = vcombine.high %v3535, %v3535
    %v3552 = vcombine.high %v3536, %v3536
    %v3553 = vcombine.high %v3537, %v3537
    %v3554 = vcombine.high %v3538, %v3538
    %v3555 = vcombine.high %v3539, %v3539
    %v3564 = vsel %vm1633, %v3532, -inf
    %v3565 = vrot.slane %v3564, 4
    %v3566 = vmax.f32 %v3564, %v3565
    %v3567 = vrot.slane %v3566, 2
    %v3568 = vmax.f32 %v3566, %v3567
    %v3569 = vrot.slane %v3568, 1
    %v3570 = vmax.f32 %v3568, %v3569
    %v3571 = vsel %vm1633, %v3548, -inf
    %v3572 = vrot.slane %v3571, 4
    %v3573 = vmax.f32 %v3571, %v3572
    %v3574 = vrot.slane %v3573, 2
    %v3575 = vmax.f32 %v3573, %v3574
    %v3576 = vrot.slane %v3575, 1
    %v3577 = vmax.f32 %v3575, %v3576
    %v3578 = vsel %vm1633, %v3533, -inf
    %v3579 = vrot.slane %v3578, 4
    %v3580 = vmax.f32 %v3578, %v3579
    %v3581 = vrot.slane %v3580, 2
    %v3582 = vmax.f32 %v3580, %v3581
    %v3583 = vrot.slane %v3582, 1
    %v3584 = vmax.f32 %v3582, %v3583
    %v3585 = vsel %vm1633, %v3549, -inf
    %v3586 = vrot.slane %v3585, 4
    %v3587 = vmax.f32 %v3585, %v3586
    %v3588 = vrot.slane %v3587, 2
    %v3589 = vmax.f32 %v3587, %v3588
    %v3590 = vrot.slane %v3589, 1
    %v3591 = vmax.f32 %v3589, %v3590
    %v3592 = vsel %vm1633, %v3534, -inf
    %v3593 = vrot.slane %v3592, 4
    %v3594 = vmax.f32 %v3592, %v3593
    %v3595 = vrot.slane %v3594, 2
    %v3596 = vmax.f32 %v3594, %v3595
    %v3597 = vrot.slane %v3596, 1
    %v3598 = vmax.f32 %v3596, %v3597
    %v3599 = vsel %vm1633, %v3550, -inf
    %v3600 = vrot.slane %v3599, 4
    %v3601 = vmax.f32 %v3599, %v3600
    %v3602 = vrot.slane %v3601, 2
    %v3603 = vmax.f32 %v3601, %v3602
    %v3604 = vrot.slane %v3603, 1
    %v3605 = vmax.f32 %v3603, %v3604
    %v3606 = vsel %vm1633, %v3535, -inf
    %v3607 = vrot.slane %v3606, 4
    %v3608 = vmax.f32 %v3606, %v3607
    %v3609 = vrot.slane %v3608, 2
    %v3610 = vmax.f32 %v3608, %v3609
    %v3611 = vrot.slane %v3610, 1
    %v3612 = vmax.f32 %v3610, %v3611
    %v3613 = vsel %vm1633, %v3551, -inf
    %v3614 = vrot.slane %v3613, 4
    %v3615 = vmax.f32 %v3613, %v3614
    %v3616 = vrot.slane %v3615, 2
    %v3617 = vmax.f32 %v3615, %v3616
    %v3618 = vrot.slane %v3617, 1
    %v3619 = vmax.f32 %v3617, %v3618
    %v3620 = vsel %vm1633, %v3536, -inf
    %v3621 = vrot.slane %v3620, 4
    %v3622 = vmax.f32 %v3620, %v3621
    %v3623 = vrot.slane %v3622, 2
    %v3624 = vmax.f32 %v3622, %v3623
    %v3625 = vrot.slane %v3624, 1
    %v3626 = vmax.f32 %v3624, %v3625
    %v3627 = vsel %vm1633, %v3552, -inf
    %v3628 = vrot.slane %v3627, 4
    %v3629 = vmax.f32 %v3627, %v3628
    %v3630 = vrot.slane %v3629, 2
    %v3631 = vmax.f32 %v3629, %v3630
    %v3632 = vrot.slane %v3631, 1
    %v3633 = vmax.f32 %v3631, %v3632
    %v3634 = vsel %vm1633, %v3537, -inf
    %v3635 = vrot.slane %v3634, 4
    %v3636 = vmax.f32 %v3634, %v3635
    %v3637 = vrot.slane %v3636, 2
    %v3638 = vmax.f32 %v3636, %v3637
    %v3639 = vrot.slane %v3638, 1
    %v3640 = vmax.f32 %v3638, %v3639
    %v3641 = vsel %vm1633, %v3553, -inf
    %v3642 = vrot.slane %v3641, 4
    %v3643 = vmax.f32 %v3641, %v3642
    %v3644 = vrot.slane %v3643, 2
    %v3645 = vmax.f32 %v3643, %v3644
    %v3646 = vrot.slane %v3645, 1
    %v3647 = vmax.f32 %v3645, %v3646
    %v3648 = vsel %vm1633, %v3538, -inf
    %v3649 = vrot.slane %v3648, 4
    %v3650 = vmax.f32 %v3648, %v3649
    %v3651 = vrot.slane %v3650, 2
    %v3652 = vmax.f32 %v3650, %v3651
    %v3653 = vrot.slane %v3652, 1
    %v3654 = vmax.f32 %v3652, %v3653
    %v3655 = vsel %vm1633, %v3554, -inf
    %v3656 = vrot.slane %v3655, 4
    %v3657 = vmax.f32 %v3655, %v3656
    %v3658 = vrot.slane %v3657, 2
    %v3659 = vmax.f32 %v3657, %v3658
    %v3660 = vrot.slane %v3659, 1
    %v3661 = vmax.f32 %v3659, %v3660
    %v3662 = vsel %vm1633, %v3539, -inf
    %v3663 = vrot.slane %v3662, 4
    %v3664 = vmax.f32 %v3662, %v3663
    %v3665 = vrot.slane %v3664, 2
    %v3666 = vmax.f32 %v3664, %v3665
    %v3667 = vrot.slane %v3666, 1
    %v3668 = vmax.f32 %v3666, %v3667
    %v3669 = vsel %vm1633, %v3555, -inf
    %v3670 = vrot.slane %v3669, 4
    %v3671 = vmax.f32 %v3669, %v3670
    %v3672 = vrot.slane %v3671, 2
    %v3673 = vmax.f32 %v3671, %v3672
    %v3674 = vrot.slane %v3673, 1
    %v3675 = vmax.f32 %v3673, %v3674
    %v3692 = vcombine.low %v3570, %v3577
    %v3693 = vcombine.low %v3584, %v3591
    %v3694 = vcombine.low %v3598, %v3605
    %v3695 = vcombine.low %v3612, %v3619
    %v3696 = vcombine.low %v3626, %v3633
    %v3697 = vcombine.low %v3640, %v3647
    %v3698 = vcombine.low %v3654, %v3661
    %v3699 = vcombine.low %v3668, %v3675
    %3700 = vrot.lane.b32.xlu0 %v3692, 64
    %v3701 = vpop.permute.xlu0 %3700
    %3702 = vrot.lane.b32.xlu0 %v3693, 64
    %v3703 = vpop.permute.xlu0 %3702
    %3704 = vrot.lane.b32.xlu0 %v3694, 64
    %v3705 = vpop.permute.xlu0 %3704
    %3706 = vrot.lane.b32.xlu0 %v3695, 64
    %v3707 = vpop.permute.xlu0 %3706
    %3708 = vrot.lane.b32.xlu0 %v3696, 64
    %v3709 = vpop.permute.xlu0 %3708
    %3710 = vrot.lane.b32.xlu0 %v3697, 64
    %v3711 = vpop.permute.xlu0 %3710
    %3712 = vrot.lane.b32.xlu0 %v3698, 64
    %v3713 = vpop.permute.xlu0 %3712
    %3714 = vrot.lane.b32.xlu0 %v3699, 64
    %v3715 = vpop.permute.xlu0 %3714
    %v3724 = vsel %vm1002, %v3532, %v3701
    %v3725 = vsel %vm1002, %v3533, %v3703
    %v3726 = vsel %vm1002, %v3534, %v3705
    %v3727 = vsel %vm1002, %v3535, %v3707
    %v3728 = vsel %vm1002, %v3536, %v3709
    %v3729 = vsel %vm1002, %v3537, %v3711
    %v3730 = vsel %vm1002, %v3538, %v3713
    %v3731 = vsel %vm1002, %v3539, %v3715
    %v3732 = vpack.c.bf16 %v3725, %v3724
    %v3733 = vpack.c.bf16 %v3727, %v3726
    %v3734 = vpack.c.bf16 %v3729, %v3728
    %v3735 = vpack.c.bf16 %v3731, %v3730
    %v3737 = vlaneseq
    %v3738 = vshrl.u32 %v3737, 7
    %v3739 = vsub.s32 0, %v3738
    %v3740 = vrot.slane %v764, %v3739
    %v3758 = vunpack.c.l.b16 %v748
    %v3759 = vunpack.c.l.b16 %v749
    %v3760 = vunpack.c.l.b16 %v750
    %v3761 = vunpack.c.l.b16 %v751
    %v3762 = vunpack.c.l.b16 %v752
    %v3763 = vunpack.c.l.b16 %v753
    %v3764 = vunpack.c.l.b16 %v754
    %v3765 = vunpack.c.l.b16 %v755
    %v3766 = vunpack.c.l.b16 %v756
    %v3767 = vunpack.c.l.b16 %v757
    %v3768 = vunpack.c.l.b16 %v758
    %v3769 = vunpack.c.l.b16 %v759
    %v3770 = vunpack.c.l.b16 %v760
    %v3771 = vunpack.c.l.b16 %v761
    %v3772 = vunpack.c.l.b16 %v762
    %v3773 = vunpack.c.l.b16 %v763
    %v3774 = vpack.c.b16 %v3759, %v3758
    %v3775 = vpack.c.b16 %v3761, %v3760
    %v3776 = vpack.c.b16 %v3763, %v3762
    %v3777 = vpack.c.b16 %v3765, %v3764
    %v3778 = vpack.c.b16 %v3767, %v3766
    %v3779 = vpack.c.b16 %v3769, %v3768
    %v3780 = vpack.c.b16 %v3771, %v3770
    %v3781 = vpack.c.b16 %v3773, %v3772
    %3790 = vmatprep.subr.bf16.mxu0 0
    %3791 = vmatpush1.bf16.msra.mxu0 %v3781
    %3792 = vmatprep.subr.bf16.mxu0 0
    %3793 = vmatpush1.bf16.msra.mxu0 %v3780
    %3794 = vmatprep.subr.bf16.mxu0 0
    %3795 = vmatpush1.bf16.msra.mxu0 %v3779
    %3796 = vmatprep.subr.bf16.mxu0 0
    %3797 = vmatpush1.bf16.msra.mxu0 %v3778
    %3798 = vmatprep.subr.bf16.mxu0 0
    %3799 = vmatpush1.bf16.msra.mxu0 %v3777
    %3800 = vmatprep.subr.bf16.mxu0 0
    %3801 = vmatpush1.bf16.msra.mxu0 %v3776
    %3802 = vmatprep.subr.bf16.mxu0 0
    %3803 = vmatpush1.bf16.msra.mxu0 %v3775
    %3804 = vmatprep.subr.bf16.mxu0 0
    %3805 = vmatpush1.bf16.msra.mxu0 %v3774
    %3806 = vmatprep.subr.bf16.mxu0 0
    %3807 = vmatpush2.bf16.msra.mxu0 0
    %3808 = vmatprep.subr.bf16.mxu0 0
    %3809 = vmatpush2.bf16.msra.mxu0 0
    %3810 = vmatprep.subr.bf16.mxu0 0
    %3811 = vmatpush2.bf16.msra.mxu0 0
    %3812 = vmatprep.subr.bf16.mxu0 0
    %3813 = vmatpush2.bf16.msra.mxu0 0
    %3814 = vmatprep.subr.bf16.mxu0 0
    %3815 = vmatpush2.bf16.msra.mxu0 0
    %3816 = vmatprep.subr.bf16.mxu0 0
    %3817 = vmatpush2.bf16.msra.mxu0 0
    %3818 = vmatprep.subr.bf16.mxu0 0
    %3819 = vmatpush2.bf16.msra.mxu0 0
    %3820 = vmatprep.subr.bf16.mxu0 0
    %3821 = vmatpush2.bf16.msra.mxu0 0
    %3822 = vmatprep.mubr.bf16.mxu0 0
    %3823 = vmatmul.mubr.bf16.gmra.mxu0 %v3732
    %v3824 = vpop.f32.mrf.mxu0
    %v3825 = vadd.f32 %v3740, %v3824
    %v3826 = vpop.f32.mrf.mxu0
    %v3827 = vpop.f32.mrf.mxu0
    %v3828 = vadd.f32 %v3740, %v3827
    %v3829 = vpop.f32.mrf.mxu0
    %3830 = vmatprep.mubr.bf16.mxu0 0
    %3831 = vmatmul.mubr.bf16.gmra.mxu0 %v3733
    %v3832 = vpop.f32.mrf.mxu0
    %v3833 = vadd.f32 %v3740, %v3832
    %v3834 = vpop.f32.mrf.mxu0
    %v3835 = vpop.f32.mrf.mxu0
    %v3836 = vadd.f32 %v3740, %v3835
    %v3837 = vpop.f32.mrf.mxu0
    %3838 = vmatprep.mubr.bf16.mxu0 0
    %3839 = vmatmul.mubr.bf16.gmra.mxu0 %v3734
    %v3840 = vpop.f32.mrf.mxu0
    %v3841 = vadd.f32 %v3740, %v3840
    %v3842 = vpop.f32.mrf.mxu0
    %v3843 = vpop.f32.mrf.mxu0
    %v3844 = vadd.f32 %v3740, %v3843
    %v3845 = vpop.f32.mrf.mxu0
    %3846 = vmatprep.mubr.bf16.mxu0 0
    %3847 = vmatmul.mubr.bf16.gmra.mxu0 %v3735
    %v3848 = vpop.f32.mrf.mxu0
    %v3849 = vadd.f32 %v3740, %v3848
    %v3850 = vpop.f32.mrf.mxu0
    %v3851 = vpop.f32.mrf.mxu0
    %v3852 = vadd.f32 %v3740, %v3851
    %v3853 = vpop.f32.mrf.mxu0
    %3854 = vdwg.mxu0
    %v3863 = vcombine.high %v3825, %v3825
    %v3864 = vcombine.high %v3828, %v3828
    %v3865 = vcombine.high %v3833, %v3833
    %v3866 = vcombine.high %v3836, %v3836
    %v3867 = vcombine.high %v3841, %v3841
    %v3868 = vcombine.high %v3844, %v3844
    %v3869 = vcombine.high %v3849, %v3849
    %v3870 = vcombine.high %v3852, %v3852
    %v3879 = vsel %vm1633, %v3825, -inf
    %v3880 = vrot.slane %v3879, 4
    %v3881 = vmax.f32 %v3879, %v3880
    %v3882 = vrot.slane %v3881, 2
    %v3883 = vmax.f32 %v3881, %v3882
    %v3884 = vrot.slane %v3883, 1
    %v3885 = vmax.f32 %v3883, %v3884
    %v3886 = vsel %vm1633, %v3863, -inf
    %v3887 = vrot.slane %v3886, 4
    %v3888 = vmax.f32 %v3886, %v3887
    %v3889 = vrot.slane %v3888, 2
    %v3890 = vmax.f32 %v3888, %v3889
    %v3891 = vrot.slane %v3890, 1
    %v3892 = vmax.f32 %v3890, %v3891
    %v3893 = vsel %vm1633, %v3828, -inf
    %v3894 = vrot.slane %v3893, 4
    %v3895 = vmax.f32 %v3893, %v3894
    %v3896 = vrot.slane %v3895, 2
    %v3897 = vmax.f32 %v3895, %v3896
    %v3898 = vrot.slane %v3897, 1
    %v3899 = vmax.f32 %v3897, %v3898
    %v3900 = vsel %vm1633, %v3864, -inf
    %v3901 = vrot.slane %v3900, 4
    %v3902 = vmax.f32 %v3900, %v3901
    %v3903 = vrot.slane %v3902, 2
    %v3904 = vmax.f32 %v3902, %v3903
    %v3905 = vrot.slane %v3904, 1
    %v3906 = vmax.f32 %v3904, %v3905
    %v3907 = vsel %vm1633, %v3833, -inf
    %v3908 = vrot.slane %v3907, 4
    %v3909 = vmax.f32 %v3907, %v3908
    %v3910 = vrot.slane %v3909, 2
    %v3911 = vmax.f32 %v3909, %v3910
    %v3912 = vrot.slane %v3911, 1
    %v3913 = vmax.f32 %v3911, %v3912
    %v3914 = vsel %vm1633, %v3865, -inf
    %v3915 = vrot.slane %v3914, 4
    %v3916 = vmax.f32 %v3914, %v3915
    %v3917 = vrot.slane %v3916, 2
    %v3918 = vmax.f32 %v3916, %v3917
    %v3919 = vrot.slane %v3918, 1
    %v3920 = vmax.f32 %v3918, %v3919
    %v3921 = vsel %vm1633, %v3836, -inf
    %v3922 = vrot.slane %v3921, 4
    %v3923 = vmax.f32 %v3921, %v3922
    %v3924 = vrot.slane %v3923, 2
    %v3925 = vmax.f32 %v3923, %v3924
    %v3926 = vrot.slane %v3925, 1
    %v3927 = vmax.f32 %v3925, %v3926
    %v3928 = vsel %vm1633, %v3866, -inf
    %v3929 = vrot.slane %v3928, 4
    %v3930 = vmax.f32 %v3928, %v3929
    %v3931 = vrot.slane %v3930, 2
    %v3932 = vmax.f32 %v3930, %v3931
    %v3933 = vrot.slane %v3932, 1
    %v3934 = vmax.f32 %v3932, %v3933
    %v3935 = vsel %vm1633, %v3841, -inf
    %v3936 = vrot.slane %v3935, 4
    %v3937 = vmax.f32 %v3935, %v3936
    %v3938 = vrot.slane %v3937, 2
    %v3939 = vmax.f32 %v3937, %v3938
    %v3940 = vrot.slane %v3939, 1
    %v3941 = vmax.f32 %v3939, %v3940
    %v3942 = vsel %vm1633, %v3867, -inf
    %v3943 = vrot.slane %v3942, 4
    %v3944 = vmax.f32 %v3942, %v3943
    %v3945 = vrot.slane %v3944, 2
    %v3946 = vmax.f32 %v3944, %v3945
    %v3947 = vrot.slane %v3946, 1
    %v3948 = vmax.f32 %v3946, %v3947
    %v3949 = vsel %vm1633, %v3844, -inf
    %v3950 = vrot.slane %v3949, 4
    %v3951 = vmax.f32 %v3949, %v3950
    %v3952 = vrot.slane %v3951, 2
    %v3953 = vmax.f32 %v3951, %v3952
    %v3954 = vrot.slane %v3953, 1
    %v3955 = vmax.f32 %v3953, %v3954
    %v3956 = vsel %vm1633, %v3868, -inf
    %v3957 = vrot.slane %v3956, 4
    %v3958 = vmax.f32 %v3956, %v3957
    %v3959 = vrot.slane %v3958, 2
    %v3960 = vmax.f32 %v3958, %v3959
    %v3961 = vrot.slane %v3960, 1
    %v3962 = vmax.f32 %v3960, %v3961
    %v3963 = vsel %vm1633, %v3849, -inf
    %v3964 = vrot.slane %v3963, 4
    %v3965 = vmax.f32 %v3963, %v3964
    %v3966 = vrot.slane %v3965, 2
    %v3967 = vmax.f32 %v3965, %v3966
    %v3968 = vrot.slane %v3967, 1
    %v3969 = vmax.f32 %v3967, %v3968
    %v3970 = vsel %vm1633, %v3869, -inf
    %v3971 = vrot.slane %v3970, 4
    %v3972 = vmax.f32 %v3970, %v3971
    %v3973 = vrot.slane %v3972, 2
    %v3974 = vmax.f32 %v3972, %v3973
    %v3975 = vrot.slane %v3974, 1
    %v3976 = vmax.f32 %v3974, %v3975
    %v3977 = vsel %vm1633, %v3852, -inf
    %v3978 = vrot.slane %v3977, 4
    %v3979 = vmax.f32 %v3977, %v3978
    %v3980 = vrot.slane %v3979, 2
    %v3981 = vmax.f32 %v3979, %v3980
    %v3982 = vrot.slane %v3981, 1
    %v3983 = vmax.f32 %v3981, %v3982
    %v3984 = vsel %vm1633, %v3870, -inf
    %v3985 = vrot.slane %v3984, 4
    %v3986 = vmax.f32 %v3984, %v3985
    %v3987 = vrot.slane %v3986, 2
    %v3988 = vmax.f32 %v3986, %v3987
    %v3989 = vrot.slane %v3988, 1
    %v3990 = vmax.f32 %v3988, %v3989
    %v3991 = vmul.f32 %v3885, %v3885
    %v3992 = vmul.f32 %v3892, %v3892
    %v3993 = vmul.f32 %v3899, %v3899
    %v3994 = vmul.f32 %v3906, %v3906
    %v3995 = vmul.f32 %v3913, %v3913
    %v3996 = vmul.f32 %v3920, %v3920
    %v3997 = vmul.f32 %v3927, %v3927
    %v3998 = vmul.f32 %v3934, %v3934
    %v3999 = vmul.f32 %v3941, %v3941
    %v4000 = vmul.f32 %v3948, %v3948
    %v4001 = vmul.f32 %v3955, %v3955
    %v4002 = vmul.f32 %v3962, %v3962
    %v4003 = vmul.f32 %v3969, %v3969
    %v4004 = vmul.f32 %v3976, %v3976
    %v4005 = vmul.f32 %v3983, %v3983
    %v4006 = vmul.f32 %v3990, %v3990
    %vm4023 = vcmask 1041409
    %v4024 = vsel %vm4023, %v3992, %v3991
    %vm4025 = vcmask 1042434
    %v4026 = vsel %vm4025, %v3993, %v4024
    %vm4027 = vcmask 1043459
    %v4028 = vsel %vm4027, %v3994, %v4026
    %vm4029 = vcmask 1044484
    %v4030 = vsel %vm4029, %v3995, %v4028
    %vm4031 = vcmask 1045509
    %v4032 = vsel %vm4031, %v3996, %v4030
    %vm4033 = vcmask 1046534
    %v4034 = vsel %vm4033, %v3997, %v4032
    %vm4035 = vcmask 1047559
    %v4036 = vsel %vm4035, %v3998, %v4034
    %v4037 = vsel %vm4023, %v4000, %v3999
    %v4038 = vsel %vm4025, %v4001, %v4037
    %v4039 = vsel %vm4027, %v4002, %v4038
    %v4040 = vsel %vm4029, %v4003, %v4039
    %v4041 = vsel %vm4031, %v4004, %v4040
    %v4042 = vsel %vm4033, %v4005, %v4041
    %v4043 = vsel %vm4035, %v4006, %v4042
    %v4046 = vsel %vm1002, %v4036, 0.0
    %4047 = vadd.xlane.f32.xlu0 %v4046
    %v4048 = vpop.xlane.xlu0 %4047
    %v4049 = vsel %vm1002, %v4043, 0.0
    %4050 = vadd.xlane.f32.xlu0 %v4049
    %v4051 = vpop.xlane.xlu0 %4050
    %v4052 = vmax.f32 %v4048, 1e-24
    %v4053 = vmax.f32 %v4051, 1e-24
    %v4054 = vrsqrt.pop %v4052
    %v4055 = vrsqrt.pop %v4053
    %v4058 = vrot.slane %v4054, 1
    %v4059 = vrot.slane %v4054, 2
    %v4060 = vrot.slane %v4054, 3
    %v4061 = vrot.slane %v4054, 4
    %v4062 = vrot.slane %v4054, 5
    %v4063 = vrot.slane %v4054, 6
    %v4064 = vrot.slane %v4054, 7
    %v4065 = vrot.slane %v4055, 1
    %v4066 = vrot.slane %v4055, 2
    %v4067 = vrot.slane %v4055, 3
    %v4068 = vrot.slane %v4055, 4
    %v4069 = vrot.slane %v4055, 5
    %v4070 = vrot.slane %v4055, 6
    %v4071 = vrot.slane %v4055, 7
    %v4088 = vmul.f32 %v3885, %v4054
    %v4089 = vmul.f32 %v3892, %v4058
    %v4090 = vmul.f32 %v3899, %v4059
    %v4091 = vmul.f32 %v3906, %v4060
    %v4092 = vmul.f32 %v3913, %v4061
    %v4093 = vmul.f32 %v3920, %v4062
    %v4094 = vmul.f32 %v3927, %v4063
    %v4095 = vmul.f32 %v3934, %v4064
    %v4096 = vmul.f32 %v3941, %v4055
    %v4097 = vmul.f32 %v3948, %v4065
    %v4098 = vmul.f32 %v3955, %v4066
    %v4099 = vmul.f32 %v3962, %v4067
    %v4100 = vmul.f32 %v3969, %v4068
    %v4101 = vmul.f32 %v3976, %v4069
    %v4102 = vmul.f32 %v3983, %v4070
    %v4103 = vmul.f32 %v3990, %v4071
    %v4104 = vld [vmem:[%s3] sm:$0xff]
    %v4105 = vld [vmem:[%s3 + $0x8] sm:$0xff]
    %v4106 = vpack.c.bf16 %v4088, %v4088
    %v4107 = vpack.c.bf16 %v4089, %v4089
    %v4108 = vpack.c.bf16 %v4090, %v4090
    %v4109 = vpack.c.bf16 %v4091, %v4091
    %v4110 = vpack.c.bf16 %v4092, %v4092
    %v4111 = vpack.c.bf16 %v4093, %v4093
    %v4112 = vpack.c.bf16 %v4094, %v4094
    %v4113 = vpack.c.bf16 %v4095, %v4095
    %v4114 = vpack.c.bf16 %v4096, %v4096
    %v4115 = vpack.c.bf16 %v4097, %v4097
    %v4116 = vpack.c.bf16 %v4098, %v4098
    %v4117 = vpack.c.bf16 %v4099, %v4099
    %v4118 = vpack.c.bf16 %v4100, %v4100
    %v4119 = vpack.c.bf16 %v4101, %v4101
    %v4120 = vpack.c.bf16 %v4102, %v4102
    %v4121 = vpack.c.bf16 %v4103, %v4103
    %v4123 = vlaneseq
    %v4124 = vshrl.u32 %v4123, 7
    %v4125 = vsub.s32 0, %v4124
    %v4126 = vrot.slane %v765, %v4125
    %v4144 = vunpack.c.l.b16 %v4106
    %v4145 = vunpack.c.l.b16 %v4107
    %v4146 = vunpack.c.l.b16 %v4108
    %v4147 = vunpack.c.l.b16 %v4109
    %v4148 = vunpack.c.l.b16 %v4110
    %v4149 = vunpack.c.l.b16 %v4111
    %v4150 = vunpack.c.l.b16 %v4112
    %v4151 = vunpack.c.l.b16 %v4113
    %v4152 = vunpack.c.l.b16 %v4114
    %v4153 = vunpack.c.l.b16 %v4115
    %v4154 = vunpack.c.l.b16 %v4116
    %v4155 = vunpack.c.l.b16 %v4117
    %v4156 = vunpack.c.l.b16 %v4118
    %v4157 = vunpack.c.l.b16 %v4119
    %v4158 = vunpack.c.l.b16 %v4120
    %v4159 = vunpack.c.l.b16 %v4121
    %v4160 = vrot.slane %v4145, 7
    %v4161 = vsel %vm4023, %v4160, %v4144
    %v4162 = vrot.slane %v4146, 6
    %v4163 = vsel %vm4025, %v4162, %v4161
    %v4164 = vrot.slane %v4147, 5
    %v4165 = vsel %vm4027, %v4164, %v4163
    %v4166 = vrot.slane %v4148, 4
    %v4167 = vsel %vm4029, %v4166, %v4165
    %v4168 = vrot.slane %v4149, 3
    %v4169 = vsel %vm4031, %v4168, %v4167
    %v4170 = vrot.slane %v4150, 2
    %v4171 = vsel %vm4033, %v4170, %v4169
    %v4172 = vrot.slane %v4151, 1
    %v4173 = vsel %vm4035, %v4172, %v4171
    %v4174 = vrot.slane %v4153, 7
    %v4175 = vsel %vm4023, %v4174, %v4152
    %v4176 = vrot.slane %v4154, 6
    %v4177 = vsel %vm4025, %v4176, %v4175
    %v4178 = vrot.slane %v4155, 5
    %v4179 = vsel %vm4027, %v4178, %v4177
    %v4180 = vrot.slane %v4156, 4
    %v4181 = vsel %vm4029, %v4180, %v4179
    %v4182 = vrot.slane %v4157, 3
    %v4183 = vsel %vm4031, %v4182, %v4181
    %v4184 = vrot.slane %v4158, 2
    %v4185 = vsel %vm4033, %v4184, %v4183
    %v4186 = vrot.slane %v4159, 1
    %v4187 = vsel %vm4035, %v4186, %v4185
    %v4188 = vpack.c.b16 %v4187, %v4173
    %v4197 = vunpack.c.l.b16 %v771
    %v4198 = vunpack.c.l.b16 %v772
    %v4199 = vunpack.c.l.b16 %v773
    %v4200 = vunpack.c.l.b16 %v774
    %v4201 = vunpack.c.l.b16 %v775
    %v4202 = vunpack.c.l.b16 %v776
    %v4203 = vunpack.c.l.b16 %v777
    %v4204 = vunpack.c.l.b16 %v778
    %v4205 = vpack.c.b16 %v4198, %v4197
    %v4206 = vpack.c.b16 %v4200, %v4199
    %v4207 = vpack.c.b16 %v4202, %v4201
    %v4208 = vpack.c.b16 %v4204, %v4203
    %v4214 = vsel %vm1002, %v4188, 0
    %4216 = vmatprep.subr.bf16.mxu0 0
    %4217 = vmatpush1.bf16.msra.mxu0 0
    %4218 = vmatprep.subr.bf16.mxu0 0
    %4219 = vmatpush1.bf16.msra.mxu0 0
    %4220 = vmatprep.subr.bf16.mxu0 0
    %4221 = vmatpush1.bf16.msra.mxu0 0
    %4222 = vmatprep.subr.bf16.mxu0 0
    %4223 = vmatpush1.bf16.msra.mxu0 0
    %4224 = vmatprep.subr.bf16.mxu0 0
    %4225 = vmatpush1.bf16.msra.mxu0 %v4208
    %4226 = vmatprep.subr.bf16.mxu0 0
    %4227 = vmatpush1.bf16.msra.mxu0 %v4207
    %4228 = vmatprep.subr.bf16.mxu0 0
    %4229 = vmatpush1.bf16.msra.mxu0 %v4206
    %4230 = vmatprep.subr.bf16.mxu0 0
    %4231 = vmatpush1.bf16.msra.mxu0 %v4205
    %4232 = vmatprep.subr.bf16.mxu0 0
    %4233 = vmatpush2.bf16.msra.mxu0 0
    %4234 = vmatprep.subr.bf16.mxu0 0
    %4235 = vmatpush2.bf16.msra.mxu0 0
    %4236 = vmatprep.subr.bf16.mxu0 0
    %4237 = vmatpush2.bf16.msra.mxu0 0
    %4238 = vmatprep.subr.bf16.mxu0 0
    %4239 = vmatpush2.bf16.msra.mxu0 0
    %4240 = vmatprep.subr.bf16.mxu0 0
    %4241 = vmatpush2.bf16.msra.mxu0 0
    %4242 = vmatprep.subr.bf16.mxu0 0
    %4243 = vmatpush2.bf16.msra.mxu0 0
    %4244 = vmatprep.subr.bf16.mxu0 0
    %4245 = vmatpush2.bf16.msra.mxu0 0
    %4246 = vmatprep.subr.bf16.mxu0 0
    %4247 = vmatpush2.bf16.msra.mxu0 0
    %4248 = vmatprep.mubr.bf16.mxu0 0
    %4249 = vmatmul.mubr.bf16.gmra.mxu0 %v4214
    %v4250 = vpop.f32.mrf.mxu0
    %v4251 = vadd.f32 %v4126, %v4250
    %v4252 = vpop.f32.mrf.mxu0
    %v4253 = vpop.f32.mrf.mxu0
    %v4254 = vadd.f32 %v4126, %v4253
    %v4255 = vpop.f32.mrf.mxu0
    %4256 = vdwg.mxu0
    %v4257 = vsel %vm1002, %v4251, 0.0
    %4258 = vadd.xlane.f32.xlu0 %v4257
    %v4259 = vpop.xlane.xlu0 %4258
    %v4260 = vsel %vm1002, %v4254, 0.0
    %4261 = vadd.xlane.f32.xlu0 %v4260
    %v4262 = vpop.xlane.xlu0 %4261
    %v4263 = vmul.f32 %v4259, %v1027
    %v4264 = vmul.f32 %v4262, %v1027
    %v4265 = vsub.f32 %v4251, %v4263
    %v4266 = vsub.f32 %v4254, %v4264
    %v4267 = vmul.f32 %v4265, %v4265
    %v4268 = vmul.f32 %v4266, %v4266
    %v4269 = vsel %vm1002, %v4267, 0.0
    %4270 = vadd.xlane.f32.xlu0 %v4269
    %v4271 = vpop.xlane.xlu0 %4270
    %v4272 = vsel %vm1002, %v4268, 0.0
    %4273 = vadd.xlane.f32.xlu0 %v4272
    %v4274 = vpop.xlane.xlu0 %4273
    %v4275 = vmul.f32 %v4271, %v1027
    %v4276 = vmul.f32 %v4274, %v1027
    %v4277 = vadd.f32 %v4275, 1e-05
    %v4278 = vadd.f32 %v4276, 1e-05
    %v4279 = vrsqrt.pop %v4277
    %v4280 = vrsqrt.pop %v4278
    %v4281 = vmul.f32 %v4265, %v4279
    %v4282 = vmul.f32 %v4266, %v4280
    %v4284 = vlaneseq
    %v4285 = vshrl.u32 %v4284, 7
    %v4286 = vsub.s32 0, %v4285
    %v4287 = vrot.slane %v769, %v4286
    %v4289 = vmul.f32 %v4281, %v4287
    %v4290 = vmul.f32 %v4282, %v4287
    %v4292 = vlaneseq
    %v4293 = vshrl.u32 %v4292, 7
    %v4294 = vsub.s32 0, %v4293
    %v4295 = vrot.slane %v767, %v4294
    %v4297 = vadd.f32 %v4289, %v4295
    %v4298 = vadd.f32 %v4290, %v4295
    %v4299 = vmax.f32 %v4297, 0.0
    %v4300 = vmax.f32 %v4298, 0.0
    %v4301 = vpack.c.bf16 %v4300, %v4299
    %v4303 = vlaneseq
    %v4304 = vshrl.u32 %v4303, 7
    %v4305 = vsub.s32 0, %v4304
    %v4306 = vrot.slane %v766, %v4305
    %v4316 = vunpack.c.l.b16 %v779
    %v4317 = vunpack.c.l.b16 %v780
    %v4318 = vunpack.c.l.b16 %v781
    %v4319 = vunpack.c.l.b16 %v782
    %v4320 = vunpack.c.l.b16 %v783
    %v4321 = vunpack.c.l.b16 %v784
    %v4322 = vunpack.c.l.b16 %v785
    %v4323 = vunpack.c.l.b16 %v786
    %v4324 = vpack.c.b16 %v4317, %v4316
    %v4325 = vpack.c.b16 %v4319, %v4318
    %v4326 = vpack.c.b16 %v4321, %v4320
    %v4327 = vpack.c.b16 %v4323, %v4322
    %v4333 = vsel %vm1002, %v4301, 0
    %4335 = vmatprep.subr.bf16.mxu0 0
    %4336 = vmatpush1.bf16.msra.mxu0 0
    %4337 = vmatprep.subr.bf16.mxu0 0
    %4338 = vmatpush1.bf16.msra.mxu0 0
    %4339 = vmatprep.subr.bf16.mxu0 0
    %4340 = vmatpush1.bf16.msra.mxu0 0
    %4341 = vmatprep.subr.bf16.mxu0 0
    %4342 = vmatpush1.bf16.msra.mxu0 0
    %4343 = vmatprep.subr.bf16.mxu0 0
    %4344 = vmatpush1.bf16.msra.mxu0 %v4327
    %4345 = vmatprep.subr.bf16.mxu0 0
    %4346 = vmatpush1.bf16.msra.mxu0 %v4326
    %4347 = vmatprep.subr.bf16.mxu0 0
    %4348 = vmatpush1.bf16.msra.mxu0 %v4325
    %4349 = vmatprep.subr.bf16.mxu0 0
    %4350 = vmatpush1.bf16.msra.mxu0 %v4324
    %4351 = vmatprep.subr.bf16.mxu0 0
    %4352 = vmatpush2.bf16.msra.mxu0 0
    %4353 = vmatprep.subr.bf16.mxu0 0
    %4354 = vmatpush2.bf16.msra.mxu0 0
    %4355 = vmatprep.subr.bf16.mxu0 0
    %4356 = vmatpush2.bf16.msra.mxu0 0
    %4357 = vmatprep.subr.bf16.mxu0 0
    %4358 = vmatpush2.bf16.msra.mxu0 0
    %4359 = vmatprep.subr.bf16.mxu0 0
    %4360 = vmatpush2.bf16.msra.mxu0 0
    %4361 = vmatprep.subr.bf16.mxu0 0
    %4362 = vmatpush2.bf16.msra.mxu0 0
    %4363 = vmatprep.subr.bf16.mxu0 0
    %4364 = vmatpush2.bf16.msra.mxu0 0
    %4365 = vmatprep.subr.bf16.mxu0 0
    %4366 = vmatpush2.bf16.msra.mxu0 0
    %4367 = vmatprep.mubr.bf16.mxu0 0
    %4368 = vmatmul.mubr.bf16.gmra.mxu0 %v4333
    %v4369 = vpop.f32.mrf.mxu0
    %v4370 = vadd.f32 %v4306, %v4369
    %v4371 = vpop.f32.mrf.mxu0
    %v4372 = vpop.f32.mrf.mxu0
    %v4373 = vadd.f32 %v4306, %v4372
    %v4374 = vpop.f32.mrf.mxu0
    %4375 = vdwg.mxu0
    %v4376 = vsel %vm1002, %v4370, 0.0
    %4377 = vadd.xlane.f32.xlu0 %v4376
    %v4378 = vpop.xlane.xlu0 %4377
    %v4379 = vsel %vm1002, %v4373, 0.0
    %4380 = vadd.xlane.f32.xlu0 %v4379
    %v4381 = vpop.xlane.xlu0 %4380
    %v4382 = vmul.f32 %v4378, %v1027
    %v4383 = vmul.f32 %v4381, %v1027
    %v4384 = vsub.f32 %v4370, %v4382
    %v4385 = vsub.f32 %v4373, %v4383
    %v4386 = vmul.f32 %v4384, %v4384
    %v4387 = vmul.f32 %v4385, %v4385
    %v4388 = vsel %vm1002, %v4386, 0.0
    %4389 = vadd.xlane.f32.xlu0 %v4388
    %v4390 = vpop.xlane.xlu0 %4389
    %v4391 = vsel %vm1002, %v4387, 0.0
    %4392 = vadd.xlane.f32.xlu0 %v4391
    %v4393 = vpop.xlane.xlu0 %4392
    %v4394 = vmul.f32 %v4390, %v1027
    %v4395 = vmul.f32 %v4393, %v1027
    %v4396 = vadd.f32 %v4394, 1e-05
    %v4397 = vadd.f32 %v4395, 1e-05
    %v4398 = vrsqrt.pop %v4396
    %v4399 = vrsqrt.pop %v4397
    %v4400 = vmul.f32 %v4384, %v4398
    %v4401 = vmul.f32 %v4385, %v4399
    %v4403 = vlaneseq
    %v4404 = vshrl.u32 %v4403, 7
    %v4405 = vsub.s32 0, %v4404
    %v4406 = vrot.slane %v770, %v4405
    %v4408 = vmul.f32 %v4400, %v4406
    %v4409 = vmul.f32 %v4401, %v4406
    %v4411 = vlaneseq
    %v4412 = vshrl.u32 %v4411, 7
    %v4413 = vsub.s32 0, %v4412
    %v4414 = vrot.slane %v768, %v4413
    %v4416 = vadd.f32 %v4408, %v4414
    %v4417 = vadd.f32 %v4409, %v4414
    %v4418 = vunpack.c.l.bf16 %v4106
    %v4419 = vunpack.c.l.bf16 %v4107
    %v4420 = vunpack.c.l.bf16 %v4108
    %v4421 = vunpack.c.l.bf16 %v4109
    %v4422 = vunpack.c.l.bf16 %v4110
    %v4423 = vunpack.c.l.bf16 %v4111
    %v4424 = vunpack.c.l.bf16 %v4112
    %v4425 = vunpack.c.l.bf16 %v4113
    %v4426 = vunpack.c.l.bf16 %v4114
    %v4427 = vunpack.c.l.bf16 %v4115
    %v4428 = vunpack.c.l.bf16 %v4116
    %v4429 = vunpack.c.l.bf16 %v4117
    %v4430 = vunpack.c.l.bf16 %v4118
    %v4431 = vunpack.c.l.bf16 %v4119
    %v4432 = vunpack.c.l.bf16 %v4120
    %v4433 = vunpack.c.l.bf16 %v4121
    %v4450 = vrot.slane %v4419, 7
    %v4451 = vsel %vm4023, %v4450, %v4418
    %v4452 = vrot.slane %v4420, 6
    %v4453 = vsel %vm4025, %v4452, %v4451
    %v4454 = vrot.slane %v4421, 5
    %v4455 = vsel %vm4027, %v4454, %v4453
    %v4456 = vrot.slane %v4422, 4
    %v4457 = vsel %vm4029, %v4456, %v4455
    %v4458 = vrot.slane %v4423, 3
    %v4459 = vsel %vm4031, %v4458, %v4457
    %v4460 = vrot.slane %v4424, 2
    %v4461 = vsel %vm4033, %v4460, %v4459
    %v4462 = vrot.slane %v4425, 1
    %v4463 = vsel %vm4035, %v4462, %v4461
    %v4464 = vrot.slane %v4427, 7
    %v4465 = vsel %vm4023, %v4464, %v4426
    %v4466 = vrot.slane %v4428, 6
    %v4467 = vsel %vm4025, %v4466, %v4465
    %v4468 = vrot.slane %v4429, 5
    %v4469 = vsel %vm4027, %v4468, %v4467
    %v4470 = vrot.slane %v4430, 4
    %v4471 = vsel %vm4029, %v4470, %v4469
    %v4472 = vrot.slane %v4431, 3
    %v4473 = vsel %vm4031, %v4472, %v4471
    %v4474 = vrot.slane %v4432, 2
    %v4475 = vsel %vm4033, %v4474, %v4473
    %v4476 = vrot.slane %v4433, 1
    %v4477 = vsel %vm4035, %v4476, %v4475
    %v4480 = vadd.f32 %v4416, %v4463
    %v4481 = vadd.f32 %v4417, %v4477
    %v4482 = vmax.f32 %v4480, 0.0
    %v4483 = vmax.f32 %v4481, 0.0
    %vm4484 = vcmp.gt.f32.partialorder %v4104, 0.5
    %vm4485 = vcmp.gt.f32.partialorder %v4105, 0.5
    %v4486 = vsel %vm4484, 1, 0
    %v4487 = vsel %vm4485, 1, 0
    %4488 = vset.pattern.permute.xlu0 0
    %4489 = vperm.xlu0 %4488, %v4486
    %v4490 = vpop.permute.xlu0 %4489
    %4491 = vset.pattern.permute.xlu0 0
    %4492 = vperm.xlu0 %4491, %v4487
    %v4493 = vpop.permute.xlu0 %4492
    %vm4494 = vcmp.eq.s32.totalorder %v4490, 1
    %vm4495 = vcmp.eq.s32.totalorder %v4493, 1
    %v4496 = vsel %vm4494, %v4482, -1e+30
    %v4497 = vsel %vm4495, %v4483, -1e+30
    %v4498 = vsel %vm1002, %v4496, -inf
    %v4499 = vsel %vm1002, %v4497, -inf
    %v4500 = vmax.f32 %v4498, %v4499
    %v4501 = vrot.slane %v4500, 4
    %v4502 = vmax.f32 %v4500, %v4501
    %v4503 = vrot.slane %v4502, 2
    %v4504 = vmax.f32 %v4502, %v4503
    %v4505 = vrot.slane %v4504, 1
    %v4506 = vmax.f32 %v4504, %v4505
    %4507 = vset.pattern.permute.xlu0 1
    %4508 = vperm.xlu0 %4507, %v4486
    %v4509 = vpop.permute.xlu0 %4508
    %4510 = vset.pattern.permute.xlu0 1
    %4511 = vperm.xlu0 %4510, %v4487
    %v4512 = vpop.permute.xlu0 %4511
    %vm4513 = vcmp.eq.s32.totalorder %v4509, 1
    %vm4514 = vcmp.eq.s32.totalorder %v4512, 1
    %v4515 = vsel %vm4513, %v4482, -1e+30
    %v4516 = vsel %vm4514, %v4483, -1e+30
    %v4517 = vsel %vm1002, %v4515, -inf
    %v4518 = vsel %vm1002, %v4516, -inf
    %v4519 = vmax.f32 %v4517, %v4518
    %v4520 = vrot.slane %v4519, 4
    %v4521 = vmax.f32 %v4519, %v4520
    %v4522 = vrot.slane %v4521, 2
    %v4523 = vmax.f32 %v4521, %v4522
    %v4524 = vrot.slane %v4523, 1
    %v4525 = vmax.f32 %v4523, %v4524
    %4526 = vset.pattern.permute.xlu0 2
    %4527 = vperm.xlu0 %4526, %v4486
    %v4528 = vpop.permute.xlu0 %4527
    %4529 = vset.pattern.permute.xlu0 2
    %4530 = vperm.xlu0 %4529, %v4487
    %v4531 = vpop.permute.xlu0 %4530
    %vm4532 = vcmp.eq.s32.totalorder %v4528, 1
    %vm4533 = vcmp.eq.s32.totalorder %v4531, 1
    %v4534 = vsel %vm4532, %v4482, -1e+30
    %v4535 = vsel %vm4533, %v4483, -1e+30
    %v4536 = vsel %vm1002, %v4534, -inf
    %v4537 = vsel %vm1002, %v4535, -inf
    %v4538 = vmax.f32 %v4536, %v4537
    %v4539 = vrot.slane %v4538, 4
    %v4540 = vmax.f32 %v4538, %v4539
    %v4541 = vrot.slane %v4540, 2
    %v4542 = vmax.f32 %v4540, %v4541
    %v4543 = vrot.slane %v4542, 1
    %v4544 = vmax.f32 %v4542, %v4543
    %4545 = vset.pattern.permute.xlu0 3
    %4546 = vperm.xlu0 %4545, %v4486
    %v4547 = vpop.permute.xlu0 %4546
    %4548 = vset.pattern.permute.xlu0 3
    %4549 = vperm.xlu0 %4548, %v4487
    %v4550 = vpop.permute.xlu0 %4549
    %vm4551 = vcmp.eq.s32.totalorder %v4547, 1
    %vm4552 = vcmp.eq.s32.totalorder %v4550, 1
    %v4553 = vsel %vm4551, %v4482, -1e+30
    %v4554 = vsel %vm4552, %v4483, -1e+30
    %v4555 = vsel %vm1002, %v4553, -inf
    %v4556 = vsel %vm1002, %v4554, -inf
    %v4557 = vmax.f32 %v4555, %v4556
    %v4558 = vrot.slane %v4557, 4
    %v4559 = vmax.f32 %v4557, %v4558
    %v4560 = vrot.slane %v4559, 2
    %v4561 = vmax.f32 %v4559, %v4560
    %v4562 = vrot.slane %v4561, 1
    %v4563 = vmax.f32 %v4561, %v4562
    %vm4564 = vcmask 1040384
    %v4565 = vsel %vm4564, %v4506, %v4525
    %vm4566 = vcmask 1041408
    %v4567 = vsel %vm4566, %v4565, %v4544
    %vm4568 = vcmask 1042432
    %v4569 = vsel %vm4568, %v4567, %v4563
    %v4570 = vpack.c.bf16 %v4105, %v4104
    %v4571 = vpack.c.bf16 %v4569, %v4569
    %vm4572 = vcmask 31744
    %v4574 = vsel %vm4572, %v4570, 0
    %v4577 = vsel %vm4566, %v4571, 0
    %4579 = vmatprep.subr.bf16.mxu0 0
    %4580 = vmatpush1.bf16.msra.mxu0 0
    %4581 = vmatprep.subr.bf16.mxu0 0
    %4582 = vmatpush1.bf16.msra.mxu0 0
    %4583 = vmatprep.subr.bf16.mxu0 0
    %4584 = vmatpush1.bf16.msra.mxu0 0
    %4585 = vmatprep.subr.bf16.mxu0 0
    %4586 = vmatpush1.bf16.msra.mxu0 0
    %4587 = vmatprep.subr.bf16.mxu0 0
    %4588 = vmatpush1.bf16.msra.mxu0 0
    %4589 = vmatprep.subr.bf16.mxu0 0
    %4590 = vmatpush1.bf16.msra.mxu0 0
    %4591 = vmatprep.subr.bf16.mxu0 0
    %4592 = vmatpush1.bf16.msra.mxu0 0
    %4593 = vmatprep.subr.bf16.mxu0 0
    %4594 = vmatpush1.bf16.msra.mxu0 %v4577
    %4595 = vmatprep.subr.bf16.mxu0 0
    %4596 = vmatpush2.bf16.msra.mxu0 0
    %4597 = vmatprep.subr.bf16.mxu0 0
    %4598 = vmatpush2.bf16.msra.mxu0 0
    %4599 = vmatprep.subr.bf16.mxu0 0
    %4600 = vmatpush2.bf16.msra.mxu0 0
    %4601 = vmatprep.subr.bf16.mxu0 0
    %4602 = vmatpush2.bf16.msra.mxu0 0
    %4603 = vmatprep.subr.bf16.mxu0 0
    %4604 = vmatpush2.bf16.msra.mxu0 0
    %4605 = vmatprep.subr.bf16.mxu0 0
    %4606 = vmatpush2.bf16.msra.mxu0 0
    %4607 = vmatprep.subr.bf16.mxu0 0
    %4608 = vmatpush2.bf16.msra.mxu0 0
    %4609 = vmatprep.subr.bf16.mxu0 0
    %4610 = vmatpush2.bf16.msra.mxu0 0
    %4611 = vmatprep.mubr.bf16.mxu0 0
    %4612 = vmatmul.mubr.bf16.gmra.mxu0 %v4574
    %v4613 = vpop.f32.mrf.mxu0
    %v4614 = vadd.f32 0.0, %v4613
    %v4615 = vpop.f32.mrf.mxu0
    %v4616 = vpop.f32.mrf.mxu0
    %v4617 = vadd.f32 0.0, %v4616
    %v4618 = vpop.f32.mrf.mxu0
    %4619 = vdwg.mxu0
    %4622 = vrot.lane.b32.xlu0 %v4614, 64
    %v4623 = vpop.permute.xlu0 %4622
    %4624 = vrot.lane.b32.xlu0 %v4617, 64
    %v4625 = vpop.permute.xlu0 %4624
    %v4628 = vsel %vm1002, %v4482, %v4623
    %v4629 = vsel %vm1002, %v4483, %v4625
    %v4630 = vpack.c.bf16 %v4629, %v4628
    %v4632 = vlaneseq
    %v4633 = vshrl.u32 %v4632, 7
    %v4634 = vsub.s32 0, %v4633
    %v4635 = vrot.slane %v787, %v4634
    %v4653 = vunpack.c.l.b16 %v796
    %v4654 = vunpack.c.l.b16 %v797
    %v4655 = vunpack.c.l.b16 %v798
    %v4656 = vunpack.c.l.b16 %v799
    %v4657 = vunpack.c.l.b16 %v800
    %v4658 = vunpack.c.l.b16 %v801
    %v4659 = vunpack.c.l.b16 %v802
    %v4660 = vunpack.c.l.b16 %v803
    %v4661 = vunpack.c.l.b16 %v804
    %v4662 = vunpack.c.l.b16 %v805
    %v4663 = vunpack.c.l.b16 %v806
    %v4664 = vunpack.c.l.b16 %v807
    %v4665 = vunpack.c.l.b16 %v808
    %v4666 = vunpack.c.l.b16 %v809
    %v4667 = vunpack.c.l.b16 %v810
    %v4668 = vunpack.c.l.b16 %v811
    %v4669 = vpack.c.b16 %v4654, %v4653
    %v4670 = vpack.c.b16 %v4656, %v4655
    %v4671 = vpack.c.b16 %v4658, %v4657
    %v4672 = vpack.c.b16 %v4660, %v4659
    %v4673 = vpack.c.b16 %v4662, %v4661
    %v4674 = vpack.c.b16 %v4664, %v4663
    %v4675 = vpack.c.b16 %v4666, %v4665
    %v4676 = vpack.c.b16 %v4668, %v4667
    %4685 = vmatprep.subr.bf16.mxu0 0
    %4686 = vmatpush1.bf16.msra.mxu0 %v4676
    %4687 = vmatprep.subr.bf16.mxu0 0
    %4688 = vmatpush1.bf16.msra.mxu0 %v4675
    %4689 = vmatprep.subr.bf16.mxu0 0
    %4690 = vmatpush1.bf16.msra.mxu0 %v4674
    %4691 = vmatprep.subr.bf16.mxu0 0
    %4692 = vmatpush1.bf16.msra.mxu0 %v4673
    %4693 = vmatprep.subr.bf16.mxu0 0
    %4694 = vmatpush1.bf16.msra.mxu0 %v4672
    %4695 = vmatprep.subr.bf16.mxu0 0
    %4696 = vmatpush1.bf16.msra.mxu0 %v4671
    %4697 = vmatprep.subr.bf16.mxu0 0
    %4698 = vmatpush1.bf16.msra.mxu0 %v4670
    %4699 = vmatprep.subr.bf16.mxu0 0
    %4700 = vmatpush1.bf16.msra.mxu0 %v4669
    %4701 = vmatprep.subr.bf16.mxu0 0
    %4702 = vmatpush2.bf16.msra.mxu0 0
    %4703 = vmatprep.subr.bf16.mxu0 0
    %4704 = vmatpush2.bf16.msra.mxu0 0
    %4705 = vmatprep.subr.bf16.mxu0 0
    %4706 = vmatpush2.bf16.msra.mxu0 0
    %4707 = vmatprep.subr.bf16.mxu0 0
    %4708 = vmatpush2.bf16.msra.mxu0 0
    %4709 = vmatprep.subr.bf16.mxu0 0
    %4710 = vmatpush2.bf16.msra.mxu0 0
    %4711 = vmatprep.subr.bf16.mxu0 0
    %4712 = vmatpush2.bf16.msra.mxu0 0
    %4713 = vmatprep.subr.bf16.mxu0 0
    %4714 = vmatpush2.bf16.msra.mxu0 0
    %4715 = vmatprep.subr.bf16.mxu0 0
    %4716 = vmatpush2.bf16.msra.mxu0 0
    %4717 = vmatprep.mubr.bf16.mxu0 0
    %4718 = vmatmul.mubr.bf16.gmra.mxu0 %v4630
    %v4719 = vpop.f32.mrf.mxu0
    %v4720 = vadd.f32 %v4635, %v4719
    %v4721 = vpop.f32.mrf.mxu0
    %v4722 = vpop.f32.mrf.mxu0
    %v4723 = vadd.f32 %v4635, %v4722
    %v4724 = vpop.f32.mrf.mxu0
    %4725 = vdwg.mxu0
    %v4726 = vsel %vm1002, %v4720, 0.0
    %4727 = vadd.xlane.f32.xlu0 %v4726
    %v4728 = vpop.xlane.xlu0 %4727
    %v4729 = vsel %vm1002, %v4723, 0.0
    %4730 = vadd.xlane.f32.xlu0 %v4729
    %v4731 = vpop.xlane.xlu0 %4730
    %v4732 = vmul.f32 %v4728, %v1027
    %v4733 = vmul.f32 %v4731, %v1027
    %v4734 = vsub.f32 %v4720, %v4732
    %v4735 = vsub.f32 %v4723, %v4733
    %v4736 = vmul.f32 %v4734, %v4734
    %v4737 = vmul.f32 %v4735, %v4735
    %v4738 = vsel %vm1002, %v4736, 0.0
    %4739 = vadd.xlane.f32.xlu0 %v4738
    %v4740 = vpop.xlane.xlu0 %4739
    %v4741 = vsel %vm1002, %v4737, 0.0
    %4742 = vadd.xlane.f32.xlu0 %v4741
    %v4743 = vpop.xlane.xlu0 %4742
    %v4744 = vmul.f32 %v4740, %v1027
    %v4745 = vmul.f32 %v4743, %v1027
    %v4746 = vadd.f32 %v4744, 1e-05
    %v4747 = vadd.f32 %v4745, 1e-05
    %v4748 = vrsqrt.pop %v4746
    %v4749 = vrsqrt.pop %v4747
    %v4750 = vmul.f32 %v4734, %v4748
    %v4751 = vmul.f32 %v4735, %v4749
    %v4753 = vlaneseq
    %v4754 = vshrl.u32 %v4753, 7
    %v4755 = vsub.s32 0, %v4754
    %v4756 = vrot.slane %v793, %v4755
    %v4758 = vmul.f32 %v4750, %v4756
    %v4759 = vmul.f32 %v4751, %v4756
    %v4761 = vlaneseq
    %v4762 = vshrl.u32 %v4761, 7
    %v4763 = vsub.s32 0, %v4762
    %v4764 = vrot.slane %v789, %v4763
    %v4766 = vadd.f32 %v4758, %v4764
    %v4767 = vadd.f32 %v4759, %v4764
    %v4768 = vmax.f32 %v4766, 0.0
    %v4769 = vmax.f32 %v4767, 0.0
    %v4770 = vpack.c.bf16 %v4769, %v4768
    %v4772 = vlaneseq
    %v4773 = vshrl.u32 %v4772, 7
    %v4774 = vsub.s32 0, %v4773
    %v4775 = vrot.slane %v788, %v4774
    %v4785 = vunpack.c.l.b16 %v812
    %v4786 = vunpack.c.l.b16 %v813
    %v4787 = vunpack.c.l.b16 %v814
    %v4788 = vunpack.c.l.b16 %v815
    %v4789 = vunpack.c.l.b16 %v816
    %v4790 = vunpack.c.l.b16 %v817
    %v4791 = vunpack.c.l.b16 %v818
    %v4792 = vunpack.c.l.b16 %v819
    %v4793 = vpack.c.b16 %v4786, %v4785
    %v4794 = vpack.c.b16 %v4788, %v4787
    %v4795 = vpack.c.b16 %v4790, %v4789
    %v4796 = vpack.c.b16 %v4792, %v4791
    %v4802 = vsel %vm1002, %v4770, 0
    %4804 = vmatprep.subr.bf16.mxu0 0
    %4805 = vmatpush1.bf16.msra.mxu0 0
    %4806 = vmatprep.subr.bf16.mxu0 0
    %4807 = vmatpush1.bf16.msra.mxu0 0
    %4808 = vmatprep.subr.bf16.mxu0 0
    %4809 = vmatpush1.bf16.msra.mxu0 0
    %4810 = vmatprep.subr.bf16.mxu0 0
    %4811 = vmatpush1.bf16.msra.mxu0 0
    %4812 = vmatprep.subr.bf16.mxu0 0
    %4813 = vmatpush1.bf16.msra.mxu0 %v4796
    %4814 = vmatprep.subr.bf16.mxu0 0
    %4815 = vmatpush1.bf16.msra.mxu0 %v4795
    %4816 = vmatprep.subr.bf16.mxu0 0
    %4817 = vmatpush1.bf16.msra.mxu0 %v4794
    %4818 = vmatprep.subr.bf16.mxu0 0
    %4819 = vmatpush1.bf16.msra.mxu0 %v4793
    %4820 = vmatprep.subr.bf16.mxu0 0
    %4821 = vmatpush2.bf16.msra.mxu0 0
    %4822 = vmatprep.subr.bf16.mxu0 0
    %4823 = vmatpush2.bf16.msra.mxu0 0
    %4824 = vmatprep.subr.bf16.mxu0 0
    %4825 = vmatpush2.bf16.msra.mxu0 0
    %4826 = vmatprep.subr.bf16.mxu0 0
    %4827 = vmatpush2.bf16.msra.mxu0 0
    %4828 = vmatprep.subr.bf16.mxu0 0
    %4829 = vmatpush2.bf16.msra.mxu0 0
    %4830 = vmatprep.subr.bf16.mxu0 0
    %4831 = vmatpush2.bf16.msra.mxu0 0
    %4832 = vmatprep.subr.bf16.mxu0 0
    %4833 = vmatpush2.bf16.msra.mxu0 0
    %4834 = vmatprep.subr.bf16.mxu0 0
    %4835 = vmatpush2.bf16.msra.mxu0 0
    %4836 = vmatprep.mubr.bf16.mxu0 0
    %4837 = vmatmul.mubr.bf16.gmra.mxu0 %v4802
    %v4838 = vpop.f32.mrf.mxu0
    %v4839 = vadd.f32 %v4775, %v4838
    %v4840 = vpop.f32.mrf.mxu0
    %v4841 = vpop.f32.mrf.mxu0
    %v4842 = vadd.f32 %v4775, %v4841
    %v4843 = vpop.f32.mrf.mxu0
    %4844 = vdwg.mxu0
    %v4845 = vsel %vm1002, %v4839, 0.0
    %4846 = vadd.xlane.f32.xlu0 %v4845
    %v4847 = vpop.xlane.xlu0 %4846
    %v4848 = vsel %vm1002, %v4842, 0.0
    %4849 = vadd.xlane.f32.xlu0 %v4848
    %v4850 = vpop.xlane.xlu0 %4849
    %v4851 = vmul.f32 %v4847, %v1027
    %v4852 = vmul.f32 %v4850, %v1027
    %v4853 = vsub.f32 %v4839, %v4851
    %v4854 = vsub.f32 %v4842, %v4852
    %v4855 = vmul.f32 %v4853, %v4853
    %v4856 = vmul.f32 %v4854, %v4854
    %v4857 = vsel %vm1002, %v4855, 0.0
    %4858 = vadd.xlane.f32.xlu0 %v4857
    %v4859 = vpop.xlane.xlu0 %4858
    %v4860 = vsel %vm1002, %v4856, 0.0
    %4861 = vadd.xlane.f32.xlu0 %v4860
    %v4862 = vpop.xlane.xlu0 %4861
    %v4863 = vmul.f32 %v4859, %v1027
    %v4864 = vmul.f32 %v4862, %v1027
    %v4865 = vadd.f32 %v4863, 1e-05
    %v4866 = vadd.f32 %v4864, 1e-05
    %v4867 = vrsqrt.pop %v4865
    %v4868 = vrsqrt.pop %v4866
    %v4869 = vmul.f32 %v4853, %v4867
    %v4870 = vmul.f32 %v4854, %v4868
    %v4872 = vlaneseq
    %v4873 = vshrl.u32 %v4872, 7
    %v4874 = vsub.s32 0, %v4873
    %v4875 = vrot.slane %v794, %v4874
    %v4877 = vmul.f32 %v4869, %v4875
    %v4878 = vmul.f32 %v4870, %v4875
    %v4880 = vlaneseq
    %v4881 = vshrl.u32 %v4880, 7
    %v4882 = vsub.s32 0, %v4881
    %v4883 = vrot.slane %v790, %v4882
    %v4885 = vadd.f32 %v4877, %v4883
    %v4886 = vadd.f32 %v4878, %v4883
    %v4888 = vlaneseq
    %v4889 = vshrl.u32 %v4888, 7
    %v4890 = vsub.s32 0, %v4889
    %v4891 = vrot.slane %v792, %v4890
    %v4909 = vunpack.c.l.b16 %v820
    %v4910 = vunpack.c.l.b16 %v821
    %v4911 = vunpack.c.l.b16 %v822
    %v4912 = vunpack.c.l.b16 %v823
    %v4913 = vunpack.c.l.b16 %v824
    %v4914 = vunpack.c.l.b16 %v825
    %v4915 = vunpack.c.l.b16 %v826
    %v4916 = vunpack.c.l.b16 %v827
    %v4917 = vunpack.c.l.b16 %v828
    %v4918 = vunpack.c.l.b16 %v829
    %v4919 = vunpack.c.l.b16 %v830
    %v4920 = vunpack.c.l.b16 %v831
    %v4921 = vunpack.c.l.b16 %v832
    %v4922 = vunpack.c.l.b16 %v833
    %v4923 = vunpack.c.l.b16 %v834
    %v4924 = vunpack.c.l.b16 %v835
    %v4925 = vpack.c.b16 %v4910, %v4909
    %v4926 = vpack.c.b16 %v4912, %v4911
    %v4927 = vpack.c.b16 %v4914, %v4913
    %v4928 = vpack.c.b16 %v4916, %v4915
    %v4929 = vpack.c.b16 %v4918, %v4917
    %v4930 = vpack.c.b16 %v4920, %v4919
    %v4931 = vpack.c.b16 %v4922, %v4921
    %v4932 = vpack.c.b16 %v4924, %v4923
    %4941 = vmatprep.subr.bf16.mxu0 0
    %4942 = vmatpush1.bf16.msra.mxu0 %v4932
    %4943 = vmatprep.subr.bf16.mxu0 0
    %4944 = vmatpush1.bf16.msra.mxu0 %v4931
    %4945 = vmatprep.subr.bf16.mxu0 0
    %4946 = vmatpush1.bf16.msra.mxu0 %v4930
    %4947 = vmatprep.subr.bf16.mxu0 0
    %4948 = vmatpush1.bf16.msra.mxu0 %v4929
    %4949 = vmatprep.subr.bf16.mxu0 0
    %4950 = vmatpush1.bf16.msra.mxu0 %v4928
    %4951 = vmatprep.subr.bf16.mxu0 0
    %4952 = vmatpush1.bf16.msra.mxu0 %v4927
    %4953 = vmatprep.subr.bf16.mxu0 0
    %4954 = vmatpush1.bf16.msra.mxu0 %v4926
    %4955 = vmatprep.subr.bf16.mxu0 0
    %4956 = vmatpush1.bf16.msra.mxu0 %v4925
    %4957 = vmatprep.subr.bf16.mxu0 0
    %4958 = vmatpush2.bf16.msra.mxu0 0
    %4959 = vmatprep.subr.bf16.mxu0 0
    %4960 = vmatpush2.bf16.msra.mxu0 0
    %4961 = vmatprep.subr.bf16.mxu0 0
    %4962 = vmatpush2.bf16.msra.mxu0 0
    %4963 = vmatprep.subr.bf16.mxu0 0
    %4964 = vmatpush2.bf16.msra.mxu0 0
    %4965 = vmatprep.subr.bf16.mxu0 0
    %4966 = vmatpush2.bf16.msra.mxu0 0
    %4967 = vmatprep.subr.bf16.mxu0 0
    %4968 = vmatpush2.bf16.msra.mxu0 0
    %4969 = vmatprep.subr.bf16.mxu0 0
    %4970 = vmatpush2.bf16.msra.mxu0 0
    %4971 = vmatprep.subr.bf16.mxu0 0
    %4972 = vmatpush2.bf16.msra.mxu0 0
    %4973 = vmatprep.mubr.bf16.mxu0 0
    %4974 = vmatmul.mubr.bf16.gmra.mxu0 %v4630
    %v4975 = vpop.f32.mrf.mxu0
    %v4976 = vadd.f32 %v4891, %v4975
    %v4977 = vpop.f32.mrf.mxu0
    %v4978 = vpop.f32.mrf.mxu0
    %v4979 = vadd.f32 %v4891, %v4978
    %v4980 = vpop.f32.mrf.mxu0
    %4981 = vdwg.mxu0
    %v4982 = vsel %vm1002, %v4976, 0.0
    %4983 = vadd.xlane.f32.xlu0 %v4982
    %v4984 = vpop.xlane.xlu0 %4983
    %v4985 = vsel %vm1002, %v4979, 0.0
    %4986 = vadd.xlane.f32.xlu0 %v4985
    %v4987 = vpop.xlane.xlu0 %4986
    %v4988 = vmul.f32 %v4984, %v1027
    %v4989 = vmul.f32 %v4987, %v1027
    %v4990 = vsub.f32 %v4976, %v4988
    %v4991 = vsub.f32 %v4979, %v4989
    %v4992 = vmul.f32 %v4990, %v4990
    %v4993 = vmul.f32 %v4991, %v4991
    %v4994 = vsel %vm1002, %v4992, 0.0
    %4995 = vadd.xlane.f32.xlu0 %v4994
    %v4996 = vpop.xlane.xlu0 %4995
    %v4997 = vsel %vm1002, %v4993, 0.0
    %4998 = vadd.xlane.f32.xlu0 %v4997
    %v4999 = vpop.xlane.xlu0 %4998
    %v5000 = vmul.f32 %v4996, %v1027
    %v5001 = vmul.f32 %v4999, %v1027
    %v5002 = vadd.f32 %v5000, 1e-05
    %v5003 = vadd.f32 %v5001, 1e-05
    %v5004 = vrsqrt.pop %v5002
    %v5005 = vrsqrt.pop %v5003
    %v5006 = vmul.f32 %v4990, %v5004
    %v5007 = vmul.f32 %v4991, %v5005
    %v5009 = vlaneseq
    %v5010 = vshrl.u32 %v5009, 7
    %v5011 = vsub.s32 0, %v5010
    %v5012 = vrot.slane %v795, %v5011
    %v5014 = vmul.f32 %v5006, %v5012
    %v5015 = vmul.f32 %v5007, %v5012
    %v5017 = vlaneseq
    %v5018 = vshrl.u32 %v5017, 7
    %v5019 = vsub.s32 0, %v5018
    %v5020 = vrot.slane %v791, %v5019
    %v5022 = vadd.f32 %v5014, %v5020
    %v5023 = vadd.f32 %v5015, %v5020
    %v5024 = vadd.f32 %v4885, %v5022
    %v5025 = vadd.f32 %v4886, %v5023
    %v5026 = vmax.f32 %v5024, 0.0
    %v5027 = vmax.f32 %v5025, 0.0
    %v5028 = vsel %vm4494, %v5026, -1e+30
    %v5029 = vsel %vm4495, %v5027, -1e+30
    %v5030 = vsel %vm1002, %v5028, -inf
    %v5031 = vsel %vm1002, %v5029, -inf
    %v5032 = vmax.f32 %v5030, %v5031
    %v5033 = vrot.slane %v5032, 4
    %v5034 = vmax.f32 %v5032, %v5033
    %v5035 = vrot.slane %v5034, 2
    %v5036 = vmax.f32 %v5034, %v5035
    %v5037 = vrot.slane %v5036, 1
    %v5038 = vmax.f32 %v5036, %v5037
    %v5039 = vsel %vm4513, %v5026, -1e+30
    %v5040 = vsel %vm4514, %v5027, -1e+30
    %v5041 = vsel %vm1002, %v5039, -inf
    %v5042 = vsel %vm1002, %v5040, -inf
    %v5043 = vmax.f32 %v5041, %v5042
    %v5044 = vrot.slane %v5043, 4
    %v5045 = vmax.f32 %v5043, %v5044
    %v5046 = vrot.slane %v5045, 2
    %v5047 = vmax.f32 %v5045, %v5046
    %v5048 = vrot.slane %v5047, 1
    %v5049 = vmax.f32 %v5047, %v5048
    %v5050 = vsel %vm4532, %v5026, -1e+30
    %v5051 = vsel %vm4533, %v5027, -1e+30
    %v5052 = vsel %vm1002, %v5050, -inf
    %v5053 = vsel %vm1002, %v5051, -inf
    %v5054 = vmax.f32 %v5052, %v5053
    %v5055 = vrot.slane %v5054, 4
    %v5056 = vmax.f32 %v5054, %v5055
    %v5057 = vrot.slane %v5056, 2
    %v5058 = vmax.f32 %v5056, %v5057
    %v5059 = vrot.slane %v5058, 1
    %v5060 = vmax.f32 %v5058, %v5059
    %v5061 = vsel %vm4551, %v5026, -1e+30
    %v5062 = vsel %vm4552, %v5027, -1e+30
    %v5063 = vsel %vm1002, %v5061, -inf
    %v5064 = vsel %vm1002, %v5062, -inf
    %v5065 = vmax.f32 %v5063, %v5064
    %v5066 = vrot.slane %v5065, 4
    %v5067 = vmax.f32 %v5065, %v5066
    %v5068 = vrot.slane %v5067, 2
    %v5069 = vmax.f32 %v5067, %v5068
    %v5070 = vrot.slane %v5069, 1
    %v5071 = vmax.f32 %v5069, %v5070
    %v5072 = vsel %vm4564, %v5038, %v5049
    %v5073 = vsel %vm4566, %v5072, %v5060
    %v5074 = vsel %vm4568, %v5073, %v5071
    %v5075 = vpack.c.bf16 %v5074, %v5074
    %v5077 = vsel %vm4566, %v5075, 0
    %5079 = vmatprep.subr.bf16.mxu0 0
    %5080 = vmatpush1.bf16.msra.mxu0 0
    %5081 = vmatprep.subr.bf16.mxu0 0
    %5082 = vmatpush1.bf16.msra.mxu0 0
    %5083 = vmatprep.subr.bf16.mxu0 0
    %5084 = vmatpush1.bf16.msra.mxu0 0
    %5085 = vmatprep.subr.bf16.mxu0 0
    %5086 = vmatpush1.bf16.msra.mxu0 0
    %5087 = vmatprep.subr.bf16.mxu0 0
    %5088 = vmatpush1.bf16.msra.mxu0 0
    %5089 = vmatprep.subr.bf16.mxu0 0
    %5090 = vmatpush1.bf16.msra.mxu0 0
    %5091 = vmatprep.subr.bf16.mxu0 0
    %5092 = vmatpush1.bf16.msra.mxu0 0
    %5093 = vmatprep.subr.bf16.mxu0 0
    %5094 = vmatpush1.bf16.msra.mxu0 %v5077
    %5095 = vmatprep.subr.bf16.mxu0 0
    %5096 = vmatpush2.bf16.msra.mxu0 0
    %5097 = vmatprep.subr.bf16.mxu0 0
    %5098 = vmatpush2.bf16.msra.mxu0 0
    %5099 = vmatprep.subr.bf16.mxu0 0
    %5100 = vmatpush2.bf16.msra.mxu0 0
    %5101 = vmatprep.subr.bf16.mxu0 0
    %5102 = vmatpush2.bf16.msra.mxu0 0
    %5103 = vmatprep.subr.bf16.mxu0 0
    %5104 = vmatpush2.bf16.msra.mxu0 0
    %5105 = vmatprep.subr.bf16.mxu0 0
    %5106 = vmatpush2.bf16.msra.mxu0 0
    %5107 = vmatprep.subr.bf16.mxu0 0
    %5108 = vmatpush2.bf16.msra.mxu0 0
    %5109 = vmatprep.subr.bf16.mxu0 0
    %5110 = vmatpush2.bf16.msra.mxu0 0
    %5111 = vmatprep.mubr.bf16.mxu0 0
    %5112 = vmatmul.mubr.bf16.gmra.mxu0 %v4574
    %v5113 = vpop.f32.mrf.mxu0
    %v5114 = vadd.f32 0.0, %v5113
    %v5115 = vpop.f32.mrf.mxu0
    %v5116 = vpop.f32.mrf.mxu0
    %v5117 = vadd.f32 0.0, %v5116
    %v5118 = vpop.f32.mrf.mxu0
    %5119 = vdwg.mxu0
    %5122 = vrot.lane.b32.xlu0 %v5114, 64
    %v5123 = vpop.permute.xlu0 %5122
    %5124 = vrot.lane.b32.xlu0 %v5117, 64
    %v5125 = vpop.permute.xlu0 %5124
    %v5128 = vsel %vm1002, %v5026, %v5123
    %v5129 = vsel %vm1002, %v5027, %v5125
    %v5130 = vpack.c.bf16 %v5129, %v5128
    %v5132 = vlaneseq
    %v5133 = vshrl.u32 %v5132, 7
    %v5134 = vsub.s32 0, %v5133
    %v5135 = vrot.slane %v836, %v5134
    %v5153 = vunpack.c.l.b16 %v845
    %v5154 = vunpack.c.l.b16 %v846
    %v5155 = vunpack.c.l.b16 %v847
    %v5156 = vunpack.c.l.b16 %v848
    %v5157 = vunpack.c.l.b16 %v849
    %v5158 = vunpack.c.l.b16 %v850
    %v5159 = vunpack.c.l.b16 %v851
    %v5160 = vunpack.c.l.b16 %v852
    %v5161 = vunpack.c.l.b16 %v853
    %v5162 = vunpack.c.l.b16 %v854
    %v5163 = vunpack.c.l.b16 %v855
    %v5164 = vunpack.c.l.b16 %v856
    %v5165 = vunpack.c.l.b16 %v857
    %v5166 = vunpack.c.l.b16 %v858
    %v5167 = vunpack.c.l.b16 %v859
    %v5168 = vunpack.c.l.b16 %v860
    %v5169 = vpack.c.b16 %v5154, %v5153
    %v5170 = vpack.c.b16 %v5156, %v5155
    %v5171 = vpack.c.b16 %v5158, %v5157
    %v5172 = vpack.c.b16 %v5160, %v5159
    %v5173 = vpack.c.b16 %v5162, %v5161
    %v5174 = vpack.c.b16 %v5164, %v5163
    %v5175 = vpack.c.b16 %v5166, %v5165
    %v5176 = vpack.c.b16 %v5168, %v5167
    %5185 = vmatprep.subr.bf16.mxu0 0
    %5186 = vmatpush1.bf16.msra.mxu0 %v5176
    %5187 = vmatprep.subr.bf16.mxu0 0
    %5188 = vmatpush1.bf16.msra.mxu0 %v5175
    %5189 = vmatprep.subr.bf16.mxu0 0
    %5190 = vmatpush1.bf16.msra.mxu0 %v5174
    %5191 = vmatprep.subr.bf16.mxu0 0
    %5192 = vmatpush1.bf16.msra.mxu0 %v5173
    %5193 = vmatprep.subr.bf16.mxu0 0
    %5194 = vmatpush1.bf16.msra.mxu0 %v5172
    %5195 = vmatprep.subr.bf16.mxu0 0
    %5196 = vmatpush1.bf16.msra.mxu0 %v5171
    %5197 = vmatprep.subr.bf16.mxu0 0
    %5198 = vmatpush1.bf16.msra.mxu0 %v5170
    %5199 = vmatprep.subr.bf16.mxu0 0
    %5200 = vmatpush1.bf16.msra.mxu0 %v5169
    %5201 = vmatprep.subr.bf16.mxu0 0
    %5202 = vmatpush2.bf16.msra.mxu0 0
    %5203 = vmatprep.subr.bf16.mxu0 0
    %5204 = vmatpush2.bf16.msra.mxu0 0
    %5205 = vmatprep.subr.bf16.mxu0 0
    %5206 = vmatpush2.bf16.msra.mxu0 0
    %5207 = vmatprep.subr.bf16.mxu0 0
    %5208 = vmatpush2.bf16.msra.mxu0 0
    %5209 = vmatprep.subr.bf16.mxu0 0
    %5210 = vmatpush2.bf16.msra.mxu0 0
    %5211 = vmatprep.subr.bf16.mxu0 0
    %5212 = vmatpush2.bf16.msra.mxu0 0
    %5213 = vmatprep.subr.bf16.mxu0 0
    %5214 = vmatpush2.bf16.msra.mxu0 0
    %5215 = vmatprep.subr.bf16.mxu0 0
    %5216 = vmatpush2.bf16.msra.mxu0 0
    %5217 = vmatprep.mubr.bf16.mxu0 0
    %5218 = vmatmul.mubr.bf16.gmra.mxu0 %v5130
    %v5219 = vpop.f32.mrf.mxu0
    %v5220 = vadd.f32 %v5135, %v5219
    %v5221 = vpop.f32.mrf.mxu0
    %v5222 = vpop.f32.mrf.mxu0
    %v5223 = vadd.f32 %v5135, %v5222
    %v5224 = vpop.f32.mrf.mxu0
    %5225 = vdwg.mxu0
    %v5226 = vsel %vm1002, %v5220, 0.0
    %5227 = vadd.xlane.f32.xlu0 %v5226
    %v5228 = vpop.xlane.xlu0 %5227
    %v5229 = vsel %vm1002, %v5223, 0.0
    %5230 = vadd.xlane.f32.xlu0 %v5229
    %v5231 = vpop.xlane.xlu0 %5230
    %v5232 = vmul.f32 %v5228, %v1027
    %v5233 = vmul.f32 %v5231, %v1027
    %v5234 = vsub.f32 %v5220, %v5232
    %v5235 = vsub.f32 %v5223, %v5233
    %v5236 = vmul.f32 %v5234, %v5234
    %v5237 = vmul.f32 %v5235, %v5235
    %v5238 = vsel %vm1002, %v5236, 0.0
    %5239 = vadd.xlane.f32.xlu0 %v5238
    %v5240 = vpop.xlane.xlu0 %5239
    %v5241 = vsel %vm1002, %v5237, 0.0
    %5242 = vadd.xlane.f32.xlu0 %v5241
    %v5243 = vpop.xlane.xlu0 %5242
    %v5244 = vmul.f32 %v5240, %v1027
    %v5245 = vmul.f32 %v5243, %v1027
    %v5246 = vadd.f32 %v5244, 1e-05
    %v5247 = vadd.f32 %v5245, 1e-05
    %v5248 = vrsqrt.pop %v5246
    %v5249 = vrsqrt.pop %v5247
    %v5250 = vmul.f32 %v5234, %v5248
    %v5251 = vmul.f32 %v5235, %v5249
    %v5253 = vlaneseq
    %v5254 = vshrl.u32 %v5253, 7
    %v5255 = vsub.s32 0, %v5254
    %v5256 = vrot.slane %v842, %v5255
    %v5258 = vmul.f32 %v5250, %v5256
    %v5259 = vmul.f32 %v5251, %v5256
    %v5261 = vlaneseq
    %v5262 = vshrl.u32 %v5261, 7
    %v5263 = vsub.s32 0, %v5262
    %v5264 = vrot.slane %v838, %v5263
    %v5266 = vadd.f32 %v5258, %v5264
    %v5267 = vadd.f32 %v5259, %v5264
    %v5268 = vmax.f32 %v5266, 0.0
    %v5269 = vmax.f32 %v5267, 0.0
    %v5270 = vpack.c.bf16 %v5269, %v5268
    %v5272 = vlaneseq
    %v5273 = vshrl.u32 %v5272, 7
    %v5274 = vsub.s32 0, %v5273
    %v5275 = vrot.slane %v837, %v5274
    %v5285 = vunpack.c.l.b16 %v861
    %v5286 = vunpack.c.l.b16 %v862
    %v5287 = vunpack.c.l.b16 %v863
    %v5288 = vunpack.c.l.b16 %v864
    %v5289 = vunpack.c.l.b16 %v865
    %v5290 = vunpack.c.l.b16 %v866
    %v5291 = vunpack.c.l.b16 %v867
    %v5292 = vunpack.c.l.b16 %v868
    %v5293 = vpack.c.b16 %v5286, %v5285
    %v5294 = vpack.c.b16 %v5288, %v5287
    %v5295 = vpack.c.b16 %v5290, %v5289
    %v5296 = vpack.c.b16 %v5292, %v5291
    %v5302 = vsel %vm1002, %v5270, 0
    %5304 = vmatprep.subr.bf16.mxu0 0
    %5305 = vmatpush1.bf16.msra.mxu0 0
    %5306 = vmatprep.subr.bf16.mxu0 0
    %5307 = vmatpush1.bf16.msra.mxu0 0
    %5308 = vmatprep.subr.bf16.mxu0 0
    %5309 = vmatpush1.bf16.msra.mxu0 0
    %5310 = vmatprep.subr.bf16.mxu0 0
    %5311 = vmatpush1.bf16.msra.mxu0 0
    %5312 = vmatprep.subr.bf16.mxu0 0
    %5313 = vmatpush1.bf16.msra.mxu0 %v5296
    %5314 = vmatprep.subr.bf16.mxu0 0
    %5315 = vmatpush1.bf16.msra.mxu0 %v5295
    %5316 = vmatprep.subr.bf16.mxu0 0
    %5317 = vmatpush1.bf16.msra.mxu0 %v5294
    %5318 = vmatprep.subr.bf16.mxu0 0
    %5319 = vmatpush1.bf16.msra.mxu0 %v5293
    %5320 = vmatprep.subr.bf16.mxu0 0
    %5321 = vmatpush2.bf16.msra.mxu0 0
    %5322 = vmatprep.subr.bf16.mxu0 0
    %5323 = vmatpush2.bf16.msra.mxu0 0
    %5324 = vmatprep.subr.bf16.mxu0 0
    %5325 = vmatpush2.bf16.msra.mxu0 0
    %5326 = vmatprep.subr.bf16.mxu0 0
    %5327 = vmatpush2.bf16.msra.mxu0 0
    %5328 = vmatprep.subr.bf16.mxu0 0
    %5329 = vmatpush2.bf16.msra.mxu0 0
    %5330 = vmatprep.subr.bf16.mxu0 0
    %5331 = vmatpush2.bf16.msra.mxu0 0
    %5332 = vmatprep.subr.bf16.mxu0 0
    %5333 = vmatpush2.bf16.msra.mxu0 0
    %5334 = vmatprep.subr.bf16.mxu0 0
    %5335 = vmatpush2.bf16.msra.mxu0 0
    %5336 = vmatprep.mubr.bf16.mxu0 0
    %5337 = vmatmul.mubr.bf16.gmra.mxu0 %v5302
    %v5338 = vpop.f32.mrf.mxu0
    %v5339 = vadd.f32 %v5275, %v5338
    %v5340 = vpop.f32.mrf.mxu0
    %v5341 = vpop.f32.mrf.mxu0
    %v5342 = vadd.f32 %v5275, %v5341
    %v5343 = vpop.f32.mrf.mxu0
    %5344 = vdwg.mxu0
    %v5345 = vsel %vm1002, %v5339, 0.0
    %5346 = vadd.xlane.f32.xlu0 %v5345
    %v5347 = vpop.xlane.xlu0 %5346
    %v5348 = vsel %vm1002, %v5342, 0.0
    %5349 = vadd.xlane.f32.xlu0 %v5348
    %v5350 = vpop.xlane.xlu0 %5349
    %v5351 = vmul.f32 %v5347, %v1027
    %v5352 = vmul.f32 %v5350, %v1027
    %v5353 = vsub.f32 %v5339, %v5351
    %v5354 = vsub.f32 %v5342, %v5352
    %v5355 = vmul.f32 %v5353, %v5353
    %v5356 = vmul.f32 %v5354, %v5354
    %v5357 = vsel %vm1002, %v5355, 0.0
    %5358 = vadd.xlane.f32.xlu0 %v5357
    %v5359 = vpop.xlane.xlu0 %5358
    %v5360 = vsel %vm1002, %v5356, 0.0
    %5361 = vadd.xlane.f32.xlu0 %v5360
    %v5362 = vpop.xlane.xlu0 %5361
    %v5363 = vmul.f32 %v5359, %v1027
    %v5364 = vmul.f32 %v5362, %v1027
    %v5365 = vadd.f32 %v5363, 1e-05
    %v5366 = vadd.f32 %v5364, 1e-05
    %v5367 = vrsqrt.pop %v5365
    %v5368 = vrsqrt.pop %v5366
    %v5369 = vmul.f32 %v5353, %v5367
    %v5370 = vmul.f32 %v5354, %v5368
    %v5372 = vlaneseq
    %v5373 = vshrl.u32 %v5372, 7
    %v5374 = vsub.s32 0, %v5373
    %v5375 = vrot.slane %v843, %v5374
    %v5377 = vmul.f32 %v5369, %v5375
    %v5378 = vmul.f32 %v5370, %v5375
    %v5380 = vlaneseq
    %v5381 = vshrl.u32 %v5380, 7
    %v5382 = vsub.s32 0, %v5381
    %v5383 = vrot.slane %v839, %v5382
    %v5385 = vadd.f32 %v5377, %v5383
    %v5386 = vadd.f32 %v5378, %v5383
    %v5388 = vlaneseq
    %v5389 = vshrl.u32 %v5388, 7
    %v5390 = vsub.s32 0, %v5389
    %v5391 = vrot.slane %v841, %v5390
    %v5409 = vunpack.c.l.b16 %v869
    %v5410 = vunpack.c.l.b16 %v870
    %v5411 = vunpack.c.l.b16 %v871
    %v5412 = vunpack.c.l.b16 %v872
    %v5413 = vunpack.c.l.b16 %v873
    %v5414 = vunpack.c.l.b16 %v874
    %v5415 = vunpack.c.l.b16 %v875
    %v5416 = vunpack.c.l.b16 %v876
    %v5417 = vunpack.c.l.b16 %v877
    %v5418 = vunpack.c.l.b16 %v878
    %v5419 = vunpack.c.l.b16 %v879
    %v5420 = vunpack.c.l.b16 %v880
    %v5421 = vunpack.c.l.b16 %v881
    %v5422 = vunpack.c.l.b16 %v882
    %v5423 = vunpack.c.l.b16 %v883
    %v5424 = vunpack.c.l.b16 %v884
    %v5425 = vpack.c.b16 %v5410, %v5409
    %v5426 = vpack.c.b16 %v5412, %v5411
    %v5427 = vpack.c.b16 %v5414, %v5413
    %v5428 = vpack.c.b16 %v5416, %v5415
    %v5429 = vpack.c.b16 %v5418, %v5417
    %v5430 = vpack.c.b16 %v5420, %v5419
    %v5431 = vpack.c.b16 %v5422, %v5421
    %v5432 = vpack.c.b16 %v5424, %v5423
    %5441 = vmatprep.subr.bf16.mxu0 0
    %5442 = vmatpush1.bf16.msra.mxu0 %v5432
    %5443 = vmatprep.subr.bf16.mxu0 0
    %5444 = vmatpush1.bf16.msra.mxu0 %v5431
    %5445 = vmatprep.subr.bf16.mxu0 0
    %5446 = vmatpush1.bf16.msra.mxu0 %v5430
    %5447 = vmatprep.subr.bf16.mxu0 0
    %5448 = vmatpush1.bf16.msra.mxu0 %v5429
    %5449 = vmatprep.subr.bf16.mxu0 0
    %5450 = vmatpush1.bf16.msra.mxu0 %v5428
    %5451 = vmatprep.subr.bf16.mxu0 0
    %5452 = vmatpush1.bf16.msra.mxu0 %v5427
    %5453 = vmatprep.subr.bf16.mxu0 0
    %5454 = vmatpush1.bf16.msra.mxu0 %v5426
    %5455 = vmatprep.subr.bf16.mxu0 0
    %5456 = vmatpush1.bf16.msra.mxu0 %v5425
    %5457 = vmatprep.subr.bf16.mxu0 0
    %5458 = vmatpush2.bf16.msra.mxu0 0
    %5459 = vmatprep.subr.bf16.mxu0 0
    %5460 = vmatpush2.bf16.msra.mxu0 0
    %5461 = vmatprep.subr.bf16.mxu0 0
    %5462 = vmatpush2.bf16.msra.mxu0 0
    %5463 = vmatprep.subr.bf16.mxu0 0
    %5464 = vmatpush2.bf16.msra.mxu0 0
    %5465 = vmatprep.subr.bf16.mxu0 0
    %5466 = vmatpush2.bf16.msra.mxu0 0
    %5467 = vmatprep.subr.bf16.mxu0 0
    %5468 = vmatpush2.bf16.msra.mxu0 0
    %5469 = vmatprep.subr.bf16.mxu0 0
    %5470 = vmatpush2.bf16.msra.mxu0 0
    %5471 = vmatprep.subr.bf16.mxu0 0
    %5472 = vmatpush2.bf16.msra.mxu0 0
    %5473 = vmatprep.mubr.bf16.mxu0 0
    %5474 = vmatmul.mubr.bf16.gmra.mxu0 %v5130
    %v5475 = vpop.f32.mrf.mxu0
    %v5476 = vadd.f32 %v5391, %v5475
    %v5477 = vpop.f32.mrf.mxu0
    %v5478 = vpop.f32.mrf.mxu0
    %v5479 = vadd.f32 %v5391, %v5478
    %v5480 = vpop.f32.mrf.mxu0
    %5481 = vdwg.mxu0
    %v5482 = vsel %vm1002, %v5476, 0.0
    %5483 = vadd.xlane.f32.xlu0 %v5482
    %v5484 = vpop.xlane.xlu0 %5483
    %v5485 = vsel %vm1002, %v5479, 0.0
    %5486 = vadd.xlane.f32.xlu0 %v5485
    %v5487 = vpop.xlane.xlu0 %5486
    %v5488 = vmul.f32 %v5484, %v1027
    %v5489 = vmul.f32 %v5487, %v1027
    %v5490 = vsub.f32 %v5476, %v5488
    %v5491 = vsub.f32 %v5479, %v5489
    %v5492 = vmul.f32 %v5490, %v5490
    %v5493 = vmul.f32 %v5491, %v5491
    %v5494 = vsel %vm1002, %v5492, 0.0
    %5495 = vadd.xlane.f32.xlu0 %v5494
    %v5496 = vpop.xlane.xlu0 %5495
    %v5497 = vsel %vm1002, %v5493, 0.0
    %5498 = vadd.xlane.f32.xlu0 %v5497
    %v5499 = vpop.xlane.xlu0 %5498
    %v5500 = vmul.f32 %v5496, %v1027
    %v5501 = vmul.f32 %v5499, %v1027
    %v5502 = vadd.f32 %v5500, 1e-05
    %v5503 = vadd.f32 %v5501, 1e-05
    %v5504 = vrsqrt.pop %v5502
    %v5505 = vrsqrt.pop %v5503
    %v5506 = vmul.f32 %v5490, %v5504
    %v5507 = vmul.f32 %v5491, %v5505
    %v5509 = vlaneseq
    %v5510 = vshrl.u32 %v5509, 7
    %v5511 = vsub.s32 0, %v5510
    %v5512 = vrot.slane %v844, %v5511
    %v5514 = vmul.f32 %v5506, %v5512
    %v5515 = vmul.f32 %v5507, %v5512
    %v5517 = vlaneseq
    %v5518 = vshrl.u32 %v5517, 7
    %v5519 = vsub.s32 0, %v5518
    %v5520 = vrot.slane %v840, %v5519
    %v5522 = vadd.f32 %v5514, %v5520
    %v5523 = vadd.f32 %v5515, %v5520
    %v5524 = vadd.f32 %v5385, %v5522
    %v5525 = vadd.f32 %v5386, %v5523
    %v5526 = vmax.f32 %v5524, 0.0
    %v5527 = vmax.f32 %v5525, 0.0
    %v5528 = vsel %vm4494, %v5526, -1e+30
    %v5529 = vsel %vm4495, %v5527, -1e+30
    %v5530 = vsel %vm1002, %v5528, -inf
    %v5531 = vsel %vm1002, %v5529, -inf
    %v5532 = vmax.f32 %v5530, %v5531
    %v5533 = vrot.slane %v5532, 4
    %v5534 = vmax.f32 %v5532, %v5533
    %v5535 = vrot.slane %v5534, 2
    %v5536 = vmax.f32 %v5534, %v5535
    %v5537 = vrot.slane %v5536, 1
    %v5538 = vmax.f32 %v5536, %v5537
    %v5539 = vsel %vm4513, %v5526, -1e+30
    %v5540 = vsel %vm4514, %v5527, -1e+30
    %v5541 = vsel %vm1002, %v5539, -inf
    %v5542 = vsel %vm1002, %v5540, -inf
    %v5543 = vmax.f32 %v5541, %v5542
    %v5544 = vrot.slane %v5543, 4
    %v5545 = vmax.f32 %v5543, %v5544
    %v5546 = vrot.slane %v5545, 2
    %v5547 = vmax.f32 %v5545, %v5546
    %v5548 = vrot.slane %v5547, 1
    %v5549 = vmax.f32 %v5547, %v5548
    %v5550 = vsel %vm4532, %v5526, -1e+30
    %v5551 = vsel %vm4533, %v5527, -1e+30
    %v5552 = vsel %vm1002, %v5550, -inf
    %v5553 = vsel %vm1002, %v5551, -inf
    %v5554 = vmax.f32 %v5552, %v5553
    %v5555 = vrot.slane %v5554, 4
    %v5556 = vmax.f32 %v5554, %v5555
    %v5557 = vrot.slane %v5556, 2
    %v5558 = vmax.f32 %v5556, %v5557
    %v5559 = vrot.slane %v5558, 1
    %v5560 = vmax.f32 %v5558, %v5559
    %v5561 = vsel %vm4551, %v5526, -1e+30
    %v5562 = vsel %vm4552, %v5527, -1e+30
    %v5563 = vsel %vm1002, %v5561, -inf
    %v5564 = vsel %vm1002, %v5562, -inf
    %v5565 = vmax.f32 %v5563, %v5564
    %v5566 = vrot.slane %v5565, 4
    %v5567 = vmax.f32 %v5565, %v5566
    %v5568 = vrot.slane %v5567, 2
    %v5569 = vmax.f32 %v5567, %v5568
    %v5570 = vrot.slane %v5569, 1
    %v5571 = vmax.f32 %v5569, %v5570
    %v5572 = vsel %vm4564, %v5538, %v5549
    %v5573 = vsel %vm4566, %v5572, %v5560
    %v5574 = vsel %vm4568, %v5573, %v5571
    %v5575 = vpack.c.bf16 %v5574, %v5574
    %v5577 = vsel %vm4566, %v5575, 0
    %5579 = vmatprep.subr.bf16.mxu0 0
    %5580 = vmatpush1.bf16.msra.mxu0 0
    %5581 = vmatprep.subr.bf16.mxu0 0
    %5582 = vmatpush1.bf16.msra.mxu0 0
    %5583 = vmatprep.subr.bf16.mxu0 0
    %5584 = vmatpush1.bf16.msra.mxu0 0
    %5585 = vmatprep.subr.bf16.mxu0 0
    %5586 = vmatpush1.bf16.msra.mxu0 0
    %5587 = vmatprep.subr.bf16.mxu0 0
    %5588 = vmatpush1.bf16.msra.mxu0 0
    %5589 = vmatprep.subr.bf16.mxu0 0
    %5590 = vmatpush1.bf16.msra.mxu0 0
    %5591 = vmatprep.subr.bf16.mxu0 0
    %5592 = vmatpush1.bf16.msra.mxu0 0
    %5593 = vmatprep.subr.bf16.mxu0 0
    %5594 = vmatpush1.bf16.msra.mxu0 %v5577
    %5595 = vmatprep.subr.bf16.mxu0 0
    %5596 = vmatpush2.bf16.msra.mxu0 0
    %5597 = vmatprep.subr.bf16.mxu0 0
    %5598 = vmatpush2.bf16.msra.mxu0 0
    %5599 = vmatprep.subr.bf16.mxu0 0
    %5600 = vmatpush2.bf16.msra.mxu0 0
    %5601 = vmatprep.subr.bf16.mxu0 0
    %5602 = vmatpush2.bf16.msra.mxu0 0
    %5603 = vmatprep.subr.bf16.mxu0 0
    %5604 = vmatpush2.bf16.msra.mxu0 0
    %5605 = vmatprep.subr.bf16.mxu0 0
    %5606 = vmatpush2.bf16.msra.mxu0 0
    %5607 = vmatprep.subr.bf16.mxu0 0
    %5608 = vmatpush2.bf16.msra.mxu0 0
    %5609 = vmatprep.subr.bf16.mxu0 0
    %5610 = vmatpush2.bf16.msra.mxu0 0
    %5611 = vmatprep.mubr.bf16.mxu0 0
    %5612 = vmatmul.mubr.bf16.gmra.mxu0 %v4574
    %v5613 = vpop.f32.mrf.mxu0
    %v5614 = vadd.f32 0.0, %v5613
    %v5615 = vpop.f32.mrf.mxu0
    %v5616 = vpop.f32.mrf.mxu0
    %v5617 = vadd.f32 0.0, %v5616
    %v5618 = vpop.f32.mrf.mxu0
    %5619 = vdwg.mxu0
    %5622 = vrot.lane.b32.xlu0 %v5614, 64
    %v5623 = vpop.permute.xlu0 %5622
    %5624 = vrot.lane.b32.xlu0 %v5617, 64
    %v5625 = vpop.permute.xlu0 %5624
    %v5628 = vsel %vm1002, %v5526, %v5623
    %v5629 = vsel %vm1002, %v5527, %v5625
    %v5630 = vpack.c.bf16 %v5629, %v5628
    %v5632 = vlaneseq
    %v5633 = vshrl.u32 %v5632, 7
    %v5634 = vsub.s32 0, %v5633
    %v5635 = vrot.slane %v901, %v5634
    %v5653 = vunpack.c.l.b16 %v885
    %v5654 = vunpack.c.l.b16 %v886
    %v5655 = vunpack.c.l.b16 %v887
    %v5656 = vunpack.c.l.b16 %v888
    %v5657 = vunpack.c.l.b16 %v889
    %v5658 = vunpack.c.l.b16 %v890
    %v5659 = vunpack.c.l.b16 %v891
    %v5660 = vunpack.c.l.b16 %v892
    %v5661 = vunpack.c.l.b16 %v893
    %v5662 = vunpack.c.l.b16 %v894
    %v5663 = vunpack.c.l.b16 %v895
    %v5664 = vunpack.c.l.b16 %v896
    %v5665 = vunpack.c.l.b16 %v897
    %v5666 = vunpack.c.l.b16 %v898
    %v5667 = vunpack.c.l.b16 %v899
    %v5668 = vunpack.c.l.b16 %v900
    %v5669 = vpack.c.b16 %v5654, %v5653
    %v5670 = vpack.c.b16 %v5656, %v5655
    %v5671 = vpack.c.b16 %v5658, %v5657
    %v5672 = vpack.c.b16 %v5660, %v5659
    %v5673 = vpack.c.b16 %v5662, %v5661
    %v5674 = vpack.c.b16 %v5664, %v5663
    %v5675 = vpack.c.b16 %v5666, %v5665
    %v5676 = vpack.c.b16 %v5668, %v5667
    %5685 = vmatprep.subr.bf16.mxu0 0
    %5686 = vmatpush1.bf16.msra.mxu0 %v5676
    %5687 = vmatprep.subr.bf16.mxu0 0
    %5688 = vmatpush1.bf16.msra.mxu0 %v5675
    %5689 = vmatprep.subr.bf16.mxu0 0
    %5690 = vmatpush1.bf16.msra.mxu0 %v5674
    %5691 = vmatprep.subr.bf16.mxu0 0
    %5692 = vmatpush1.bf16.msra.mxu0 %v5673
    %5693 = vmatprep.subr.bf16.mxu0 0
    %5694 = vmatpush1.bf16.msra.mxu0 %v5672
    %5695 = vmatprep.subr.bf16.mxu0 0
    %5696 = vmatpush1.bf16.msra.mxu0 %v5671
    %5697 = vmatprep.subr.bf16.mxu0 0
    %5698 = vmatpush1.bf16.msra.mxu0 %v5670
    %5699 = vmatprep.subr.bf16.mxu0 0
    %5700 = vmatpush1.bf16.msra.mxu0 %v5669
    %5701 = vmatprep.subr.bf16.mxu0 0
    %5702 = vmatpush2.bf16.msra.mxu0 0
    %5703 = vmatprep.subr.bf16.mxu0 0
    %5704 = vmatpush2.bf16.msra.mxu0 0
    %5705 = vmatprep.subr.bf16.mxu0 0
    %5706 = vmatpush2.bf16.msra.mxu0 0
    %5707 = vmatprep.subr.bf16.mxu0 0
    %5708 = vmatpush2.bf16.msra.mxu0 0
    %5709 = vmatprep.subr.bf16.mxu0 0
    %5710 = vmatpush2.bf16.msra.mxu0 0
    %5711 = vmatprep.subr.bf16.mxu0 0
    %5712 = vmatpush2.bf16.msra.mxu0 0
    %5713 = vmatprep.subr.bf16.mxu0 0
    %5714 = vmatpush2.bf16.msra.mxu0 0
    %5715 = vmatprep.subr.bf16.mxu0 0
    %5716 = vmatpush2.bf16.msra.mxu0 0
    %5717 = vmatprep.mubr.bf16.mxu0 0
    %5718 = vmatmul.mubr.bf16.gmra.mxu0 %v5630
    %v5719 = vpop.f32.mrf.mxu0
    %v5720 = vadd.f32 %v5635, %v5719
    %v5721 = vpop.f32.mrf.mxu0
    %v5722 = vpop.f32.mrf.mxu0
    %v5723 = vadd.f32 %v5635, %v5722
    %v5724 = vpop.f32.mrf.mxu0
    %5725 = vdwg.mxu0
    %v5726 = vmul.f32 %v5720, %v5720
    %v5727 = vmul.f32 %v5723, %v5723
    %v5728 = vsel %vm1002, %v5726, 0.0
    %5729 = vadd.xlane.f32.xlu0 %v5728
    %v5730 = vpop.xlane.xlu0 %5729
    %v5731 = vsel %vm1002, %v5727, 0.0
    %5732 = vadd.xlane.f32.xlu0 %v5731
    %v5733 = vpop.xlane.xlu0 %5732
    %v5734 = vmax.f32 %v5730, 1e-24
    %v5735 = vmax.f32 %v5733, 1e-24
    %v5736 = vrsqrt.pop %v5734
    %v5737 = vrsqrt.pop %v5735
    %v5738 = vmul.f32 %v5720, %v5736
    %v5739 = vmul.f32 %v5723, %v5737
    %v5740 = vld [vmem:[%s5] sm:$0xff]
    %v5741 = vld [vmem:[%s5 + $0x8] sm:$0xff]
    %5744 = vrot.lane.b32.xlu0 %v5740, 64
    %v5745 = vpop.permute.xlu0 %5744
    %5746 = vrot.lane.b32.xlu0 %v5741, 64
    %v5747 = vpop.permute.xlu0 %5746
    %v5750 = vsel %vm1002, %v5738, %v5745
    %v5751 = vsel %vm1002, %v5739, %v5747
    %5752 = vst [vmem:[#allocation46] sm:$0xff] %v5750
    %5753 = vst [vmem:[#allocation46 + $0x8] sm:$0xff] %v5751
    // Predicated region
    $region414: #{tpu_custom_call.1} parent=1 // pred_check
      _
    $region415: #{tpu_custom_call.1} parent=1 // pred_check_branch
      %5755 = sbr.rel (0) target = $region417
    $region416: #{tpu_custom_call.1} parent=1 // pred_region
      %s5757 = ssub.s32 256, 256
      %5758 = vsyncadd [#allocation4], %s5757
      %s5759 = sshll.u32 [#allocation46], 4
      %s5760 = int_to_ptr.vmem [resolvable:$true] %s5759
      %5765 = dma.vmem_to_hbm [thread:$0]  %s5760, 256, %s151, [#allocation4], 128, 128, 8
    $region417: #{tpu_custom_call.1} parent=1 // pred_fallthru
      _
    // Predicated region
    $region418: #{tpu_custom_call.1} parent=1 // pred_check
      _
    $region419: #{tpu_custom_call.1} parent=1 // pred_check_branch
      %5767 = sbr.rel (0) target = $region421
    $region420: #{tpu_custom_call.1} parent=1 // pred_region
      %5768 = dma.done [#allocation4], 256
    $region421: #{tpu_custom_call.1} parent=1 // pred_fallthru
      _
    %5769 = vsyncpa [#allocation3], 1
    %5770 = vsyncpa [#allocation6], 1
    %5771 = vsyncpa [#allocation9], 1
    %5772 = vsyncpa [#allocation12], 1
    %5773 = vsyncpa [#allocation15], 1
    %5774 = vsyncpa [#allocation18], 1
    %5775 = vsyncpa [#allocation21], 1
    %5776 = vsyncpa [#allocation24], 1
    %5777 = vsyncpa [#allocation27], 1
    %5778 = vsyncpa [#allocation30], 1
    %5779 = vsyncpa [#allocation33], 1
    %5780 = vsyncpa [#allocation36], 1
    %5781 = vsyncpa [#allocation39], 1
    %5782 = vsyncpa [#allocation42], 1
    %5783 = vsyncpa [#allocation45], 1
    %5784 = vsyncpa [#allocation4], 1

</llo_original>
